<compile_context>
chip_gen: v5e
topology: v5e:2x2
jax: 0.10.0
libtpu: 0.0.40
codegen_flags: <defaults>
</compile_context>

<pallas_src>
import functools
import jax
import jax.numpy as jnp
from jax.experimental import pallas as pl
from jax.experimental.pallas import tpu as pltpu

# ---- small, module-consistent config (scaled down from n_embed=384, n_head=6) ----
B = 2          # batch
T = 128        # sequence length (<= chunk_size causal window)
C = 128        # n_embed
H = 4          # n_head
HS = C // H    # head_size
HID = 4 * C    # feed-forward hidden
EPS = 1e-5     # torch.nn.LayerNorm default
FF_TILE = 128  # feed-forward hidden-dim tile (lane-aligned)


def _layernorm(z, gamma, beta):
    mu = jnp.mean(z, axis=-1, keepdims=True)
    var = jnp.mean((z - mu) ** 2, axis=-1, keepdims=True)
    return (z - mu) * jax.lax.rsqrt(var + EPS) * gamma + beta


def block_kernel(x_ref,
                 ln1g_ref, ln1b_ref,
                 wqkv_ref,
                 wproj_ref, bproj_ref,
                 ln2g_ref, ln2b_ref,
                 w1_ref, b1_ref, w2_ref, b2_ref,
                 o_ref,
                 attn_scratch,
                 *, batch, seq, num_heads, head_size):
    x = x_ref[...]                          # (B*T, C) fp32, all batches flattened
    bt, c = x.shape

    # ---- LayerNorm 1 (fp32, VPU) ----
    h = _layernorm(x, ln1g_ref[0], ln1b_ref[0])

    # ---- fused QKV projection: one (B*T,C)x(C,3C) bf16 matmul, fp32 accumulation ----
    # softmax scale is pre-folded into the Q columns of wqkv, so the result can be
    # cast to bf16 immediately (halves the live footprint across the head loop).
    qkv = jnp.dot(h.astype(jnp.bfloat16), wqkv_ref[...],
                  preferred_element_type=jnp.float32).astype(jnp.bfloat16)  # (B*T, 3C)

    # ---- causal mask as additive 0 / -1e30 bias (finite -> no inf/NaN risk) ----
    row = jax.lax.broadcasted_iota(jnp.int32, (seq, seq), 0)
    col = jax.lax.broadcasted_iota(jnp.int32, (seq, seq), 1)
    neg_bias = jnp.where(col <= row, 0.0, -1e30).astype(jnp.float32)

    # ---- attention: loop batches / heads (static unroll; both are small) ----
    for b in range(batch):                  # rows b*seq : (b+1)*seq are sublane-aligned
        rows = slice(b * seq, (b + 1) * seq)
        head_outs = []
        for hd in range(num_heads):
            q_sl = slice(hd * head_size, (hd + 1) * head_size)
            k_sl = slice(c + hd * head_size, c + (hd + 1) * head_size)
            v_sl = slice(2 * c + hd * head_size, 2 * c + (hd + 1) * head_size)

            qh = qkv[rows, q_sl]            # (T, HS) bf16, scale already folded in
            kh = qkv[rows, k_sl]
            vh = qkv[rows, v_sl]

            # q @ k^T without an explicit transpose: contract last dims of both operands
            s = jax.lax.dot_general(qh, kh, (((1,), (1,)), ((), ())),
                                    preferred_element_type=jnp.float32)   # (T, T) fp32
            s = s + neg_bias

            # stable softmax; divide replaced with EUP approx reciprocal
            s = s - jnp.max(s, axis=-1, keepdims=True)
            e = jnp.exp(s)
            w = e * pl.reciprocal(jnp.sum(e, axis=-1, keepdims=True), approx=True)
            # dropout on attention weights = identity (eval mode)

            head_outs.append(jnp.dot(w.astype(jnp.bfloat16), vh,
                                     preferred_element_type=jnp.float32))  # (T, HS)

        # concat heads -> (T, C) and store bf16 into VMEM scratch (full-lane-width store)
        attn_scratch[rows, :] = jnp.concatenate(head_outs, axis=-1).astype(jnp.bfloat16)

    # ---- single K=C output projection over all B*T rows (no per-head K=32 matmuls) ----
    sa = jnp.dot(attn_scratch[...], wproj_ref[...],
                 preferred_element_type=jnp.float32)                       # (B*T, C)
    x1 = x + sa + bproj_ref[0]              # residual 1 (fp32); proj dropout = identity

    # ---- LayerNorm 2 + FeedForward (hidden dim tiled; 4C fp32 never materializes) ----
    h2 = _layernorm(x1, ln2g_ref[0], ln2b_ref[0]).astype(jnp.bfloat16)
    hid = w1_ref.shape[1]
    ff_acc = jnp.zeros((bt, c), jnp.float32)
    for j in range(0, hid, FF_TILE):
        jsl = slice(j, j + FF_TILE)
        hchunk = jnp.dot(h2, w1_ref[:, jsl],
                         preferred_element_type=jnp.float32) + b1_ref[0, jsl]
        hchunk = jnp.maximum(hchunk, 0.0).astype(jnp.bfloat16)             # ReLU, fused
        ff_acc = ff_acc + jnp.dot(hchunk, w2_ref[jsl, :],
                                  preferred_element_type=jnp.float32)
    # feed-forward Dropout = identity (eval mode)

    o_ref[...] = x1 + ff_acc + b2_ref[0]    # residual 2


def prepare_params(p):
    """One-time weight preprocessing (hoisted out of the per-call hot path)."""
    scale = HS ** (-0.5)
    wqkv = jnp.concatenate([p["wq"] * scale, p["wk"], p["wv"]],
                           axis=1).astype(jnp.bfloat16)                    # (C, 3C)
    return {
        "ln1_g": p["ln1_g"], "ln1_b": p["ln1_b"],
        "wqkv": wqkv,
        "wproj": p["wproj"].astype(jnp.bfloat16), "bproj": p["bproj"],
        "ln2_g": p["ln2_g"], "ln2_b": p["ln2_b"],
        "w1": p["w1"].astype(jnp.bfloat16), "b1": p["b1"],
        "w2": p["w2"].astype(jnp.bfloat16), "b2": p["b2"],
    }


@jax.jit
def block_forward(x, prep):
    b, t, c = x.shape
    bt = b * t
    x2 = x.reshape(bt, c)

    args = [x2,
            prep["ln1_g"], prep["ln1_b"],
            prep["wqkv"],
            prep["wproj"], prep["bproj"],
            prep["ln2_g"], prep["ln2_b"],
            prep["w1"], prep["b1"], prep["w2"], prep["b2"]]

    def full_spec(a):
        nd = a.ndim
        return pl.BlockSpec(a.shape, lambda i, _nd=nd: (0,) * _nd)

    kernel = functools.partial(block_kernel, batch=b, seq=t,
                               num_heads=H, head_size=HS)

    hid = prep["w1"].shape[1]
    flops = (2 * bt * c * (3 * c)            # fused QKV
             + 4 * b * H * t * t * HS        # scores + PV
             + 2 * bt * c * c                # output projection
             + 4 * bt * c * hid)             # feed-forward
    bytes_accessed = (2 * bt * c * 4                                  # x in + out
                      + (c * 3 * c + c * c + c * hid + hid * c) * 2   # bf16 weights
                      + (5 * c + hid) * 4)                            # LN params + biases

    out2 = pl.pallas_call(
        kernel,
        out_shape=jax.ShapeDtypeStruct((bt, c), jnp.float32),
        grid_spec=pltpu.PrefetchScalarGridSpec(
            num_scalar_prefetch=0,
            grid=(1,),                       # single step: M=B*T rows per matmul
            in_specs=[full_spec(a) for a in args],
            out_specs=pl.BlockSpec((bt, c), lambda i: (0, 0)),
            scratch_shapes=[pltpu.VMEM((bt, c), jnp.bfloat16)],   # head-concat buffer
        ),
        compiler_params=pltpu.CompilerParams(
            dimension_semantics=("arbitrary",),
        ),
        cost_estimate=pl.CostEstimate(flops=flops,
                                      transcendentals=b * H * t * t,
                                      bytes_accessed=bytes_accessed),
    )(*args)
    return out2.reshape(b, t, c)


def reference_forward(x, p):
    """Pure-JAX fp32 reference mirroring the PyTorch forward (eval mode)."""
    def ln(z, g, b):
        mu = z.mean(-1, keepdims=True)
        var = ((z - mu) ** 2).mean(-1, keepdims=True)
        return (z - mu) / jnp.sqrt(var + EPS) * g[0] + b[0]

    h = ln(x, p["ln1_g"], p["ln1_b"])
    q = h @ p["wq"]; k = h @ p["wk"]; v = h @ p["wv"]
    outs = []
    t = x.shape[1]
    mask = jnp.tril(jnp.ones((t, t), bool))
    for hd in range(H):
        sl = slice(hd * HS, (hd + 1) * HS)
        s = (q[..., sl] @ jnp.swapaxes(k[..., sl], -1, -2)) * HS ** (-0.5)
        s = jnp.where(mask, s, -jnp.inf)
        outs.append(jax.nn.softmax(s, -1) @ v[..., sl])
    attn = jnp.concatenate(outs, -1)
    x1 = x + attn @ p["wproj"] + p["bproj"][0]
    h2 = ln(x1, p["ln2_g"], p["ln2_b"])
    ff = jnp.maximum(h2 @ p["w1"] + p["b1"][0], 0.0) @ p["w2"] + p["b2"][0]
    return x1 + ff


def init_params(key):
    ks = jax.random.split(key, 8)
    s = 0.02
    return {
        "ln1_g": jnp.ones((1, C), jnp.float32),
        "ln1_b": jnp.zeros((1, C), jnp.float32),
        "wq": s * jax.random.normal(ks[0], (C, C), jnp.float32),
        "wk": s * jax.random.normal(ks[1], (C, C), jnp.float32),
        "wv": s * jax.random.normal(ks[2], (C, C), jnp.float32),
        "wproj": s * jax.random.normal(ks[3], (C, C), jnp.float32),
        "bproj": jnp.zeros((1, C), jnp.float32),
        "ln2_g": jnp.ones((1, C), jnp.float32),
        "ln2_b": jnp.zeros((1, C), jnp.float32),
        "w1": s * jax.random.normal(ks[4], (C, HID), jnp.float32),
        "b1": jnp.zeros((1, HID), jnp.float32),
        "w2": s * jax.random.normal(ks[5], (HID, C), jnp.float32),
        "b2": jnp.zeros((1, C), jnp.float32),
    }


if __name__ == "__main__":
    key = jax.random.PRNGKey(0)
    pkey, xkey = jax.random.split(key)
    params = init_params(pkey)
    x = jax.random.normal(xkey, (B, T, C), jnp.float32)

    prep = jax.block_until_ready(prepare_params(params))   # one-time weight prep

    out = block_forward(x, prep)
    out = jax.block_until_ready(out)

    ref = reference_forward(x, params)
    assert out.shape == (B, T, C)
    # Kernel uses bf16 matmul operands (fp32 accumulation); reference is pure fp32,
    # so allow bf16-level tolerance.
    assert jnp.allclose(out, ref, atol=2e-2, rtol=2e-2), "mismatch vs. reference"

    print("KERNEL_OK")
</pallas_src>

<mosaic_0001>
module attributes {stable_mosaic.version = 11 : i64} {
  func.func @block_kernel(%arg0: i32, %arg1: memref<256x128xf32, #tpu.memory_space<vmem>>, %arg2: memref<1x128xf32, #tpu.memory_space<vmem>>, %arg3: memref<1x128xf32, #tpu.memory_space<vmem>>, %arg4: memref<128x384xbf16, #tpu.memory_space<vmem>>, %arg5: memref<128x128xbf16, #tpu.memory_space<vmem>>, %arg6: memref<1x128xf32, #tpu.memory_space<vmem>>, %arg7: memref<1x128xf32, #tpu.memory_space<vmem>>, %arg8: memref<1x128xf32, #tpu.memory_space<vmem>>, %arg9: memref<128x512xbf16, #tpu.memory_space<vmem>>, %arg10: memref<1x512xf32, #tpu.memory_space<vmem>>, %arg11: memref<512x128xbf16, #tpu.memory_space<vmem>>, %arg12: memref<1x128xf32, #tpu.memory_space<vmem>>, %arg13: memref<256x128xf32, #tpu.memory_space<vmem>>, %arg14: memref<256x128xbf16, #tpu.memory_space<vmem>>) attributes {dimension_semantics = [#tpu.dimension_semantics<arbitrary>], iteration_bounds = array<i64: 1>, scalar_prefetch = 0 : i64, scratch_operands = 1 : i64, tpu.core_type = #tpu.core_type<tc>, window_params = [{pipeline_mode = #tpu.pipeline_mode<synchronous>, transform_indices = @transform_0, window_bounds = array<i64: 256, 128>}, {pipeline_mode = #tpu.pipeline_mode<synchronous>, transform_indices = @transform_1, window_bounds = array<i64: 1, 128>}, {pipeline_mode = #tpu.pipeline_mode<synchronous>, transform_indices = @transform_2, window_bounds = array<i64: 1, 128>}, {pipeline_mode = #tpu.pipeline_mode<synchronous>, transform_indices = @transform_3, window_bounds = array<i64: 128, 384>}, {pipeline_mode = #tpu.pipeline_mode<synchronous>, transform_indices = @transform_4, window_bounds = array<i64: 128, 128>}, {pipeline_mode = #tpu.pipeline_mode<synchronous>, transform_indices = @transform_5, window_bounds = array<i64: 1, 128>}, {pipeline_mode = #tpu.pipeline_mode<synchronous>, transform_indices = @transform_6, window_bounds = array<i64: 1, 128>}, {pipeline_mode = #tpu.pipeline_mode<synchronous>, transform_indices = @transform_7, window_bounds = array<i64: 1, 128>}, {pipeline_mode = #tpu.pipeline_mode<synchronous>, transform_indices = @transform_8, window_bounds = array<i64: 128, 512>}, {pipeline_mode = #tpu.pipeline_mode<synchronous>, transform_indices = @transform_9, window_bounds = array<i64: 1, 512>}, {pipeline_mode = #tpu.pipeline_mode<synchronous>, transform_indices = @transform_10, window_bounds = array<i64: 512, 128>}, {pipeline_mode = #tpu.pipeline_mode<synchronous>, transform_indices = @transform_11, window_bounds = array<i64: 1, 128>}, {pipeline_mode = #tpu.pipeline_mode<synchronous>, transform_indices = @transform_12, window_bounds = array<i64: 256, 128>}]} {
    %c0 = arith.constant 0 : index
    %c0_0 = arith.constant 0 : index
    %0 = vector.load %arg1[%c0, %c0_0] : memref<256x128xf32, #tpu.memory_space<vmem>>, vector<256x128xf32>
    %c0_1 = arith.constant 0 : index
    %c0_2 = arith.constant 0 : index
    %1 = vector.load %arg2[%c0_1, %c0_2] : memref<1x128xf32, #tpu.memory_space<vmem>>, vector<1x128xf32>
    %2 = vector.shape_cast %1 : vector<1x128xf32> to vector<128xf32>
    %c0_3 = arith.constant 0 : index
    %c0_4 = arith.constant 0 : index
    %3 = vector.load %arg3[%c0_3, %c0_4] : memref<1x128xf32, #tpu.memory_space<vmem>>, vector<1x128xf32>
    %4 = vector.shape_cast %3 : vector<1x128xf32> to vector<128xf32>
    %cst = arith.constant dense<0.000000e+00> : vector<256xf32>
    %5 = vector.multi_reduction <add>, %0, %cst [1] : vector<256x128xf32> to vector<256xf32>
    %6 = vector.shape_cast %5 : vector<256xf32> to vector<256x1xf32>
    %cst_5 = arith.constant 1.280000e+02 : f32
    %7 = vector.broadcast %cst_5 : f32 to vector<256x1xf32>
    %8 = arith.divf %6, %7 : vector<256x1xf32>
    %9 = vector.broadcast %8 : vector<256x1xf32> to vector<256x128xf32>
    %10 = arith.subf %0, %9 : vector<256x128xf32>
    %11 = arith.mulf %10, %10 : vector<256x128xf32>
    %cst_6 = arith.constant dense<0.000000e+00> : vector<256xf32>
    %12 = vector.multi_reduction <add>, %11, %cst_6 [1] : vector<256x128xf32> to vector<256xf32>
    %13 = vector.shape_cast %12 : vector<256xf32> to vector<256x1xf32>
    %cst_7 = arith.constant 1.280000e+02 : f32
    %14 = vector.broadcast %cst_7 : f32 to vector<256x1xf32>
    %15 = arith.divf %13, %14 : vector<256x1xf32>
    %16 = vector.broadcast %8 : vector<256x1xf32> to vector<256x128xf32>
    %17 = arith.subf %0, %16 : vector<256x128xf32>
    %cst_8 = arith.constant 9.99999974E-6 : f32
    %18 = vector.broadcast %cst_8 : f32 to vector<256x1xf32>
    %19 = arith.addf %15, %18 : vector<256x1xf32>
    %20 = math.rsqrt %19 : vector<256x1xf32>
    %21 = vector.broadcast %20 : vector<256x1xf32> to vector<256x128xf32>
    %22 = arith.mulf %17, %21 : vector<256x128xf32>
    %23 = vector.shape_cast %2 : vector<128xf32> to vector<1x128xf32>
    %24 = vector.broadcast %23 : vector<1x128xf32> to vector<256x128xf32>
    %25 = arith.mulf %22, %24 : vector<256x128xf32>
    %26 = vector.shape_cast %4 : vector<128xf32> to vector<1x128xf32>
    %27 = vector.broadcast %26 : vector<1x128xf32> to vector<256x128xf32>
    %28 = arith.addf %25, %27 : vector<256x128xf32>
    %29 = arith.truncf %28 : vector<256x128xf32> to vector<256x128xbf16>
    %c0_9 = arith.constant 0 : index
    %c0_10 = arith.constant 0 : index
    %30 = vector.load %arg4[%c0_9, %c0_10] : memref<128x384xbf16, #tpu.memory_space<vmem>>, vector<128x384xbf16>
    %cst_11 = arith.constant dense<0.000000e+00> : vector<256x384xf32>
    %31 = tpu.matmul %29, %30, %cst_11 {dimension_numbers = #tpu.dot_dimension_numbers<[1], [0], [0], [1], [0, 0, 1, 1], [], []>} : vector<256x128xbf16>, vector<128x384xbf16>, vector<256x384xf32> -> vector<256x384xf32>
    %32 = arith.truncf %31 : vector<256x384xf32> to vector<256x384xbf16>
    %33 = tpu.iota {dimensions = array<i32: 0>} : vector<128x128xi32>
    %34 = tpu.iota {dimensions = array<i32: 1>} : vector<128x128xi32>
    %35 = arith.cmpi sle, %34, %33 : vector<128x128xi32>
    %cst_12 = arith.constant 0.000000e+00 : f32
    %cst_13 = arith.constant -1.000000e+30 : f32
    %36 = vector.broadcast %cst_12 : f32 to vector<128x128xf32>
    %37 = vector.broadcast %cst_13 : f32 to vector<128x128xf32>
    %38 = arith.select %35, %36, %37 : vector<128x128xi1>, vector<128x128xf32>
    %39 = vector.extract_strided_slice %32 {offsets = [0, 0], sizes = [128, 32], strides = [1, 1]} : vector<256x384xbf16> to vector<128x32xbf16>
    %40 = vector.extract_strided_slice %32 {offsets = [0, 128], sizes = [128, 32], strides = [1, 1]} : vector<256x384xbf16> to vector<128x32xbf16>
    %41 = vector.extract_strided_slice %32 {offsets = [0, 256], sizes = [128, 32], strides = [1, 1]} : vector<256x384xbf16> to vector<128x32xbf16>
    %cst_14 = arith.constant dense<0.000000e+00> : vector<128x128xf32>
    %42 = tpu.matmul %39, %40, %cst_14 {dimension_numbers = #tpu.dot_dimension_numbers<[1], [1], [0], [0], [0, 0, 1, 0], [], []>} : vector<128x32xbf16>, vector<128x32xbf16>, vector<128x128xf32> -> vector<128x128xf32>
    %43 = arith.addf %42, %38 : vector<128x128xf32>
    %cst_15 = arith.constant dense<0xFF800000> : vector<128xf32>
    %44 = vector.multi_reduction <maximumf>, %43, %cst_15 [1] : vector<128x128xf32> to vector<128xf32>
    %45 = vector.shape_cast %44 : vector<128xf32> to vector<128x1xf32>
    %46 = vector.broadcast %45 : vector<128x1xf32> to vector<128x128xf32>
    %47 = arith.subf %43, %46 : vector<128x128xf32>
    %48 = math.exp %47 : vector<128x128xf32>
    %cst_16 = arith.constant dense<0.000000e+00> : vector<128xf32>
    %49 = vector.multi_reduction <add>, %48, %cst_16 [1] : vector<128x128xf32> to vector<128xf32>
    %50 = vector.shape_cast %49 : vector<128xf32> to vector<128x1xf32>
    %51 = tpu.reciprocal %50 {approx = true} : vector<128x1xf32> -> vector<128x1xf32>
    %52 = vector.broadcast %51 : vector<128x1xf32> to vector<128x128xf32>
    %53 = arith.mulf %48, %52 : vector<128x128xf32>
    %54 = arith.truncf %53 : vector<128x128xf32> to vector<128x128xbf16>
    %cst_17 = arith.constant dense<0.000000e+00> : vector<128x32xf32>
    %55 = tpu.matmul %54, %41, %cst_17 {dimension_numbers = #tpu.dot_dimension_numbers<[1], [0], [0], [1], [0, 0, 1, 1], [], []>} : vector<128x128xbf16>, vector<128x32xbf16>, vector<128x32xf32> -> vector<128x32xf32>
    %56 = vector.extract_strided_slice %32 {offsets = [0, 32], sizes = [128, 32], strides = [1, 1]} : vector<256x384xbf16> to vector<128x32xbf16>
    %57 = vector.extract_strided_slice %32 {offsets = [0, 160], sizes = [128, 32], strides = [1, 1]} : vector<256x384xbf16> to vector<128x32xbf16>
    %58 = vector.extract_strided_slice %32 {offsets = [0, 288], sizes = [128, 32], strides = [1, 1]} : vector<256x384xbf16> to vector<128x32xbf16>
    %cst_18 = arith.constant dense<0.000000e+00> : vector<128x128xf32>
    %59 = tpu.matmul %56, %57, %cst_18 {dimension_numbers = #tpu.dot_dimension_numbers<[1], [1], [0], [0], [0, 0, 1, 0], [], []>} : vector<128x32xbf16>, vector<128x32xbf16>, vector<128x128xf32> -> vector<128x128xf32>
    %60 = arith.addf %59, %38 : vector<128x128xf32>
    %cst_19 = arith.constant dense<0xFF800000> : vector<128xf32>
    %61 = vector.multi_reduction <maximumf>, %60, %cst_19 [1] : vector<128x128xf32> to vector<128xf32>
    %62 = vector.shape_cast %61 : vector<128xf32> to vector<128x1xf32>
    %63 = vector.broadcast %62 : vector<128x1xf32> to vector<128x128xf32>
    %64 = arith.subf %60, %63 : vector<128x128xf32>
    %65 = math.exp %64 : vector<128x128xf32>
    %cst_20 = arith.constant dense<0.000000e+00> : vector<128xf32>
    %66 = vector.multi_reduction <add>, %65, %cst_20 [1] : vector<128x128xf32> to vector<128xf32>
    %67 = vector.shape_cast %66 : vector<128xf32> to vector<128x1xf32>
    %68 = tpu.reciprocal %67 {approx = true} : vector<128x1xf32> -> vector<128x1xf32>
    %69 = vector.broadcast %68 : vector<128x1xf32> to vector<128x128xf32>
    %70 = arith.mulf %65, %69 : vector<128x128xf32>
    %71 = arith.truncf %70 : vector<128x128xf32> to vector<128x128xbf16>
    %cst_21 = arith.constant dense<0.000000e+00> : vector<128x32xf32>
    %72 = tpu.matmul %71, %58, %cst_21 {dimension_numbers = #tpu.dot_dimension_numbers<[1], [0], [0], [1], [0, 0, 1, 1], [], []>} : vector<128x128xbf16>, vector<128x32xbf16>, vector<128x32xf32> -> vector<128x32xf32>
    %73 = vector.extract_strided_slice %32 {offsets = [0, 64], sizes = [128, 32], strides = [1, 1]} : vector<256x384xbf16> to vector<128x32xbf16>
    %74 = vector.extract_strided_slice %32 {offsets = [0, 192], sizes = [128, 32], strides = [1, 1]} : vector<256x384xbf16> to vector<128x32xbf16>
    %75 = vector.extract_strided_slice %32 {offsets = [0, 320], sizes = [128, 32], strides = [1, 1]} : vector<256x384xbf16> to vector<128x32xbf16>
    %cst_22 = arith.constant dense<0.000000e+00> : vector<128x128xf32>
    %76 = tpu.matmul %73, %74, %cst_22 {dimension_numbers = #tpu.dot_dimension_numbers<[1], [1], [0], [0], [0, 0, 1, 0], [], []>} : vector<128x32xbf16>, vector<128x32xbf16>, vector<128x128xf32> -> vector<128x128xf32>
    %77 = arith.addf %76, %38 : vector<128x128xf32>
    %cst_23 = arith.constant dense<0xFF800000> : vector<128xf32>
    %78 = vector.multi_reduction <maximumf>, %77, %cst_23 [1] : vector<128x128xf32> to vector<128xf32>
    %79 = vector.shape_cast %78 : vector<128xf32> to vector<128x1xf32>
    %80 = vector.broadcast %79 : vector<128x1xf32> to vector<128x128xf32>
    %81 = arith.subf %77, %80 : vector<128x128xf32>
    %82 = math.exp %81 : vector<128x128xf32>
    %cst_24 = arith.constant dense<0.000000e+00> : vector<128xf32>
    %83 = vector.multi_reduction <add>, %82, %cst_24 [1] : vector<128x128xf32> to vector<128xf32>
    %84 = vector.shape_cast %83 : vector<128xf32> to vector<128x1xf32>
    %85 = tpu.reciprocal %84 {approx = true} : vector<128x1xf32> -> vector<128x1xf32>
    %86 = vector.broadcast %85 : vector<128x1xf32> to vector<128x128xf32>
    %87 = arith.mulf %82, %86 : vector<128x128xf32>
    %88 = arith.truncf %87 : vector<128x128xf32> to vector<128x128xbf16>
    %cst_25 = arith.constant dense<0.000000e+00> : vector<128x32xf32>
    %89 = tpu.matmul %88, %75, %cst_25 {dimension_numbers = #tpu.dot_dimension_numbers<[1], [0], [0], [1], [0, 0, 1, 1], [], []>} : vector<128x128xbf16>, vector<128x32xbf16>, vector<128x32xf32> -> vector<128x32xf32>
    %90 = vector.extract_strided_slice %32 {offsets = [0, 96], sizes = [128, 32], strides = [1, 1]} : vector<256x384xbf16> to vector<128x32xbf16>
    %91 = vector.extract_strided_slice %32 {offsets = [0, 224], sizes = [128, 32], strides = [1, 1]} : vector<256x384xbf16> to vector<128x32xbf16>
    %92 = vector.extract_strided_slice %32 {offsets = [0, 352], sizes = [128, 32], strides = [1, 1]} : vector<256x384xbf16> to vector<128x32xbf16>
    %cst_26 = arith.constant dense<0.000000e+00> : vector<128x128xf32>
    %93 = tpu.matmul %90, %91, %cst_26 {dimension_numbers = #tpu.dot_dimension_numbers<[1], [1], [0], [0], [0, 0, 1, 0], [], []>} : vector<128x32xbf16>, vector<128x32xbf16>, vector<128x128xf32> -> vector<128x128xf32>
    %94 = arith.addf %93, %38 : vector<128x128xf32>
    %cst_27 = arith.constant dense<0xFF800000> : vector<128xf32>
    %95 = vector.multi_reduction <maximumf>, %94, %cst_27 [1] : vector<128x128xf32> to vector<128xf32>
    %96 = vector.shape_cast %95 : vector<128xf32> to vector<128x1xf32>
    %97 = vector.broadcast %96 : vector<128x1xf32> to vector<128x128xf32>
    %98 = arith.subf %94, %97 : vector<128x128xf32>
    %99 = math.exp %98 : vector<128x128xf32>
    %cst_28 = arith.constant dense<0.000000e+00> : vector<128xf32>
    %100 = vector.multi_reduction <add>, %99, %cst_28 [1] : vector<128x128xf32> to vector<128xf32>
    %101 = vector.shape_cast %100 : vector<128xf32> to vector<128x1xf32>
    %102 = tpu.reciprocal %101 {approx = true} : vector<128x1xf32> -> vector<128x1xf32>
    %103 = vector.broadcast %102 : vector<128x1xf32> to vector<128x128xf32>
    %104 = arith.mulf %99, %103 : vector<128x128xf32>
    %105 = arith.truncf %104 : vector<128x128xf32> to vector<128x128xbf16>
    %cst_29 = arith.constant dense<0.000000e+00> : vector<128x32xf32>
    %106 = tpu.matmul %105, %92, %cst_29 {dimension_numbers = #tpu.dot_dimension_numbers<[1], [0], [0], [1], [0, 0, 1, 1], [], []>} : vector<128x128xbf16>, vector<128x32xbf16>, vector<128x32xf32> -> vector<128x32xf32>
    %107 = tpu.concatenate %55, %72, %89, %106 in 1 : vector<128x32xf32>, vector<128x32xf32>, vector<128x32xf32>, vector<128x32xf32> -> vector<128x128xf32>
    %108 = arith.truncf %107 : vector<128x128xf32> to vector<128x128xbf16>
    %c0_30 = arith.constant 0 : index
    %c0_31 = arith.constant 0 : index
    %109 = vector.load %arg14[%c0_30, %c0_31] : memref<256x128xbf16, #tpu.memory_space<vmem>>, vector<128x128xbf16>
    tpu.vector_store %arg14[%c0_30, %c0_31], %108 {strides = array<i32>} : memref<256x128xbf16, #tpu.memory_space<vmem>>, vector<128x128xbf16>,
    %110 = vector.extract_strided_slice %32 {offsets = [128, 0], sizes = [128, 32], strides = [1, 1]} : vector<256x384xbf16> to vector<128x32xbf16>
    %111 = vector.extract_strided_slice %32 {offsets = [128, 128], sizes = [128, 32], strides = [1, 1]} : vector<256x384xbf16> to vector<128x32xbf16>
    %112 = vector.extract_strided_slice %32 {offsets = [128, 256], sizes = [128, 32], strides = [1, 1]} : vector<256x384xbf16> to vector<128x32xbf16>
    %cst_32 = arith.constant dense<0.000000e+00> : vector<128x128xf32>
    %113 = tpu.matmul %110, %111, %cst_32 {dimension_numbers = #tpu.dot_dimension_numbers<[1], [1], [0], [0], [0, 0, 1, 0], [], []>} : vector<128x32xbf16>, vector<128x32xbf16>, vector<128x128xf32> -> vector<128x128xf32>
    %114 = arith.addf %113, %38 : vector<128x128xf32>
    %cst_33 = arith.constant dense<0xFF800000> : vector<128xf32>
    %115 = vector.multi_reduction <maximumf>, %114, %cst_33 [1] : vector<128x128xf32> to vector<128xf32>
    %116 = vector.shape_cast %115 : vector<128xf32> to vector<128x1xf32>
    %117 = vector.broadcast %116 : vector<128x1xf32> to vector<128x128xf32>
    %118 = arith.subf %114, %117 : vector<128x128xf32>
    %119 = math.exp %118 : vector<128x128xf32>
    %cst_34 = arith.constant dense<0.000000e+00> : vector<128xf32>
    %120 = vector.multi_reduction <add>, %119, %cst_34 [1] : vector<128x128xf32> to vector<128xf32>
    %121 = vector.shape_cast %120 : vector<128xf32> to vector<128x1xf32>
    %122 = tpu.reciprocal %121 {approx = true} : vector<128x1xf32> -> vector<128x1xf32>
    %123 = vector.broadcast %122 : vector<128x1xf32> to vector<128x128xf32>
    %124 = arith.mulf %119, %123 : vector<128x128xf32>
    %125 = arith.truncf %124 : vector<128x128xf32> to vector<128x128xbf16>
    %cst_35 = arith.constant dense<0.000000e+00> : vector<128x32xf32>
    %126 = tpu.matmul %125, %112, %cst_35 {dimension_numbers = #tpu.dot_dimension_numbers<[1], [0], [0], [1], [0, 0, 1, 1], [], []>} : vector<128x128xbf16>, vector<128x32xbf16>, vector<128x32xf32> -> vector<128x32xf32>
    %127 = vector.extract_strided_slice %32 {offsets = [128, 32], sizes = [128, 32], strides = [1, 1]} : vector<256x384xbf16> to vector<128x32xbf16>
    %128 = vector.extract_strided_slice %32 {offsets = [128, 160], sizes = [128, 32], strides = [1, 1]} : vector<256x384xbf16> to vector<128x32xbf16>
    %129 = vector.extract_strided_slice %32 {offsets = [128, 288], sizes = [128, 32], strides = [1, 1]} : vector<256x384xbf16> to vector<128x32xbf16>
    %cst_36 = arith.constant dense<0.000000e+00> : vector<128x128xf32>
    %130 = tpu.matmul %127, %128, %cst_36 {dimension_numbers = #tpu.dot_dimension_numbers<[1], [1], [0], [0], [0, 0, 1, 0], [], []>} : vector<128x32xbf16>, vector<128x32xbf16>, vector<128x128xf32> -> vector<128x128xf32>
    %131 = arith.addf %130, %38 : vector<128x128xf32>
    %cst_37 = arith.constant dense<0xFF800000> : vector<128xf32>
    %132 = vector.multi_reduction <maximumf>, %131, %cst_37 [1] : vector<128x128xf32> to vector<128xf32>
    %133 = vector.shape_cast %132 : vector<128xf32> to vector<128x1xf32>
    %134 = vector.broadcast %133 : vector<128x1xf32> to vector<128x128xf32>
    %135 = arith.subf %131, %134 : vector<128x128xf32>
    %136 = math.exp %135 : vector<128x128xf32>
    %cst_38 = arith.constant dense<0.000000e+00> : vector<128xf32>
    %137 = vector.multi_reduction <add>, %136, %cst_38 [1] : vector<128x128xf32> to vector<128xf32>
    %138 = vector.shape_cast %137 : vector<128xf32> to vector<128x1xf32>
    %139 = tpu.reciprocal %138 {approx = true} : vector<128x1xf32> -> vector<128x1xf32>
    %140 = vector.broadcast %139 : vector<128x1xf32> to vector<128x128xf32>
    %141 = arith.mulf %136, %140 : vector<128x128xf32>
    %142 = arith.truncf %141 : vector<128x128xf32> to vector<128x128xbf16>
    %cst_39 = arith.constant dense<0.000000e+00> : vector<128x32xf32>
    %143 = tpu.matmul %142, %129, %cst_39 {dimension_numbers = #tpu.dot_dimension_numbers<[1], [0], [0], [1], [0, 0, 1, 1], [], []>} : vector<128x128xbf16>, vector<128x32xbf16>, vector<128x32xf32> -> vector<128x32xf32>
    %144 = vector.extract_strided_slice %32 {offsets = [128, 64], sizes = [128, 32], strides = [1, 1]} : vector<256x384xbf16> to vector<128x32xbf16>
    %145 = vector.extract_strided_slice %32 {offsets = [128, 192], sizes = [128, 32], strides = [1, 1]} : vector<256x384xbf16> to vector<128x32xbf16>
    %146 = vector.extract_strided_slice %32 {offsets = [128, 320], sizes = [128, 32], strides = [1, 1]} : vector<256x384xbf16> to vector<128x32xbf16>
    %cst_40 = arith.constant dense<0.000000e+00> : vector<128x128xf32>
    %147 = tpu.matmul %144, %145, %cst_40 {dimension_numbers = #tpu.dot_dimension_numbers<[1], [1], [0], [0], [0, 0, 1, 0], [], []>} : vector<128x32xbf16>, vector<128x32xbf16>, vector<128x128xf32> -> vector<128x128xf32>
    %148 = arith.addf %147, %38 : vector<128x128xf32>
    %cst_41 = arith.constant dense<0xFF800000> : vector<128xf32>
    %149 = vector.multi_reduction <maximumf>, %148, %cst_41 [1] : vector<128x128xf32> to vector<128xf32>
    %150 = vector.shape_cast %149 : vector<128xf32> to vector<128x1xf32>
    %151 = vector.broadcast %150 : vector<128x1xf32> to vector<128x128xf32>
    %152 = arith.subf %148, %151 : vector<128x128xf32>
    %153 = math.exp %152 : vector<128x128xf32>
    %cst_42 = arith.constant dense<0.000000e+00> : vector<128xf32>
    %154 = vector.multi_reduction <add>, %153, %cst_42 [1] : vector<128x128xf32> to vector<128xf32>
    %155 = vector.shape_cast %154 : vector<128xf32> to vector<128x1xf32>
    %156 = tpu.reciprocal %155 {approx = true} : vector<128x1xf32> -> vector<128x1xf32>
    %157 = vector.broadcast %156 : vector<128x1xf32> to vector<128x128xf32>
    %158 = arith.mulf %153, %157 : vector<128x128xf32>
    %159 = arith.truncf %158 : vector<128x128xf32> to vector<128x128xbf16>
    %cst_43 = arith.constant dense<0.000000e+00> : vector<128x32xf32>
    %160 = tpu.matmul %159, %146, %cst_43 {dimension_numbers = #tpu.dot_dimension_numbers<[1], [0], [0], [1], [0, 0, 1, 1], [], []>} : vector<128x128xbf16>, vector<128x32xbf16>, vector<128x32xf32> -> vector<128x32xf32>
    %161 = vector.extract_strided_slice %32 {offsets = [128, 96], sizes = [128, 32], strides = [1, 1]} : vector<256x384xbf16> to vector<128x32xbf16>
    %162 = vector.extract_strided_slice %32 {offsets = [128, 224], sizes = [128, 32], strides = [1, 1]} : vector<256x384xbf16> to vector<128x32xbf16>
    %163 = vector.extract_strided_slice %32 {offsets = [128, 352], sizes = [128, 32], strides = [1, 1]} : vector<256x384xbf16> to vector<128x32xbf16>
    %cst_44 = arith.constant dense<0.000000e+00> : vector<128x128xf32>
    %164 = tpu.matmul %161, %162, %cst_44 {dimension_numbers = #tpu.dot_dimension_numbers<[1], [1], [0], [0], [0, 0, 1, 0], [], []>} : vector<128x32xbf16>, vector<128x32xbf16>, vector<128x128xf32> -> vector<128x128xf32>
    %165 = arith.addf %164, %38 : vector<128x128xf32>
    %cst_45 = arith.constant dense<0xFF800000> : vector<128xf32>
    %166 = vector.multi_reduction <maximumf>, %165, %cst_45 [1] : vector<128x128xf32> to vector<128xf32>
    %167 = vector.shape_cast %166 : vector<128xf32> to vector<128x1xf32>
    %168 = vector.broadcast %167 : vector<128x1xf32> to vector<128x128xf32>
    %169 = arith.subf %165, %168 : vector<128x128xf32>
    %170 = math.exp %169 : vector<128x128xf32>
    %cst_46 = arith.constant dense<0.000000e+00> : vector<128xf32>
    %171 = vector.multi_reduction <add>, %170, %cst_46 [1] : vector<128x128xf32> to vector<128xf32>
    %172 = vector.shape_cast %171 : vector<128xf32> to vector<128x1xf32>
    %173 = tpu.reciprocal %172 {approx = true} : vector<128x1xf32> -> vector<128x1xf32>
    %174 = vector.broadcast %173 : vector<128x1xf32> to vector<128x128xf32>
    %175 = arith.mulf %170, %174 : vector<128x128xf32>
    %176 = arith.truncf %175 : vector<128x128xf32> to vector<128x128xbf16>
    %cst_47 = arith.constant dense<0.000000e+00> : vector<128x32xf32>
    %177 = tpu.matmul %176, %163, %cst_47 {dimension_numbers = #tpu.dot_dimension_numbers<[1], [0], [0], [1], [0, 0, 1, 1], [], []>} : vector<128x128xbf16>, vector<128x32xbf16>, vector<128x32xf32> -> vector<128x32xf32>
    %178 = tpu.concatenate %126, %143, %160, %177 in 1 : vector<128x32xf32>, vector<128x32xf32>, vector<128x32xf32>, vector<128x32xf32> -> vector<128x128xf32>
    %179 = arith.truncf %178 : vector<128x128xf32> to vector<128x128xbf16>
    %c128 = arith.constant 128 : index
    %c0_48 = arith.constant 0 : index
    %180 = vector.load %arg14[%c128, %c0_48] : memref<256x128xbf16, #tpu.memory_space<vmem>>, vector<128x128xbf16>
    tpu.vector_store %arg14[%c128, %c0_48], %179 {strides = array<i32>} : memref<256x128xbf16, #tpu.memory_space<vmem>>, vector<128x128xbf16>,
    %c0_49 = arith.constant 0 : index
    %c0_50 = arith.constant 0 : index
    %181 = vector.load %arg14[%c0_49, %c0_50] : memref<256x128xbf16, #tpu.memory_space<vmem>>, vector<256x128xbf16>
    %c0_51 = arith.constant 0 : index
    %c0_52 = arith.constant 0 : index
    %182 = vector.load %arg5[%c0_51, %c0_52] : memref<128x128xbf16, #tpu.memory_space<vmem>>, vector<128x128xbf16>
    %cst_53 = arith.constant dense<0.000000e+00> : vector<256x128xf32>
    %183 = tpu.matmul %181, %182, %cst_53 {dimension_numbers = #tpu.dot_dimension_numbers<[1], [0], [0], [1], [0, 0, 1, 1], [], []>} : vector<256x128xbf16>, vector<128x128xbf16>, vector<256x128xf32> -> vector<256x128xf32>
    %184 = arith.addf %0, %183 : vector<256x128xf32>
    %c0_54 = arith.constant 0 : index
    %c0_55 = arith.constant 0 : index
    %185 = vector.load %arg6[%c0_54, %c0_55] : memref<1x128xf32, #tpu.memory_space<vmem>>, vector<1x128xf32>
    %186 = vector.shape_cast %185 : vector<1x128xf32> to vector<128xf32>
    %187 = vector.shape_cast %186 : vector<128xf32> to vector<1x128xf32>
    %188 = vector.broadcast %187 : vector<1x128xf32> to vector<256x128xf32>
    %189 = arith.addf %184, %188 : vector<256x128xf32>
    %c0_56 = arith.constant 0 : index
    %c0_57 = arith.constant 0 : index
    %190 = vector.load %arg7[%c0_56, %c0_57] : memref<1x128xf32, #tpu.memory_space<vmem>>, vector<1x128xf32>
    %191 = vector.shape_cast %190 : vector<1x128xf32> to vector<128xf32>
    %c0_58 = arith.constant 0 : index
    %c0_59 = arith.constant 0 : index
    %192 = vector.load %arg8[%c0_58, %c0_59] : memref<1x128xf32, #tpu.memory_space<vmem>>, vector<1x128xf32>
    %193 = vector.shape_cast %192 : vector<1x128xf32> to vector<128xf32>
    %cst_60 = arith.constant dense<0.000000e+00> : vector<256xf32>
    %194 = vector.multi_reduction <add>, %189, %cst_60 [1] : vector<256x128xf32> to vector<256xf32>
    %195 = vector.shape_cast %194 : vector<256xf32> to vector<256x1xf32>
    %cst_61 = arith.constant 1.280000e+02 : f32
    %196 = vector.broadcast %cst_61 : f32 to vector<256x1xf32>
    %197 = arith.divf %195, %196 : vector<256x1xf32>
    %198 = vector.broadcast %197 : vector<256x1xf32> to vector<256x128xf32>
    %199 = arith.subf %189, %198 : vector<256x128xf32>
    %200 = arith.mulf %199, %199 : vector<256x128xf32>
    %cst_62 = arith.constant dense<0.000000e+00> : vector<256xf32>
    %201 = vector.multi_reduction <add>, %200, %cst_62 [1] : vector<256x128xf32> to vector<256xf32>
    %202 = vector.shape_cast %201 : vector<256xf32> to vector<256x1xf32>
    %cst_63 = arith.constant 1.280000e+02 : f32
    %203 = vector.broadcast %cst_63 : f32 to vector<256x1xf32>
    %204 = arith.divf %202, %203 : vector<256x1xf32>
    %205 = vector.broadcast %197 : vector<256x1xf32> to vector<256x128xf32>
    %206 = arith.subf %189, %205 : vector<256x128xf32>
    %cst_64 = arith.constant 9.99999974E-6 : f32
    %207 = vector.broadcast %cst_64 : f32 to vector<256x1xf32>
    %208 = arith.addf %204, %207 : vector<256x1xf32>
    %209 = math.rsqrt %208 : vector<256x1xf32>
    %210 = vector.broadcast %209 : vector<256x1xf32> to vector<256x128xf32>
    %211 = arith.mulf %206, %210 : vector<256x128xf32>
    %212 = vector.shape_cast %191 : vector<128xf32> to vector<1x128xf32>
    %213 = vector.broadcast %212 : vector<1x128xf32> to vector<256x128xf32>
    %214 = arith.mulf %211, %213 : vector<256x128xf32>
    %215 = vector.shape_cast %193 : vector<128xf32> to vector<1x128xf32>
    %216 = vector.broadcast %215 : vector<1x128xf32> to vector<256x128xf32>
    %217 = arith.addf %214, %216 : vector<256x128xf32>
    %218 = arith.truncf %217 : vector<256x128xf32> to vector<256x128xbf16>
    %cst_65 = arith.constant 0.000000e+00 : f32
    %219 = vector.broadcast %cst_65 : f32 to vector<256x128xf32>
    %c0_66 = arith.constant 0 : index
    %c0_67 = arith.constant 0 : index
    %220 = vector.load %arg9[%c0_66, %c0_67] : memref<128x512xbf16, #tpu.memory_space<vmem>>, vector<128x128xbf16>
    %cst_68 = arith.constant dense<0.000000e+00> : vector<256x128xf32>
    %221 = tpu.matmul %218, %220, %cst_68 {dimension_numbers = #tpu.dot_dimension_numbers<[1], [0], [0], [1], [0, 0, 1, 1], [], []>} : vector<256x128xbf16>, vector<128x128xbf16>, vector<256x128xf32> -> vector<256x128xf32>
    %c0_69 = arith.constant 0 : index
    %c0_70 = arith.constant 0 : index
    %222 = vector.load %arg10[%c0_69, %c0_70] : memref<1x512xf32, #tpu.memory_space<vmem>>, vector<1x128xf32>
    %223 = vector.shape_cast %222 : vector<1x128xf32> to vector<128xf32>
    %224 = vector.shape_cast %223 : vector<128xf32> to vector<1x128xf32>
    %225 = vector.broadcast %224 : vector<1x128xf32> to vector<256x128xf32>
    %226 = arith.addf %221, %225 : vector<256x128xf32>
    %cst_71 = arith.constant 0.000000e+00 : f32
    %227 = vector.broadcast %cst_71 : f32 to vector<256x128xf32>
    %228 = arith.maximumf %226, %227 : vector<256x128xf32>
    %229 = arith.truncf %228 : vector<256x128xf32> to vector<256x128xbf16>
    %c0_72 = arith.constant 0 : index
    %c0_73 = arith.constant 0 : index
    %230 = vector.load %arg11[%c0_72, %c0_73] : memref<512x128xbf16, #tpu.memory_space<vmem>>, vector<128x128xbf16>
    %cst_74 = arith.constant dense<0.000000e+00> : vector<256x128xf32>
    %231 = tpu.matmul %229, %230, %cst_74 {dimension_numbers = #tpu.dot_dimension_numbers<[1], [0], [0], [1], [0, 0, 1, 1], [], []>} : vector<256x128xbf16>, vector<128x128xbf16>, vector<256x128xf32> -> vector<256x128xf32>
    %232 = arith.addf %219, %231 : vector<256x128xf32>
    %c0_75 = arith.constant 0 : index
    %c128_76 = arith.constant 128 : index
    %233 = vector.load %arg9[%c0_75, %c128_76] : memref<128x512xbf16, #tpu.memory_space<vmem>>, vector<128x128xbf16>
    %cst_77 = arith.constant dense<0.000000e+00> : vector<256x128xf32>
    %234 = tpu.matmul %218, %233, %cst_77 {dimension_numbers = #tpu.dot_dimension_numbers<[1], [0], [0], [1], [0, 0, 1, 1], [], []>} : vector<256x128xbf16>, vector<128x128xbf16>, vector<256x128xf32> -> vector<256x128xf32>
    %c0_78 = arith.constant 0 : index
    %c128_79 = arith.constant 128 : index
    %235 = vector.load %arg10[%c0_78, %c128_79] : memref<1x512xf32, #tpu.memory_space<vmem>>, vector<1x128xf32>
    %236 = vector.shape_cast %235 : vector<1x128xf32> to vector<128xf32>
    %237 = vector.shape_cast %236 : vector<128xf32> to vector<1x128xf32>
    %238 = vector.broadcast %237 : vector<1x128xf32> to vector<256x128xf32>
    %239 = arith.addf %234, %238 : vector<256x128xf32>
    %cst_80 = arith.constant 0.000000e+00 : f32
    %240 = vector.broadcast %cst_80 : f32 to vector<256x128xf32>
    %241 = arith.maximumf %239, %240 : vector<256x128xf32>
    %242 = arith.truncf %241 : vector<256x128xf32> to vector<256x128xbf16>
    %c128_81 = arith.constant 128 : index
    %c0_82 = arith.constant 0 : index
    %243 = vector.load %arg11[%c128_81, %c0_82] : memref<512x128xbf16, #tpu.memory_space<vmem>>, vector<128x128xbf16>
    %cst_83 = arith.constant dense<0.000000e+00> : vector<256x128xf32>
    %244 = tpu.matmul %242, %243, %cst_83 {dimension_numbers = #tpu.dot_dimension_numbers<[1], [0], [0], [1], [0, 0, 1, 1], [], []>} : vector<256x128xbf16>, vector<128x128xbf16>, vector<256x128xf32> -> vector<256x128xf32>
    %245 = arith.addf %232, %244 : vector<256x128xf32>
    %c0_84 = arith.constant 0 : index
    %c256 = arith.constant 256 : index
    %246 = vector.load %arg9[%c0_84, %c256] : memref<128x512xbf16, #tpu.memory_space<vmem>>, vector<128x128xbf16>
    %cst_85 = arith.constant dense<0.000000e+00> : vector<256x128xf32>
    %247 = tpu.matmul %218, %246, %cst_85 {dimension_numbers = #tpu.dot_dimension_numbers<[1], [0], [0], [1], [0, 0, 1, 1], [], []>} : vector<256x128xbf16>, vector<128x128xbf16>, vector<256x128xf32> -> vector<256x128xf32>
    %c0_86 = arith.constant 0 : index
    %c256_87 = arith.constant 256 : index
    %248 = vector.load %arg10[%c0_86, %c256_87] : memref<1x512xf32, #tpu.memory_space<vmem>>, vector<1x128xf32>
    %249 = vector.shape_cast %248 : vector<1x128xf32> to vector<128xf32>
    %250 = vector.shape_cast %249 : vector<128xf32> to vector<1x128xf32>
    %251 = vector.broadcast %250 : vector<1x128xf32> to vector<256x128xf32>
    %252 = arith.addf %247, %251 : vector<256x128xf32>
    %cst_88 = arith.constant 0.000000e+00 : f32
    %253 = vector.broadcast %cst_88 : f32 to vector<256x128xf32>
    %254 = arith.maximumf %252, %253 : vector<256x128xf32>
    %255 = arith.truncf %254 : vector<256x128xf32> to vector<256x128xbf16>
    %c256_89 = arith.constant 256 : index
    %c0_90 = arith.constant 0 : index
    %256 = vector.load %arg11[%c256_89, %c0_90] : memref<512x128xbf16, #tpu.memory_space<vmem>>, vector<128x128xbf16>
    %cst_91 = arith.constant dense<0.000000e+00> : vector<256x128xf32>
    %257 = tpu.matmul %255, %256, %cst_91 {dimension_numbers = #tpu.dot_dimension_numbers<[1], [0], [0], [1], [0, 0, 1, 1], [], []>} : vector<256x128xbf16>, vector<128x128xbf16>, vector<256x128xf32> -> vector<256x128xf32>
    %258 = arith.addf %245, %257 : vector<256x128xf32>
    %c0_92 = arith.constant 0 : index
    %c384 = arith.constant 384 : index
    %259 = vector.load %arg9[%c0_92, %c384] : memref<128x512xbf16, #tpu.memory_space<vmem>>, vector<128x128xbf16>
    %cst_93 = arith.constant dense<0.000000e+00> : vector<256x128xf32>
    %260 = tpu.matmul %218, %259, %cst_93 {dimension_numbers = #tpu.dot_dimension_numbers<[1], [0], [0], [1], [0, 0, 1, 1], [], []>} : vector<256x128xbf16>, vector<128x128xbf16>, vector<256x128xf32> -> vector<256x128xf32>
    %c0_94 = arith.constant 0 : index
    %c384_95 = arith.constant 384 : index
    %261 = vector.load %arg10[%c0_94, %c384_95] : memref<1x512xf32, #tpu.memory_space<vmem>>, vector<1x128xf32>
    %262 = vector.shape_cast %261 : vector<1x128xf32> to vector<128xf32>
    %263 = vector.shape_cast %262 : vector<128xf32> to vector<1x128xf32>
    %264 = vector.broadcast %263 : vector<1x128xf32> to vector<256x128xf32>
    %265 = arith.addf %260, %264 : vector<256x128xf32>
    %cst_96 = arith.constant 0.000000e+00 : f32
    %266 = vector.broadcast %cst_96 : f32 to vector<256x128xf32>
    %267 = arith.maximumf %265, %266 : vector<256x128xf32>
    %268 = arith.truncf %267 : vector<256x128xf32> to vector<256x128xbf16>
    %c384_97 = arith.constant 384 : index
    %c0_98 = arith.constant 0 : index
    %269 = vector.load %arg11[%c384_97, %c0_98] : memref<512x128xbf16, #tpu.memory_space<vmem>>, vector<128x128xbf16>
    %cst_99 = arith.constant dense<0.000000e+00> : vector<256x128xf32>
    %270 = tpu.matmul %268, %269, %cst_99 {dimension_numbers = #tpu.dot_dimension_numbers<[1], [0], [0], [1], [0, 0, 1, 1], [], []>} : vector<256x128xbf16>, vector<128x128xbf16>, vector<256x128xf32> -> vector<256x128xf32>
    %271 = arith.addf %258, %270 : vector<256x128xf32>
    %272 = arith.addf %189, %271 : vector<256x128xf32>
    %c0_100 = arith.constant 0 : index
    %c0_101 = arith.constant 0 : index
    %273 = vector.load %arg12[%c0_100, %c0_101] : memref<1x128xf32, #tpu.memory_space<vmem>>, vector<1x128xf32>
    %274 = vector.shape_cast %273 : vector<1x128xf32> to vector<128xf32>
    %275 = vector.shape_cast %274 : vector<128xf32> to vector<1x128xf32>
    %276 = vector.broadcast %275 : vector<1x128xf32> to vector<256x128xf32>
    %277 = arith.addf %272, %276 : vector<256x128xf32>
    %c0_102 = arith.constant 0 : index
    %c0_103 = arith.constant 0 : index
    %278 = vector.load %arg13[%c0_102, %c0_103] : memref<256x128xf32, #tpu.memory_space<vmem>>, vector<256x128xf32>
    tpu.vector_store %arg13[%c0_102, %c0_103], %277 {strides = array<i32>} : memref<256x128xf32, #tpu.memory_space<vmem>>, vector<256x128xf32>,
    return
  }
  func.func @transform_0(%arg0: i32) -> (i32, i32) {
    %c0_i32 = arith.constant 0 : i32
    %c0_i32_0 = arith.constant 0 : i32
    %c0_i32_1 = arith.constant 0 : i32
    return %c0_i32, %c0_i32_0 : i32, i32
  }
  func.func @transform_1(%arg0: i32) -> (i32, i32) {
    %c0_i32 = arith.constant 0 : i32
    %c0_i32_0 = arith.constant 0 : i32
    %c0_i32_1 = arith.constant 0 : i32
    return %c0_i32, %c0_i32_0 : i32, i32
  }
  func.func @transform_2(%arg0: i32) -> (i32, i32) {
    %c0_i32 = arith.constant 0 : i32
    %c0_i32_0 = arith.constant 0 : i32
    %c0_i32_1 = arith.constant 0 : i32
    return %c0_i32, %c0_i32_0 : i32, i32
  }
  func.func @transform_3(%arg0: i32) -> (i32, i32) {
    %c0_i32 = arith.constant 0 : i32
    %c0_i32_0 = arith.constant 0 : i32
    %c0_i32_1 = arith.constant 0 : i32
    return %c0_i32, %c0_i32_0 : i32, i32
  }
  func.func @transform_4(%arg0: i32) -> (i32, i32) {
    %c0_i32 = arith.constant 0 : i32
    %c0_i32_0 = arith.constant 0 : i32
    %c0_i32_1 = arith.constant 0 : i32
    return %c0_i32, %c0_i32_0 : i32, i32
  }
  func.func @transform_5(%arg0: i32) -> (i32, i32) {
    %c0_i32 = arith.constant 0 : i32
    %c0_i32_0 = arith.constant 0 : i32
    %c0_i32_1 = arith.constant 0 : i32
    return %c0_i32, %c0_i32_0 : i32, i32
  }
  func.func @transform_6(%arg0: i32) -> (i32, i32) {
    %c0_i32 = arith.constant 0 : i32
    %c0_i32_0 = arith.constant 0 : i32
    %c0_i32_1 = arith.constant 0 : i32
    return %c0_i32, %c0_i32_0 : i32, i32
  }
  func.func @transform_7(%arg0: i32) -> (i32, i32) {
    %c0_i32 = arith.constant 0 : i32
    %c0_i32_0 = arith.constant 0 : i32
    %c0_i32_1 = arith.constant 0 : i32
    return %c0_i32, %c0_i32_0 : i32, i32
  }
  func.func @transform_8(%arg0: i32) -> (i32, i32) {
    %c0_i32 = arith.constant 0 : i32
    %c0_i32_0 = arith.constant 0 : i32
    %c0_i32_1 = arith.constant 0 : i32
    return %c0_i32, %c0_i32_0 : i32, i32
  }
  func.func @transform_9(%arg0: i32) -> (i32, i32) {
    %c0_i32 = arith.constant 0 : i32
    %c0_i32_0 = arith.constant 0 : i32
    %c0_i32_1 = arith.constant 0 : i32
    return %c0_i32, %c0_i32_0 : i32, i32
  }
  func.func @transform_10(%arg0: i32) -> (i32, i32) {
    %c0_i32 = arith.constant 0 : i32
    %c0_i32_0 = arith.constant 0 : i32
    %c0_i32_1 = arith.constant 0 : i32
    return %c0_i32, %c0_i32_0 : i32, i32
  }
  func.func @transform_11(%arg0: i32) -> (i32, i32) {
    %c0_i32 = arith.constant 0 : i32
    %c0_i32_0 = arith.constant 0 : i32
    %c0_i32_1 = arith.constant 0 : i32
    return %c0_i32, %c0_i32_0 : i32, i32
  }
  func.func @transform_12(%arg0: i32) -> (i32, i32) {
    %c0_i32 = arith.constant 0 : i32
    %c0_i32_0 = arith.constant 0 : i32
    %c0_i32_1 = arith.constant 0 : i32
    return %c0_i32, %c0_i32_0 : i32, i32
  }
}

</mosaic_0001>

<llo_original>
// kernel: block_forward.1
$region0: #{block_forward.1}
  #allocation0 [shape = 'u32[]', space=smem, size = 0x4, offset = 0x4, fixed_abs, tag = 'smem constant byte address 0x4 - core index']
  #allocation1 [shape = 'u32[72,128]{1,0:T(1,128)}', space=vmem, size = 0x9000, scoped, tag = 'internal scratch']
  #allocation2 [shape = 'bf16[256,128]{1,0:T(8,128)(2,1)}', space=vmem, size = 0x10000, scoped, tag = 'scratch operand']
  %s0 = inlined_call_operand.hbm [shape: f32[256,128], index: 0, kind: input, shape index: {}]
  %s1 = inlined_call_operand.vmem [shape: f32[1,128], index: 1, kind: input, shape index: {}]
  %s2 = inlined_call_operand.vmem [shape: f32[1,128], index: 2, kind: input, shape index: {}]
  %s3 = inlined_call_operand.hbm [shape: bf16[128,384], index: 3, kind: input, shape index: {}]
  %s4 = inlined_call_operand.hbm [shape: bf16[128,128], index: 4, kind: input, shape index: {}]
  %s5 = inlined_call_operand.vmem [shape: f32[1,128], index: 5, kind: input, shape index: {}]
  %s6 = inlined_call_operand.vmem [shape: f32[1,128], index: 6, kind: input, shape index: {}]
  %s7 = inlined_call_operand.vmem [shape: f32[1,128], index: 7, kind: input, shape index: {}]
  %s8 = inlined_call_operand.hbm [shape: bf16[128,512], index: 8, kind: input, shape index: {}]
  %s9 = inlined_call_operand.hbm [shape: f32[1,512], index: 9, kind: input, shape index: {}]
  %s10 = inlined_call_operand.hbm [shape: bf16[512,128], index: 10, kind: input, shape index: {}]
  %s11 = inlined_call_operand.hbm [shape: f32[1,128], index: 11, kind: input, shape index: {}]
  %s12 = inlined_call_operand.hbm [shape: f32[256,128], index: 12, kind: output, shape index: {}]
  %s13 = sld [smem:[#allocation0]]
  $region86: #{block_forward.1} parent=0
    _
  %s15 = ssub.s32 1, %s13
  %s16 = scalar_select 0, %s15, %s13
  $region1: #{block_forward.1} parent=0
    #allocation3 [shape = 'u8[131072]{0}', space=vmem, size = 0x20000, scoped, tag = 'input window, operand 0, single buffered']
    #allocation4 [shape = 's32[1]{0}', space=sflag, size = 0x4, scoped, tag = 'scoped memory for block_forward.1']
    #allocation5 [shape = 's32[1]{0}', space=sflag, size = 0x4, scoped, tag = 'scoped memory for block_forward.1']
    #allocation6 [shape = 'u8[98304]{0}', space=vmem, size = 0x18000, scoped, tag = 'input window, operand 3, single buffered']
    #allocation7 [shape = 's32[1]{0}', space=sflag, size = 0x4, scoped, tag = 'scoped memory for block_forward.1']
    #allocation8 [shape = 'u8[32768]{0}', space=vmem, size = 0x8000, scoped, tag = 'input window, operand 4, single buffered']
    #allocation9 [shape = 'u8[131072]{0}', space=vmem, size = 0x20000, scoped, tag = 'input window, operand 8, single buffered']
    #allocation10 [shape = 's32[1]{0}', space=sflag, size = 0x4, scoped, tag = 'scoped memory for block_forward.1']
    #allocation11 [shape = 'u8[2048]{0}', space=vmem, size = 0x800, scoped, tag = 'input window, operand 9, single buffered']
    #allocation12 [shape = 'u8[131072]{0}', space=vmem, size = 0x20000, scoped, tag = 'input window, operand 10, single buffered']
    #allocation13 [shape = 's32[1]{0}', space=sflag, size = 0x4, scoped, tag = 'scoped memory for block_forward.1']
    #allocation14 [shape = 'u8[512]{0}', space=vmem, size = 0x400, scoped, tag = 'input window, operand 11, single buffered']
    #allocation15 [shape = 'u8[131072]{0}', space=vmem, size = 0x20000, scoped, tag = 'output window, operand 0, single buffered']
    %17 = vsyncpa [#allocation4], 0
    %18 = vsyncpa [#allocation7], 0
    %19 = vsyncpa [#allocation10], 0
    %20 = vsyncpa [#allocation13], 0
    %21 = vsyncpa [#allocation5], 0
    // Predicated region
    $region2: #{block_forward.1} parent=1 // pred_check
      _
    $region3: #{block_forward.1} parent=1 // pred_check_branch
      %23 = sbr.rel (0) target = $region5
    $region4: #{block_forward.1} parent=1 // pred_region
      %25 = vsyncadd [#allocation4], 0
      %s26 = sshll.u32 %s0, 4
      %s27 = int_to_ptr.hbm [resolvable:$true] %s26
      %s28 = sshll.u32 [#allocation3], 4
      %s29 = int_to_ptr.vmem [resolvable:$true] %s28
      %34 = dma.hbm_to_vmem [thread:$0]  %s27, 4096, %s29, [#allocation4], 128, 128, 8
    $region5: #{block_forward.1} parent=1 // pred_fallthru
      _
    // Predicated region
    $region6: #{block_forward.1} parent=1 // pred_check
      _
    $region7: #{block_forward.1} parent=1 // pred_check_branch
      %36 = sbr.rel (0) target = $region9
    $region8: #{block_forward.1} parent=1 // pred_region
      _
    $region9: #{block_forward.1} parent=1 // pred_fallthru
      _
    // Predicated region
    $region10: #{block_forward.1} parent=1 // pred_check
      _
    $region11: #{block_forward.1} parent=1 // pred_check_branch
      %38 = sbr.rel (0) target = $region13
    $region12: #{block_forward.1} parent=1 // pred_region
      _
    $region13: #{block_forward.1} parent=1 // pred_fallthru
      _
    // Predicated region
    $region14: #{block_forward.1} parent=1 // pred_check
      _
    $region15: #{block_forward.1} parent=1 // pred_check_branch
      %40 = sbr.rel (0) target = $region17
    $region16: #{block_forward.1} parent=1 // pred_region
      %42 = vsyncadd [#allocation7], 0
      %s43 = sshll.u32 %s3, 4
      %s44 = int_to_ptr.hbm [resolvable:$true] %s43
      %s45 = sshll.u32 [#allocation6], 4
      %s46 = int_to_ptr.vmem [resolvable:$true] %s45
      %51 = dma.hbm_to_vmem [thread:$0]  %s44, 3072, %s46, [#allocation7], 192, 192, 12
    $region17: #{block_forward.1} parent=1 // pred_fallthru
      _
    // Predicated region
    $region18: #{block_forward.1} parent=1 // pred_check
      _
    $region19: #{block_forward.1} parent=1 // pred_check_branch
      %53 = sbr.rel (0) target = $region21
    $region20: #{block_forward.1} parent=1 // pred_region
      %55 = vsyncadd [#allocation7], 0
      %s56 = sshll.u32 %s4, 4
      %s57 = int_to_ptr.hbm [resolvable:$true] %s56
      %s58 = sshll.u32 [#allocation8], 4
      %s59 = int_to_ptr.vmem [resolvable:$true] %s58
      %64 = dma.hbm_to_vmem [thread:$0]  %s57, 1024, %s59, [#allocation7], 64, 64, 4
    $region21: #{block_forward.1} parent=1 // pred_fallthru
      _
    // Predicated region
    $region22: #{block_forward.1} parent=1 // pred_check
      _
    $region23: #{block_forward.1} parent=1 // pred_check_branch
      %66 = sbr.rel (0) target = $region25
    $region24: #{block_forward.1} parent=1 // pred_region
      _
    $region25: #{block_forward.1} parent=1 // pred_fallthru
      _
    // Predicated region
    $region26: #{block_forward.1} parent=1 // pred_check
      _
    $region27: #{block_forward.1} parent=1 // pred_check_branch
      %68 = sbr.rel (0) target = $region29
    $region28: #{block_forward.1} parent=1 // pred_region
      _
    $region29: #{block_forward.1} parent=1 // pred_fallthru
      _
    // Predicated region
    $region30: #{block_forward.1} parent=1 // pred_check
      _
    $region31: #{block_forward.1} parent=1 // pred_check_branch
      %70 = sbr.rel (0) target = $region33
    $region32: #{block_forward.1} parent=1 // pred_region
      _
    $region33: #{block_forward.1} parent=1 // pred_fallthru
      _
    // Predicated region
    $region34: #{block_forward.1} parent=1 // pred_check
      _
    $region35: #{block_forward.1} parent=1 // pred_check_branch
      %72 = sbr.rel (0) target = $region37
    $region36: #{block_forward.1} parent=1 // pred_region
      %74 = vsyncadd [#allocation10], 0
      %s75 = sshll.u32 %s8, 4
      %s76 = int_to_ptr.hbm [resolvable:$true] %s75
      %s77 = sshll.u32 [#allocation9], 4
      %s78 = int_to_ptr.vmem [resolvable:$true] %s77
      %83 = dma.hbm_to_vmem [thread:$0]  %s76, 4096, %s78, [#allocation10], 256, 256, 16
    $region37: #{block_forward.1} parent=1 // pred_fallthru
      _
    // Predicated region
    $region38: #{block_forward.1} parent=1 // pred_check
      _
    $region39: #{block_forward.1} parent=1 // pred_check_branch
      %85 = sbr.rel (0) target = $region41
    $region40: #{block_forward.1} parent=1 // pred_region
      %87 = vsyncadd [#allocation10], 0
      %s89 = sshll.u32 %s9, 4
      %s90 = int_to_ptr.hbm [resolvable:$true] %s89
      %s91 = sshll.u32 [#allocation11], 4
      %s92 = int_to_ptr.vmem [resolvable:$true] %s91
      %94 = dma.hbm_to_vmem [thread:$0]  %s90, 64, %s92, [#allocation10]
    $region41: #{block_forward.1} parent=1 // pred_fallthru
      _
    // Predicated region
    $region42: #{block_forward.1} parent=1 // pred_check
      _
    $region43: #{block_forward.1} parent=1 // pred_check_branch
      %96 = sbr.rel (0) target = $region45
    $region44: #{block_forward.1} parent=1 // pred_region
      %98 = vsyncadd [#allocation13], 0
      %s99 = sshll.u32 %s10, 4
      %s100 = int_to_ptr.hbm [resolvable:$true] %s99
      %s101 = sshll.u32 [#allocation12], 4
      %s102 = int_to_ptr.vmem [resolvable:$true] %s101
      %107 = dma.hbm_to_vmem [thread:$0]  %s100, 4096, %s102, [#allocation13], 64, 64, 4
    $region45: #{block_forward.1} parent=1 // pred_fallthru
      _
    // Predicated region
    $region46: #{block_forward.1} parent=1 // pred_check
      _
    $region47: #{block_forward.1} parent=1 // pred_check_branch
      %109 = sbr.rel (0) target = $region49
    $region48: #{block_forward.1} parent=1 // pred_region
      %111 = vsyncadd [#allocation13], 0
      %s113 = sshll.u32 %s11, 4
      %s114 = int_to_ptr.hbm [resolvable:$true] %s113
      %s115 = sshll.u32 [#allocation14], 4
      %s116 = int_to_ptr.vmem [resolvable:$true] %s115
      %118 = dma.hbm_to_vmem [thread:$0]  %s114, 16, %s116, [#allocation13]
    $region49: #{block_forward.1} parent=1 // pred_fallthru
      _
    // Predicated region
    $region50: #{block_forward.1} parent=1 // pred_check
      _
    $region51: #{block_forward.1} parent=1 // pred_check_branch
      %120 = sbr.rel (0) target = $region53
    $region52: #{block_forward.1} parent=1 // pred_region
      %122 = dma.done [#allocation4], 4096
    $region53: #{block_forward.1} parent=1 // pred_fallthru
      _
    // Predicated region
    $region54: #{block_forward.1} parent=1 // pred_check
      _
    $region55: #{block_forward.1} parent=1 // pred_check_branch
      %124 = sbr.rel (0) target = $region57
    $region56: #{block_forward.1} parent=1 // pred_region
      %126 = dma.done [#allocation7], 3072
    $region57: #{block_forward.1} parent=1 // pred_fallthru
      _
    // Predicated region
    $region58: #{block_forward.1} parent=1 // pred_check
      _
    $region59: #{block_forward.1} parent=1 // pred_check_branch
      %128 = sbr.rel (0) target = $region61
    $region60: #{block_forward.1} parent=1 // pred_region
      %130 = dma.done [#allocation7], 1024
    $region61: #{block_forward.1} parent=1 // pred_fallthru
      _
    // Predicated region
    $region62: #{block_forward.1} parent=1 // pred_check
      _
    $region63: #{block_forward.1} parent=1 // pred_check_branch
      %132 = sbr.rel (0) target = $region65
    $region64: #{block_forward.1} parent=1 // pred_region
      %134 = dma.done [#allocation10], 4096
    $region65: #{block_forward.1} parent=1 // pred_fallthru
      _
    // Predicated region
    $region66: #{block_forward.1} parent=1 // pred_check
      _
    $region67: #{block_forward.1} parent=1 // pred_check_branch
      %136 = sbr.rel (0) target = $region69
    $region68: #{block_forward.1} parent=1 // pred_region
      %138 = dma.done [#allocation10], 64
    $region69: #{block_forward.1} parent=1 // pred_fallthru
      _
    // Predicated region
    $region70: #{block_forward.1} parent=1 // pred_check
      _
    $region71: #{block_forward.1} parent=1 // pred_check_branch
      %140 = sbr.rel (0) target = $region73
    $region72: #{block_forward.1} parent=1 // pred_region
      %142 = dma.done [#allocation13], 4096
    $region73: #{block_forward.1} parent=1 // pred_fallthru
      _
    // Predicated region
    $region74: #{block_forward.1} parent=1 // pred_check
      _
    $region75: #{block_forward.1} parent=1 // pred_check_branch
      %144 = sbr.rel (0) target = $region77
    $region76: #{block_forward.1} parent=1 // pred_region
      %146 = dma.done [#allocation13], 16
    $region77: #{block_forward.1} parent=1 // pred_fallthru
      _
    %v147 = vld [vmem:[#allocation3] sm:$0xff]
    %v148 = vld [vmem:[#allocation3 + $0x8] sm:$0xff]
    %v149 = vld [vmem:[#allocation3 + $0x10] sm:$0xff]
    %v150 = vld [vmem:[#allocation3 + $0x18] sm:$0xff]
    %v151 = vld [vmem:[#allocation3 + $0x20] sm:$0xff]
    %v152 = vld [vmem:[#allocation3 + $0x28] sm:$0xff]
    %v153 = vld [vmem:[#allocation3 + $0x30] sm:$0xff]
    %v154 = vld [vmem:[#allocation3 + $0x38] sm:$0xff]
    %v155 = vld [vmem:[#allocation3 + $0x40] sm:$0xff]
    %v156 = vld [vmem:[#allocation3 + $0x48] sm:$0xff]
    %v157 = vld [vmem:[#allocation3 + $0x50] sm:$0xff]
    %v158 = vld [vmem:[#allocation3 + $0x58] sm:$0xff]
    %v159 = vld [vmem:[#allocation3 + $0x60] sm:$0xff]
    %v160 = vld [vmem:[#allocation3 + $0x68] sm:$0xff]
    %v161 = vld [vmem:[#allocation3 + $0x70] sm:$0xff]
    %v162 = vld [vmem:[#allocation3 + $0x78] sm:$0xff]
    %v163 = vld [vmem:[#allocation3 + $0x80] sm:$0xff]
    %v164 = vld [vmem:[#allocation3 + $0x88] sm:$0xff]
    %v165 = vld [vmem:[#allocation3 + $0x90] sm:$0xff]
    %v166 = vld [vmem:[#allocation3 + $0x98] sm:$0xff]
    %v167 = vld [vmem:[#allocation3 + $0xa0] sm:$0xff]
    %v168 = vld [vmem:[#allocation3 + $0xa8] sm:$0xff]
    %v169 = vld [vmem:[#allocation3 + $0xb0] sm:$0xff]
    %v170 = vld [vmem:[#allocation3 + $0xb8] sm:$0xff]
    %v171 = vld [vmem:[#allocation3 + $0xc0] sm:$0xff]
    %v172 = vld [vmem:[#allocation3 + $0xc8] sm:$0xff]
    %v173 = vld [vmem:[#allocation3 + $0xd0] sm:$0xff]
    %v174 = vld [vmem:[#allocation3 + $0xd8] sm:$0xff]
    %v175 = vld [vmem:[#allocation3 + $0xe0] sm:$0xff]
    %v176 = vld [vmem:[#allocation3 + $0xe8] sm:$0xff]
    %v177 = vld [vmem:[#allocation3 + $0xf0] sm:$0xff]
    %v178 = vld [vmem:[#allocation3 + $0xf8] sm:$0xff]
    %v179 = vld [vmem:[%s1] sm:$0x1]
    %v180 = vld [vmem:[%s2] sm:$0x1]
    %181 = vadd.xlane.f32.xlu0 %v147
    %v182 = vpop.xlane.xlu0 %181
    %183 = vadd.xlane.f32.xlu0 %v148
    %v184 = vpop.xlane.xlu0 %183
    %185 = vadd.xlane.f32.xlu0 %v149
    %v186 = vpop.xlane.xlu0 %185
    %187 = vadd.xlane.f32.xlu0 %v150
    %v188 = vpop.xlane.xlu0 %187
    %189 = vadd.xlane.f32.xlu0 %v151
    %v190 = vpop.xlane.xlu0 %189
    %191 = vadd.xlane.f32.xlu0 %v152
    %v192 = vpop.xlane.xlu0 %191
    %193 = vadd.xlane.f32.xlu0 %v153
    %v194 = vpop.xlane.xlu0 %193
    %195 = vadd.xlane.f32.xlu0 %v154
    %v196 = vpop.xlane.xlu0 %195
    %197 = vadd.xlane.f32.xlu0 %v155
    %v198 = vpop.xlane.xlu0 %197
    %199 = vadd.xlane.f32.xlu0 %v156
    %v200 = vpop.xlane.xlu0 %199
    %201 = vadd.xlane.f32.xlu0 %v157
    %v202 = vpop.xlane.xlu0 %201
    %203 = vadd.xlane.f32.xlu0 %v158
    %v204 = vpop.xlane.xlu0 %203
    %205 = vadd.xlane.f32.xlu0 %v159
    %v206 = vpop.xlane.xlu0 %205
    %207 = vadd.xlane.f32.xlu0 %v160
    %v208 = vpop.xlane.xlu0 %207
    %209 = vadd.xlane.f32.xlu0 %v161
    %v210 = vpop.xlane.xlu0 %209
    %211 = vadd.xlane.f32.xlu0 %v162
    %v212 = vpop.xlane.xlu0 %211
    %213 = vadd.xlane.f32.xlu0 %v163
    %v214 = vpop.xlane.xlu0 %213
    %215 = vadd.xlane.f32.xlu0 %v164
    %v216 = vpop.xlane.xlu0 %215
    %217 = vadd.xlane.f32.xlu0 %v165
    %v218 = vpop.xlane.xlu0 %217
    %219 = vadd.xlane.f32.xlu0 %v166
    %v220 = vpop.xlane.xlu0 %219
    %221 = vadd.xlane.f32.xlu0 %v167
    %v222 = vpop.xlane.xlu0 %221
    %223 = vadd.xlane.f32.xlu0 %v168
    %v224 = vpop.xlane.xlu0 %223
    %225 = vadd.xlane.f32.xlu0 %v169
    %v226 = vpop.xlane.xlu0 %225
    %227 = vadd.xlane.f32.xlu0 %v170
    %v228 = vpop.xlane.xlu0 %227
    %229 = vadd.xlane.f32.xlu0 %v171
    %v230 = vpop.xlane.xlu0 %229
    %231 = vadd.xlane.f32.xlu0 %v172
    %v232 = vpop.xlane.xlu0 %231
    %233 = vadd.xlane.f32.xlu0 %v173
    %v234 = vpop.xlane.xlu0 %233
    %235 = vadd.xlane.f32.xlu0 %v174
    %v236 = vpop.xlane.xlu0 %235
    %237 = vadd.xlane.f32.xlu0 %v175
    %v238 = vpop.xlane.xlu0 %237
    %239 = vadd.xlane.f32.xlu0 %v176
    %v240 = vpop.xlane.xlu0 %239
    %241 = vadd.xlane.f32.xlu0 %v177
    %v242 = vpop.xlane.xlu0 %241
    %243 = vadd.xlane.f32.xlu0 %v178
    %v244 = vpop.xlane.xlu0 %243
    %v245 = vrcp.pop 128.0
    %v246 = vmul.f32 128.0, %v245
    %v247 = vsub.f32 1.0, %v246
    %v248 = vmul.f32 %v245, %v247
    %v249 = vadd.f32 %v245, %v248
    %vm250 = vweird.f32 %v245
    %v251 = vsel %vm250, %v245, %v249
    %v252 = vmul.f32 %v182, %v251
    %v253 = vmul.f32 %v184, %v251
    %v254 = vmul.f32 %v186, %v251
    %v255 = vmul.f32 %v188, %v251
    %v256 = vmul.f32 %v190, %v251
    %v257 = vmul.f32 %v192, %v251
    %v258 = vmul.f32 %v194, %v251
    %v259 = vmul.f32 %v196, %v251
    %v260 = vmul.f32 %v198, %v251
    %v261 = vmul.f32 %v200, %v251
    %v262 = vmul.f32 %v202, %v251
    %v263 = vmul.f32 %v204, %v251
    %v264 = vmul.f32 %v206, %v251
    %v265 = vmul.f32 %v208, %v251
    %v266 = vmul.f32 %v210, %v251
    %v267 = vmul.f32 %v212, %v251
    %v268 = vmul.f32 %v214, %v251
    %v269 = vmul.f32 %v216, %v251
    %v270 = vmul.f32 %v218, %v251
    %v271 = vmul.f32 %v220, %v251
    %v272 = vmul.f32 %v222, %v251
    %v273 = vmul.f32 %v224, %v251
    %v274 = vmul.f32 %v226, %v251
    %v275 = vmul.f32 %v228, %v251
    %v276 = vmul.f32 %v230, %v251
    %v277 = vmul.f32 %v232, %v251
    %v278 = vmul.f32 %v234, %v251
    %v279 = vmul.f32 %v236, %v251
    %v280 = vmul.f32 %v238, %v251
    %v281 = vmul.f32 %v240, %v251
    %v282 = vmul.f32 %v242, %v251
    %v283 = vmul.f32 %v244, %v251
    %v284 = vsub.f32 %v147, %v252
    %v285 = vsub.f32 %v148, %v253
    %v286 = vsub.f32 %v149, %v254
    %v287 = vsub.f32 %v150, %v255
    %v288 = vsub.f32 %v151, %v256
    %v289 = vsub.f32 %v152, %v257
    %v290 = vsub.f32 %v153, %v258
    %v291 = vsub.f32 %v154, %v259
    %v292 = vsub.f32 %v155, %v260
    %v293 = vsub.f32 %v156, %v261
    %v294 = vsub.f32 %v157, %v262
    %v295 = vsub.f32 %v158, %v263
    %v296 = vsub.f32 %v159, %v264
    %v297 = vsub.f32 %v160, %v265
    %v298 = vsub.f32 %v161, %v266
    %v299 = vsub.f32 %v162, %v267
    %v300 = vsub.f32 %v163, %v268
    %v301 = vsub.f32 %v164, %v269
    %v302 = vsub.f32 %v165, %v270
    %v303 = vsub.f32 %v166, %v271
    %v304 = vsub.f32 %v167, %v272
    %v305 = vsub.f32 %v168, %v273
    %v306 = vsub.f32 %v169, %v274
    %v307 = vsub.f32 %v170, %v275
    %v308 = vsub.f32 %v171, %v276
    %v309 = vsub.f32 %v172, %v277
    %v310 = vsub.f32 %v173, %v278
    %v311 = vsub.f32 %v174, %v279
    %v312 = vsub.f32 %v175, %v280
    %v313 = vsub.f32 %v176, %v281
    %v314 = vsub.f32 %v177, %v282
    %v315 = vsub.f32 %v178, %v283
    %v316 = vmul.f32 %v284, %v284
    %v317 = vmul.f32 %v285, %v285
    %v318 = vmul.f32 %v286, %v286
    %v319 = vmul.f32 %v287, %v287
    %v320 = vmul.f32 %v288, %v288
    %v321 = vmul.f32 %v289, %v289
    %v322 = vmul.f32 %v290, %v290
    %v323 = vmul.f32 %v291, %v291
    %v324 = vmul.f32 %v292, %v292
    %v325 = vmul.f32 %v293, %v293
    %v326 = vmul.f32 %v294, %v294
    %v327 = vmul.f32 %v295, %v295
    %v328 = vmul.f32 %v296, %v296
    %v329 = vmul.f32 %v297, %v297
    %v330 = vmul.f32 %v298, %v298
    %v331 = vmul.f32 %v299, %v299
    %v332 = vmul.f32 %v300, %v300
    %v333 = vmul.f32 %v301, %v301
    %v334 = vmul.f32 %v302, %v302
    %v335 = vmul.f32 %v303, %v303
    %v336 = vmul.f32 %v304, %v304
    %v337 = vmul.f32 %v305, %v305
    %v338 = vmul.f32 %v306, %v306
    %v339 = vmul.f32 %v307, %v307
    %v340 = vmul.f32 %v308, %v308
    %v341 = vmul.f32 %v309, %v309
    %v342 = vmul.f32 %v310, %v310
    %v343 = vmul.f32 %v311, %v311
    %v344 = vmul.f32 %v312, %v312
    %v345 = vmul.f32 %v313, %v313
    %v346 = vmul.f32 %v314, %v314
    %v347 = vmul.f32 %v315, %v315
    %348 = vadd.xlane.f32.xlu0 %v316
    %v349 = vpop.xlane.xlu0 %348
    %350 = vadd.xlane.f32.xlu0 %v317
    %v351 = vpop.xlane.xlu0 %350
    %352 = vadd.xlane.f32.xlu0 %v318
    %v353 = vpop.xlane.xlu0 %352
    %354 = vadd.xlane.f32.xlu0 %v319
    %v355 = vpop.xlane.xlu0 %354
    %356 = vadd.xlane.f32.xlu0 %v320
    %v357 = vpop.xlane.xlu0 %356
    %358 = vadd.xlane.f32.xlu0 %v321
    %v359 = vpop.xlane.xlu0 %358
    %360 = vadd.xlane.f32.xlu0 %v322
    %v361 = vpop.xlane.xlu0 %360
    %362 = vadd.xlane.f32.xlu0 %v323
    %v363 = vpop.xlane.xlu0 %362
    %364 = vadd.xlane.f32.xlu0 %v324
    %v365 = vpop.xlane.xlu0 %364
    %366 = vadd.xlane.f32.xlu0 %v325
    %v367 = vpop.xlane.xlu0 %366
    %368 = vadd.xlane.f32.xlu0 %v326
    %v369 = vpop.xlane.xlu0 %368
    %370 = vadd.xlane.f32.xlu0 %v327
    %v371 = vpop.xlane.xlu0 %370
    %372 = vadd.xlane.f32.xlu0 %v328
    %v373 = vpop.xlane.xlu0 %372
    %374 = vadd.xlane.f32.xlu0 %v329
    %v375 = vpop.xlane.xlu0 %374
    %376 = vadd.xlane.f32.xlu0 %v330
    %v377 = vpop.xlane.xlu0 %376
    %378 = vadd.xlane.f32.xlu0 %v331
    %v379 = vpop.xlane.xlu0 %378
    %380 = vadd.xlane.f32.xlu0 %v332
    %v381 = vpop.xlane.xlu0 %380
    %382 = vadd.xlane.f32.xlu0 %v333
    %v383 = vpop.xlane.xlu0 %382
    %384 = vadd.xlane.f32.xlu0 %v334
    %v385 = vpop.xlane.xlu0 %384
    %386 = vadd.xlane.f32.xlu0 %v335
    %v387 = vpop.xlane.xlu0 %386
    %388 = vadd.xlane.f32.xlu0 %v336
    %v389 = vpop.xlane.xlu0 %388
    %390 = vadd.xlane.f32.xlu0 %v337
    %v391 = vpop.xlane.xlu0 %390
    %392 = vadd.xlane.f32.xlu0 %v338
    %v393 = vpop.xlane.xlu0 %392
    %394 = vadd.xlane.f32.xlu0 %v339
    %v395 = vpop.xlane.xlu0 %394
    %396 = vadd.xlane.f32.xlu0 %v340
    %v397 = vpop.xlane.xlu0 %396
    %398 = vadd.xlane.f32.xlu0 %v341
    %v399 = vpop.xlane.xlu0 %398
    %400 = vadd.xlane.f32.xlu0 %v342
    %v401 = vpop.xlane.xlu0 %400
    %402 = vadd.xlane.f32.xlu0 %v343
    %v403 = vpop.xlane.xlu0 %402
    %404 = vadd.xlane.f32.xlu0 %v344
    %v405 = vpop.xlane.xlu0 %404
    %406 = vadd.xlane.f32.xlu0 %v345
    %v407 = vpop.xlane.xlu0 %406
    %408 = vadd.xlane.f32.xlu0 %v346
    %v409 = vpop.xlane.xlu0 %408
    %410 = vadd.xlane.f32.xlu0 %v347
    %v411 = vpop.xlane.xlu0 %410
    %v412 = vmul.f32 %v349, %v251
    %v413 = vmul.f32 %v351, %v251
    %v414 = vmul.f32 %v353, %v251
    %v415 = vmul.f32 %v355, %v251
    %v416 = vmul.f32 %v357, %v251
    %v417 = vmul.f32 %v359, %v251
    %v418 = vmul.f32 %v361, %v251
    %v419 = vmul.f32 %v363, %v251
    %v420 = vmul.f32 %v365, %v251
    %v421 = vmul.f32 %v367, %v251
    %v422 = vmul.f32 %v369, %v251
    %v423 = vmul.f32 %v371, %v251
    %v424 = vmul.f32 %v373, %v251
    %v425 = vmul.f32 %v375, %v251
    %v426 = vmul.f32 %v377, %v251
    %v427 = vmul.f32 %v379, %v251
    %v428 = vmul.f32 %v381, %v251
    %v429 = vmul.f32 %v383, %v251
    %v430 = vmul.f32 %v385, %v251
    %v431 = vmul.f32 %v387, %v251
    %v432 = vmul.f32 %v389, %v251
    %v433 = vmul.f32 %v391, %v251
    %v434 = vmul.f32 %v393, %v251
    %v435 = vmul.f32 %v395, %v251
    %v436 = vmul.f32 %v397, %v251
    %v437 = vmul.f32 %v399, %v251
    %v438 = vmul.f32 %v401, %v251
    %v439 = vmul.f32 %v403, %v251
    %v440 = vmul.f32 %v405, %v251
    %v441 = vmul.f32 %v407, %v251
    %v442 = vmul.f32 %v409, %v251
    %v443 = vmul.f32 %v411, %v251
    %v444 = vadd.f32 %v412, 1e-05
    %v445 = vadd.f32 %v413, 1e-05
    %v446 = vadd.f32 %v414, 1e-05
    %v447 = vadd.f32 %v415, 1e-05
    %v448 = vadd.f32 %v416, 1e-05
    %v449 = vadd.f32 %v417, 1e-05
    %v450 = vadd.f32 %v418, 1e-05
    %v451 = vadd.f32 %v419, 1e-05
    %v452 = vadd.f32 %v420, 1e-05
    %v453 = vadd.f32 %v421, 1e-05
    %v454 = vadd.f32 %v422, 1e-05
    %v455 = vadd.f32 %v423, 1e-05
    %v456 = vadd.f32 %v424, 1e-05
    %v457 = vadd.f32 %v425, 1e-05
    %v458 = vadd.f32 %v426, 1e-05
    %v459 = vadd.f32 %v427, 1e-05
    %v460 = vadd.f32 %v428, 1e-05
    %v461 = vadd.f32 %v429, 1e-05
    %v462 = vadd.f32 %v430, 1e-05
    %v463 = vadd.f32 %v431, 1e-05
    %v464 = vadd.f32 %v432, 1e-05
    %v465 = vadd.f32 %v433, 1e-05
    %v466 = vadd.f32 %v434, 1e-05
    %v467 = vadd.f32 %v435, 1e-05
    %v468 = vadd.f32 %v436, 1e-05
    %v469 = vadd.f32 %v437, 1e-05
    %v470 = vadd.f32 %v438, 1e-05
    %v471 = vadd.f32 %v439, 1e-05
    %v472 = vadd.f32 %v440, 1e-05
    %v473 = vadd.f32 %v441, 1e-05
    %v474 = vadd.f32 %v442, 1e-05
    %v475 = vadd.f32 %v443, 1e-05
    %v476 = vrsqrt.pop %v444
    %v477 = vmul.f32 %v476, %v444
    %v478 = vmul.f32 %v477, %v476
    %v479 = vmul.f32 0.5, %v478
    %v480 = vsub.f32 1.5, %v479
    %v481 = vmul.f32 %v476, %v480
    %vm482 = vweird.f32 %v444
    %vm483 = vweird.f32 %v476
    %vm484 = vmor %vm482, %vm483
    %v485 = vsel %vm484, %v476, %v481
    %v486 = vrsqrt.pop %v445
    %v487 = vmul.f32 %v486, %v445
    %v488 = vmul.f32 %v487, %v486
    %v489 = vmul.f32 0.5, %v488
    %v490 = vsub.f32 1.5, %v489
    %v491 = vmul.f32 %v486, %v490
    %vm492 = vweird.f32 %v445
    %vm493 = vweird.f32 %v486
    %vm494 = vmor %vm492, %vm493
    %v495 = vsel %vm494, %v486, %v491
    %v496 = vrsqrt.pop %v446
    %v497 = vmul.f32 %v496, %v446
    %v498 = vmul.f32 %v497, %v496
    %v499 = vmul.f32 0.5, %v498
    %v500 = vsub.f32 1.5, %v499
    %v501 = vmul.f32 %v496, %v500
    %vm502 = vweird.f32 %v446
    %vm503 = vweird.f32 %v496
    %vm504 = vmor %vm502, %vm503
    %v505 = vsel %vm504, %v496, %v501
    %v506 = vrsqrt.pop %v447
    %v507 = vmul.f32 %v506, %v447
    %v508 = vmul.f32 %v507, %v506
    %v509 = vmul.f32 0.5, %v508
    %v510 = vsub.f32 1.5, %v509
    %v511 = vmul.f32 %v506, %v510
    %vm512 = vweird.f32 %v447
    %vm513 = vweird.f32 %v506
    %vm514 = vmor %vm512, %vm513
    %v515 = vsel %vm514, %v506, %v511
    %v516 = vrsqrt.pop %v448
    %v517 = vmul.f32 %v516, %v448
    %v518 = vmul.f32 %v517, %v516
    %v519 = vmul.f32 0.5, %v518
    %v520 = vsub.f32 1.5, %v519
    %v521 = vmul.f32 %v516, %v520
    %vm522 = vweird.f32 %v448
    %vm523 = vweird.f32 %v516
    %vm524 = vmor %vm522, %vm523
    %v525 = vsel %vm524, %v516, %v521
    %v526 = vrsqrt.pop %v449
    %v527 = vmul.f32 %v526, %v449
    %v528 = vmul.f32 %v527, %v526
    %v529 = vmul.f32 0.5, %v528
    %v530 = vsub.f32 1.5, %v529
    %v531 = vmul.f32 %v526, %v530
    %vm532 = vweird.f32 %v449
    %vm533 = vweird.f32 %v526
    %vm534 = vmor %vm532, %vm533
    %v535 = vsel %vm534, %v526, %v531
    %v536 = vrsqrt.pop %v450
    %v537 = vmul.f32 %v536, %v450
    %v538 = vmul.f32 %v537, %v536
    %v539 = vmul.f32 0.5, %v538
    %v540 = vsub.f32 1.5, %v539
    %v541 = vmul.f32 %v536, %v540
    %vm542 = vweird.f32 %v450
    %vm543 = vweird.f32 %v536
    %vm544 = vmor %vm542, %vm543
    %v545 = vsel %vm544, %v536, %v541
    %v546 = vrsqrt.pop %v451
    %v547 = vmul.f32 %v546, %v451
    %v548 = vmul.f32 %v547, %v546
    %v549 = vmul.f32 0.5, %v548
    %v550 = vsub.f32 1.5, %v549
    %v551 = vmul.f32 %v546, %v550
    %vm552 = vweird.f32 %v451
    %vm553 = vweird.f32 %v546
    %vm554 = vmor %vm552, %vm553
    %v555 = vsel %vm554, %v546, %v551
    %v556 = vrsqrt.pop %v452
    %v557 = vmul.f32 %v556, %v452
    %v558 = vmul.f32 %v557, %v556
    %v559 = vmul.f32 0.5, %v558
    %v560 = vsub.f32 1.5, %v559
    %v561 = vmul.f32 %v556, %v560
    %vm562 = vweird.f32 %v452
    %vm563 = vweird.f32 %v556
    %vm564 = vmor %vm562, %vm563
    %v565 = vsel %vm564, %v556, %v561
    %v566 = vrsqrt.pop %v453
    %v567 = vmul.f32 %v566, %v453
    %v568 = vmul.f32 %v567, %v566
    %v569 = vmul.f32 0.5, %v568
    %v570 = vsub.f32 1.5, %v569
    %v571 = vmul.f32 %v566, %v570
    %vm572 = vweird.f32 %v453
    %vm573 = vweird.f32 %v566
    %vm574 = vmor %vm572, %vm573
    %v575 = vsel %vm574, %v566, %v571
    %v576 = vrsqrt.pop %v454
    %v577 = vmul.f32 %v576, %v454
    %v578 = vmul.f32 %v577, %v576
    %v579 = vmul.f32 0.5, %v578
    %v580 = vsub.f32 1.5, %v579
    %v581 = vmul.f32 %v576, %v580
    %vm582 = vweird.f32 %v454
    %vm583 = vweird.f32 %v576
    %vm584 = vmor %vm582, %vm583
    %v585 = vsel %vm584, %v576, %v581
    %v586 = vrsqrt.pop %v455
    %v587 = vmul.f32 %v586, %v455
    %v588 = vmul.f32 %v587, %v586
    %v589 = vmul.f32 0.5, %v588
    %v590 = vsub.f32 1.5, %v589
    %v591 = vmul.f32 %v586, %v590
    %vm592 = vweird.f32 %v455
    %vm593 = vweird.f32 %v586
    %vm594 = vmor %vm592, %vm593
    %v595 = vsel %vm594, %v586, %v591
    %v596 = vrsqrt.pop %v456
    %v597 = vmul.f32 %v596, %v456
    %v598 = vmul.f32 %v597, %v596
    %v599 = vmul.f32 0.5, %v598
    %v600 = vsub.f32 1.5, %v599
    %v601 = vmul.f32 %v596, %v600
    %vm602 = vweird.f32 %v456
    %vm603 = vweird.f32 %v596
    %vm604 = vmor %vm602, %vm603
    %v605 = vsel %vm604, %v596, %v601
    %v606 = vrsqrt.pop %v457
    %v607 = vmul.f32 %v606, %v457
    %v608 = vmul.f32 %v607, %v606
    %v609 = vmul.f32 0.5, %v608
    %v610 = vsub.f32 1.5, %v609
    %v611 = vmul.f32 %v606, %v610
    %vm612 = vweird.f32 %v457
    %vm613 = vweird.f32 %v606
    %vm614 = vmor %vm612, %vm613
    %v615 = vsel %vm614, %v606, %v611
    %v616 = vrsqrt.pop %v458
    %v617 = vmul.f32 %v616, %v458
    %v618 = vmul.f32 %v617, %v616
    %v619 = vmul.f32 0.5, %v618
    %v620 = vsub.f32 1.5, %v619
    %v621 = vmul.f32 %v616, %v620
    %vm622 = vweird.f32 %v458
    %vm623 = vweird.f32 %v616
    %vm624 = vmor %vm622, %vm623
    %v625 = vsel %vm624, %v616, %v621
    %v626 = vrsqrt.pop %v459
    %v627 = vmul.f32 %v626, %v459
    %v628 = vmul.f32 %v627, %v626
    %v629 = vmul.f32 0.5, %v628
    %v630 = vsub.f32 1.5, %v629
    %v631 = vmul.f32 %v626, %v630
    %vm632 = vweird.f32 %v459
    %vm633 = vweird.f32 %v626
    %vm634 = vmor %vm632, %vm633
    %v635 = vsel %vm634, %v626, %v631
    %v636 = vrsqrt.pop %v460
    %v637 = vmul.f32 %v636, %v460
    %v638 = vmul.f32 %v637, %v636
    %v639 = vmul.f32 0.5, %v638
    %v640 = vsub.f32 1.5, %v639
    %v641 = vmul.f32 %v636, %v640
    %vm642 = vweird.f32 %v460
    %vm643 = vweird.f32 %v636
    %vm644 = vmor %vm642, %vm643
    %v645 = vsel %vm644, %v636, %v641
    %v646 = vrsqrt.pop %v461
    %v647 = vmul.f32 %v646, %v461
    %v648 = vmul.f32 %v647, %v646
    %v649 = vmul.f32 0.5, %v648
    %v650 = vsub.f32 1.5, %v649
    %v651 = vmul.f32 %v646, %v650
    %vm652 = vweird.f32 %v461
    %vm653 = vweird.f32 %v646
    %vm654 = vmor %vm652, %vm653
    %v655 = vsel %vm654, %v646, %v651
    %v656 = vrsqrt.pop %v462
    %v657 = vmul.f32 %v656, %v462
    %v658 = vmul.f32 %v657, %v656
    %v659 = vmul.f32 0.5, %v658
    %v660 = vsub.f32 1.5, %v659
    %v661 = vmul.f32 %v656, %v660
    %vm662 = vweird.f32 %v462
    %vm663 = vweird.f32 %v656
    %vm664 = vmor %vm662, %vm663
    %v665 = vsel %vm664, %v656, %v661
    %v666 = vrsqrt.pop %v463
    %v667 = vmul.f32 %v666, %v463
    %v668 = vmul.f32 %v667, %v666
    %v669 = vmul.f32 0.5, %v668
    %v670 = vsub.f32 1.5, %v669
    %v671 = vmul.f32 %v666, %v670
    %vm672 = vweird.f32 %v463
    %vm673 = vweird.f32 %v666
    %vm674 = vmor %vm672, %vm673
    %v675 = vsel %vm674, %v666, %v671
    %v676 = vrsqrt.pop %v464
    %v677 = vmul.f32 %v676, %v464
    %v678 = vmul.f32 %v677, %v676
    %v679 = vmul.f32 0.5, %v678
    %v680 = vsub.f32 1.5, %v679
    %v681 = vmul.f32 %v676, %v680
    %vm682 = vweird.f32 %v464
    %vm683 = vweird.f32 %v676
    %vm684 = vmor %vm682, %vm683
    %v685 = vsel %vm684, %v676, %v681
    %v686 = vrsqrt.pop %v465
    %v687 = vmul.f32 %v686, %v465
    %v688 = vmul.f32 %v687, %v686
    %v689 = vmul.f32 0.5, %v688
    %v690 = vsub.f32 1.5, %v689
    %v691 = vmul.f32 %v686, %v690
    %vm692 = vweird.f32 %v465
    %vm693 = vweird.f32 %v686
    %vm694 = vmor %vm692, %vm693
    %v695 = vsel %vm694, %v686, %v691
    %v696 = vrsqrt.pop %v466
    %v697 = vmul.f32 %v696, %v466
    %v698 = vmul.f32 %v697, %v696
    %v699 = vmul.f32 0.5, %v698
    %v700 = vsub.f32 1.5, %v699
    %v701 = vmul.f32 %v696, %v700
    %vm702 = vweird.f32 %v466
    %vm703 = vweird.f32 %v696
    %vm704 = vmor %vm702, %vm703
    %v705 = vsel %vm704, %v696, %v701
    %v706 = vrsqrt.pop %v467
    %v707 = vmul.f32 %v706, %v467
    %v708 = vmul.f32 %v707, %v706
    %v709 = vmul.f32 0.5, %v708
    %v710 = vsub.f32 1.5, %v709
    %v711 = vmul.f32 %v706, %v710
    %vm712 = vweird.f32 %v467
    %vm713 = vweird.f32 %v706
    %vm714 = vmor %vm712, %vm713
    %v715 = vsel %vm714, %v706, %v711
    %v716 = vrsqrt.pop %v468
    %v717 = vmul.f32 %v716, %v468
    %v718 = vmul.f32 %v717, %v716
    %v719 = vmul.f32 0.5, %v718
    %v720 = vsub.f32 1.5, %v719
    %v721 = vmul.f32 %v716, %v720
    %vm722 = vweird.f32 %v468
    %vm723 = vweird.f32 %v716
    %vm724 = vmor %vm722, %vm723
    %v725 = vsel %vm724, %v716, %v721
    %v726 = vrsqrt.pop %v469
    %v727 = vmul.f32 %v726, %v469
    %v728 = vmul.f32 %v727, %v726
    %v729 = vmul.f32 0.5, %v728
    %v730 = vsub.f32 1.5, %v729
    %v731 = vmul.f32 %v726, %v730
    %vm732 = vweird.f32 %v469
    %vm733 = vweird.f32 %v726
    %vm734 = vmor %vm732, %vm733
    %v735 = vsel %vm734, %v726, %v731
    %v736 = vrsqrt.pop %v470
    %v737 = vmul.f32 %v736, %v470
    %v738 = vmul.f32 %v737, %v736
    %v739 = vmul.f32 0.5, %v738
    %v740 = vsub.f32 1.5, %v739
    %v741 = vmul.f32 %v736, %v740
    %vm742 = vweird.f32 %v470
    %vm743 = vweird.f32 %v736
    %vm744 = vmor %vm742, %vm743
    %v745 = vsel %vm744, %v736, %v741
    %v746 = vrsqrt.pop %v471
    %v747 = vmul.f32 %v746, %v471
    %v748 = vmul.f32 %v747, %v746
    %v749 = vmul.f32 0.5, %v748
    %v750 = vsub.f32 1.5, %v749
    %v751 = vmul.f32 %v746, %v750
    %vm752 = vweird.f32 %v471
    %vm753 = vweird.f32 %v746
    %vm754 = vmor %vm752, %vm753
    %v755 = vsel %vm754, %v746, %v751
    %v756 = vrsqrt.pop %v472
    %v757 = vmul.f32 %v756, %v472
    %v758 = vmul.f32 %v757, %v756
    %v759 = vmul.f32 0.5, %v758
    %v760 = vsub.f32 1.5, %v759
    %v761 = vmul.f32 %v756, %v760
    %vm762 = vweird.f32 %v472
    %vm763 = vweird.f32 %v756
    %vm764 = vmor %vm762, %vm763
    %v765 = vsel %vm764, %v756, %v761
    %v766 = vrsqrt.pop %v473
    %v767 = vmul.f32 %v766, %v473
    %v768 = vmul.f32 %v767, %v766
    %v769 = vmul.f32 0.5, %v768
    %v770 = vsub.f32 1.5, %v769
    %v771 = vmul.f32 %v766, %v770
    %vm772 = vweird.f32 %v473
    %vm773 = vweird.f32 %v766
    %vm774 = vmor %vm772, %vm773
    %v775 = vsel %vm774, %v766, %v771
    %v776 = vrsqrt.pop %v474
    %v777 = vmul.f32 %v776, %v474
    %v778 = vmul.f32 %v777, %v776
    %v779 = vmul.f32 0.5, %v778
    %v780 = vsub.f32 1.5, %v779
    %v781 = vmul.f32 %v776, %v780
    %vm782 = vweird.f32 %v474
    %vm783 = vweird.f32 %v776
    %vm784 = vmor %vm782, %vm783
    %v785 = vsel %vm784, %v776, %v781
    %v786 = vrsqrt.pop %v475
    %v787 = vmul.f32 %v786, %v475
    %v788 = vmul.f32 %v787, %v786
    %v789 = vmul.f32 0.5, %v788
    %v790 = vsub.f32 1.5, %v789
    %v791 = vmul.f32 %v786, %v790
    %vm792 = vweird.f32 %v475
    %vm793 = vweird.f32 %v786
    %vm794 = vmor %vm792, %vm793
    %v795 = vsel %vm794, %v786, %v791
    %v796 = vmul.f32 %v284, %v485
    %v797 = vmul.f32 %v285, %v495
    %v798 = vmul.f32 %v286, %v505
    %v799 = vmul.f32 %v287, %v515
    %v800 = vmul.f32 %v288, %v525
    %v801 = vmul.f32 %v289, %v535
    %v802 = vmul.f32 %v290, %v545
    %v803 = vmul.f32 %v291, %v555
    %v804 = vmul.f32 %v292, %v565
    %v805 = vmul.f32 %v293, %v575
    %v806 = vmul.f32 %v294, %v585
    %v807 = vmul.f32 %v295, %v595
    %v808 = vmul.f32 %v296, %v605
    %v809 = vmul.f32 %v297, %v615
    %v810 = vmul.f32 %v298, %v625
    %v811 = vmul.f32 %v299, %v635
    %v812 = vmul.f32 %v300, %v645
    %v813 = vmul.f32 %v301, %v655
    %v814 = vmul.f32 %v302, %v665
    %v815 = vmul.f32 %v303, %v675
    %v816 = vmul.f32 %v304, %v685
    %v817 = vmul.f32 %v305, %v695
    %v818 = vmul.f32 %v306, %v705
    %v819 = vmul.f32 %v307, %v715
    %v820 = vmul.f32 %v308, %v725
    %v821 = vmul.f32 %v309, %v735
    %v822 = vmul.f32 %v310, %v745
    %v823 = vmul.f32 %v311, %v755
    %v824 = vmul.f32 %v312, %v765
    %v825 = vmul.f32 %v313, %v775
    %v826 = vmul.f32 %v314, %v785
    %v827 = vmul.f32 %v315, %v795
    %v829 = vperm.slane %v179, 0
    %v831 = vmul.f32 %v796, %v829
    %v832 = vmul.f32 %v797, %v829
    %v833 = vmul.f32 %v798, %v829
    %v834 = vmul.f32 %v799, %v829
    %v835 = vmul.f32 %v800, %v829
    %v836 = vmul.f32 %v801, %v829
    %v837 = vmul.f32 %v802, %v829
    %v838 = vmul.f32 %v803, %v829
    %v839 = vmul.f32 %v804, %v829
    %v840 = vmul.f32 %v805, %v829
    %v841 = vmul.f32 %v806, %v829
    %v842 = vmul.f32 %v807, %v829
    %v843 = vmul.f32 %v808, %v829
    %v844 = vmul.f32 %v809, %v829
    %v845 = vmul.f32 %v810, %v829
    %v846 = vmul.f32 %v811, %v829
    %v847 = vmul.f32 %v812, %v829
    %v848 = vmul.f32 %v813, %v829
    %v849 = vmul.f32 %v814, %v829
    %v850 = vmul.f32 %v815, %v829
    %v851 = vmul.f32 %v816, %v829
    %v852 = vmul.f32 %v817, %v829
    %v853 = vmul.f32 %v818, %v829
    %v854 = vmul.f32 %v819, %v829
    %v855 = vmul.f32 %v820, %v829
    %v856 = vmul.f32 %v821, %v829
    %v857 = vmul.f32 %v822, %v829
    %v858 = vmul.f32 %v823, %v829
    %v859 = vmul.f32 %v824, %v829
    %v860 = vmul.f32 %v825, %v829
    %v861 = vmul.f32 %v826, %v829
    %v862 = vmul.f32 %v827, %v829
    %v864 = vperm.slane %v180, 0
    %v866 = vadd.f32 %v831, %v864
    %v867 = vadd.f32 %v832, %v864
    %v868 = vadd.f32 %v833, %v864
    %v869 = vadd.f32 %v834, %v864
    %v870 = vadd.f32 %v835, %v864
    %v871 = vadd.f32 %v836, %v864
    %v872 = vadd.f32 %v837, %v864
    %v873 = vadd.f32 %v838, %v864
    %v874 = vadd.f32 %v839, %v864
    %v875 = vadd.f32 %v840, %v864
    %v876 = vadd.f32 %v841, %v864
    %v877 = vadd.f32 %v842, %v864
    %v878 = vadd.f32 %v843, %v864
    %v879 = vadd.f32 %v844, %v864
    %v880 = vadd.f32 %v845, %v864
    %v881 = vadd.f32 %v846, %v864
    %v882 = vadd.f32 %v847, %v864
    %v883 = vadd.f32 %v848, %v864
    %v884 = vadd.f32 %v849, %v864
    %v885 = vadd.f32 %v850, %v864
    %v886 = vadd.f32 %v851, %v864
    %v887 = vadd.f32 %v852, %v864
    %v888 = vadd.f32 %v853, %v864
    %v889 = vadd.f32 %v854, %v864
    %v890 = vadd.f32 %v855, %v864
    %v891 = vadd.f32 %v856, %v864
    %v892 = vadd.f32 %v857, %v864
    %v893 = vadd.f32 %v858, %v864
    %v894 = vadd.f32 %v859, %v864
    %v895 = vadd.f32 %v860, %v864
    %v896 = vadd.f32 %v861, %v864
    %v897 = vadd.f32 %v862, %v864
    %v898 = vpack.c.bf16 %v867, %v866
    %v899 = vpack.c.bf16 %v869, %v868
    %v900 = vpack.c.bf16 %v871, %v870
    %v901 = vpack.c.bf16 %v873, %v872
    %v902 = vpack.c.bf16 %v875, %v874
    %v903 = vpack.c.bf16 %v877, %v876
    %v904 = vpack.c.bf16 %v879, %v878
    %v905 = vpack.c.bf16 %v881, %v880
    %v906 = vpack.c.bf16 %v883, %v882
    %v907 = vpack.c.bf16 %v885, %v884
    %v908 = vpack.c.bf16 %v887, %v886
    %v909 = vpack.c.bf16 %v889, %v888
    %v910 = vpack.c.bf16 %v891, %v890
    %v911 = vpack.c.bf16 %v893, %v892
    %v912 = vpack.c.bf16 %v895, %v894
    %v913 = vpack.c.bf16 %v897, %v896
    %v914 = vld [vmem:[#allocation6] sm:$0xff]
    %v915 = vld [vmem:[#allocation6 + $0x8] sm:$0xf]
    %v916 = vld [vmem:[#allocation6 + $0xc] sm:$0xff]
    %v917 = vld [vmem:[#allocation6 + $0x14] sm:$0xf]
    %v918 = vld [vmem:[#allocation6 + $0x18] sm:$0xff]
    %v919 = vld [vmem:[#allocation6 + $0x20] sm:$0xf]
    %v920 = vld [vmem:[#allocation6 + $0x24] sm:$0xff]
    %v921 = vld [vmem:[#allocation6 + $0x2c] sm:$0xf]
    %v922 = vld [vmem:[#allocation6 + $0x30] sm:$0xff]
    %v923 = vld [vmem:[#allocation6 + $0x38] sm:$0xf]
    %v924 = vld [vmem:[#allocation6 + $0x3c] sm:$0xff]
    %v925 = vld [vmem:[#allocation6 + $0x44] sm:$0xf]
    %v926 = vld [vmem:[#allocation6 + $0x48] sm:$0xff]
    %v927 = vld [vmem:[#allocation6 + $0x50] sm:$0xf]
    %v928 = vld [vmem:[#allocation6 + $0x54] sm:$0xff]
    %v929 = vld [vmem:[#allocation6 + $0x5c] sm:$0xf]
    %v930 = vld [vmem:[#allocation6 + $0x60] sm:$0xff]
    %v931 = vld [vmem:[#allocation6 + $0x68] sm:$0xf]
    %v932 = vld [vmem:[#allocation6 + $0x6c] sm:$0xff]
    %v933 = vld [vmem:[#allocation6 + $0x74] sm:$0xf]
    %v934 = vld [vmem:[#allocation6 + $0x78] sm:$0xff]
    %v935 = vld [vmem:[#allocation6 + $0x80] sm:$0xf]
    %v936 = vld [vmem:[#allocation6 + $0x84] sm:$0xff]
    %v937 = vld [vmem:[#allocation6 + $0x8c] sm:$0xf]
    %v938 = vld [vmem:[#allocation6 + $0x90] sm:$0xff]
    %v939 = vld [vmem:[#allocation6 + $0x98] sm:$0xf]
    %v940 = vld [vmem:[#allocation6 + $0x9c] sm:$0xff]
    %v941 = vld [vmem:[#allocation6 + $0xa4] sm:$0xf]
    %v942 = vld [vmem:[#allocation6 + $0xa8] sm:$0xff]
    %v943 = vld [vmem:[#allocation6 + $0xb0] sm:$0xf]
    %v944 = vld [vmem:[#allocation6 + $0xb4] sm:$0xff]
    %v945 = vld [vmem:[#allocation6 + $0xbc] sm:$0xf]
    %v978 = vunpack.c.l.b16 %v914
    %v979 = vunpack.c.h.b16 %v914
    %v980 = vunpack.c.l.b16 %v915
    %v981 = vunpack.c.l.b16 %v916
    %v982 = vunpack.c.h.b16 %v916
    %v983 = vunpack.c.l.b16 %v917
    %v984 = vunpack.c.l.b16 %v918
    %v985 = vunpack.c.h.b16 %v918
    %v986 = vunpack.c.l.b16 %v919
    %v987 = vunpack.c.l.b16 %v920
    %v988 = vunpack.c.h.b16 %v920
    %v989 = vunpack.c.l.b16 %v921
    %v990 = vunpack.c.l.b16 %v922
    %v991 = vunpack.c.h.b16 %v922
    %v992 = vunpack.c.l.b16 %v923
    %v993 = vunpack.c.l.b16 %v924
    %v994 = vunpack.c.h.b16 %v924
    %v995 = vunpack.c.l.b16 %v925
    %v996 = vunpack.c.l.b16 %v926
    %v997 = vunpack.c.h.b16 %v926
    %v998 = vunpack.c.l.b16 %v927
    %v999 = vunpack.c.l.b16 %v928
    %v1000 = vunpack.c.h.b16 %v928
    %v1001 = vunpack.c.l.b16 %v929
    %v1002 = vunpack.c.l.b16 %v930
    %v1003 = vunpack.c.h.b16 %v930
    %v1004 = vunpack.c.l.b16 %v931
    %v1005 = vunpack.c.l.b16 %v932
    %v1006 = vunpack.c.h.b16 %v932
    %v1007 = vunpack.c.l.b16 %v933
    %v1008 = vunpack.c.l.b16 %v934
    %v1009 = vunpack.c.h.b16 %v934
    %v1010 = vunpack.c.l.b16 %v935
    %v1011 = vunpack.c.l.b16 %v936
    %v1012 = vunpack.c.h.b16 %v936
    %v1013 = vunpack.c.l.b16 %v937
    %v1014 = vunpack.c.l.b16 %v938
    %v1015 = vunpack.c.h.b16 %v938
    %v1016 = vunpack.c.l.b16 %v939
    %v1017 = vunpack.c.l.b16 %v940
    %v1018 = vunpack.c.h.b16 %v940
    %v1019 = vunpack.c.l.b16 %v941
    %v1020 = vunpack.c.l.b16 %v942
    %v1021 = vunpack.c.h.b16 %v942
    %v1022 = vunpack.c.l.b16 %v943
    %v1023 = vunpack.c.l.b16 %v944
    %v1024 = vunpack.c.h.b16 %v944
    %v1025 = vunpack.c.l.b16 %v945
    %v1026 = vpack.c.b16 %v981, %v978
    %v1027 = vpack.c.b16 %v982, %v979
    %v1028 = vpack.c.b16 %v983, %v980
    %v1029 = vpack.c.b16 %v987, %v984
    %v1030 = vpack.c.b16 %v988, %v985
    %v1031 = vpack.c.b16 %v989, %v986
    %v1032 = vpack.c.b16 %v993, %v990
    %v1033 = vpack.c.b16 %v994, %v991
    %v1034 = vpack.c.b16 %v995, %v992
    %v1035 = vpack.c.b16 %v999, %v996
    %v1036 = vpack.c.b16 %v1000, %v997
    %v1037 = vpack.c.b16 %v1001, %v998
    %v1038 = vpack.c.b16 %v1005, %v1002
    %v1039 = vpack.c.b16 %v1006, %v1003
    %v1040 = vpack.c.b16 %v1007, %v1004
    %v1041 = vpack.c.b16 %v1011, %v1008
    %v1042 = vpack.c.b16 %v1012, %v1009
    %v1043 = vpack.c.b16 %v1013, %v1010
    %v1044 = vpack.c.b16 %v1017, %v1014
    %v1045 = vpack.c.b16 %v1018, %v1015
    %v1046 = vpack.c.b16 %v1019, %v1016
    %v1047 = vpack.c.b16 %v1023, %v1020
    %v1048 = vpack.c.b16 %v1024, %v1021
    %v1049 = vpack.c.b16 %v1025, %v1022
    %1074 = vmatpush.bf16.msra.mxu0 %v1047
    %1075 = vmatpush.bf16.msra.mxu0 %v1044
    %1076 = vmatpush.bf16.msra.mxu0 %v1041
    %1077 = vmatpush.bf16.msra.mxu0 %v1038
    %1078 = vmatpush.bf16.msra.mxu0 %v1035
    %1079 = vmatpush.bf16.msra.mxu0 %v1032
    %1080 = vmatpush.bf16.msra.mxu0 %v1029
    %1081 = vmatpush.bf16.msra.mxu0 %v1026
    %1082 = vmatmul.bf16.gmra.mxu0 %v898
    %v1083 = vpop.f32.mrf.mxu0
    %v1084 = vadd.f32 0.0, %v1083
    %v1085 = vpop.f32.mrf.mxu0
    %v1086 = vadd.f32 0.0, %v1085
    %1087 = vmatmul.bf16.gmra.mxu0 %v899
    %v1088 = vpop.f32.mrf.mxu0
    %v1089 = vadd.f32 0.0, %v1088
    %v1090 = vpop.f32.mrf.mxu0
    %v1091 = vadd.f32 0.0, %v1090
    %1092 = vmatmul.bf16.gmra.mxu0 %v900
    %v1093 = vpop.f32.mrf.mxu0
    %v1094 = vadd.f32 0.0, %v1093
    %v1095 = vpop.f32.mrf.mxu0
    %v1096 = vadd.f32 0.0, %v1095
    %1097 = vmatmul.bf16.gmra.mxu0 %v901
    %v1098 = vpop.f32.mrf.mxu0
    %v1099 = vadd.f32 0.0, %v1098
    %v1100 = vpop.f32.mrf.mxu0
    %v1101 = vadd.f32 0.0, %v1100
    %1102 = vmatmul.bf16.gmra.mxu0 %v902
    %v1103 = vpop.f32.mrf.mxu0
    %v1104 = vadd.f32 0.0, %v1103
    %v1105 = vpop.f32.mrf.mxu0
    %v1106 = vadd.f32 0.0, %v1105
    %1107 = vmatmul.bf16.gmra.mxu0 %v903
    %v1108 = vpop.f32.mrf.mxu0
    %v1109 = vadd.f32 0.0, %v1108
    %v1110 = vpop.f32.mrf.mxu0
    %v1111 = vadd.f32 0.0, %v1110
    %1112 = vmatmul.bf16.gmra.mxu0 %v904
    %v1113 = vpop.f32.mrf.mxu0
    %v1114 = vadd.f32 0.0, %v1113
    %v1115 = vpop.f32.mrf.mxu0
    %v1116 = vadd.f32 0.0, %v1115
    %1117 = vmatmul.bf16.gmra.mxu0 %v905
    %v1118 = vpop.f32.mrf.mxu0
    %v1119 = vadd.f32 0.0, %v1118
    %v1120 = vpop.f32.mrf.mxu0
    %v1121 = vadd.f32 0.0, %v1120
    %1122 = vmatmul.bf16.gmra.mxu0 %v906
    %v1123 = vpop.f32.mrf.mxu0
    %v1124 = vadd.f32 0.0, %v1123
    %v1125 = vpop.f32.mrf.mxu0
    %v1126 = vadd.f32 0.0, %v1125
    %1127 = vmatmul.bf16.gmra.mxu0 %v907
    %v1128 = vpop.f32.mrf.mxu0
    %v1129 = vadd.f32 0.0, %v1128
    %v1130 = vpop.f32.mrf.mxu0
    %v1131 = vadd.f32 0.0, %v1130
    %1132 = vmatmul.bf16.gmra.mxu0 %v908
    %v1133 = vpop.f32.mrf.mxu0
    %v1134 = vadd.f32 0.0, %v1133
    %v1135 = vpop.f32.mrf.mxu0
    %v1136 = vadd.f32 0.0, %v1135
    %1137 = vmatmul.bf16.gmra.mxu0 %v909
    %v1138 = vpop.f32.mrf.mxu0
    %v1139 = vadd.f32 0.0, %v1138
    %v1140 = vpop.f32.mrf.mxu0
    %v1141 = vadd.f32 0.0, %v1140
    %1142 = vmatmul.bf16.gmra.mxu0 %v910
    %v1143 = vpop.f32.mrf.mxu0
    %v1144 = vadd.f32 0.0, %v1143
    %v1145 = vpop.f32.mrf.mxu0
    %v1146 = vadd.f32 0.0, %v1145
    %1147 = vmatmul.bf16.gmra.mxu0 %v911
    %v1148 = vpop.f32.mrf.mxu0
    %v1149 = vadd.f32 0.0, %v1148
    %v1150 = vpop.f32.mrf.mxu0
    %v1151 = vadd.f32 0.0, %v1150
    %1152 = vmatmul.bf16.gmra.mxu0 %v912
    %v1153 = vpop.f32.mrf.mxu0
    %v1154 = vadd.f32 0.0, %v1153
    %v1155 = vpop.f32.mrf.mxu0
    %v1156 = vadd.f32 0.0, %v1155
    %1157 = vmatmul.bf16.gmra.mxu0 %v913
    %v1158 = vpop.f32.mrf.mxu0
    %v1159 = vadd.f32 0.0, %v1158
    %v1160 = vpop.f32.mrf.mxu0
    %v1161 = vadd.f32 0.0, %v1160
    %1162 = vdwg.mxu0
    %1163 = vmatpush.bf16.msra.mxu0 %v1048
    %1164 = vmatpush.bf16.msra.mxu0 %v1045
    %1165 = vmatpush.bf16.msra.mxu0 %v1042
    %1166 = vmatpush.bf16.msra.mxu0 %v1039
    %1167 = vmatpush.bf16.msra.mxu0 %v1036
    %1168 = vmatpush.bf16.msra.mxu0 %v1033
    %1169 = vmatpush.bf16.msra.mxu0 %v1030
    %1170 = vmatpush.bf16.msra.mxu0 %v1027
    %1171 = vmatmul.bf16.gmra.mxu0 %v898
    %v1172 = vpop.f32.mrf.mxu0
    %v1173 = vadd.f32 0.0, %v1172
    %v1174 = vpop.f32.mrf.mxu0
    %v1175 = vadd.f32 0.0, %v1174
    %1176 = vmatmul.bf16.gmra.mxu0 %v899
    %v1177 = vpop.f32.mrf.mxu0
    %v1178 = vadd.f32 0.0, %v1177
    %v1179 = vpop.f32.mrf.mxu0
    %v1180 = vadd.f32 0.0, %v1179
    %1181 = vmatmul.bf16.gmra.mxu0 %v900
    %v1182 = vpop.f32.mrf.mxu0
    %v1183 = vadd.f32 0.0, %v1182
    %v1184 = vpop.f32.mrf.mxu0
    %v1185 = vadd.f32 0.0, %v1184
    %1186 = vmatmul.bf16.gmra.mxu0 %v901
    %v1187 = vpop.f32.mrf.mxu0
    %v1188 = vadd.f32 0.0, %v1187
    %v1189 = vpop.f32.mrf.mxu0
    %v1190 = vadd.f32 0.0, %v1189
    %1191 = vmatmul.bf16.gmra.mxu0 %v902
    %v1192 = vpop.f32.mrf.mxu0
    %v1193 = vadd.f32 0.0, %v1192
    %v1194 = vpop.f32.mrf.mxu0
    %v1195 = vadd.f32 0.0, %v1194
    %1196 = vmatmul.bf16.gmra.mxu0 %v903
    %v1197 = vpop.f32.mrf.mxu0
    %v1198 = vadd.f32 0.0, %v1197
    %v1199 = vpop.f32.mrf.mxu0
    %v1200 = vadd.f32 0.0, %v1199
    %1201 = vmatmul.bf16.gmra.mxu0 %v904
    %v1202 = vpop.f32.mrf.mxu0
    %v1203 = vadd.f32 0.0, %v1202
    %v1204 = vpop.f32.mrf.mxu0
    %v1205 = vadd.f32 0.0, %v1204
    %1206 = vmatmul.bf16.gmra.mxu0 %v905
    %v1207 = vpop.f32.mrf.mxu0
    %v1208 = vadd.f32 0.0, %v1207
    %v1209 = vpop.f32.mrf.mxu0
    %v1210 = vadd.f32 0.0, %v1209
    %1211 = vmatmul.bf16.gmra.mxu0 %v906
    %v1212 = vpop.f32.mrf.mxu0
    %v1213 = vadd.f32 0.0, %v1212
    %v1214 = vpop.f32.mrf.mxu0
    %v1215 = vadd.f32 0.0, %v1214
    %1216 = vmatmul.bf16.gmra.mxu0 %v907
    %v1217 = vpop.f32.mrf.mxu0
    %v1218 = vadd.f32 0.0, %v1217
    %v1219 = vpop.f32.mrf.mxu0
    %v1220 = vadd.f32 0.0, %v1219
    %1221 = vmatmul.bf16.gmra.mxu0 %v908
    %v1222 = vpop.f32.mrf.mxu0
    %v1223 = vadd.f32 0.0, %v1222
    %v1224 = vpop.f32.mrf.mxu0
    %v1225 = vadd.f32 0.0, %v1224
    %1226 = vmatmul.bf16.gmra.mxu0 %v909
    %v1227 = vpop.f32.mrf.mxu0
    %v1228 = vadd.f32 0.0, %v1227
    %v1229 = vpop.f32.mrf.mxu0
    %v1230 = vadd.f32 0.0, %v1229
    %1231 = vmatmul.bf16.gmra.mxu0 %v910
    %v1232 = vpop.f32.mrf.mxu0
    %v1233 = vadd.f32 0.0, %v1232
    %v1234 = vpop.f32.mrf.mxu0
    %v1235 = vadd.f32 0.0, %v1234
    %1236 = vmatmul.bf16.gmra.mxu0 %v911
    %v1237 = vpop.f32.mrf.mxu0
    %v1238 = vadd.f32 0.0, %v1237
    %v1239 = vpop.f32.mrf.mxu0
    %v1240 = vadd.f32 0.0, %v1239
    %1241 = vmatmul.bf16.gmra.mxu0 %v912
    %v1242 = vpop.f32.mrf.mxu0
    %v1243 = vadd.f32 0.0, %v1242
    %v1244 = vpop.f32.mrf.mxu0
    %v1245 = vadd.f32 0.0, %v1244
    %1246 = vmatmul.bf16.gmra.mxu0 %v913
    %v1247 = vpop.f32.mrf.mxu0
    %v1248 = vadd.f32 0.0, %v1247
    %v1249 = vpop.f32.mrf.mxu0
    %v1250 = vadd.f32 0.0, %v1249
    %1251 = vdwg.mxu0
    %1252 = vmatpush.bf16.msra.mxu0 %v1049
    %1253 = vmatpush.bf16.msra.mxu0 %v1046
    %1254 = vmatpush.bf16.msra.mxu0 %v1043
    %1255 = vmatpush.bf16.msra.mxu0 %v1040
    %1256 = vmatpush.bf16.msra.mxu0 %v1037
    %1257 = vmatpush.bf16.msra.mxu0 %v1034
    %1258 = vmatpush.bf16.msra.mxu0 %v1031
    %1259 = vmatpush.bf16.msra.mxu0 %v1028
    %1260 = vmatmul.bf16.gmra.mxu0 %v898
    %v1261 = vpop.f32.mrf.mxu0
    %v1262 = vadd.f32 0.0, %v1261
    %v1263 = vpop.f32.mrf.mxu0
    %v1264 = vadd.f32 0.0, %v1263
    %1265 = vmatmul.bf16.gmra.mxu0 %v899
    %v1266 = vpop.f32.mrf.mxu0
    %v1267 = vadd.f32 0.0, %v1266
    %v1268 = vpop.f32.mrf.mxu0
    %v1269 = vadd.f32 0.0, %v1268
    %1270 = vmatmul.bf16.gmra.mxu0 %v900
    %v1271 = vpop.f32.mrf.mxu0
    %v1272 = vadd.f32 0.0, %v1271
    %v1273 = vpop.f32.mrf.mxu0
    %v1274 = vadd.f32 0.0, %v1273
    %1275 = vmatmul.bf16.gmra.mxu0 %v901
    %v1276 = vpop.f32.mrf.mxu0
    %v1277 = vadd.f32 0.0, %v1276
    %v1278 = vpop.f32.mrf.mxu0
    %v1279 = vadd.f32 0.0, %v1278
    %1280 = vmatmul.bf16.gmra.mxu0 %v902
    %v1281 = vpop.f32.mrf.mxu0
    %v1282 = vadd.f32 0.0, %v1281
    %v1283 = vpop.f32.mrf.mxu0
    %v1284 = vadd.f32 0.0, %v1283
    %1285 = vmatmul.bf16.gmra.mxu0 %v903
    %v1286 = vpop.f32.mrf.mxu0
    %v1287 = vadd.f32 0.0, %v1286
    %v1288 = vpop.f32.mrf.mxu0
    %v1289 = vadd.f32 0.0, %v1288
    %1290 = vmatmul.bf16.gmra.mxu0 %v904
    %v1291 = vpop.f32.mrf.mxu0
    %v1292 = vadd.f32 0.0, %v1291
    %v1293 = vpop.f32.mrf.mxu0
    %v1294 = vadd.f32 0.0, %v1293
    %1295 = vmatmul.bf16.gmra.mxu0 %v905
    %v1296 = vpop.f32.mrf.mxu0
    %v1297 = vadd.f32 0.0, %v1296
    %v1298 = vpop.f32.mrf.mxu0
    %v1299 = vadd.f32 0.0, %v1298
    %1300 = vmatmul.bf16.gmra.mxu0 %v906
    %v1301 = vpop.f32.mrf.mxu0
    %v1302 = vadd.f32 0.0, %v1301
    %v1303 = vpop.f32.mrf.mxu0
    %v1304 = vadd.f32 0.0, %v1303
    %1305 = vmatmul.bf16.gmra.mxu0 %v907
    %v1306 = vpop.f32.mrf.mxu0
    %v1307 = vadd.f32 0.0, %v1306
    %v1308 = vpop.f32.mrf.mxu0
    %v1309 = vadd.f32 0.0, %v1308
    %1310 = vmatmul.bf16.gmra.mxu0 %v908
    %v1311 = vpop.f32.mrf.mxu0
    %v1312 = vadd.f32 0.0, %v1311
    %v1313 = vpop.f32.mrf.mxu0
    %v1314 = vadd.f32 0.0, %v1313
    %1315 = vmatmul.bf16.gmra.mxu0 %v909
    %v1316 = vpop.f32.mrf.mxu0
    %v1317 = vadd.f32 0.0, %v1316
    %v1318 = vpop.f32.mrf.mxu0
    %v1319 = vadd.f32 0.0, %v1318
    %1320 = vmatmul.bf16.gmra.mxu0 %v910
    %v1321 = vpop.f32.mrf.mxu0
    %v1322 = vadd.f32 0.0, %v1321
    %v1323 = vpop.f32.mrf.mxu0
    %v1324 = vadd.f32 0.0, %v1323
    %1325 = vmatmul.bf16.gmra.mxu0 %v911
    %v1326 = vpop.f32.mrf.mxu0
    %v1327 = vadd.f32 0.0, %v1326
    %v1328 = vpop.f32.mrf.mxu0
    %v1329 = vadd.f32 0.0, %v1328
    %1330 = vmatmul.bf16.gmra.mxu0 %v912
    %v1331 = vpop.f32.mrf.mxu0
    %v1332 = vadd.f32 0.0, %v1331
    %v1333 = vpop.f32.mrf.mxu0
    %v1334 = vadd.f32 0.0, %v1333
    %1335 = vmatmul.bf16.gmra.mxu0 %v913
    %v1336 = vpop.f32.mrf.mxu0
    %v1337 = vadd.f32 0.0, %v1336
    %v1338 = vpop.f32.mrf.mxu0
    %v1339 = vadd.f32 0.0, %v1338
    %1340 = vdwg.mxu0
    %v1341 = vpack.c.bf16 %v1173, %v1084
    %v1342 = vpack.c.bf16 %v1262, %v1262
    %v1343 = vpack.c.bf16 %v1175, %v1086
    %v1344 = vpack.c.bf16 %v1264, %v1264
    %v1345 = vpack.c.bf16 %v1178, %v1089
    %v1346 = vpack.c.bf16 %v1267, %v1267
    %v1347 = vpack.c.bf16 %v1180, %v1091
    %v1348 = vpack.c.bf16 %v1269, %v1269
    %v1349 = vpack.c.bf16 %v1183, %v1094
    %v1350 = vpack.c.bf16 %v1272, %v1272
    %v1351 = vpack.c.bf16 %v1185, %v1096
    %v1352 = vpack.c.bf16 %v1274, %v1274
    %v1353 = vpack.c.bf16 %v1188, %v1099
    %v1354 = vpack.c.bf16 %v1277, %v1277
    %v1355 = vpack.c.bf16 %v1190, %v1101
    %v1356 = vpack.c.bf16 %v1279, %v1279
    %v1357 = vpack.c.bf16 %v1193, %v1104
    %v1358 = vpack.c.bf16 %v1282, %v1282
    %v1359 = vpack.c.bf16 %v1195, %v1106
    %v1360 = vpack.c.bf16 %v1284, %v1284
    %v1361 = vpack.c.bf16 %v1198, %v1109
    %v1362 = vpack.c.bf16 %v1287, %v1287
    %v1363 = vpack.c.bf16 %v1200, %v1111
    %v1364 = vpack.c.bf16 %v1289, %v1289
    %v1365 = vpack.c.bf16 %v1203, %v1114
    %v1366 = vpack.c.bf16 %v1292, %v1292
    %v1367 = vpack.c.bf16 %v1205, %v1116
    %v1368 = vpack.c.bf16 %v1294, %v1294
    %v1369 = vpack.c.bf16 %v1208, %v1119
    %v1370 = vpack.c.bf16 %v1297, %v1297
    %v1371 = vpack.c.bf16 %v1210, %v1121
    %v1372 = vpack.c.bf16 %v1299, %v1299
    %v1373 = vpack.c.bf16 %v1213, %v1124
    %v1374 = vpack.c.bf16 %v1302, %v1302
    %v1375 = vpack.c.bf16 %v1215, %v1126
    %v1376 = vpack.c.bf16 %v1304, %v1304
    %v1377 = vpack.c.bf16 %v1218, %v1129
    %v1378 = vpack.c.bf16 %v1307, %v1307
    %v1379 = vpack.c.bf16 %v1220, %v1131
    %v1380 = vpack.c.bf16 %v1309, %v1309
    %v1381 = vpack.c.bf16 %v1223, %v1134
    %v1382 = vpack.c.bf16 %v1312, %v1312
    %v1383 = vpack.c.bf16 %v1225, %v1136
    %v1384 = vpack.c.bf16 %v1314, %v1314
    %v1385 = vpack.c.bf16 %v1228, %v1139
    %v1386 = vpack.c.bf16 %v1317, %v1317
    %v1387 = vpack.c.bf16 %v1230, %v1141
    %v1388 = vpack.c.bf16 %v1319, %v1319
    %v1389 = vpack.c.bf16 %v1233, %v1144
    %v1390 = vpack.c.bf16 %v1322, %v1322
    %v1391 = vpack.c.bf16 %v1235, %v1146
    %v1392 = vpack.c.bf16 %v1324, %v1324
    %v1393 = vpack.c.bf16 %v1238, %v1149
    %v1394 = vpack.c.bf16 %v1327, %v1327
    %v1395 = vpack.c.bf16 %v1240, %v1151
    %v1396 = vpack.c.bf16 %v1329, %v1329
    %v1397 = vpack.c.bf16 %v1243, %v1154
    %v1398 = vpack.c.bf16 %v1332, %v1332
    %v1399 = vpack.c.bf16 %v1245, %v1156
    %v1400 = vpack.c.bf16 %v1334, %v1334
    %v1401 = vpack.c.bf16 %v1248, %v1159
    %v1402 = vpack.c.bf16 %v1337, %v1337
    %v1403 = vpack.c.bf16 %v1250, %v1161
    %v1404 = vpack.c.bf16 %v1339, %v1339
    %v1405 = vlaneseq
    %v1406 = vshrl.u32 %v1405, 7
    %v1407 = vadd.s32 %v1406, 8
    %v1408 = vadd.s32 %v1406, 16
    %v1409 = vadd.s32 %v1406, 24
    %v1410 = vadd.s32 %v1406, 32
    %v1411 = vadd.s32 %v1406, 40
    %v1412 = vadd.s32 %v1406, 48
    %v1413 = vadd.s32 %v1406, 56
    %v1414 = vadd.s32 %v1406, 64
    %v1415 = vadd.s32 %v1406, 72
    %v1416 = vadd.s32 %v1406, 80
    %v1417 = vadd.s32 %v1406, 88
    %v1418 = vadd.s32 %v1406, 96
    %v1419 = vadd.s32 %v1406, 104
    %v1420 = vadd.s32 %v1406, 112
    %v1421 = vadd.s32 %v1406, 120
    %v1422 = vlaneseq
    %v1423 = vand.u32 %v1422, 127
    %vm1424 = vcmp.le.s32.totalorder %v1423, %v1406
    %vm1425 = vcmp.le.s32.totalorder %v1423, %v1407
    %vm1426 = vcmp.le.s32.totalorder %v1423, %v1408
    %vm1427 = vcmp.le.s32.totalorder %v1423, %v1409
    %vm1428 = vcmp.le.s32.totalorder %v1423, %v1410
    %vm1429 = vcmp.le.s32.totalorder %v1423, %v1411
    %vm1430 = vcmp.le.s32.totalorder %v1423, %v1412
    %vm1431 = vcmp.le.s32.totalorder %v1423, %v1413
    %vm1432 = vcmp.le.s32.totalorder %v1423, %v1414
    %vm1433 = vcmp.le.s32.totalorder %v1423, %v1415
    %vm1434 = vcmp.le.s32.totalorder %v1423, %v1416
    %vm1435 = vcmp.le.s32.totalorder %v1423, %v1417
    %vm1436 = vcmp.le.s32.totalorder %v1423, %v1418
    %vm1437 = vcmp.le.s32.totalorder %v1423, %v1419
    %vm1438 = vcmp.le.s32.totalorder %v1423, %v1420
    %vm1439 = vcmp.le.s32.totalorder %v1423, %v1421
    %v1440 = vsel %vm1424, 0.0, -1e+30
    %v1441 = vsel %vm1425, 0.0, -1e+30
    %v1442 = vsel %vm1426, 0.0, -1e+30
    %v1443 = vsel %vm1427, 0.0, -1e+30
    %v1444 = vsel %vm1428, 0.0, -1e+30
    %v1445 = vsel %vm1429, 0.0, -1e+30
    %v1446 = vsel %vm1430, 0.0, -1e+30
    %v1447 = vsel %vm1431, 0.0, -1e+30
    %v1448 = vsel %vm1432, 0.0, -1e+30
    %v1449 = vsel %vm1433, 0.0, -1e+30
    %v1450 = vsel %vm1434, 0.0, -1e+30
    %v1451 = vsel %vm1435, 0.0, -1e+30
    %v1452 = vsel %vm1436, 0.0, -1e+30
    %v1453 = vsel %vm1437, 0.0, -1e+30
    %v1454 = vsel %vm1438, 0.0, -1e+30
    %v1455 = vsel %vm1439, 0.0, -1e+30
    %v1472 = vunpack.c.l.b16 %v1341
    %v1473 = vunpack.c.l.b16 %v1343
    %v1474 = vunpack.c.l.b16 %v1345
    %v1475 = vunpack.c.l.b16 %v1347
    %v1476 = vunpack.c.l.b16 %v1349
    %v1477 = vunpack.c.l.b16 %v1351
    %v1478 = vunpack.c.l.b16 %v1353
    %v1479 = vunpack.c.l.b16 %v1355
    %v1480 = vunpack.c.l.b16 %v1357
    %v1481 = vunpack.c.l.b16 %v1359
    %v1482 = vunpack.c.l.b16 %v1361
    %v1483 = vunpack.c.l.b16 %v1363
    %v1484 = vunpack.c.l.b16 %v1365
    %v1485 = vunpack.c.l.b16 %v1367
    %v1486 = vunpack.c.l.b16 %v1369
    %v1487 = vunpack.c.l.b16 %v1371
    %v1488 = vpack.c.b16 %v1473, %v1472
    %v1489 = vpack.c.b16 %v1475, %v1474
    %v1490 = vpack.c.b16 %v1477, %v1476
    %v1491 = vpack.c.b16 %v1479, %v1478
    %v1492 = vpack.c.b16 %v1481, %v1480
    %v1493 = vpack.c.b16 %v1483, %v1482
    %v1494 = vpack.c.b16 %v1485, %v1484
    %v1495 = vpack.c.b16 %v1487, %v1486
    %v1496 = vunpack.c.h.b16 %v1341
    %v1497 = vunpack.c.h.b16 %v1343
    %v1498 = vunpack.c.h.b16 %v1345
    %v1499 = vunpack.c.h.b16 %v1347
    %v1500 = vunpack.c.h.b16 %v1349
    %v1501 = vunpack.c.h.b16 %v1351
    %v1502 = vunpack.c.h.b16 %v1353
    %v1503 = vunpack.c.h.b16 %v1355
    %v1504 = vunpack.c.h.b16 %v1357
    %v1505 = vunpack.c.h.b16 %v1359
    %v1506 = vunpack.c.h.b16 %v1361
    %v1507 = vunpack.c.h.b16 %v1363
    %v1508 = vunpack.c.h.b16 %v1365
    %v1509 = vunpack.c.h.b16 %v1367
    %v1510 = vunpack.c.h.b16 %v1369
    %v1511 = vunpack.c.h.b16 %v1371
    %v1512 = vpack.c.b16 %v1497, %v1496
    %v1513 = vpack.c.b16 %v1499, %v1498
    %v1514 = vpack.c.b16 %v1501, %v1500
    %v1515 = vpack.c.b16 %v1503, %v1502
    %v1516 = vpack.c.b16 %v1505, %v1504
    %v1517 = vpack.c.b16 %v1507, %v1506
    %v1518 = vpack.c.b16 %v1509, %v1508
    %v1519 = vpack.c.b16 %v1511, %v1510
    %vm1520 = vcmask 261120
    %v1522 = vsel %vm1520, %v1488, 0
    %v1525 = vsel %vm1520, %v1489, 0
    %v1528 = vsel %vm1520, %v1490, 0
    %v1531 = vsel %vm1520, %v1491, 0
    %v1534 = vsel %vm1520, %v1492, 0
    %v1537 = vsel %vm1520, %v1493, 0
    %v1540 = vsel %vm1520, %v1494, 0
    %v1543 = vsel %vm1520, %v1495, 0
    %v1546 = vsel %vm1520, %v1512, 0
    %v1549 = vsel %vm1520, %v1513, 0
    %v1552 = vsel %vm1520, %v1514, 0
    %v1555 = vsel %vm1520, %v1515, 0
    %v1558 = vsel %vm1520, %v1516, 0
    %v1561 = vsel %vm1520, %v1517, 0
    %v1564 = vsel %vm1520, %v1518, 0
    %v1567 = vsel %vm1520, %v1519, 0
    %1569 = vmatpush.bf16.xpose.msra.mxu0 %v1567
    %1570 = vmatpush.bf16.xpose.msra.mxu0 %v1564
    %1571 = vmatpush.bf16.xpose.msra.mxu0 %v1561
    %1572 = vmatpush.bf16.xpose.msra.mxu0 %v1558
    %1573 = vmatpush.bf16.xpose.msra.mxu0 %v1555
    %1574 = vmatpush.bf16.xpose.msra.mxu0 %v1552
    %1575 = vmatpush.bf16.xpose.msra.mxu0 %v1549
    %1576 = vmatpush.bf16.xpose.msra.mxu0 %v1546
    %1577 = vmatmul.bf16.gmra.mxu0 %v1522
    %v1578 = vpop.f32.mrf.mxu0
    %v1579 = vadd.f32 %v1440, %v1578
    %v1580 = vpop.f32.mrf.mxu0
    %v1581 = vadd.f32 %v1441, %v1580
    %1582 = vmatmul.bf16.gmra.mxu0 %v1525
    %v1583 = vpop.f32.mrf.mxu0
    %v1584 = vadd.f32 %v1442, %v1583
    %v1585 = vpop.f32.mrf.mxu0
    %v1586 = vadd.f32 %v1443, %v1585
    %1587 = vmatmul.bf16.gmra.mxu0 %v1528
    %v1588 = vpop.f32.mrf.mxu0
    %v1589 = vadd.f32 %v1444, %v1588
    %v1590 = vpop.f32.mrf.mxu0
    %v1591 = vadd.f32 %v1445, %v1590
    %1592 = vmatmul.bf16.gmra.mxu0 %v1531
    %v1593 = vpop.f32.mrf.mxu0
    %v1594 = vadd.f32 %v1446, %v1593
    %v1595 = vpop.f32.mrf.mxu0
    %v1596 = vadd.f32 %v1447, %v1595
    %1597 = vmatmul.bf16.gmra.mxu0 %v1534
    %v1598 = vpop.f32.mrf.mxu0
    %v1599 = vadd.f32 %v1448, %v1598
    %v1600 = vpop.f32.mrf.mxu0
    %v1601 = vadd.f32 %v1449, %v1600
    %1602 = vmatmul.bf16.gmra.mxu0 %v1537
    %v1603 = vpop.f32.mrf.mxu0
    %v1604 = vadd.f32 %v1450, %v1603
    %v1605 = vpop.f32.mrf.mxu0
    %v1606 = vadd.f32 %v1451, %v1605
    %1607 = vmatmul.bf16.gmra.mxu0 %v1540
    %v1608 = vpop.f32.mrf.mxu0
    %v1609 = vadd.f32 %v1452, %v1608
    %v1610 = vpop.f32.mrf.mxu0
    %v1611 = vadd.f32 %v1453, %v1610
    %1612 = vmatmul.bf16.gmra.mxu0 %v1543
    %v1613 = vpop.f32.mrf.mxu0
    %v1614 = vadd.f32 %v1454, %v1613
    %v1615 = vpop.f32.mrf.mxu0
    %v1616 = vadd.f32 %v1455, %v1615
    %1617 = vdwg.mxu0
    %1618 = vmax.xlane.f32.xlu0 %v1579
    %v1619 = vpop.xlane.xlu0 %1618
    %1620 = vmax.xlane.f32.xlu0 %v1581
    %v1621 = vpop.xlane.xlu0 %1620
    %1622 = vmax.xlane.f32.xlu0 %v1584
    %v1623 = vpop.xlane.xlu0 %1622
    %1624 = vmax.xlane.f32.xlu0 %v1586
    %v1625 = vpop.xlane.xlu0 %1624
    %1626 = vmax.xlane.f32.xlu0 %v1589
    %v1627 = vpop.xlane.xlu0 %1626
    %1628 = vmax.xlane.f32.xlu0 %v1591
    %v1629 = vpop.xlane.xlu0 %1628
    %1630 = vmax.xlane.f32.xlu0 %v1594
    %v1631 = vpop.xlane.xlu0 %1630
    %1632 = vmax.xlane.f32.xlu0 %v1596
    %v1633 = vpop.xlane.xlu0 %1632
    %1634 = vmax.xlane.f32.xlu0 %v1599
    %v1635 = vpop.xlane.xlu0 %1634
    %1636 = vmax.xlane.f32.xlu0 %v1601
    %v1637 = vpop.xlane.xlu0 %1636
    %1638 = vmax.xlane.f32.xlu0 %v1604
    %v1639 = vpop.xlane.xlu0 %1638
    %1640 = vmax.xlane.f32.xlu0 %v1606
    %v1641 = vpop.xlane.xlu0 %1640
    %1642 = vmax.xlane.f32.xlu0 %v1609
    %v1643 = vpop.xlane.xlu0 %1642
    %1644 = vmax.xlane.f32.xlu0 %v1611
    %v1645 = vpop.xlane.xlu0 %1644
    %1646 = vmax.xlane.f32.xlu0 %v1614
    %v1647 = vpop.xlane.xlu0 %1646
    %1648 = vmax.xlane.f32.xlu0 %v1616
    %v1649 = vpop.xlane.xlu0 %1648
    %v1650 = vsub.f32 %v1579, %v1619
    %v1651 = vsub.f32 %v1581, %v1621
    %v1652 = vsub.f32 %v1584, %v1623
    %v1653 = vsub.f32 %v1586, %v1625
    %v1654 = vsub.f32 %v1589, %v1627
    %v1655 = vsub.f32 %v1591, %v1629
    %v1656 = vsub.f32 %v1594, %v1631
    %v1657 = vsub.f32 %v1596, %v1633
    %v1658 = vsub.f32 %v1599, %v1635
    %v1659 = vsub.f32 %v1601, %v1637
    %v1660 = vsub.f32 %v1604, %v1639
    %v1661 = vsub.f32 %v1606, %v1641
    %v1662 = vsub.f32 %v1609, %v1643
    %v1663 = vsub.f32 %v1611, %v1645
    %v1664 = vsub.f32 %v1614, %v1647
    %v1665 = vsub.f32 %v1616, %v1649
    %v1666 = vmul.f32 %v1650, 1.442695
    %v1667 = vpow.pop %v1666
    %v1668 = vmul.f32 %v1651, 1.442695
    %v1669 = vpow.pop %v1668
    %v1670 = vmul.f32 %v1652, 1.442695
    %v1671 = vpow.pop %v1670
    %v1672 = vmul.f32 %v1653, 1.442695
    %v1673 = vpow.pop %v1672
    %v1674 = vmul.f32 %v1654, 1.442695
    %v1675 = vpow.pop %v1674
    %v1676 = vmul.f32 %v1655, 1.442695
    %v1677 = vpow.pop %v1676
    %v1678 = vmul.f32 %v1656, 1.442695
    %v1679 = vpow.pop %v1678
    %v1680 = vmul.f32 %v1657, 1.442695
    %v1681 = vpow.pop %v1680
    %v1682 = vmul.f32 %v1658, 1.442695
    %v1683 = vpow.pop %v1682
    %v1684 = vmul.f32 %v1659, 1.442695
    %v1685 = vpow.pop %v1684
    %v1686 = vmul.f32 %v1660, 1.442695
    %v1687 = vpow.pop %v1686
    %v1688 = vmul.f32 %v1661, 1.442695
    %v1689 = vpow.pop %v1688
    %v1690 = vmul.f32 %v1662, 1.442695
    %v1691 = vpow.pop %v1690
    %v1692 = vmul.f32 %v1663, 1.442695
    %v1693 = vpow.pop %v1692
    %v1694 = vmul.f32 %v1664, 1.442695
    %v1695 = vpow.pop %v1694
    %v1696 = vmul.f32 %v1665, 1.442695
    %v1697 = vpow.pop %v1696
    %1698 = vadd.xlane.f32.xlu0 %v1667
    %v1699 = vpop.xlane.xlu0 %1698
    %1700 = vadd.xlane.f32.xlu0 %v1669
    %v1701 = vpop.xlane.xlu0 %1700
    %1702 = vadd.xlane.f32.xlu0 %v1671
    %v1703 = vpop.xlane.xlu0 %1702
    %1704 = vadd.xlane.f32.xlu0 %v1673
    %v1705 = vpop.xlane.xlu0 %1704
    %1706 = vadd.xlane.f32.xlu0 %v1675
    %v1707 = vpop.xlane.xlu0 %1706
    %1708 = vadd.xlane.f32.xlu0 %v1677
    %v1709 = vpop.xlane.xlu0 %1708
    %1710 = vadd.xlane.f32.xlu0 %v1679
    %v1711 = vpop.xlane.xlu0 %1710
    %1712 = vadd.xlane.f32.xlu0 %v1681
    %v1713 = vpop.xlane.xlu0 %1712
    %1714 = vadd.xlane.f32.xlu0 %v1683
    %v1715 = vpop.xlane.xlu0 %1714
    %1716 = vadd.xlane.f32.xlu0 %v1685
    %v1717 = vpop.xlane.xlu0 %1716
    %1718 = vadd.xlane.f32.xlu0 %v1687
    %v1719 = vpop.xlane.xlu0 %1718
    %1720 = vadd.xlane.f32.xlu0 %v1689
    %v1721 = vpop.xlane.xlu0 %1720
    %1722 = vadd.xlane.f32.xlu0 %v1691
    %v1723 = vpop.xlane.xlu0 %1722
    %1724 = vadd.xlane.f32.xlu0 %v1693
    %v1725 = vpop.xlane.xlu0 %1724
    %1726 = vadd.xlane.f32.xlu0 %v1695
    %v1727 = vpop.xlane.xlu0 %1726
    %1728 = vadd.xlane.f32.xlu0 %v1697
    %v1729 = vpop.xlane.xlu0 %1728
    %v1730 = vrcp.pop %v1699
    %v1731 = vrcp.pop %v1701
    %v1732 = vrcp.pop %v1703
    %v1733 = vrcp.pop %v1705
    %v1734 = vrcp.pop %v1707
    %v1735 = vrcp.pop %v1709
    %v1736 = vrcp.pop %v1711
    %v1737 = vrcp.pop %v1713
    %v1738 = vrcp.pop %v1715
    %v1739 = vrcp.pop %v1717
    %v1740 = vrcp.pop %v1719
    %v1741 = vrcp.pop %v1721
    %v1742 = vrcp.pop %v1723
    %v1743 = vrcp.pop %v1725
    %v1744 = vrcp.pop %v1727
    %v1745 = vrcp.pop %v1729
    %v1746 = vmul.f32 %v1667, %v1730
    %v1747 = vmul.f32 %v1669, %v1731
    %v1748 = vmul.f32 %v1671, %v1732
    %v1749 = vmul.f32 %v1673, %v1733
    %v1750 = vmul.f32 %v1675, %v1734
    %v1751 = vmul.f32 %v1677, %v1735
    %v1752 = vmul.f32 %v1679, %v1736
    %v1753 = vmul.f32 %v1681, %v1737
    %v1754 = vmul.f32 %v1683, %v1738
    %v1755 = vmul.f32 %v1685, %v1739
    %v1756 = vmul.f32 %v1687, %v1740
    %v1757 = vmul.f32 %v1689, %v1741
    %v1758 = vmul.f32 %v1691, %v1742
    %v1759 = vmul.f32 %v1693, %v1743
    %v1760 = vmul.f32 %v1695, %v1744
    %v1761 = vmul.f32 %v1697, %v1745
    %v1762 = vpack.c.bf16 %v1747, %v1746
    %v1763 = vpack.c.bf16 %v1749, %v1748
    %v1764 = vpack.c.bf16 %v1751, %v1750
    %v1765 = vpack.c.bf16 %v1753, %v1752
    %v1766 = vpack.c.bf16 %v1755, %v1754
    %v1767 = vpack.c.bf16 %v1757, %v1756
    %v1768 = vpack.c.bf16 %v1759, %v1758
    %v1769 = vpack.c.bf16 %v1761, %v1760
    %v1786 = vunpack.c.l.b16 %v1342
    %v1787 = vunpack.c.l.b16 %v1344
    %v1788 = vunpack.c.l.b16 %v1346
    %v1789 = vunpack.c.l.b16 %v1348
    %v1790 = vunpack.c.l.b16 %v1350
    %v1791 = vunpack.c.l.b16 %v1352
    %v1792 = vunpack.c.l.b16 %v1354
    %v1793 = vunpack.c.l.b16 %v1356
    %v1794 = vunpack.c.l.b16 %v1358
    %v1795 = vunpack.c.l.b16 %v1360
    %v1796 = vunpack.c.l.b16 %v1362
    %v1797 = vunpack.c.l.b16 %v1364
    %v1798 = vunpack.c.l.b16 %v1366
    %v1799 = vunpack.c.l.b16 %v1368
    %v1800 = vunpack.c.l.b16 %v1370
    %v1801 = vunpack.c.l.b16 %v1372
    %v1802 = vpack.c.b16 %v1787, %v1786
    %v1803 = vpack.c.b16 %v1789, %v1788
    %v1804 = vpack.c.b16 %v1791, %v1790
    %v1805 = vpack.c.b16 %v1793, %v1792
    %v1806 = vpack.c.b16 %v1795, %v1794
    %v1807 = vpack.c.b16 %v1797, %v1796
    %v1808 = vpack.c.b16 %v1799, %v1798
    %v1809 = vpack.c.b16 %v1801, %v1800
    %1818 = vmatpush.bf16.msra.mxu0 %v1809
    %1819 = vmatpush.bf16.msra.mxu0 %v1808
    %1820 = vmatpush.bf16.msra.mxu0 %v1807
    %1821 = vmatpush.bf16.msra.mxu0 %v1806
    %1822 = vmatpush.bf16.msra.mxu0 %v1805
    %1823 = vmatpush.bf16.msra.mxu0 %v1804
    %1824 = vmatpush.bf16.msra.mxu0 %v1803
    %1825 = vmatpush.bf16.msra.mxu0 %v1802
    %1826 = vmatmul.bf16.gmra.mxu0 %v1762
    %v1827 = vpop.f32.mrf.mxu0
    %v1828 = vadd.f32 0.0, %v1827
    %v1829 = vpop.f32.mrf.mxu0
    %v1830 = vadd.f32 0.0, %v1829
    %1831 = vmatmul.bf16.gmra.mxu0 %v1763
    %v1832 = vpop.f32.mrf.mxu0
    %v1833 = vadd.f32 0.0, %v1832
    %v1834 = vpop.f32.mrf.mxu0
    %v1835 = vadd.f32 0.0, %v1834
    %1836 = vmatmul.bf16.gmra.mxu0 %v1764
    %v1837 = vpop.f32.mrf.mxu0
    %v1838 = vadd.f32 0.0, %v1837
    %v1839 = vpop.f32.mrf.mxu0
    %v1840 = vadd.f32 0.0, %v1839
    %1841 = vmatmul.bf16.gmra.mxu0 %v1765
    %v1842 = vpop.f32.mrf.mxu0
    %v1843 = vadd.f32 0.0, %v1842
    %v1844 = vpop.f32.mrf.mxu0
    %v1845 = vadd.f32 0.0, %v1844
    %1846 = vmatmul.bf16.gmra.mxu0 %v1766
    %v1847 = vpop.f32.mrf.mxu0
    %v1848 = vadd.f32 0.0, %v1847
    %v1849 = vpop.f32.mrf.mxu0
    %v1850 = vadd.f32 0.0, %v1849
    %1851 = vmatmul.bf16.gmra.mxu0 %v1767
    %v1852 = vpop.f32.mrf.mxu0
    %v1853 = vadd.f32 0.0, %v1852
    %v1854 = vpop.f32.mrf.mxu0
    %v1855 = vadd.f32 0.0, %v1854
    %1856 = vmatmul.bf16.gmra.mxu0 %v1768
    %v1857 = vpop.f32.mrf.mxu0
    %v1858 = vadd.f32 0.0, %v1857
    %v1859 = vpop.f32.mrf.mxu0
    %v1860 = vadd.f32 0.0, %v1859
    %1861 = vmatmul.bf16.gmra.mxu0 %v1769
    %v1862 = vpop.f32.mrf.mxu0
    %v1863 = vadd.f32 0.0, %v1862
    %v1864 = vpop.f32.mrf.mxu0
    %v1865 = vadd.f32 0.0, %v1864
    %1866 = vdwg.mxu0
    %1867 = vrot.lane.b32.xlu0 %v1488, 96
    %v1868 = vpop.permute.xlu0 %1867
    %1869 = vrot.lane.b32.xlu0 %v1489, 96
    %v1870 = vpop.permute.xlu0 %1869
    %1871 = vrot.lane.b32.xlu0 %v1490, 96
    %v1872 = vpop.permute.xlu0 %1871
    %1873 = vrot.lane.b32.xlu0 %v1491, 96
    %v1874 = vpop.permute.xlu0 %1873
    %1875 = vrot.lane.b32.xlu0 %v1492, 96
    %v1876 = vpop.permute.xlu0 %1875
    %1877 = vrot.lane.b32.xlu0 %v1493, 96
    %v1878 = vpop.permute.xlu0 %1877
    %1879 = vrot.lane.b32.xlu0 %v1494, 96
    %v1880 = vpop.permute.xlu0 %1879
    %1881 = vrot.lane.b32.xlu0 %v1495, 96
    %v1882 = vpop.permute.xlu0 %1881
    %1883 = vrot.lane.b32.xlu0 %v1512, 96
    %v1884 = vpop.permute.xlu0 %1883
    %1885 = vrot.lane.b32.xlu0 %v1513, 96
    %v1886 = vpop.permute.xlu0 %1885
    %1887 = vrot.lane.b32.xlu0 %v1514, 96
    %v1888 = vpop.permute.xlu0 %1887
    %1889 = vrot.lane.b32.xlu0 %v1515, 96
    %v1890 = vpop.permute.xlu0 %1889
    %1891 = vrot.lane.b32.xlu0 %v1516, 96
    %v1892 = vpop.permute.xlu0 %1891
    %1893 = vrot.lane.b32.xlu0 %v1517, 96
    %v1894 = vpop.permute.xlu0 %1893
    %1895 = vrot.lane.b32.xlu0 %v1518, 96
    %v1896 = vpop.permute.xlu0 %1895
    %1897 = vrot.lane.b32.xlu0 %v1519, 96
    %v1898 = vpop.permute.xlu0 %1897
    %v1900 = vsel %vm1520, %v1868, 0
    %v1903 = vsel %vm1520, %v1870, 0
    %v1906 = vsel %vm1520, %v1872, 0
    %v1909 = vsel %vm1520, %v1874, 0
    %v1912 = vsel %vm1520, %v1876, 0
    %v1915 = vsel %vm1520, %v1878, 0
    %v1918 = vsel %vm1520, %v1880, 0
    %v1921 = vsel %vm1520, %v1882, 0
    %v1924 = vsel %vm1520, %v1884, 0
    %v1927 = vsel %vm1520, %v1886, 0
    %v1930 = vsel %vm1520, %v1888, 0
    %v1933 = vsel %vm1520, %v1890, 0
    %v1936 = vsel %vm1520, %v1892, 0
    %v1939 = vsel %vm1520, %v1894, 0
    %v1942 = vsel %vm1520, %v1896, 0
    %v1945 = vsel %vm1520, %v1898, 0
    %1947 = vmatpush.bf16.xpose.msra.mxu0 %v1945
    %1948 = vmatpush.bf16.xpose.msra.mxu0 %v1942
    %1949 = vmatpush.bf16.xpose.msra.mxu0 %v1939
    %1950 = vmatpush.bf16.xpose.msra.mxu0 %v1936
    %1951 = vmatpush.bf16.xpose.msra.mxu0 %v1933
    %1952 = vmatpush.bf16.xpose.msra.mxu0 %v1930
    %1953 = vmatpush.bf16.xpose.msra.mxu0 %v1927
    %1954 = vmatpush.bf16.xpose.msra.mxu0 %v1924
    %1955 = vmatmul.bf16.gmra.mxu0 %v1900
    %v1956 = vpop.f32.mrf.mxu0
    %v1957 = vadd.f32 %v1440, %v1956
    %v1958 = vpop.f32.mrf.mxu0
    %v1959 = vadd.f32 %v1441, %v1958
    %1960 = vmatmul.bf16.gmra.mxu0 %v1903
    %v1961 = vpop.f32.mrf.mxu0
    %v1962 = vadd.f32 %v1442, %v1961
    %v1963 = vpop.f32.mrf.mxu0
    %v1964 = vadd.f32 %v1443, %v1963
    %1965 = vmatmul.bf16.gmra.mxu0 %v1906
    %v1966 = vpop.f32.mrf.mxu0
    %v1967 = vadd.f32 %v1444, %v1966
    %v1968 = vpop.f32.mrf.mxu0
    %v1969 = vadd.f32 %v1445, %v1968
    %1970 = vmatmul.bf16.gmra.mxu0 %v1909
    %v1971 = vpop.f32.mrf.mxu0
    %v1972 = vadd.f32 %v1446, %v1971
    %v1973 = vpop.f32.mrf.mxu0
    %v1974 = vadd.f32 %v1447, %v1973
    %1975 = vmatmul.bf16.gmra.mxu0 %v1912
    %v1976 = vpop.f32.mrf.mxu0
    %v1977 = vadd.f32 %v1448, %v1976
    %v1978 = vpop.f32.mrf.mxu0
    %v1979 = vadd.f32 %v1449, %v1978
    %1980 = vmatmul.bf16.gmra.mxu0 %v1915
    %v1981 = vpop.f32.mrf.mxu0
    %v1982 = vadd.f32 %v1450, %v1981
    %v1983 = vpop.f32.mrf.mxu0
    %v1984 = vadd.f32 %v1451, %v1983
    %1985 = vmatmul.bf16.gmra.mxu0 %v1918
    %v1986 = vpop.f32.mrf.mxu0
    %v1987 = vadd.f32 %v1452, %v1986
    %v1988 = vpop.f32.mrf.mxu0
    %v1989 = vadd.f32 %v1453, %v1988
    %1990 = vmatmul.bf16.gmra.mxu0 %v1921
    %v1991 = vpop.f32.mrf.mxu0
    %v1992 = vadd.f32 %v1454, %v1991
    %v1993 = vpop.f32.mrf.mxu0
    %v1994 = vadd.f32 %v1455, %v1993
    %1995 = vdwg.mxu0
    %1996 = vmax.xlane.f32.xlu0 %v1957
    %v1997 = vpop.xlane.xlu0 %1996
    %1998 = vmax.xlane.f32.xlu0 %v1959
    %v1999 = vpop.xlane.xlu0 %1998
    %2000 = vmax.xlane.f32.xlu0 %v1962
    %v2001 = vpop.xlane.xlu0 %2000
    %2002 = vmax.xlane.f32.xlu0 %v1964
    %v2003 = vpop.xlane.xlu0 %2002
    %2004 = vmax.xlane.f32.xlu0 %v1967
    %v2005 = vpop.xlane.xlu0 %2004
    %2006 = vmax.xlane.f32.xlu0 %v1969
    %v2007 = vpop.xlane.xlu0 %2006
    %2008 = vmax.xlane.f32.xlu0 %v1972
    %v2009 = vpop.xlane.xlu0 %2008
    %2010 = vmax.xlane.f32.xlu0 %v1974
    %v2011 = vpop.xlane.xlu0 %2010
    %2012 = vmax.xlane.f32.xlu0 %v1977
    %v2013 = vpop.xlane.xlu0 %2012
    %2014 = vmax.xlane.f32.xlu0 %v1979
    %v2015 = vpop.xlane.xlu0 %2014
    %2016 = vmax.xlane.f32.xlu0 %v1982
    %v2017 = vpop.xlane.xlu0 %2016
    %2018 = vmax.xlane.f32.xlu0 %v1984
    %v2019 = vpop.xlane.xlu0 %2018
    %2020 = vmax.xlane.f32.xlu0 %v1987
    %v2021 = vpop.xlane.xlu0 %2020
    %2022 = vmax.xlane.f32.xlu0 %v1989
    %v2023 = vpop.xlane.xlu0 %2022
    %2024 = vmax.xlane.f32.xlu0 %v1992
    %v2025 = vpop.xlane.xlu0 %2024
    %2026 = vmax.xlane.f32.xlu0 %v1994
    %v2027 = vpop.xlane.xlu0 %2026
    %v2028 = vsub.f32 %v1957, %v1997
    %v2029 = vsub.f32 %v1959, %v1999
    %v2030 = vsub.f32 %v1962, %v2001
    %v2031 = vsub.f32 %v1964, %v2003
    %v2032 = vsub.f32 %v1967, %v2005
    %v2033 = vsub.f32 %v1969, %v2007
    %v2034 = vsub.f32 %v1972, %v2009
    %v2035 = vsub.f32 %v1974, %v2011
    %v2036 = vsub.f32 %v1977, %v2013
    %v2037 = vsub.f32 %v1979, %v2015
    %v2038 = vsub.f32 %v1982, %v2017
    %v2039 = vsub.f32 %v1984, %v2019
    %v2040 = vsub.f32 %v1987, %v2021
    %v2041 = vsub.f32 %v1989, %v2023
    %v2042 = vsub.f32 %v1992, %v2025
    %v2043 = vsub.f32 %v1994, %v2027
    %v2044 = vmul.f32 %v2028, 1.442695
    %v2045 = vpow.pop %v2044
    %v2046 = vmul.f32 %v2029, 1.442695
    %v2047 = vpow.pop %v2046
    %v2048 = vmul.f32 %v2030, 1.442695
    %v2049 = vpow.pop %v2048
    %v2050 = vmul.f32 %v2031, 1.442695
    %v2051 = vpow.pop %v2050
    %v2052 = vmul.f32 %v2032, 1.442695
    %v2053 = vpow.pop %v2052
    %v2054 = vmul.f32 %v2033, 1.442695
    %v2055 = vpow.pop %v2054
    %v2056 = vmul.f32 %v2034, 1.442695
    %v2057 = vpow.pop %v2056
    %v2058 = vmul.f32 %v2035, 1.442695
    %v2059 = vpow.pop %v2058
    %v2060 = vmul.f32 %v2036, 1.442695
    %v2061 = vpow.pop %v2060
    %v2062 = vmul.f32 %v2037, 1.442695
    %v2063 = vpow.pop %v2062
    %v2064 = vmul.f32 %v2038, 1.442695
    %v2065 = vpow.pop %v2064
    %v2066 = vmul.f32 %v2039, 1.442695
    %v2067 = vpow.pop %v2066
    %v2068 = vmul.f32 %v2040, 1.442695
    %v2069 = vpow.pop %v2068
    %v2070 = vmul.f32 %v2041, 1.442695
    %v2071 = vpow.pop %v2070
    %v2072 = vmul.f32 %v2042, 1.442695
    %v2073 = vpow.pop %v2072
    %v2074 = vmul.f32 %v2043, 1.442695
    %v2075 = vpow.pop %v2074
    %2076 = vadd.xlane.f32.xlu0 %v2045
    %v2077 = vpop.xlane.xlu0 %2076
    %2078 = vadd.xlane.f32.xlu0 %v2047
    %v2079 = vpop.xlane.xlu0 %2078
    %2080 = vadd.xlane.f32.xlu0 %v2049
    %v2081 = vpop.xlane.xlu0 %2080
    %2082 = vadd.xlane.f32.xlu0 %v2051
    %v2083 = vpop.xlane.xlu0 %2082
    %2084 = vadd.xlane.f32.xlu0 %v2053
    %v2085 = vpop.xlane.xlu0 %2084
    %2086 = vadd.xlane.f32.xlu0 %v2055
    %v2087 = vpop.xlane.xlu0 %2086
    %2088 = vadd.xlane.f32.xlu0 %v2057
    %v2089 = vpop.xlane.xlu0 %2088
    %2090 = vadd.xlane.f32.xlu0 %v2059
    %v2091 = vpop.xlane.xlu0 %2090
    %2092 = vadd.xlane.f32.xlu0 %v2061
    %v2093 = vpop.xlane.xlu0 %2092
    %2094 = vadd.xlane.f32.xlu0 %v2063
    %v2095 = vpop.xlane.xlu0 %2094
    %2096 = vadd.xlane.f32.xlu0 %v2065
    %v2097 = vpop.xlane.xlu0 %2096
    %2098 = vadd.xlane.f32.xlu0 %v2067
    %v2099 = vpop.xlane.xlu0 %2098
    %2100 = vadd.xlane.f32.xlu0 %v2069
    %v2101 = vpop.xlane.xlu0 %2100
    %2102 = vadd.xlane.f32.xlu0 %v2071
    %v2103 = vpop.xlane.xlu0 %2102
    %2104 = vadd.xlane.f32.xlu0 %v2073
    %v2105 = vpop.xlane.xlu0 %2104
    %2106 = vadd.xlane.f32.xlu0 %v2075
    %v2107 = vpop.xlane.xlu0 %2106
    %v2108 = vrcp.pop %v2077
    %v2109 = vrcp.pop %v2079
    %v2110 = vrcp.pop %v2081
    %v2111 = vrcp.pop %v2083
    %v2112 = vrcp.pop %v2085
    %v2113 = vrcp.pop %v2087
    %v2114 = vrcp.pop %v2089
    %v2115 = vrcp.pop %v2091
    %v2116 = vrcp.pop %v2093
    %v2117 = vrcp.pop %v2095
    %v2118 = vrcp.pop %v2097
    %v2119 = vrcp.pop %v2099
    %v2120 = vrcp.pop %v2101
    %v2121 = vrcp.pop %v2103
    %v2122 = vrcp.pop %v2105
    %v2123 = vrcp.pop %v2107
    %v2124 = vmul.f32 %v2045, %v2108
    %v2125 = vmul.f32 %v2047, %v2109
    %v2126 = vmul.f32 %v2049, %v2110
    %v2127 = vmul.f32 %v2051, %v2111
    %v2128 = vmul.f32 %v2053, %v2112
    %v2129 = vmul.f32 %v2055, %v2113
    %v2130 = vmul.f32 %v2057, %v2114
    %v2131 = vmul.f32 %v2059, %v2115
    %v2132 = vmul.f32 %v2061, %v2116
    %v2133 = vmul.f32 %v2063, %v2117
    %v2134 = vmul.f32 %v2065, %v2118
    %v2135 = vmul.f32 %v2067, %v2119
    %v2136 = vmul.f32 %v2069, %v2120
    %v2137 = vmul.f32 %v2071, %v2121
    %v2138 = vmul.f32 %v2073, %v2122
    %v2139 = vmul.f32 %v2075, %v2123
    %v2140 = vpack.c.bf16 %v2125, %v2124
    %v2141 = vpack.c.bf16 %v2127, %v2126
    %v2142 = vpack.c.bf16 %v2129, %v2128
    %v2143 = vpack.c.bf16 %v2131, %v2130
    %v2144 = vpack.c.bf16 %v2133, %v2132
    %v2145 = vpack.c.bf16 %v2135, %v2134
    %v2146 = vpack.c.bf16 %v2137, %v2136
    %v2147 = vpack.c.bf16 %v2139, %v2138
    %2148 = vrot.lane.b32.xlu0 %v1802, 96
    %v2149 = vpop.permute.xlu0 %2148
    %2150 = vrot.lane.b32.xlu0 %v1803, 96
    %v2151 = vpop.permute.xlu0 %2150
    %2152 = vrot.lane.b32.xlu0 %v1804, 96
    %v2153 = vpop.permute.xlu0 %2152
    %2154 = vrot.lane.b32.xlu0 %v1805, 96
    %v2155 = vpop.permute.xlu0 %2154
    %2156 = vrot.lane.b32.xlu0 %v1806, 96
    %v2157 = vpop.permute.xlu0 %2156
    %2158 = vrot.lane.b32.xlu0 %v1807, 96
    %v2159 = vpop.permute.xlu0 %2158
    %2160 = vrot.lane.b32.xlu0 %v1808, 96
    %v2161 = vpop.permute.xlu0 %2160
    %2162 = vrot.lane.b32.xlu0 %v1809, 96
    %v2163 = vpop.permute.xlu0 %2162
    %2172 = vmatpush.bf16.msra.mxu0 %v2163
    %2173 = vmatpush.bf16.msra.mxu0 %v2161
    %2174 = vmatpush.bf16.msra.mxu0 %v2159
    %2175 = vmatpush.bf16.msra.mxu0 %v2157
    %2176 = vmatpush.bf16.msra.mxu0 %v2155
    %2177 = vmatpush.bf16.msra.mxu0 %v2153
    %2178 = vmatpush.bf16.msra.mxu0 %v2151
    %2179 = vmatpush.bf16.msra.mxu0 %v2149
    %2180 = vmatmul.bf16.gmra.mxu0 %v2140
    %v2181 = vpop.f32.mrf.mxu0
    %v2182 = vadd.f32 0.0, %v2181
    %v2183 = vpop.f32.mrf.mxu0
    %v2184 = vadd.f32 0.0, %v2183
    %2185 = vmatmul.bf16.gmra.mxu0 %v2141
    %v2186 = vpop.f32.mrf.mxu0
    %v2187 = vadd.f32 0.0, %v2186
    %v2188 = vpop.f32.mrf.mxu0
    %v2189 = vadd.f32 0.0, %v2188
    %2190 = vmatmul.bf16.gmra.mxu0 %v2142
    %v2191 = vpop.f32.mrf.mxu0
    %v2192 = vadd.f32 0.0, %v2191
    %v2193 = vpop.f32.mrf.mxu0
    %v2194 = vadd.f32 0.0, %v2193
    %2195 = vmatmul.bf16.gmra.mxu0 %v2143
    %v2196 = vpop.f32.mrf.mxu0
    %v2197 = vadd.f32 0.0, %v2196
    %v2198 = vpop.f32.mrf.mxu0
    %v2199 = vadd.f32 0.0, %v2198
    %2200 = vmatmul.bf16.gmra.mxu0 %v2144
    %v2201 = vpop.f32.mrf.mxu0
    %v2202 = vadd.f32 0.0, %v2201
    %v2203 = vpop.f32.mrf.mxu0
    %v2204 = vadd.f32 0.0, %v2203
    %2205 = vmatmul.bf16.gmra.mxu0 %v2145
    %v2206 = vpop.f32.mrf.mxu0
    %v2207 = vadd.f32 0.0, %v2206
    %v2208 = vpop.f32.mrf.mxu0
    %v2209 = vadd.f32 0.0, %v2208
    %2210 = vmatmul.bf16.gmra.mxu0 %v2146
    %v2211 = vpop.f32.mrf.mxu0
    %v2212 = vadd.f32 0.0, %v2211
    %v2213 = vpop.f32.mrf.mxu0
    %v2214 = vadd.f32 0.0, %v2213
    %2215 = vmatmul.bf16.gmra.mxu0 %v2147
    %v2216 = vpop.f32.mrf.mxu0
    %v2217 = vadd.f32 0.0, %v2216
    %v2218 = vpop.f32.mrf.mxu0
    %v2219 = vadd.f32 0.0, %v2218
    %2220 = vdwg.mxu0
    %2221 = vrot.lane.b32.xlu0 %v1488, 64
    %v2222 = vpop.permute.xlu0 %2221
    %2223 = vrot.lane.b32.xlu0 %v1489, 64
    %v2224 = vpop.permute.xlu0 %2223
    %2225 = vrot.lane.b32.xlu0 %v1490, 64
    %v2226 = vpop.permute.xlu0 %2225
    %2227 = vrot.lane.b32.xlu0 %v1491, 64
    %v2228 = vpop.permute.xlu0 %2227
    %2229 = vrot.lane.b32.xlu0 %v1492, 64
    %v2230 = vpop.permute.xlu0 %2229
    %2231 = vrot.lane.b32.xlu0 %v1493, 64
    %v2232 = vpop.permute.xlu0 %2231
    %2233 = vrot.lane.b32.xlu0 %v1494, 64
    %v2234 = vpop.permute.xlu0 %2233
    %2235 = vrot.lane.b32.xlu0 %v1495, 64
    %v2236 = vpop.permute.xlu0 %2235
    %2237 = vrot.lane.b32.xlu0 %v1512, 64
    %v2238 = vpop.permute.xlu0 %2237
    %2239 = vrot.lane.b32.xlu0 %v1513, 64
    %v2240 = vpop.permute.xlu0 %2239
    %2241 = vrot.lane.b32.xlu0 %v1514, 64
    %v2242 = vpop.permute.xlu0 %2241
    %2243 = vrot.lane.b32.xlu0 %v1515, 64
    %v2244 = vpop.permute.xlu0 %2243
    %2245 = vrot.lane.b32.xlu0 %v1516, 64
    %v2246 = vpop.permute.xlu0 %2245
    %2247 = vrot.lane.b32.xlu0 %v1517, 64
    %v2248 = vpop.permute.xlu0 %2247
    %2249 = vrot.lane.b32.xlu0 %v1518, 64
    %v2250 = vpop.permute.xlu0 %2249
    %2251 = vrot.lane.b32.xlu0 %v1519, 64
    %v2252 = vpop.permute.xlu0 %2251
    %v2254 = vsel %vm1520, %v2222, 0
    %v2257 = vsel %vm1520, %v2224, 0
    %v2260 = vsel %vm1520, %v2226, 0
    %v2263 = vsel %vm1520, %v2228, 0
    %v2266 = vsel %vm1520, %v2230, 0
    %v2269 = vsel %vm1520, %v2232, 0
    %v2272 = vsel %vm1520, %v2234, 0
    %v2275 = vsel %vm1520, %v2236, 0
    %v2278 = vsel %vm1520, %v2238, 0
    %v2281 = vsel %vm1520, %v2240, 0
    %v2284 = vsel %vm1520, %v2242, 0
    %v2287 = vsel %vm1520, %v2244, 0
    %v2290 = vsel %vm1520, %v2246, 0
    %v2293 = vsel %vm1520, %v2248, 0
    %v2296 = vsel %vm1520, %v2250, 0
    %v2299 = vsel %vm1520, %v2252, 0
    %2301 = vmatpush.bf16.xpose.msra.mxu0 %v2299
    %2302 = vmatpush.bf16.xpose.msra.mxu0 %v2296
    %2303 = vmatpush.bf16.xpose.msra.mxu0 %v2293
    %2304 = vmatpush.bf16.xpose.msra.mxu0 %v2290
    %2305 = vmatpush.bf16.xpose.msra.mxu0 %v2287
    %2306 = vmatpush.bf16.xpose.msra.mxu0 %v2284
    %2307 = vmatpush.bf16.xpose.msra.mxu0 %v2281
    %2308 = vmatpush.bf16.xpose.msra.mxu0 %v2278
    %2309 = vmatmul.bf16.gmra.mxu0 %v2254
    %v2310 = vpop.f32.mrf.mxu0
    %v2311 = vadd.f32 %v1440, %v2310
    %v2312 = vpop.f32.mrf.mxu0
    %v2313 = vadd.f32 %v1441, %v2312
    %2314 = vmatmul.bf16.gmra.mxu0 %v2257
    %v2315 = vpop.f32.mrf.mxu0
    %v2316 = vadd.f32 %v1442, %v2315
    %v2317 = vpop.f32.mrf.mxu0
    %v2318 = vadd.f32 %v1443, %v2317
    %2319 = vmatmul.bf16.gmra.mxu0 %v2260
    %v2320 = vpop.f32.mrf.mxu0
    %v2321 = vadd.f32 %v1444, %v2320
    %v2322 = vpop.f32.mrf.mxu0
    %v2323 = vadd.f32 %v1445, %v2322
    %2324 = vmatmul.bf16.gmra.mxu0 %v2263
    %v2325 = vpop.f32.mrf.mxu0
    %v2326 = vadd.f32 %v1446, %v2325
    %v2327 = vpop.f32.mrf.mxu0
    %v2328 = vadd.f32 %v1447, %v2327
    %2329 = vmatmul.bf16.gmra.mxu0 %v2266
    %v2330 = vpop.f32.mrf.mxu0
    %v2331 = vadd.f32 %v1448, %v2330
    %v2332 = vpop.f32.mrf.mxu0
    %v2333 = vadd.f32 %v1449, %v2332
    %2334 = vmatmul.bf16.gmra.mxu0 %v2269
    %v2335 = vpop.f32.mrf.mxu0
    %v2336 = vadd.f32 %v1450, %v2335
    %v2337 = vpop.f32.mrf.mxu0
    %v2338 = vadd.f32 %v1451, %v2337
    %2339 = vmatmul.bf16.gmra.mxu0 %v2272
    %v2340 = vpop.f32.mrf.mxu0
    %v2341 = vadd.f32 %v1452, %v2340
    %v2342 = vpop.f32.mrf.mxu0
    %v2343 = vadd.f32 %v1453, %v2342
    %2344 = vmatmul.bf16.gmra.mxu0 %v2275
    %v2345 = vpop.f32.mrf.mxu0
    %v2346 = vadd.f32 %v1454, %v2345
    %v2347 = vpop.f32.mrf.mxu0
    %v2348 = vadd.f32 %v1455, %v2347
    %2349 = vdwg.mxu0
    %2350 = vmax.xlane.f32.xlu0 %v2311
    %v2351 = vpop.xlane.xlu0 %2350
    %2352 = vmax.xlane.f32.xlu0 %v2313
    %v2353 = vpop.xlane.xlu0 %2352
    %2354 = vmax.xlane.f32.xlu0 %v2316
    %v2355 = vpop.xlane.xlu0 %2354
    %2356 = vmax.xlane.f32.xlu0 %v2318
    %v2357 = vpop.xlane.xlu0 %2356
    %2358 = vmax.xlane.f32.xlu0 %v2321
    %v2359 = vpop.xlane.xlu0 %2358
    %2360 = vmax.xlane.f32.xlu0 %v2323
    %v2361 = vpop.xlane.xlu0 %2360
    %2362 = vmax.xlane.f32.xlu0 %v2326
    %v2363 = vpop.xlane.xlu0 %2362
    %2364 = vmax.xlane.f32.xlu0 %v2328
    %v2365 = vpop.xlane.xlu0 %2364
    %2366 = vmax.xlane.f32.xlu0 %v2331
    %v2367 = vpop.xlane.xlu0 %2366
    %2368 = vmax.xlane.f32.xlu0 %v2333
    %v2369 = vpop.xlane.xlu0 %2368
    %2370 = vmax.xlane.f32.xlu0 %v2336
    %v2371 = vpop.xlane.xlu0 %2370
    %2372 = vmax.xlane.f32.xlu0 %v2338
    %v2373 = vpop.xlane.xlu0 %2372
    %2374 = vmax.xlane.f32.xlu0 %v2341
    %v2375 = vpop.xlane.xlu0 %2374
    %2376 = vmax.xlane.f32.xlu0 %v2343
    %v2377 = vpop.xlane.xlu0 %2376
    %2378 = vmax.xlane.f32.xlu0 %v2346
    %v2379 = vpop.xlane.xlu0 %2378
    %2380 = vmax.xlane.f32.xlu0 %v2348
    %v2381 = vpop.xlane.xlu0 %2380
    %v2382 = vsub.f32 %v2311, %v2351
    %v2383 = vsub.f32 %v2313, %v2353
    %v2384 = vsub.f32 %v2316, %v2355
    %v2385 = vsub.f32 %v2318, %v2357
    %v2386 = vsub.f32 %v2321, %v2359
    %v2387 = vsub.f32 %v2323, %v2361
    %v2388 = vsub.f32 %v2326, %v2363
    %v2389 = vsub.f32 %v2328, %v2365
    %v2390 = vsub.f32 %v2331, %v2367
    %v2391 = vsub.f32 %v2333, %v2369
    %v2392 = vsub.f32 %v2336, %v2371
    %v2393 = vsub.f32 %v2338, %v2373
    %v2394 = vsub.f32 %v2341, %v2375
    %v2395 = vsub.f32 %v2343, %v2377
    %v2396 = vsub.f32 %v2346, %v2379
    %v2397 = vsub.f32 %v2348, %v2381
    %v2398 = vmul.f32 %v2382, 1.442695
    %v2399 = vpow.pop %v2398
    %v2400 = vmul.f32 %v2383, 1.442695
    %v2401 = vpow.pop %v2400
    %v2402 = vmul.f32 %v2384, 1.442695
    %v2403 = vpow.pop %v2402
    %v2404 = vmul.f32 %v2385, 1.442695
    %v2405 = vpow.pop %v2404
    %v2406 = vmul.f32 %v2386, 1.442695
    %v2407 = vpow.pop %v2406
    %v2408 = vmul.f32 %v2387, 1.442695
    %v2409 = vpow.pop %v2408
    %v2410 = vmul.f32 %v2388, 1.442695
    %v2411 = vpow.pop %v2410
    %v2412 = vmul.f32 %v2389, 1.442695
    %v2413 = vpow.pop %v2412
    %v2414 = vmul.f32 %v2390, 1.442695
    %v2415 = vpow.pop %v2414
    %v2416 = vmul.f32 %v2391, 1.442695
    %v2417 = vpow.pop %v2416
    %v2418 = vmul.f32 %v2392, 1.442695
    %v2419 = vpow.pop %v2418
    %v2420 = vmul.f32 %v2393, 1.442695
    %v2421 = vpow.pop %v2420
    %v2422 = vmul.f32 %v2394, 1.442695
    %v2423 = vpow.pop %v2422
    %v2424 = vmul.f32 %v2395, 1.442695
    %v2425 = vpow.pop %v2424
    %v2426 = vmul.f32 %v2396, 1.442695
    %v2427 = vpow.pop %v2426
    %v2428 = vmul.f32 %v2397, 1.442695
    %v2429 = vpow.pop %v2428
    %2430 = vadd.xlane.f32.xlu0 %v2399
    %v2431 = vpop.xlane.xlu0 %2430
    %2432 = vadd.xlane.f32.xlu0 %v2401
    %v2433 = vpop.xlane.xlu0 %2432
    %2434 = vadd.xlane.f32.xlu0 %v2403
    %v2435 = vpop.xlane.xlu0 %2434
    %2436 = vadd.xlane.f32.xlu0 %v2405
    %v2437 = vpop.xlane.xlu0 %2436
    %2438 = vadd.xlane.f32.xlu0 %v2407
    %v2439 = vpop.xlane.xlu0 %2438
    %2440 = vadd.xlane.f32.xlu0 %v2409
    %v2441 = vpop.xlane.xlu0 %2440
    %2442 = vadd.xlane.f32.xlu0 %v2411
    %v2443 = vpop.xlane.xlu0 %2442
    %2444 = vadd.xlane.f32.xlu0 %v2413
    %v2445 = vpop.xlane.xlu0 %2444
    %2446 = vadd.xlane.f32.xlu0 %v2415
    %v2447 = vpop.xlane.xlu0 %2446
    %2448 = vadd.xlane.f32.xlu0 %v2417
    %v2449 = vpop.xlane.xlu0 %2448
    %2450 = vadd.xlane.f32.xlu0 %v2419
    %v2451 = vpop.xlane.xlu0 %2450
    %2452 = vadd.xlane.f32.xlu0 %v2421
    %v2453 = vpop.xlane.xlu0 %2452
    %2454 = vadd.xlane.f32.xlu0 %v2423
    %v2455 = vpop.xlane.xlu0 %2454
    %2456 = vadd.xlane.f32.xlu0 %v2425
    %v2457 = vpop.xlane.xlu0 %2456
    %2458 = vadd.xlane.f32.xlu0 %v2427
    %v2459 = vpop.xlane.xlu0 %2458
    %2460 = vadd.xlane.f32.xlu0 %v2429
    %v2461 = vpop.xlane.xlu0 %2460
    %v2462 = vrcp.pop %v2431
    %v2463 = vrcp.pop %v2433
    %v2464 = vrcp.pop %v2435
    %v2465 = vrcp.pop %v2437
    %v2466 = vrcp.pop %v2439
    %v2467 = vrcp.pop %v2441
    %v2468 = vrcp.pop %v2443
    %v2469 = vrcp.pop %v2445
    %v2470 = vrcp.pop %v2447
    %v2471 = vrcp.pop %v2449
    %v2472 = vrcp.pop %v2451
    %v2473 = vrcp.pop %v2453
    %v2474 = vrcp.pop %v2455
    %v2475 = vrcp.pop %v2457
    %v2476 = vrcp.pop %v2459
    %v2477 = vrcp.pop %v2461
    %v2478 = vmul.f32 %v2399, %v2462
    %v2479 = vmul.f32 %v2401, %v2463
    %v2480 = vmul.f32 %v2403, %v2464
    %v2481 = vmul.f32 %v2405, %v2465
    %v2482 = vmul.f32 %v2407, %v2466
    %v2483 = vmul.f32 %v2409, %v2467
    %v2484 = vmul.f32 %v2411, %v2468
    %v2485 = vmul.f32 %v2413, %v2469
    %v2486 = vmul.f32 %v2415, %v2470
    %v2487 = vmul.f32 %v2417, %v2471
    %v2488 = vmul.f32 %v2419, %v2472
    %v2489 = vmul.f32 %v2421, %v2473
    %v2490 = vmul.f32 %v2423, %v2474
    %v2491 = vmul.f32 %v2425, %v2475
    %v2492 = vmul.f32 %v2427, %v2476
    %v2493 = vmul.f32 %v2429, %v2477
    %v2494 = vpack.c.bf16 %v2479, %v2478
    %v2495 = vpack.c.bf16 %v2481, %v2480
    %v2496 = vpack.c.bf16 %v2483, %v2482
    %v2497 = vpack.c.bf16 %v2485, %v2484
    %v2498 = vpack.c.bf16 %v2487, %v2486
    %v2499 = vpack.c.bf16 %v2489, %v2488
    %v2500 = vpack.c.bf16 %v2491, %v2490
    %v2501 = vpack.c.bf16 %v2493, %v2492
    %2502 = vrot.lane.b32.xlu0 %v1802, 64
    %v2503 = vpop.permute.xlu0 %2502
    %2504 = vrot.lane.b32.xlu0 %v1803, 64
    %v2505 = vpop.permute.xlu0 %2504
    %2506 = vrot.lane.b32.xlu0 %v1804, 64
    %v2507 = vpop.permute.xlu0 %2506
    %2508 = vrot.lane.b32.xlu0 %v1805, 64
    %v2509 = vpop.permute.xlu0 %2508
    %2510 = vrot.lane.b32.xlu0 %v1806, 64
    %v2511 = vpop.permute.xlu0 %2510
    %2512 = vrot.lane.b32.xlu0 %v1807, 64
    %v2513 = vpop.permute.xlu0 %2512
    %2514 = vrot.lane.b32.xlu0 %v1808, 64
    %v2515 = vpop.permute.xlu0 %2514
    %2516 = vrot.lane.b32.xlu0 %v1809, 64
    %v2517 = vpop.permute.xlu0 %2516
    %2526 = vmatpush.bf16.msra.mxu0 %v2517
    %2527 = vmatpush.bf16.msra.mxu0 %v2515
    %2528 = vmatpush.bf16.msra.mxu0 %v2513
    %2529 = vmatpush.bf16.msra.mxu0 %v2511
    %2530 = vmatpush.bf16.msra.mxu0 %v2509
    %2531 = vmatpush.bf16.msra.mxu0 %v2507
    %2532 = vmatpush.bf16.msra.mxu0 %v2505
    %2533 = vmatpush.bf16.msra.mxu0 %v2503
    %2534 = vmatmul.bf16.gmra.mxu0 %v2494
    %v2535 = vpop.f32.mrf.mxu0
    %v2536 = vadd.f32 0.0, %v2535
    %v2537 = vpop.f32.mrf.mxu0
    %v2538 = vadd.f32 0.0, %v2537
    %2539 = vmatmul.bf16.gmra.mxu0 %v2495
    %v2540 = vpop.f32.mrf.mxu0
    %v2541 = vadd.f32 0.0, %v2540
    %v2542 = vpop.f32.mrf.mxu0
    %v2543 = vadd.f32 0.0, %v2542
    %2544 = vmatmul.bf16.gmra.mxu0 %v2496
    %v2545 = vpop.f32.mrf.mxu0
    %v2546 = vadd.f32 0.0, %v2545
    %v2547 = vpop.f32.mrf.mxu0
    %v2548 = vadd.f32 0.0, %v2547
    %2549 = vmatmul.bf16.gmra.mxu0 %v2497
    %v2550 = vpop.f32.mrf.mxu0
    %v2551 = vadd.f32 0.0, %v2550
    %v2552 = vpop.f32.mrf.mxu0
    %v2553 = vadd.f32 0.0, %v2552
    %2554 = vmatmul.bf16.gmra.mxu0 %v2498
    %v2555 = vpop.f32.mrf.mxu0
    %v2556 = vadd.f32 0.0, %v2555
    %v2557 = vpop.f32.mrf.mxu0
    %v2558 = vadd.f32 0.0, %v2557
    %2559 = vmatmul.bf16.gmra.mxu0 %v2499
    %v2560 = vpop.f32.mrf.mxu0
    %v2561 = vadd.f32 0.0, %v2560
    %v2562 = vpop.f32.mrf.mxu0
    %v2563 = vadd.f32 0.0, %v2562
    %2564 = vmatmul.bf16.gmra.mxu0 %v2500
    %v2565 = vpop.f32.mrf.mxu0
    %v2566 = vadd.f32 0.0, %v2565
    %v2567 = vpop.f32.mrf.mxu0
    %v2568 = vadd.f32 0.0, %v2567
    %2569 = vmatmul.bf16.gmra.mxu0 %v2501
    %v2570 = vpop.f32.mrf.mxu0
    %v2571 = vadd.f32 0.0, %v2570
    %v2572 = vpop.f32.mrf.mxu0
    %v2573 = vadd.f32 0.0, %v2572
    %2574 = vdwg.mxu0
    %2575 = vrot.lane.b32.xlu0 %v1488, 32
    %v2576 = vpop.permute.xlu0 %2575
    %2577 = vrot.lane.b32.xlu0 %v1489, 32
    %v2578 = vpop.permute.xlu0 %2577
    %2579 = vrot.lane.b32.xlu0 %v1490, 32
    %v2580 = vpop.permute.xlu0 %2579
    %2581 = vrot.lane.b32.xlu0 %v1491, 32
    %v2582 = vpop.permute.xlu0 %2581
    %2583 = vrot.lane.b32.xlu0 %v1492, 32
    %v2584 = vpop.permute.xlu0 %2583
    %2585 = vrot.lane.b32.xlu0 %v1493, 32
    %v2586 = vpop.permute.xlu0 %2585
    %2587 = vrot.lane.b32.xlu0 %v1494, 32
    %v2588 = vpop.permute.xlu0 %2587
    %2589 = vrot.lane.b32.xlu0 %v1495, 32
    %v2590 = vpop.permute.xlu0 %2589
    %2591 = vrot.lane.b32.xlu0 %v1512, 32
    %v2592 = vpop.permute.xlu0 %2591
    %2593 = vrot.lane.b32.xlu0 %v1513, 32
    %v2594 = vpop.permute.xlu0 %2593
    %2595 = vrot.lane.b32.xlu0 %v1514, 32
    %v2596 = vpop.permute.xlu0 %2595
    %2597 = vrot.lane.b32.xlu0 %v1515, 32
    %v2598 = vpop.permute.xlu0 %2597
    %2599 = vrot.lane.b32.xlu0 %v1516, 32
    %v2600 = vpop.permute.xlu0 %2599
    %2601 = vrot.lane.b32.xlu0 %v1517, 32
    %v2602 = vpop.permute.xlu0 %2601
    %2603 = vrot.lane.b32.xlu0 %v1518, 32
    %v2604 = vpop.permute.xlu0 %2603
    %2605 = vrot.lane.b32.xlu0 %v1519, 32
    %v2606 = vpop.permute.xlu0 %2605
    %v2608 = vsel %vm1520, %v2576, 0
    %v2611 = vsel %vm1520, %v2578, 0
    %v2614 = vsel %vm1520, %v2580, 0
    %v2617 = vsel %vm1520, %v2582, 0
    %v2620 = vsel %vm1520, %v2584, 0
    %v2623 = vsel %vm1520, %v2586, 0
    %v2626 = vsel %vm1520, %v2588, 0
    %v2629 = vsel %vm1520, %v2590, 0
    %v2632 = vsel %vm1520, %v2592, 0
    %v2635 = vsel %vm1520, %v2594, 0
    %v2638 = vsel %vm1520, %v2596, 0
    %v2641 = vsel %vm1520, %v2598, 0
    %v2644 = vsel %vm1520, %v2600, 0
    %v2647 = vsel %vm1520, %v2602, 0
    %v2650 = vsel %vm1520, %v2604, 0
    %v2653 = vsel %vm1520, %v2606, 0
    %2655 = vmatpush.bf16.xpose.msra.mxu0 %v2653
    %2656 = vmatpush.bf16.xpose.msra.mxu0 %v2650
    %2657 = vmatpush.bf16.xpose.msra.mxu0 %v2647
    %2658 = vmatpush.bf16.xpose.msra.mxu0 %v2644
    %2659 = vmatpush.bf16.xpose.msra.mxu0 %v2641
    %2660 = vmatpush.bf16.xpose.msra.mxu0 %v2638
    %2661 = vmatpush.bf16.xpose.msra.mxu0 %v2635
    %2662 = vmatpush.bf16.xpose.msra.mxu0 %v2632
    %2663 = vmatmul.bf16.gmra.mxu0 %v2608
    %v2664 = vpop.f32.mrf.mxu0
    %v2665 = vadd.f32 %v1440, %v2664
    %v2666 = vpop.f32.mrf.mxu0
    %v2667 = vadd.f32 %v1441, %v2666
    %2668 = vmatmul.bf16.gmra.mxu0 %v2611
    %v2669 = vpop.f32.mrf.mxu0
    %v2670 = vadd.f32 %v1442, %v2669
    %v2671 = vpop.f32.mrf.mxu0
    %v2672 = vadd.f32 %v1443, %v2671
    %2673 = vmatmul.bf16.gmra.mxu0 %v2614
    %v2674 = vpop.f32.mrf.mxu0
    %v2675 = vadd.f32 %v1444, %v2674
    %v2676 = vpop.f32.mrf.mxu0
    %v2677 = vadd.f32 %v1445, %v2676
    %2678 = vmatmul.bf16.gmra.mxu0 %v2617
    %v2679 = vpop.f32.mrf.mxu0
    %v2680 = vadd.f32 %v1446, %v2679
    %v2681 = vpop.f32.mrf.mxu0
    %v2682 = vadd.f32 %v1447, %v2681
    %2683 = vmatmul.bf16.gmra.mxu0 %v2620
    %v2684 = vpop.f32.mrf.mxu0
    %v2685 = vadd.f32 %v1448, %v2684
    %v2686 = vpop.f32.mrf.mxu0
    %v2687 = vadd.f32 %v1449, %v2686
    %2688 = vmatmul.bf16.gmra.mxu0 %v2623
    %v2689 = vpop.f32.mrf.mxu0
    %v2690 = vadd.f32 %v1450, %v2689
    %v2691 = vpop.f32.mrf.mxu0
    %v2692 = vadd.f32 %v1451, %v2691
    %2693 = vmatmul.bf16.gmra.mxu0 %v2626
    %v2694 = vpop.f32.mrf.mxu0
    %v2695 = vadd.f32 %v1452, %v2694
    %v2696 = vpop.f32.mrf.mxu0
    %v2697 = vadd.f32 %v1453, %v2696
    %2698 = vmatmul.bf16.gmra.mxu0 %v2629
    %v2699 = vpop.f32.mrf.mxu0
    %v2700 = vadd.f32 %v1454, %v2699
    %v2701 = vpop.f32.mrf.mxu0
    %v2702 = vadd.f32 %v1455, %v2701
    %2703 = vdwg.mxu0
    %2704 = vmax.xlane.f32.xlu0 %v2665
    %v2705 = vpop.xlane.xlu0 %2704
    %2706 = vmax.xlane.f32.xlu0 %v2667
    %v2707 = vpop.xlane.xlu0 %2706
    %2708 = vmax.xlane.f32.xlu0 %v2670
    %v2709 = vpop.xlane.xlu0 %2708
    %2710 = vmax.xlane.f32.xlu0 %v2672
    %v2711 = vpop.xlane.xlu0 %2710
    %2712 = vmax.xlane.f32.xlu0 %v2675
    %v2713 = vpop.xlane.xlu0 %2712
    %2714 = vmax.xlane.f32.xlu0 %v2677
    %v2715 = vpop.xlane.xlu0 %2714
    %2716 = vmax.xlane.f32.xlu0 %v2680
    %v2717 = vpop.xlane.xlu0 %2716
    %2718 = vmax.xlane.f32.xlu0 %v2682
    %v2719 = vpop.xlane.xlu0 %2718
    %2720 = vmax.xlane.f32.xlu0 %v2685
    %v2721 = vpop.xlane.xlu0 %2720
    %2722 = vmax.xlane.f32.xlu0 %v2687
    %v2723 = vpop.xlane.xlu0 %2722
    %2724 = vmax.xlane.f32.xlu0 %v2690
    %v2725 = vpop.xlane.xlu0 %2724
    %2726 = vmax.xlane.f32.xlu0 %v2692
    %v2727 = vpop.xlane.xlu0 %2726
    %2728 = vmax.xlane.f32.xlu0 %v2695
    %v2729 = vpop.xlane.xlu0 %2728
    %2730 = vmax.xlane.f32.xlu0 %v2697
    %v2731 = vpop.xlane.xlu0 %2730
    %2732 = vmax.xlane.f32.xlu0 %v2700
    %v2733 = vpop.xlane.xlu0 %2732
    %2734 = vmax.xlane.f32.xlu0 %v2702
    %v2735 = vpop.xlane.xlu0 %2734
    %v2736 = vsub.f32 %v2665, %v2705
    %v2737 = vsub.f32 %v2667, %v2707
    %v2738 = vsub.f32 %v2670, %v2709
    %v2739 = vsub.f32 %v2672, %v2711
    %v2740 = vsub.f32 %v2675, %v2713
    %v2741 = vsub.f32 %v2677, %v2715
    %v2742 = vsub.f32 %v2680, %v2717
    %v2743 = vsub.f32 %v2682, %v2719
    %v2744 = vsub.f32 %v2685, %v2721
    %v2745 = vsub.f32 %v2687, %v2723
    %v2746 = vsub.f32 %v2690, %v2725
    %v2747 = vsub.f32 %v2692, %v2727
    %v2748 = vsub.f32 %v2695, %v2729
    %v2749 = vsub.f32 %v2697, %v2731
    %v2750 = vsub.f32 %v2700, %v2733
    %v2751 = vsub.f32 %v2702, %v2735
    %v2752 = vmul.f32 %v2736, 1.442695
    %v2753 = vpow.pop %v2752
    %v2754 = vmul.f32 %v2737, 1.442695
    %v2755 = vpow.pop %v2754
    %v2756 = vmul.f32 %v2738, 1.442695
    %v2757 = vpow.pop %v2756
    %v2758 = vmul.f32 %v2739, 1.442695
    %v2759 = vpow.pop %v2758
    %v2760 = vmul.f32 %v2740, 1.442695
    %v2761 = vpow.pop %v2760
    %v2762 = vmul.f32 %v2741, 1.442695
    %v2763 = vpow.pop %v2762
    %v2764 = vmul.f32 %v2742, 1.442695
    %v2765 = vpow.pop %v2764
    %v2766 = vmul.f32 %v2743, 1.442695
    %v2767 = vpow.pop %v2766
    %v2768 = vmul.f32 %v2744, 1.442695
    %v2769 = vpow.pop %v2768
    %v2770 = vmul.f32 %v2745, 1.442695
    %v2771 = vpow.pop %v2770
    %v2772 = vmul.f32 %v2746, 1.442695
    %v2773 = vpow.pop %v2772
    %v2774 = vmul.f32 %v2747, 1.442695
    %v2775 = vpow.pop %v2774
    %v2776 = vmul.f32 %v2748, 1.442695
    %v2777 = vpow.pop %v2776
    %v2778 = vmul.f32 %v2749, 1.442695
    %v2779 = vpow.pop %v2778
    %v2780 = vmul.f32 %v2750, 1.442695
    %v2781 = vpow.pop %v2780
    %v2782 = vmul.f32 %v2751, 1.442695
    %v2783 = vpow.pop %v2782
    %2784 = vadd.xlane.f32.xlu0 %v2753
    %v2785 = vpop.xlane.xlu0 %2784
    %2786 = vadd.xlane.f32.xlu0 %v2755
    %v2787 = vpop.xlane.xlu0 %2786
    %2788 = vadd.xlane.f32.xlu0 %v2757
    %v2789 = vpop.xlane.xlu0 %2788
    %2790 = vadd.xlane.f32.xlu0 %v2759
    %v2791 = vpop.xlane.xlu0 %2790
    %2792 = vadd.xlane.f32.xlu0 %v2761
    %v2793 = vpop.xlane.xlu0 %2792
    %2794 = vadd.xlane.f32.xlu0 %v2763
    %v2795 = vpop.xlane.xlu0 %2794
    %2796 = vadd.xlane.f32.xlu0 %v2765
    %v2797 = vpop.xlane.xlu0 %2796
    %2798 = vadd.xlane.f32.xlu0 %v2767
    %v2799 = vpop.xlane.xlu0 %2798
    %2800 = vadd.xlane.f32.xlu0 %v2769
    %v2801 = vpop.xlane.xlu0 %2800
    %2802 = vadd.xlane.f32.xlu0 %v2771
    %v2803 = vpop.xlane.xlu0 %2802
    %2804 = vadd.xlane.f32.xlu0 %v2773
    %v2805 = vpop.xlane.xlu0 %2804
    %2806 = vadd.xlane.f32.xlu0 %v2775
    %v2807 = vpop.xlane.xlu0 %2806
    %2808 = vadd.xlane.f32.xlu0 %v2777
    %v2809 = vpop.xlane.xlu0 %2808
    %2810 = vadd.xlane.f32.xlu0 %v2779
    %v2811 = vpop.xlane.xlu0 %2810
    %2812 = vadd.xlane.f32.xlu0 %v2781
    %v2813 = vpop.xlane.xlu0 %2812
    %2814 = vadd.xlane.f32.xlu0 %v2783
    %v2815 = vpop.xlane.xlu0 %2814
    %v2816 = vrcp.pop %v2785
    %v2817 = vrcp.pop %v2787
    %v2818 = vrcp.pop %v2789
    %v2819 = vrcp.pop %v2791
    %v2820 = vrcp.pop %v2793
    %v2821 = vrcp.pop %v2795
    %v2822 = vrcp.pop %v2797
    %v2823 = vrcp.pop %v2799
    %v2824 = vrcp.pop %v2801
    %v2825 = vrcp.pop %v2803
    %v2826 = vrcp.pop %v2805
    %v2827 = vrcp.pop %v2807
    %v2828 = vrcp.pop %v2809
    %v2829 = vrcp.pop %v2811
    %v2830 = vrcp.pop %v2813
    %v2831 = vrcp.pop %v2815
    %v2832 = vmul.f32 %v2753, %v2816
    %v2833 = vmul.f32 %v2755, %v2817
    %v2834 = vmul.f32 %v2757, %v2818
    %v2835 = vmul.f32 %v2759, %v2819
    %v2836 = vmul.f32 %v2761, %v2820
    %v2837 = vmul.f32 %v2763, %v2821
    %v2838 = vmul.f32 %v2765, %v2822
    %v2839 = vmul.f32 %v2767, %v2823
    %v2840 = vmul.f32 %v2769, %v2824
    %v2841 = vmul.f32 %v2771, %v2825
    %v2842 = vmul.f32 %v2773, %v2826
    %v2843 = vmul.f32 %v2775, %v2827
    %v2844 = vmul.f32 %v2777, %v2828
    %v2845 = vmul.f32 %v2779, %v2829
    %v2846 = vmul.f32 %v2781, %v2830
    %v2847 = vmul.f32 %v2783, %v2831
    %v2848 = vpack.c.bf16 %v2833, %v2832
    %v2849 = vpack.c.bf16 %v2835, %v2834
    %v2850 = vpack.c.bf16 %v2837, %v2836
    %v2851 = vpack.c.bf16 %v2839, %v2838
    %v2852 = vpack.c.bf16 %v2841, %v2840
    %v2853 = vpack.c.bf16 %v2843, %v2842
    %v2854 = vpack.c.bf16 %v2845, %v2844
    %v2855 = vpack.c.bf16 %v2847, %v2846
    %2856 = vrot.lane.b32.xlu0 %v1802, 32
    %v2857 = vpop.permute.xlu0 %2856
    %2858 = vrot.lane.b32.xlu0 %v1803, 32
    %v2859 = vpop.permute.xlu0 %2858
    %2860 = vrot.lane.b32.xlu0 %v1804, 32
    %v2861 = vpop.permute.xlu0 %2860
    %2862 = vrot.lane.b32.xlu0 %v1805, 32
    %v2863 = vpop.permute.xlu0 %2862
    %2864 = vrot.lane.b32.xlu0 %v1806, 32
    %v2865 = vpop.permute.xlu0 %2864
    %2866 = vrot.lane.b32.xlu0 %v1807, 32
    %v2867 = vpop.permute.xlu0 %2866
    %2868 = vrot.lane.b32.xlu0 %v1808, 32
    %v2869 = vpop.permute.xlu0 %2868
    %2870 = vrot.lane.b32.xlu0 %v1809, 32
    %v2871 = vpop.permute.xlu0 %2870
    %2880 = vmatpush.bf16.msra.mxu0 %v2871
    %2881 = vmatpush.bf16.msra.mxu0 %v2869
    %2882 = vmatpush.bf16.msra.mxu0 %v2867
    %2883 = vmatpush.bf16.msra.mxu0 %v2865
    %2884 = vmatpush.bf16.msra.mxu0 %v2863
    %2885 = vmatpush.bf16.msra.mxu0 %v2861
    %2886 = vmatpush.bf16.msra.mxu0 %v2859
    %2887 = vmatpush.bf16.msra.mxu0 %v2857
    %2888 = vmatmul.bf16.gmra.mxu0 %v2848
    %v2889 = vpop.f32.mrf.mxu0
    %v2890 = vadd.f32 0.0, %v2889
    %v2891 = vpop.f32.mrf.mxu0
    %v2892 = vadd.f32 0.0, %v2891
    %2893 = vmatmul.bf16.gmra.mxu0 %v2849
    %v2894 = vpop.f32.mrf.mxu0
    %v2895 = vadd.f32 0.0, %v2894
    %v2896 = vpop.f32.mrf.mxu0
    %v2897 = vadd.f32 0.0, %v2896
    %2898 = vmatmul.bf16.gmra.mxu0 %v2850
    %v2899 = vpop.f32.mrf.mxu0
    %v2900 = vadd.f32 0.0, %v2899
    %v2901 = vpop.f32.mrf.mxu0
    %v2902 = vadd.f32 0.0, %v2901
    %2903 = vmatmul.bf16.gmra.mxu0 %v2851
    %v2904 = vpop.f32.mrf.mxu0
    %v2905 = vadd.f32 0.0, %v2904
    %v2906 = vpop.f32.mrf.mxu0
    %v2907 = vadd.f32 0.0, %v2906
    %2908 = vmatmul.bf16.gmra.mxu0 %v2852
    %v2909 = vpop.f32.mrf.mxu0
    %v2910 = vadd.f32 0.0, %v2909
    %v2911 = vpop.f32.mrf.mxu0
    %v2912 = vadd.f32 0.0, %v2911
    %2913 = vmatmul.bf16.gmra.mxu0 %v2853
    %v2914 = vpop.f32.mrf.mxu0
    %v2915 = vadd.f32 0.0, %v2914
    %v2916 = vpop.f32.mrf.mxu0
    %v2917 = vadd.f32 0.0, %v2916
    %2918 = vmatmul.bf16.gmra.mxu0 %v2854
    %v2919 = vpop.f32.mrf.mxu0
    %v2920 = vadd.f32 0.0, %v2919
    %v2921 = vpop.f32.mrf.mxu0
    %v2922 = vadd.f32 0.0, %v2921
    %2923 = vmatmul.bf16.gmra.mxu0 %v2855
    %v2924 = vpop.f32.mrf.mxu0
    %v2925 = vadd.f32 0.0, %v2924
    %v2926 = vpop.f32.mrf.mxu0
    %v2927 = vadd.f32 0.0, %v2926
    %2928 = vdwg.mxu0
    %2945 = vrot.lane.b32.xlu0 %v2182, 32
    %v2946 = vpop.permute.xlu0 %2945
    %2947 = vrot.lane.b32.xlu0 %v2184, 32
    %v2948 = vpop.permute.xlu0 %2947
    %2949 = vrot.lane.b32.xlu0 %v2187, 32
    %v2950 = vpop.permute.xlu0 %2949
    %2951 = vrot.lane.b32.xlu0 %v2189, 32
    %v2952 = vpop.permute.xlu0 %2951
    %2953 = vrot.lane.b32.xlu0 %v2192, 32
    %v2954 = vpop.permute.xlu0 %2953
    %2955 = vrot.lane.b32.xlu0 %v2194, 32
    %v2956 = vpop.permute.xlu0 %2955
    %2957 = vrot.lane.b32.xlu0 %v2197, 32
    %v2958 = vpop.permute.xlu0 %2957
    %2959 = vrot.lane.b32.xlu0 %v2199, 32
    %v2960 = vpop.permute.xlu0 %2959
    %2961 = vrot.lane.b32.xlu0 %v2202, 32
    %v2962 = vpop.permute.xlu0 %2961
    %2963 = vrot.lane.b32.xlu0 %v2204, 32
    %v2964 = vpop.permute.xlu0 %2963
    %2965 = vrot.lane.b32.xlu0 %v2207, 32
    %v2966 = vpop.permute.xlu0 %2965
    %2967 = vrot.lane.b32.xlu0 %v2209, 32
    %v2968 = vpop.permute.xlu0 %2967
    %2969 = vrot.lane.b32.xlu0 %v2212, 32
    %v2970 = vpop.permute.xlu0 %2969
    %2971 = vrot.lane.b32.xlu0 %v2214, 32
    %v2972 = vpop.permute.xlu0 %2971
    %2973 = vrot.lane.b32.xlu0 %v2217, 32
    %v2974 = vpop.permute.xlu0 %2973
    %2975 = vrot.lane.b32.xlu0 %v2219, 32
    %v2976 = vpop.permute.xlu0 %2975
    %3009 = vrot.lane.b32.xlu0 %v2536, 64
    %v3010 = vpop.permute.xlu0 %3009
    %3011 = vrot.lane.b32.xlu0 %v2538, 64
    %v3012 = vpop.permute.xlu0 %3011
    %3013 = vrot.lane.b32.xlu0 %v2541, 64
    %v3014 = vpop.permute.xlu0 %3013
    %3015 = vrot.lane.b32.xlu0 %v2543, 64
    %v3016 = vpop.permute.xlu0 %3015
    %3017 = vrot.lane.b32.xlu0 %v2546, 64
    %v3018 = vpop.permute.xlu0 %3017
    %3019 = vrot.lane.b32.xlu0 %v2548, 64
    %v3020 = vpop.permute.xlu0 %3019
    %3021 = vrot.lane.b32.xlu0 %v2551, 64
    %v3022 = vpop.permute.xlu0 %3021
    %3023 = vrot.lane.b32.xlu0 %v2553, 64
    %v3024 = vpop.permute.xlu0 %3023
    %3025 = vrot.lane.b32.xlu0 %v2556, 64
    %v3026 = vpop.permute.xlu0 %3025
    %3027 = vrot.lane.b32.xlu0 %v2558, 64
    %v3028 = vpop.permute.xlu0 %3027
    %3029 = vrot.lane.b32.xlu0 %v2561, 64
    %v3030 = vpop.permute.xlu0 %3029
    %3031 = vrot.lane.b32.xlu0 %v2563, 64
    %v3032 = vpop.permute.xlu0 %3031
    %3033 = vrot.lane.b32.xlu0 %v2566, 64
    %v3034 = vpop.permute.xlu0 %3033
    %3035 = vrot.lane.b32.xlu0 %v2568, 64
    %v3036 = vpop.permute.xlu0 %3035
    %3037 = vrot.lane.b32.xlu0 %v2571, 64
    %v3038 = vpop.permute.xlu0 %3037
    %3039 = vrot.lane.b32.xlu0 %v2573, 64
    %v3040 = vpop.permute.xlu0 %3039
    %3073 = vrot.lane.b32.xlu0 %v2890, 96
    %v3074 = vpop.permute.xlu0 %3073
    %3075 = vrot.lane.b32.xlu0 %v2892, 96
    %v3076 = vpop.permute.xlu0 %3075
    %3077 = vrot.lane.b32.xlu0 %v2895, 96
    %v3078 = vpop.permute.xlu0 %3077
    %3079 = vrot.lane.b32.xlu0 %v2897, 96
    %v3080 = vpop.permute.xlu0 %3079
    %3081 = vrot.lane.b32.xlu0 %v2900, 96
    %v3082 = vpop.permute.xlu0 %3081
    %3083 = vrot.lane.b32.xlu0 %v2902, 96
    %v3084 = vpop.permute.xlu0 %3083
    %3085 = vrot.lane.b32.xlu0 %v2905, 96
    %v3086 = vpop.permute.xlu0 %3085
    %3087 = vrot.lane.b32.xlu0 %v2907, 96
    %v3088 = vpop.permute.xlu0 %3087
    %3089 = vrot.lane.b32.xlu0 %v2910, 96
    %v3090 = vpop.permute.xlu0 %3089
    %3091 = vrot.lane.b32.xlu0 %v2912, 96
    %v3092 = vpop.permute.xlu0 %3091
    %3093 = vrot.lane.b32.xlu0 %v2915, 96
    %v3094 = vpop.permute.xlu0 %3093
    %3095 = vrot.lane.b32.xlu0 %v2917, 96
    %v3096 = vpop.permute.xlu0 %3095
    %3097 = vrot.lane.b32.xlu0 %v2920, 96
    %v3098 = vpop.permute.xlu0 %3097
    %3099 = vrot.lane.b32.xlu0 %v2922, 96
    %v3100 = vpop.permute.xlu0 %3099
    %3101 = vrot.lane.b32.xlu0 %v2925, 96
    %v3102 = vpop.permute.xlu0 %3101
    %3103 = vrot.lane.b32.xlu0 %v2927, 96
    %v3104 = vpop.permute.xlu0 %3103
    %v3121 = vsel %vm1520, %v1828, %v2946
    %v3122 = vsel %vm1520, %v1830, %v2948
    %v3123 = vsel %vm1520, %v1833, %v2950
    %v3124 = vsel %vm1520, %v1835, %v2952
    %v3125 = vsel %vm1520, %v1838, %v2954
    %v3126 = vsel %vm1520, %v1840, %v2956
    %v3127 = vsel %vm1520, %v1843, %v2958
    %v3128 = vsel %vm1520, %v1845, %v2960
    %v3129 = vsel %vm1520, %v1848, %v2962
    %v3130 = vsel %vm1520, %v1850, %v2964
    %v3131 = vsel %vm1520, %v1853, %v2966
    %v3132 = vsel %vm1520, %v1855, %v2968
    %v3133 = vsel %vm1520, %v1858, %v2970
    %v3134 = vsel %vm1520, %v1860, %v2972
    %v3135 = vsel %vm1520, %v1863, %v2974
    %v3136 = vsel %vm1520, %v1865, %v2976
    %vm3137 = vcmask 523264
    %v3138 = vsel %vm3137, %v3121, %v3010
    %v3139 = vsel %vm3137, %v3122, %v3012
    %v3140 = vsel %vm3137, %v3123, %v3014
    %v3141 = vsel %vm3137, %v3124, %v3016
    %v3142 = vsel %vm3137, %v3125, %v3018
    %v3143 = vsel %vm3137, %v3126, %v3020
    %v3144 = vsel %vm3137, %v3127, %v3022
    %v3145 = vsel %vm3137, %v3128, %v3024
    %v3146 = vsel %vm3137, %v3129, %v3026
    %v3147 = vsel %vm3137, %v3130, %v3028
    %v3148 = vsel %vm3137, %v3131, %v3030
    %v3149 = vsel %vm3137, %v3132, %v3032
    %v3150 = vsel %vm3137, %v3133, %v3034
    %v3151 = vsel %vm3137, %v3134, %v3036
    %v3152 = vsel %vm3137, %v3135, %v3038
    %v3153 = vsel %vm3137, %v3136, %v3040
    %vm3154 = vcmask 785408
    %v3155 = vsel %vm3154, %v3138, %v3074
    %v3156 = vsel %vm3154, %v3139, %v3076
    %v3157 = vsel %vm3154, %v3140, %v3078
    %v3158 = vsel %vm3154, %v3141, %v3080
    %v3159 = vsel %vm3154, %v3142, %v3082
    %v3160 = vsel %vm3154, %v3143, %v3084
    %v3161 = vsel %vm3154, %v3144, %v3086
    %v3162 = vsel %vm3154, %v3145, %v3088
    %v3163 = vsel %vm3154, %v3146, %v3090
    %v3164 = vsel %vm3154, %v3147, %v3092
    %v3165 = vsel %vm3154, %v3148, %v3094
    %v3166 = vsel %vm3154, %v3149, %v3096
    %v3167 = vsel %vm3154, %v3150, %v3098
    %v3168 = vsel %vm3154, %v3151, %v3100
    %v3169 = vsel %vm3154, %v3152, %v3102
    %v3170 = vsel %vm3154, %v3153, %v3104
    %v3171 = vpack.c.bf16 %v3155, %v3155
    %v3172 = vpack.c.bf16 %v3156, %v3156
    %v3173 = vpack.c.bf16 %v3157, %v3157
    %v3174 = vpack.c.bf16 %v3158, %v3158
    %v3175 = vpack.c.bf16 %v3159, %v3159
    %v3176 = vpack.c.bf16 %v3160, %v3160
    %v3177 = vpack.c.bf16 %v3161, %v3161
    %v3178 = vpack.c.bf16 %v3162, %v3162
    %v3179 = vpack.c.bf16 %v3163, %v3163
    %v3180 = vpack.c.bf16 %v3164, %v3164
    %v3181 = vpack.c.bf16 %v3165, %v3165
    %v3182 = vpack.c.bf16 %v3166, %v3166
    %v3183 = vpack.c.bf16 %v3167, %v3167
    %v3184 = vpack.c.bf16 %v3168, %v3168
    %v3185 = vpack.c.bf16 %v3169, %v3169
    %v3186 = vpack.c.bf16 %v3170, %v3170
    %3187 = vst [vmem:[#allocation2] sm:$0xf] %v3171
    %3188 = vst [vmem:[#allocation2 + $0x4] sm:$0xf] %v3172
    %3189 = vst [vmem:[#allocation2 + $0x8] sm:$0xf] %v3173
    %3190 = vst [vmem:[#allocation2 + $0xc] sm:$0xf] %v3174
    %3191 = vst [vmem:[#allocation2 + $0x10] sm:$0xf] %v3175
    %3192 = vst [vmem:[#allocation2 + $0x14] sm:$0xf] %v3176
    %3193 = vst [vmem:[#allocation2 + $0x18] sm:$0xf] %v3177
    %3194 = vst [vmem:[#allocation2 + $0x1c] sm:$0xf] %v3178
    %3195 = vst [vmem:[#allocation2 + $0x20] sm:$0xf] %v3179
    %3196 = vst [vmem:[#allocation2 + $0x24] sm:$0xf] %v3180
    %3197 = vst [vmem:[#allocation2 + $0x28] sm:$0xf] %v3181
    %3198 = vst [vmem:[#allocation2 + $0x2c] sm:$0xf] %v3182
    %3199 = vst [vmem:[#allocation2 + $0x30] sm:$0xf] %v3183
    %3200 = vst [vmem:[#allocation2 + $0x34] sm:$0xf] %v3184
    %3201 = vst [vmem:[#allocation2 + $0x38] sm:$0xf] %v3185
    %3202 = vst [vmem:[#allocation2 + $0x3c] sm:$0xf] %v3186
    %v3219 = vunpack.c.l.b16 %v1373
    %v3220 = vunpack.c.l.b16 %v1375
    %v3221 = vunpack.c.l.b16 %v1377
    %v3222 = vunpack.c.l.b16 %v1379
    %v3223 = vunpack.c.l.b16 %v1381
    %v3224 = vunpack.c.l.b16 %v1383
    %v3225 = vunpack.c.l.b16 %v1385
    %v3226 = vunpack.c.l.b16 %v1387
    %v3227 = vunpack.c.l.b16 %v1389
    %v3228 = vunpack.c.l.b16 %v1391
    %v3229 = vunpack.c.l.b16 %v1393
    %v3230 = vunpack.c.l.b16 %v1395
    %v3231 = vunpack.c.l.b16 %v1397
    %v3232 = vunpack.c.l.b16 %v1399
    %v3233 = vunpack.c.l.b16 %v1401
    %v3234 = vunpack.c.l.b16 %v1403
    %v3235 = vpack.c.b16 %v3220, %v3219
    %v3236 = vpack.c.b16 %v3222, %v3221
    %v3237 = vpack.c.b16 %v3224, %v3223
    %v3238 = vpack.c.b16 %v3226, %v3225
    %v3239 = vpack.c.b16 %v3228, %v3227
    %v3240 = vpack.c.b16 %v3230, %v3229
    %v3241 = vpack.c.b16 %v3232, %v3231
    %v3242 = vpack.c.b16 %v3234, %v3233
    %v3243 = vunpack.c.h.b16 %v1373
    %v3244 = vunpack.c.h.b16 %v1375
    %v3245 = vunpack.c.h.b16 %v1377
    %v3246 = vunpack.c.h.b16 %v1379
    %v3247 = vunpack.c.h.b16 %v1381
    %v3248 = vunpack.c.h.b16 %v1383
    %v3249 = vunpack.c.h.b16 %v1385
    %v3250 = vunpack.c.h.b16 %v1387
    %v3251 = vunpack.c.h.b16 %v1389
    %v3252 = vunpack.c.h.b16 %v1391
    %v3253 = vunpack.c.h.b16 %v1393
    %v3254 = vunpack.c.h.b16 %v1395
    %v3255 = vunpack.c.h.b16 %v1397
    %v3256 = vunpack.c.h.b16 %v1399
    %v3257 = vunpack.c.h.b16 %v1401
    %v3258 = vunpack.c.h.b16 %v1403
    %v3259 = vpack.c.b16 %v3244, %v3243
    %v3260 = vpack.c.b16 %v3246, %v3245
    %v3261 = vpack.c.b16 %v3248, %v3247
    %v3262 = vpack.c.b16 %v3250, %v3249
    %v3263 = vpack.c.b16 %v3252, %v3251
    %v3264 = vpack.c.b16 %v3254, %v3253
    %v3265 = vpack.c.b16 %v3256, %v3255
    %v3266 = vpack.c.b16 %v3258, %v3257
    %v3268 = vsel %vm1520, %v3235, 0
    %v3271 = vsel %vm1520, %v3236, 0
    %v3274 = vsel %vm1520, %v3237, 0
    %v3277 = vsel %vm1520, %v3238, 0
    %v3280 = vsel %vm1520, %v3239, 0
    %v3283 = vsel %vm1520, %v3240, 0
    %v3286 = vsel %vm1520, %v3241, 0
    %v3289 = vsel %vm1520, %v3242, 0
    %v3292 = vsel %vm1520, %v3259, 0
    %v3295 = vsel %vm1520, %v3260, 0
    %v3298 = vsel %vm1520, %v3261, 0
    %v3301 = vsel %vm1520, %v3262, 0
    %v3304 = vsel %vm1520, %v3263, 0
    %v3307 = vsel %vm1520, %v3264, 0
    %v3310 = vsel %vm1520, %v3265, 0
    %v3313 = vsel %vm1520, %v3266, 0
    %3315 = vmatpush.bf16.xpose.msra.mxu0 %v3313
    %3316 = vmatpush.bf16.xpose.msra.mxu0 %v3310
    %3317 = vmatpush.bf16.xpose.msra.mxu0 %v3307
    %3318 = vmatpush.bf16.xpose.msra.mxu0 %v3304
    %3319 = vmatpush.bf16.xpose.msra.mxu0 %v3301
    %3320 = vmatpush.bf16.xpose.msra.mxu0 %v3298
    %3321 = vmatpush.bf16.xpose.msra.mxu0 %v3295
    %3322 = vmatpush.bf16.xpose.msra.mxu0 %v3292
    %3323 = vmatmul.bf16.gmra.mxu0 %v3268
    %v3324 = vpop.f32.mrf.mxu0
    %v3325 = vadd.f32 %v1440, %v3324
    %v3326 = vpop.f32.mrf.mxu0
    %v3327 = vadd.f32 %v1441, %v3326
    %3328 = vmatmul.bf16.gmra.mxu0 %v3271
    %v3329 = vpop.f32.mrf.mxu0
    %v3330 = vadd.f32 %v1442, %v3329
    %v3331 = vpop.f32.mrf.mxu0
    %v3332 = vadd.f32 %v1443, %v3331
    %3333 = vmatmul.bf16.gmra.mxu0 %v3274
    %v3334 = vpop.f32.mrf.mxu0
    %v3335 = vadd.f32 %v1444, %v3334
    %v3336 = vpop.f32.mrf.mxu0
    %v3337 = vadd.f32 %v1445, %v3336
    %3338 = vmatmul.bf16.gmra.mxu0 %v3277
    %v3339 = vpop.f32.mrf.mxu0
    %v3340 = vadd.f32 %v1446, %v3339
    %v3341 = vpop.f32.mrf.mxu0
    %v3342 = vadd.f32 %v1447, %v3341
    %3343 = vmatmul.bf16.gmra.mxu0 %v3280
    %v3344 = vpop.f32.mrf.mxu0
    %v3345 = vadd.f32 %v1448, %v3344
    %v3346 = vpop.f32.mrf.mxu0
    %v3347 = vadd.f32 %v1449, %v3346
    %3348 = vmatmul.bf16.gmra.mxu0 %v3283
    %v3349 = vpop.f32.mrf.mxu0
    %v3350 = vadd.f32 %v1450, %v3349
    %v3351 = vpop.f32.mrf.mxu0
    %v3352 = vadd.f32 %v1451, %v3351
    %3353 = vmatmul.bf16.gmra.mxu0 %v3286
    %v3354 = vpop.f32.mrf.mxu0
    %v3355 = vadd.f32 %v1452, %v3354
    %v3356 = vpop.f32.mrf.mxu0
    %v3357 = vadd.f32 %v1453, %v3356
    %3358 = vmatmul.bf16.gmra.mxu0 %v3289
    %v3359 = vpop.f32.mrf.mxu0
    %v3360 = vadd.f32 %v1454, %v3359
    %v3361 = vpop.f32.mrf.mxu0
    %v3362 = vadd.f32 %v1455, %v3361
    %3363 = vdwg.mxu0
    %3364 = vmax.xlane.f32.xlu0 %v3325
    %v3365 = vpop.xlane.xlu0 %3364
    %3366 = vmax.xlane.f32.xlu0 %v3327
    %v3367 = vpop.xlane.xlu0 %3366
    %3368 = vmax.xlane.f32.xlu0 %v3330
    %v3369 = vpop.xlane.xlu0 %3368
    %3370 = vmax.xlane.f32.xlu0 %v3332
    %v3371 = vpop.xlane.xlu0 %3370
    %3372 = vmax.xlane.f32.xlu0 %v3335
    %v3373 = vpop.xlane.xlu0 %3372
    %3374 = vmax.xlane.f32.xlu0 %v3337
    %v3375 = vpop.xlane.xlu0 %3374
    %3376 = vmax.xlane.f32.xlu0 %v3340
    %v3377 = vpop.xlane.xlu0 %3376
    %3378 = vmax.xlane.f32.xlu0 %v3342
    %v3379 = vpop.xlane.xlu0 %3378
    %3380 = vmax.xlane.f32.xlu0 %v3345
    %v3381 = vpop.xlane.xlu0 %3380
    %3382 = vmax.xlane.f32.xlu0 %v3347
    %v3383 = vpop.xlane.xlu0 %3382
    %3384 = vmax.xlane.f32.xlu0 %v3350
    %v3385 = vpop.xlane.xlu0 %3384
    %3386 = vmax.xlane.f32.xlu0 %v3352
    %v3387 = vpop.xlane.xlu0 %3386
    %3388 = vmax.xlane.f32.xlu0 %v3355
    %v3389 = vpop.xlane.xlu0 %3388
    %3390 = vmax.xlane.f32.xlu0 %v3357
    %v3391 = vpop.xlane.xlu0 %3390
    %3392 = vmax.xlane.f32.xlu0 %v3360
    %v3393 = vpop.xlane.xlu0 %3392
    %3394 = vmax.xlane.f32.xlu0 %v3362
    %v3395 = vpop.xlane.xlu0 %3394
    %v3396 = vsub.f32 %v3325, %v3365
    %v3397 = vsub.f32 %v3327, %v3367
    %v3398 = vsub.f32 %v3330, %v3369
    %v3399 = vsub.f32 %v3332, %v3371
    %v3400 = vsub.f32 %v3335, %v3373
    %v3401 = vsub.f32 %v3337, %v3375
    %v3402 = vsub.f32 %v3340, %v3377
    %v3403 = vsub.f32 %v3342, %v3379
    %v3404 = vsub.f32 %v3345, %v3381
    %v3405 = vsub.f32 %v3347, %v3383
    %v3406 = vsub.f32 %v3350, %v3385
    %v3407 = vsub.f32 %v3352, %v3387
    %v3408 = vsub.f32 %v3355, %v3389
    %v3409 = vsub.f32 %v3357, %v3391
    %v3410 = vsub.f32 %v3360, %v3393
    %v3411 = vsub.f32 %v3362, %v3395
    %v3412 = vmul.f32 %v3396, 1.442695
    %v3413 = vpow.pop %v3412
    %v3414 = vmul.f32 %v3397, 1.442695
    %v3415 = vpow.pop %v3414
    %v3416 = vmul.f32 %v3398, 1.442695
    %v3417 = vpow.pop %v3416
    %v3418 = vmul.f32 %v3399, 1.442695
    %v3419 = vpow.pop %v3418
    %v3420 = vmul.f32 %v3400, 1.442695
    %v3421 = vpow.pop %v3420
    %v3422 = vmul.f32 %v3401, 1.442695
    %v3423 = vpow.pop %v3422
    %v3424 = vmul.f32 %v3402, 1.442695
    %v3425 = vpow.pop %v3424
    %v3426 = vmul.f32 %v3403, 1.442695
    %v3427 = vpow.pop %v3426
    %v3428 = vmul.f32 %v3404, 1.442695
    %v3429 = vpow.pop %v3428
    %v3430 = vmul.f32 %v3405, 1.442695
    %v3431 = vpow.pop %v3430
    %v3432 = vmul.f32 %v3406, 1.442695
    %v3433 = vpow.pop %v3432
    %v3434 = vmul.f32 %v3407, 1.442695
    %v3435 = vpow.pop %v3434
    %v3436 = vmul.f32 %v3408, 1.442695
    %v3437 = vpow.pop %v3436
    %v3438 = vmul.f32 %v3409, 1.442695
    %v3439 = vpow.pop %v3438
    %v3440 = vmul.f32 %v3410, 1.442695
    %v3441 = vpow.pop %v3440
    %v3442 = vmul.f32 %v3411, 1.442695
    %v3443 = vpow.pop %v3442
    %3444 = vadd.xlane.f32.xlu0 %v3413
    %v3445 = vpop.xlane.xlu0 %3444
    %3446 = vadd.xlane.f32.xlu0 %v3415
    %v3447 = vpop.xlane.xlu0 %3446
    %3448 = vadd.xlane.f32.xlu0 %v3417
    %v3449 = vpop.xlane.xlu0 %3448
    %3450 = vadd.xlane.f32.xlu0 %v3419
    %v3451 = vpop.xlane.xlu0 %3450
    %3452 = vadd.xlane.f32.xlu0 %v3421
    %v3453 = vpop.xlane.xlu0 %3452
    %3454 = vadd.xlane.f32.xlu0 %v3423
    %v3455 = vpop.xlane.xlu0 %3454
    %3456 = vadd.xlane.f32.xlu0 %v3425
    %v3457 = vpop.xlane.xlu0 %3456
    %3458 = vadd.xlane.f32.xlu0 %v3427
    %v3459 = vpop.xlane.xlu0 %3458
    %3460 = vadd.xlane.f32.xlu0 %v3429
    %v3461 = vpop.xlane.xlu0 %3460
    %3462 = vadd.xlane.f32.xlu0 %v3431
    %v3463 = vpop.xlane.xlu0 %3462
    %3464 = vadd.xlane.f32.xlu0 %v3433
    %v3465 = vpop.xlane.xlu0 %3464
    %3466 = vadd.xlane.f32.xlu0 %v3435
    %v3467 = vpop.xlane.xlu0 %3466
    %3468 = vadd.xlane.f32.xlu0 %v3437
    %v3469 = vpop.xlane.xlu0 %3468
    %3470 = vadd.xlane.f32.xlu0 %v3439
    %v3471 = vpop.xlane.xlu0 %3470
    %3472 = vadd.xlane.f32.xlu0 %v3441
    %v3473 = vpop.xlane.xlu0 %3472
    %3474 = vadd.xlane.f32.xlu0 %v3443
    %v3475 = vpop.xlane.xlu0 %3474
    %v3476 = vrcp.pop %v3445
    %v3477 = vrcp.pop %v3447
    %v3478 = vrcp.pop %v3449
    %v3479 = vrcp.pop %v3451
    %v3480 = vrcp.pop %v3453
    %v3481 = vrcp.pop %v3455
    %v3482 = vrcp.pop %v3457
    %v3483 = vrcp.pop %v3459
    %v3484 = vrcp.pop %v3461
    %v3485 = vrcp.pop %v3463
    %v3486 = vrcp.pop %v3465
    %v3487 = vrcp.pop %v3467
    %v3488 = vrcp.pop %v3469
    %v3489 = vrcp.pop %v3471
    %v3490 = vrcp.pop %v3473
    %v3491 = vrcp.pop %v3475
    %v3492 = vmul.f32 %v3413, %v3476
    %v3493 = vmul.f32 %v3415, %v3477
    %v3494 = vmul.f32 %v3417, %v3478
    %v3495 = vmul.f32 %v3419, %v3479
    %v3496 = vmul.f32 %v3421, %v3480
    %v3497 = vmul.f32 %v3423, %v3481
    %v3498 = vmul.f32 %v3425, %v3482
    %v3499 = vmul.f32 %v3427, %v3483
    %v3500 = vmul.f32 %v3429, %v3484
    %v3501 = vmul.f32 %v3431, %v3485
    %v3502 = vmul.f32 %v3433, %v3486
    %v3503 = vmul.f32 %v3435, %v3487
    %v3504 = vmul.f32 %v3437, %v3488
    %v3505 = vmul.f32 %v3439, %v3489
    %v3506 = vmul.f32 %v3441, %v3490
    %v3507 = vmul.f32 %v3443, %v3491
    %v3508 = vpack.c.bf16 %v3493, %v3492
    %v3509 = vpack.c.bf16 %v3495, %v3494
    %v3510 = vpack.c.bf16 %v3497, %v3496
    %v3511 = vpack.c.bf16 %v3499, %v3498
    %v3512 = vpack.c.bf16 %v3501, %v3500
    %v3513 = vpack.c.bf16 %v3503, %v3502
    %v3514 = vpack.c.bf16 %v3505, %v3504
    %v3515 = vpack.c.bf16 %v3507, %v3506
    %v3532 = vunpack.c.l.b16 %v1374
    %v3533 = vunpack.c.l.b16 %v1376
    %v3534 = vunpack.c.l.b16 %v1378
    %v3535 = vunpack.c.l.b16 %v1380
    %v3536 = vunpack.c.l.b16 %v1382
    %v3537 = vunpack.c.l.b16 %v1384
    %v3538 = vunpack.c.l.b16 %v1386
    %v3539 = vunpack.c.l.b16 %v1388
    %v3540 = vunpack.c.l.b16 %v1390
    %v3541 = vunpack.c.l.b16 %v1392
    %v3542 = vunpack.c.l.b16 %v1394
    %v3543 = vunpack.c.l.b16 %v1396
    %v3544 = vunpack.c.l.b16 %v1398
    %v3545 = vunpack.c.l.b16 %v1400
    %v3546 = vunpack.c.l.b16 %v1402
    %v3547 = vunpack.c.l.b16 %v1404
    %v3548 = vpack.c.b16 %v3533, %v3532
    %v3549 = vpack.c.b16 %v3535, %v3534
    %v3550 = vpack.c.b16 %v3537, %v3536
    %v3551 = vpack.c.b16 %v3539, %v3538
    %v3552 = vpack.c.b16 %v3541, %v3540
    %v3553 = vpack.c.b16 %v3543, %v3542
    %v3554 = vpack.c.b16 %v3545, %v3544
    %v3555 = vpack.c.b16 %v3547, %v3546
    %3564 = vmatpush.bf16.msra.mxu0 %v3555
    %3565 = vmatpush.bf16.msra.mxu0 %v3554
    %3566 = vmatpush.bf16.msra.mxu0 %v3553
    %3567 = vmatpush.bf16.msra.mxu0 %v3552
    %3568 = vmatpush.bf16.msra.mxu0 %v3551
    %3569 = vmatpush.bf16.msra.mxu0 %v3550
    %3570 = vmatpush.bf16.msra.mxu0 %v3549
    %3571 = vmatpush.bf16.msra.mxu0 %v3548
    %3572 = vmatmul.bf16.gmra.mxu0 %v3508
    %v3573 = vpop.f32.mrf.mxu0
    %v3574 = vadd.f32 0.0, %v3573
    %v3575 = vpop.f32.mrf.mxu0
    %v3576 = vadd.f32 0.0, %v3575
    %3577 = vmatmul.bf16.gmra.mxu0 %v3509
    %v3578 = vpop.f32.mrf.mxu0
    %v3579 = vadd.f32 0.0, %v3578
    %v3580 = vpop.f32.mrf.mxu0
    %v3581 = vadd.f32 0.0, %v3580
    %3582 = vmatmul.bf16.gmra.mxu0 %v3510
    %v3583 = vpop.f32.mrf.mxu0
    %v3584 = vadd.f32 0.0, %v3583
    %v3585 = vpop.f32.mrf.mxu0
    %v3586 = vadd.f32 0.0, %v3585
    %3587 = vmatmul.bf16.gmra.mxu0 %v3511
    %v3588 = vpop.f32.mrf.mxu0
    %v3589 = vadd.f32 0.0, %v3588
    %v3590 = vpop.f32.mrf.mxu0
    %v3591 = vadd.f32 0.0, %v3590
    %3592 = vmatmul.bf16.gmra.mxu0 %v3512
    %v3593 = vpop.f32.mrf.mxu0
    %v3594 = vadd.f32 0.0, %v3593
    %v3595 = vpop.f32.mrf.mxu0
    %v3596 = vadd.f32 0.0, %v3595
    %3597 = vmatmul.bf16.gmra.mxu0 %v3513
    %v3598 = vpop.f32.mrf.mxu0
    %v3599 = vadd.f32 0.0, %v3598
    %v3600 = vpop.f32.mrf.mxu0
    %v3601 = vadd.f32 0.0, %v3600
    %3602 = vmatmul.bf16.gmra.mxu0 %v3514
    %v3603 = vpop.f32.mrf.mxu0
    %v3604 = vadd.f32 0.0, %v3603
    %v3605 = vpop.f32.mrf.mxu0
    %v3606 = vadd.f32 0.0, %v3605
    %3607 = vmatmul.bf16.gmra.mxu0 %v3515
    %v3608 = vpop.f32.mrf.mxu0
    %v3609 = vadd.f32 0.0, %v3608
    %v3610 = vpop.f32.mrf.mxu0
    %v3611 = vadd.f32 0.0, %v3610
    %3612 = vdwg.mxu0
    %3613 = vrot.lane.b32.xlu0 %v3235, 96
    %v3614 = vpop.permute.xlu0 %3613
    %3615 = vrot.lane.b32.xlu0 %v3236, 96
    %v3616 = vpop.permute.xlu0 %3615
    %3617 = vrot.lane.b32.xlu0 %v3237, 96
    %v3618 = vpop.permute.xlu0 %3617
    %3619 = vrot.lane.b32.xlu0 %v3238, 96
    %v3620 = vpop.permute.xlu0 %3619
    %3621 = vrot.lane.b32.xlu0 %v3239, 96
    %v3622 = vpop.permute.xlu0 %3621
    %3623 = vrot.lane.b32.xlu0 %v3240, 96
    %v3624 = vpop.permute.xlu0 %3623
    %3625 = vrot.lane.b32.xlu0 %v3241, 96
    %v3626 = vpop.permute.xlu0 %3625
    %3627 = vrot.lane.b32.xlu0 %v3242, 96
    %v3628 = vpop.permute.xlu0 %3627
    %3629 = vrot.lane.b32.xlu0 %v3259, 96
    %v3630 = vpop.permute.xlu0 %3629
    %3631 = vrot.lane.b32.xlu0 %v3260, 96
    %v3632 = vpop.permute.xlu0 %3631
    %3633 = vrot.lane.b32.xlu0 %v3261, 96
    %v3634 = vpop.permute.xlu0 %3633
    %3635 = vrot.lane.b32.xlu0 %v3262, 96
    %v3636 = vpop.permute.xlu0 %3635
    %3637 = vrot.lane.b32.xlu0 %v3263, 96
    %v3638 = vpop.permute.xlu0 %3637
    %3639 = vrot.lane.b32.xlu0 %v3264, 96
    %v3640 = vpop.permute.xlu0 %3639
    %3641 = vrot.lane.b32.xlu0 %v3265, 96
    %v3642 = vpop.permute.xlu0 %3641
    %3643 = vrot.lane.b32.xlu0 %v3266, 96
    %v3644 = vpop.permute.xlu0 %3643
    %v3646 = vsel %vm1520, %v3614, 0
    %v3649 = vsel %vm1520, %v3616, 0
    %v3652 = vsel %vm1520, %v3618, 0
    %v3655 = vsel %vm1520, %v3620, 0
    %v3658 = vsel %vm1520, %v3622, 0
    %v3661 = vsel %vm1520, %v3624, 0
    %v3664 = vsel %vm1520, %v3626, 0
    %v3667 = vsel %vm1520, %v3628, 0
    %v3670 = vsel %vm1520, %v3630, 0
    %v3673 = vsel %vm1520, %v3632, 0
    %v3676 = vsel %vm1520, %v3634, 0
    %v3679 = vsel %vm1520, %v3636, 0
    %v3682 = vsel %vm1520, %v3638, 0
    %v3685 = vsel %vm1520, %v3640, 0
    %v3688 = vsel %vm1520, %v3642, 0
    %v3691 = vsel %vm1520, %v3644, 0
    %3693 = vmatpush.bf16.xpose.msra.mxu0 %v3691
    %3694 = vmatpush.bf16.xpose.msra.mxu0 %v3688
    %3695 = vmatpush.bf16.xpose.msra.mxu0 %v3685
    %3696 = vmatpush.bf16.xpose.msra.mxu0 %v3682
    %3697 = vmatpush.bf16.xpose.msra.mxu0 %v3679
    %3698 = vmatpush.bf16.xpose.msra.mxu0 %v3676
    %3699 = vmatpush.bf16.xpose.msra.mxu0 %v3673
    %3700 = vmatpush.bf16.xpose.msra.mxu0 %v3670
    %3701 = vmatmul.bf16.gmra.mxu0 %v3646
    %v3702 = vpop.f32.mrf.mxu0
    %v3703 = vadd.f32 %v1440, %v3702
    %v3704 = vpop.f32.mrf.mxu0
    %v3705 = vadd.f32 %v1441, %v3704
    %3706 = vmatmul.bf16.gmra.mxu0 %v3649
    %v3707 = vpop.f32.mrf.mxu0
    %v3708 = vadd.f32 %v1442, %v3707
    %v3709 = vpop.f32.mrf.mxu0
    %v3710 = vadd.f32 %v1443, %v3709
    %3711 = vmatmul.bf16.gmra.mxu0 %v3652
    %v3712 = vpop.f32.mrf.mxu0
    %v3713 = vadd.f32 %v1444, %v3712
    %v3714 = vpop.f32.mrf.mxu0
    %v3715 = vadd.f32 %v1445, %v3714
    %3716 = vmatmul.bf16.gmra.mxu0 %v3655
    %v3717 = vpop.f32.mrf.mxu0
    %v3718 = vadd.f32 %v1446, %v3717
    %v3719 = vpop.f32.mrf.mxu0
    %v3720 = vadd.f32 %v1447, %v3719
    %3721 = vmatmul.bf16.gmra.mxu0 %v3658
    %v3722 = vpop.f32.mrf.mxu0
    %v3723 = vadd.f32 %v1448, %v3722
    %v3724 = vpop.f32.mrf.mxu0
    %v3725 = vadd.f32 %v1449, %v3724
    %3726 = vmatmul.bf16.gmra.mxu0 %v3661
    %v3727 = vpop.f32.mrf.mxu0
    %v3728 = vadd.f32 %v1450, %v3727
    %v3729 = vpop.f32.mrf.mxu0
    %v3730 = vadd.f32 %v1451, %v3729
    %3731 = vmatmul.bf16.gmra.mxu0 %v3664
    %v3732 = vpop.f32.mrf.mxu0
    %v3733 = vadd.f32 %v1452, %v3732
    %v3734 = vpop.f32.mrf.mxu0
    %v3735 = vadd.f32 %v1453, %v3734
    %3736 = vmatmul.bf16.gmra.mxu0 %v3667
    %v3737 = vpop.f32.mrf.mxu0
    %v3738 = vadd.f32 %v1454, %v3737
    %v3739 = vpop.f32.mrf.mxu0
    %v3740 = vadd.f32 %v1455, %v3739
    %3741 = vdwg.mxu0
    %3742 = vmax.xlane.f32.xlu0 %v3703
    %v3743 = vpop.xlane.xlu0 %3742
    %3744 = vmax.xlane.f32.xlu0 %v3705
    %v3745 = vpop.xlane.xlu0 %3744
    %3746 = vmax.xlane.f32.xlu0 %v3708
    %v3747 = vpop.xlane.xlu0 %3746
    %3748 = vmax.xlane.f32.xlu0 %v3710
    %v3749 = vpop.xlane.xlu0 %3748
    %3750 = vmax.xlane.f32.xlu0 %v3713
    %v3751 = vpop.xlane.xlu0 %3750
    %3752 = vmax.xlane.f32.xlu0 %v3715
    %v3753 = vpop.xlane.xlu0 %3752
    %3754 = vmax.xlane.f32.xlu0 %v3718
    %v3755 = vpop.xlane.xlu0 %3754
    %3756 = vmax.xlane.f32.xlu0 %v3720
    %v3757 = vpop.xlane.xlu0 %3756
    %3758 = vmax.xlane.f32.xlu0 %v3723
    %v3759 = vpop.xlane.xlu0 %3758
    %3760 = vmax.xlane.f32.xlu0 %v3725
    %v3761 = vpop.xlane.xlu0 %3760
    %3762 = vmax.xlane.f32.xlu0 %v3728
    %v3763 = vpop.xlane.xlu0 %3762
    %3764 = vmax.xlane.f32.xlu0 %v3730
    %v3765 = vpop.xlane.xlu0 %3764
    %3766 = vmax.xlane.f32.xlu0 %v3733
    %v3767 = vpop.xlane.xlu0 %3766
    %3768 = vmax.xlane.f32.xlu0 %v3735
    %v3769 = vpop.xlane.xlu0 %3768
    %3770 = vmax.xlane.f32.xlu0 %v3738
    %v3771 = vpop.xlane.xlu0 %3770
    %3772 = vmax.xlane.f32.xlu0 %v3740
    %v3773 = vpop.xlane.xlu0 %3772
    %v3774 = vsub.f32 %v3703, %v3743
    %v3775 = vsub.f32 %v3705, %v3745
    %v3776 = vsub.f32 %v3708, %v3747
    %v3777 = vsub.f32 %v3710, %v3749
    %v3778 = vsub.f32 %v3713, %v3751
    %v3779 = vsub.f32 %v3715, %v3753
    %v3780 = vsub.f32 %v3718, %v3755
    %v3781 = vsub.f32 %v3720, %v3757
    %v3782 = vsub.f32 %v3723, %v3759
    %v3783 = vsub.f32 %v3725, %v3761
    %v3784 = vsub.f32 %v3728, %v3763
    %v3785 = vsub.f32 %v3730, %v3765
    %v3786 = vsub.f32 %v3733, %v3767
    %v3787 = vsub.f32 %v3735, %v3769
    %v3788 = vsub.f32 %v3738, %v3771
    %v3789 = vsub.f32 %v3740, %v3773
    %v3790 = vmul.f32 %v3774, 1.442695
    %v3791 = vpow.pop %v3790
    %v3792 = vmul.f32 %v3775, 1.442695
    %v3793 = vpow.pop %v3792
    %v3794 = vmul.f32 %v3776, 1.442695
    %v3795 = vpow.pop %v3794
    %v3796 = vmul.f32 %v3777, 1.442695
    %v3797 = vpow.pop %v3796
    %v3798 = vmul.f32 %v3778, 1.442695
    %v3799 = vpow.pop %v3798
    %v3800 = vmul.f32 %v3779, 1.442695
    %v3801 = vpow.pop %v3800
    %v3802 = vmul.f32 %v3780, 1.442695
    %v3803 = vpow.pop %v3802
    %v3804 = vmul.f32 %v3781, 1.442695
    %v3805 = vpow.pop %v3804
    %v3806 = vmul.f32 %v3782, 1.442695
    %v3807 = vpow.pop %v3806
    %v3808 = vmul.f32 %v3783, 1.442695
    %v3809 = vpow.pop %v3808
    %v3810 = vmul.f32 %v3784, 1.442695
    %v3811 = vpow.pop %v3810
    %v3812 = vmul.f32 %v3785, 1.442695
    %v3813 = vpow.pop %v3812
    %v3814 = vmul.f32 %v3786, 1.442695
    %v3815 = vpow.pop %v3814
    %v3816 = vmul.f32 %v3787, 1.442695
    %v3817 = vpow.pop %v3816
    %v3818 = vmul.f32 %v3788, 1.442695
    %v3819 = vpow.pop %v3818
    %v3820 = vmul.f32 %v3789, 1.442695
    %v3821 = vpow.pop %v3820
    %3822 = vadd.xlane.f32.xlu0 %v3791
    %v3823 = vpop.xlane.xlu0 %3822
    %3824 = vadd.xlane.f32.xlu0 %v3793
    %v3825 = vpop.xlane.xlu0 %3824
    %3826 = vadd.xlane.f32.xlu0 %v3795
    %v3827 = vpop.xlane.xlu0 %3826
    %3828 = vadd.xlane.f32.xlu0 %v3797
    %v3829 = vpop.xlane.xlu0 %3828
    %3830 = vadd.xlane.f32.xlu0 %v3799
    %v3831 = vpop.xlane.xlu0 %3830
    %3832 = vadd.xlane.f32.xlu0 %v3801
    %v3833 = vpop.xlane.xlu0 %3832
    %3834 = vadd.xlane.f32.xlu0 %v3803
    %v3835 = vpop.xlane.xlu0 %3834
    %3836 = vadd.xlane.f32.xlu0 %v3805
    %v3837 = vpop.xlane.xlu0 %3836
    %3838 = vadd.xlane.f32.xlu0 %v3807
    %v3839 = vpop.xlane.xlu0 %3838
    %3840 = vadd.xlane.f32.xlu0 %v3809
    %v3841 = vpop.xlane.xlu0 %3840
    %3842 = vadd.xlane.f32.xlu0 %v3811
    %v3843 = vpop.xlane.xlu0 %3842
    %3844 = vadd.xlane.f32.xlu0 %v3813
    %v3845 = vpop.xlane.xlu0 %3844
    %3846 = vadd.xlane.f32.xlu0 %v3815
    %v3847 = vpop.xlane.xlu0 %3846
    %3848 = vadd.xlane.f32.xlu0 %v3817
    %v3849 = vpop.xlane.xlu0 %3848
    %3850 = vadd.xlane.f32.xlu0 %v3819
    %v3851 = vpop.xlane.xlu0 %3850
    %3852 = vadd.xlane.f32.xlu0 %v3821
    %v3853 = vpop.xlane.xlu0 %3852
    %v3854 = vrcp.pop %v3823
    %v3855 = vrcp.pop %v3825
    %v3856 = vrcp.pop %v3827
    %v3857 = vrcp.pop %v3829
    %v3858 = vrcp.pop %v3831
    %v3859 = vrcp.pop %v3833
    %v3860 = vrcp.pop %v3835
    %v3861 = vrcp.pop %v3837
    %v3862 = vrcp.pop %v3839
    %v3863 = vrcp.pop %v3841
    %v3864 = vrcp.pop %v3843
    %v3865 = vrcp.pop %v3845
    %v3866 = vrcp.pop %v3847
    %v3867 = vrcp.pop %v3849
    %v3868 = vrcp.pop %v3851
    %v3869 = vrcp.pop %v3853
    %v3870 = vmul.f32 %v3791, %v3854
    %v3871 = vmul.f32 %v3793, %v3855
    %v3872 = vmul.f32 %v3795, %v3856
    %v3873 = vmul.f32 %v3797, %v3857
    %v3874 = vmul.f32 %v3799, %v3858
    %v3875 = vmul.f32 %v3801, %v3859
    %v3876 = vmul.f32 %v3803, %v3860
    %v3877 = vmul.f32 %v3805, %v3861
    %v3878 = vmul.f32 %v3807, %v3862
    %v3879 = vmul.f32 %v3809, %v3863
    %v3880 = vmul.f32 %v3811, %v3864
    %v3881 = vmul.f32 %v3813, %v3865
    %v3882 = vmul.f32 %v3815, %v3866
    %v3883 = vmul.f32 %v3817, %v3867
    %v3884 = vmul.f32 %v3819, %v3868
    %v3885 = vmul.f32 %v3821, %v3869
    %v3886 = vpack.c.bf16 %v3871, %v3870
    %v3887 = vpack.c.bf16 %v3873, %v3872
    %v3888 = vpack.c.bf16 %v3875, %v3874
    %v3889 = vpack.c.bf16 %v3877, %v3876
    %v3890 = vpack.c.bf16 %v3879, %v3878
    %v3891 = vpack.c.bf16 %v3881, %v3880
    %v3892 = vpack.c.bf16 %v3883, %v3882
    %v3893 = vpack.c.bf16 %v3885, %v3884
    %3894 = vrot.lane.b32.xlu0 %v3548, 96
    %v3895 = vpop.permute.xlu0 %3894
    %3896 = vrot.lane.b32.xlu0 %v3549, 96
    %v3897 = vpop.permute.xlu0 %3896
    %3898 = vrot.lane.b32.xlu0 %v3550, 96
    %v3899 = vpop.permute.xlu0 %3898
    %3900 = vrot.lane.b32.xlu0 %v3551, 96
    %v3901 = vpop.permute.xlu0 %3900
    %3902 = vrot.lane.b32.xlu0 %v3552, 96
    %v3903 = vpop.permute.xlu0 %3902
    %3904 = vrot.lane.b32.xlu0 %v3553, 96
    %v3905 = vpop.permute.xlu0 %3904
    %3906 = vrot.lane.b32.xlu0 %v3554, 96
    %v3907 = vpop.permute.xlu0 %3906
    %3908 = vrot.lane.b32.xlu0 %v3555, 96
    %v3909 = vpop.permute.xlu0 %3908
    %3918 = vmatpush.bf16.msra.mxu0 %v3909
    %3919 = vmatpush.bf16.msra.mxu0 %v3907
    %3920 = vmatpush.bf16.msra.mxu0 %v3905
    %3921 = vmatpush.bf16.msra.mxu0 %v3903
    %3922 = vmatpush.bf16.msra.mxu0 %v3901
    %3923 = vmatpush.bf16.msra.mxu0 %v3899
    %3924 = vmatpush.bf16.msra.mxu0 %v3897
    %3925 = vmatpush.bf16.msra.mxu0 %v3895
    %3926 = vmatmul.bf16.gmra.mxu0 %v3886
    %v3927 = vpop.f32.mrf.mxu0
    %v3928 = vadd.f32 0.0, %v3927
    %v3929 = vpop.f32.mrf.mxu0
    %v3930 = vadd.f32 0.0, %v3929
    %3931 = vmatmul.bf16.gmra.mxu0 %v3887
    %v3932 = vpop.f32.mrf.mxu0
    %v3933 = vadd.f32 0.0, %v3932
    %v3934 = vpop.f32.mrf.mxu0
    %v3935 = vadd.f32 0.0, %v3934
    %3936 = vmatmul.bf16.gmra.mxu0 %v3888
    %v3937 = vpop.f32.mrf.mxu0
    %v3938 = vadd.f32 0.0, %v3937
    %v3939 = vpop.f32.mrf.mxu0
    %v3940 = vadd.f32 0.0, %v3939
    %3941 = vmatmul.bf16.gmra.mxu0 %v3889
    %v3942 = vpop.f32.mrf.mxu0
    %v3943 = vadd.f32 0.0, %v3942
    %v3944 = vpop.f32.mrf.mxu0
    %v3945 = vadd.f32 0.0, %v3944
    %3946 = vmatmul.bf16.gmra.mxu0 %v3890
    %v3947 = vpop.f32.mrf.mxu0
    %v3948 = vadd.f32 0.0, %v3947
    %v3949 = vpop.f32.mrf.mxu0
    %v3950 = vadd.f32 0.0, %v3949
    %3951 = vmatmul.bf16.gmra.mxu0 %v3891
    %v3952 = vpop.f32.mrf.mxu0
    %v3953 = vadd.f32 0.0, %v3952
    %v3954 = vpop.f32.mrf.mxu0
    %v3955 = vadd.f32 0.0, %v3954
    %3956 = vmatmul.bf16.gmra.mxu0 %v3892
    %v3957 = vpop.f32.mrf.mxu0
    %v3958 = vadd.f32 0.0, %v3957
    %v3959 = vpop.f32.mrf.mxu0
    %v3960 = vadd.f32 0.0, %v3959
    %3961 = vmatmul.bf16.gmra.mxu0 %v3893
    %v3962 = vpop.f32.mrf.mxu0
    %v3963 = vadd.f32 0.0, %v3962
    %v3964 = vpop.f32.mrf.mxu0
    %v3965 = vadd.f32 0.0, %v3964
    %3966 = vdwg.mxu0
    %3967 = vrot.lane.b32.xlu0 %v3235, 64
    %v3968 = vpop.permute.xlu0 %3967
    %3969 = vrot.lane.b32.xlu0 %v3236, 64
    %v3970 = vpop.permute.xlu0 %3969
    %3971 = vrot.lane.b32.xlu0 %v3237, 64
    %v3972 = vpop.permute.xlu0 %3971
    %3973 = vrot.lane.b32.xlu0 %v3238, 64
    %v3974 = vpop.permute.xlu0 %3973
    %3975 = vrot.lane.b32.xlu0 %v3239, 64
    %v3976 = vpop.permute.xlu0 %3975
    %3977 = vrot.lane.b32.xlu0 %v3240, 64
    %v3978 = vpop.permute.xlu0 %3977
    %3979 = vrot.lane.b32.xlu0 %v3241, 64
    %v3980 = vpop.permute.xlu0 %3979
    %3981 = vrot.lane.b32.xlu0 %v3242, 64
    %v3982 = vpop.permute.xlu0 %3981
    %3983 = vrot.lane.b32.xlu0 %v3259, 64
    %v3984 = vpop.permute.xlu0 %3983
    %3985 = vrot.lane.b32.xlu0 %v3260, 64
    %v3986 = vpop.permute.xlu0 %3985
    %3987 = vrot.lane.b32.xlu0 %v3261, 64
    %v3988 = vpop.permute.xlu0 %3987
    %3989 = vrot.lane.b32.xlu0 %v3262, 64
    %v3990 = vpop.permute.xlu0 %3989
    %3991 = vrot.lane.b32.xlu0 %v3263, 64
    %v3992 = vpop.permute.xlu0 %3991
    %3993 = vrot.lane.b32.xlu0 %v3264, 64
    %v3994 = vpop.permute.xlu0 %3993
    %3995 = vrot.lane.b32.xlu0 %v3265, 64
    %v3996 = vpop.permute.xlu0 %3995
    %3997 = vrot.lane.b32.xlu0 %v3266, 64
    %v3998 = vpop.permute.xlu0 %3997
    %v4000 = vsel %vm1520, %v3968, 0
    %v4003 = vsel %vm1520, %v3970, 0
    %v4006 = vsel %vm1520, %v3972, 0
    %v4009 = vsel %vm1520, %v3974, 0
    %v4012 = vsel %vm1520, %v3976, 0
    %v4015 = vsel %vm1520, %v3978, 0
    %v4018 = vsel %vm1520, %v3980, 0
    %v4021 = vsel %vm1520, %v3982, 0
    %v4024 = vsel %vm1520, %v3984, 0
    %v4027 = vsel %vm1520, %v3986, 0
    %v4030 = vsel %vm1520, %v3988, 0
    %v4033 = vsel %vm1520, %v3990, 0
    %v4036 = vsel %vm1520, %v3992, 0
    %v4039 = vsel %vm1520, %v3994, 0
    %v4042 = vsel %vm1520, %v3996, 0
    %v4045 = vsel %vm1520, %v3998, 0
    %4047 = vmatpush.bf16.xpose.msra.mxu0 %v4045
    %4048 = vmatpush.bf16.xpose.msra.mxu0 %v4042
    %4049 = vmatpush.bf16.xpose.msra.mxu0 %v4039
    %4050 = vmatpush.bf16.xpose.msra.mxu0 %v4036
    %4051 = vmatpush.bf16.xpose.msra.mxu0 %v4033
    %4052 = vmatpush.bf16.xpose.msra.mxu0 %v4030
    %4053 = vmatpush.bf16.xpose.msra.mxu0 %v4027
    %4054 = vmatpush.bf16.xpose.msra.mxu0 %v4024
    %4055 = vmatmul.bf16.gmra.mxu0 %v4000
    %v4056 = vpop.f32.mrf.mxu0
    %v4057 = vadd.f32 %v1440, %v4056
    %v4058 = vpop.f32.mrf.mxu0
    %v4059 = vadd.f32 %v1441, %v4058
    %4060 = vmatmul.bf16.gmra.mxu0 %v4003
    %v4061 = vpop.f32.mrf.mxu0
    %v4062 = vadd.f32 %v1442, %v4061
    %v4063 = vpop.f32.mrf.mxu0
    %v4064 = vadd.f32 %v1443, %v4063
    %4065 = vmatmul.bf16.gmra.mxu0 %v4006
    %v4066 = vpop.f32.mrf.mxu0
    %v4067 = vadd.f32 %v1444, %v4066
    %v4068 = vpop.f32.mrf.mxu0
    %v4069 = vadd.f32 %v1445, %v4068
    %4070 = vmatmul.bf16.gmra.mxu0 %v4009
    %v4071 = vpop.f32.mrf.mxu0
    %v4072 = vadd.f32 %v1446, %v4071
    %v4073 = vpop.f32.mrf.mxu0
    %v4074 = vadd.f32 %v1447, %v4073
    %4075 = vmatmul.bf16.gmra.mxu0 %v4012
    %v4076 = vpop.f32.mrf.mxu0
    %v4077 = vadd.f32 %v1448, %v4076
    %v4078 = vpop.f32.mrf.mxu0
    %v4079 = vadd.f32 %v1449, %v4078
    %4080 = vmatmul.bf16.gmra.mxu0 %v4015
    %v4081 = vpop.f32.mrf.mxu0
    %v4082 = vadd.f32 %v1450, %v4081
    %v4083 = vpop.f32.mrf.mxu0
    %v4084 = vadd.f32 %v1451, %v4083
    %4085 = vmatmul.bf16.gmra.mxu0 %v4018
    %v4086 = vpop.f32.mrf.mxu0
    %v4087 = vadd.f32 %v1452, %v4086
    %v4088 = vpop.f32.mrf.mxu0
    %v4089 = vadd.f32 %v1453, %v4088
    %4090 = vmatmul.bf16.gmra.mxu0 %v4021
    %v4091 = vpop.f32.mrf.mxu0
    %v4092 = vadd.f32 %v1454, %v4091
    %v4093 = vpop.f32.mrf.mxu0
    %v4094 = vadd.f32 %v1455, %v4093
    %4095 = vdwg.mxu0
    %4096 = vmax.xlane.f32.xlu0 %v4057
    %v4097 = vpop.xlane.xlu0 %4096
    %4098 = vmax.xlane.f32.xlu0 %v4059
    %v4099 = vpop.xlane.xlu0 %4098
    %4100 = vmax.xlane.f32.xlu0 %v4062
    %v4101 = vpop.xlane.xlu0 %4100
    %4102 = vmax.xlane.f32.xlu0 %v4064
    %v4103 = vpop.xlane.xlu0 %4102
    %4104 = vmax.xlane.f32.xlu0 %v4067
    %v4105 = vpop.xlane.xlu0 %4104
    %4106 = vmax.xlane.f32.xlu0 %v4069
    %v4107 = vpop.xlane.xlu0 %4106
    %4108 = vmax.xlane.f32.xlu0 %v4072
    %v4109 = vpop.xlane.xlu0 %4108
    %4110 = vmax.xlane.f32.xlu0 %v4074
    %v4111 = vpop.xlane.xlu0 %4110
    %4112 = vmax.xlane.f32.xlu0 %v4077
    %v4113 = vpop.xlane.xlu0 %4112
    %4114 = vmax.xlane.f32.xlu0 %v4079
    %v4115 = vpop.xlane.xlu0 %4114
    %4116 = vmax.xlane.f32.xlu0 %v4082
    %v4117 = vpop.xlane.xlu0 %4116
    %4118 = vmax.xlane.f32.xlu0 %v4084
    %v4119 = vpop.xlane.xlu0 %4118
    %4120 = vmax.xlane.f32.xlu0 %v4087
    %v4121 = vpop.xlane.xlu0 %4120
    %4122 = vmax.xlane.f32.xlu0 %v4089
    %v4123 = vpop.xlane.xlu0 %4122
    %4124 = vmax.xlane.f32.xlu0 %v4092
    %v4125 = vpop.xlane.xlu0 %4124
    %4126 = vmax.xlane.f32.xlu0 %v4094
    %v4127 = vpop.xlane.xlu0 %4126
    %v4128 = vsub.f32 %v4057, %v4097
    %v4129 = vsub.f32 %v4059, %v4099
    %v4130 = vsub.f32 %v4062, %v4101
    %v4131 = vsub.f32 %v4064, %v4103
    %v4132 = vsub.f32 %v4067, %v4105
    %v4133 = vsub.f32 %v4069, %v4107
    %v4134 = vsub.f32 %v4072, %v4109
    %v4135 = vsub.f32 %v4074, %v4111
    %v4136 = vsub.f32 %v4077, %v4113
    %v4137 = vsub.f32 %v4079, %v4115
    %v4138 = vsub.f32 %v4082, %v4117
    %v4139 = vsub.f32 %v4084, %v4119
    %v4140 = vsub.f32 %v4087, %v4121
    %v4141 = vsub.f32 %v4089, %v4123
    %v4142 = vsub.f32 %v4092, %v4125
    %v4143 = vsub.f32 %v4094, %v4127
    %v4144 = vmul.f32 %v4128, 1.442695
    %v4145 = vpow.pop %v4144
    %v4146 = vmul.f32 %v4129, 1.442695
    %v4147 = vpow.pop %v4146
    %v4148 = vmul.f32 %v4130, 1.442695
    %v4149 = vpow.pop %v4148
    %v4150 = vmul.f32 %v4131, 1.442695
    %v4151 = vpow.pop %v4150
    %v4152 = vmul.f32 %v4132, 1.442695
    %v4153 = vpow.pop %v4152
    %v4154 = vmul.f32 %v4133, 1.442695
    %v4155 = vpow.pop %v4154
    %v4156 = vmul.f32 %v4134, 1.442695
    %v4157 = vpow.pop %v4156
    %v4158 = vmul.f32 %v4135, 1.442695
    %v4159 = vpow.pop %v4158
    %v4160 = vmul.f32 %v4136, 1.442695
    %v4161 = vpow.pop %v4160
    %v4162 = vmul.f32 %v4137, 1.442695
    %v4163 = vpow.pop %v4162
    %v4164 = vmul.f32 %v4138, 1.442695
    %v4165 = vpow.pop %v4164
    %v4166 = vmul.f32 %v4139, 1.442695
    %v4167 = vpow.pop %v4166
    %v4168 = vmul.f32 %v4140, 1.442695
    %v4169 = vpow.pop %v4168
    %v4170 = vmul.f32 %v4141, 1.442695
    %v4171 = vpow.pop %v4170
    %v4172 = vmul.f32 %v4142, 1.442695
    %v4173 = vpow.pop %v4172
    %v4174 = vmul.f32 %v4143, 1.442695
    %v4175 = vpow.pop %v4174
    %4176 = vadd.xlane.f32.xlu0 %v4145
    %v4177 = vpop.xlane.xlu0 %4176
    %4178 = vadd.xlane.f32.xlu0 %v4147
    %v4179 = vpop.xlane.xlu0 %4178
    %4180 = vadd.xlane.f32.xlu0 %v4149
    %v4181 = vpop.xlane.xlu0 %4180
    %4182 = vadd.xlane.f32.xlu0 %v4151
    %v4183 = vpop.xlane.xlu0 %4182
    %4184 = vadd.xlane.f32.xlu0 %v4153
    %v4185 = vpop.xlane.xlu0 %4184
    %4186 = vadd.xlane.f32.xlu0 %v4155
    %v4187 = vpop.xlane.xlu0 %4186
    %4188 = vadd.xlane.f32.xlu0 %v4157
    %v4189 = vpop.xlane.xlu0 %4188
    %4190 = vadd.xlane.f32.xlu0 %v4159
    %v4191 = vpop.xlane.xlu0 %4190
    %4192 = vadd.xlane.f32.xlu0 %v4161
    %v4193 = vpop.xlane.xlu0 %4192
    %4194 = vadd.xlane.f32.xlu0 %v4163
    %v4195 = vpop.xlane.xlu0 %4194
    %4196 = vadd.xlane.f32.xlu0 %v4165
    %v4197 = vpop.xlane.xlu0 %4196
    %4198 = vadd.xlane.f32.xlu0 %v4167
    %v4199 = vpop.xlane.xlu0 %4198
    %4200 = vadd.xlane.f32.xlu0 %v4169
    %v4201 = vpop.xlane.xlu0 %4200
    %4202 = vadd.xlane.f32.xlu0 %v4171
    %v4203 = vpop.xlane.xlu0 %4202
    %4204 = vadd.xlane.f32.xlu0 %v4173
    %v4205 = vpop.xlane.xlu0 %4204
    %4206 = vadd.xlane.f32.xlu0 %v4175
    %v4207 = vpop.xlane.xlu0 %4206
    %v4208 = vrcp.pop %v4177
    %v4209 = vrcp.pop %v4179
    %v4210 = vrcp.pop %v4181
    %v4211 = vrcp.pop %v4183
    %v4212 = vrcp.pop %v4185
    %v4213 = vrcp.pop %v4187
    %v4214 = vrcp.pop %v4189
    %v4215 = vrcp.pop %v4191
    %v4216 = vrcp.pop %v4193
    %v4217 = vrcp.pop %v4195
    %v4218 = vrcp.pop %v4197
    %v4219 = vrcp.pop %v4199
    %v4220 = vrcp.pop %v4201
    %v4221 = vrcp.pop %v4203
    %v4222 = vrcp.pop %v4205
    %v4223 = vrcp.pop %v4207
    %v4224 = vmul.f32 %v4145, %v4208
    %v4225 = vmul.f32 %v4147, %v4209
    %v4226 = vmul.f32 %v4149, %v4210
    %v4227 = vmul.f32 %v4151, %v4211
    %v4228 = vmul.f32 %v4153, %v4212
    %v4229 = vmul.f32 %v4155, %v4213
    %v4230 = vmul.f32 %v4157, %v4214
    %v4231 = vmul.f32 %v4159, %v4215
    %v4232 = vmul.f32 %v4161, %v4216
    %v4233 = vmul.f32 %v4163, %v4217
    %v4234 = vmul.f32 %v4165, %v4218
    %v4235 = vmul.f32 %v4167, %v4219
    %v4236 = vmul.f32 %v4169, %v4220
    %v4237 = vmul.f32 %v4171, %v4221
    %v4238 = vmul.f32 %v4173, %v4222
    %v4239 = vmul.f32 %v4175, %v4223
    %v4240 = vpack.c.bf16 %v4225, %v4224
    %v4241 = vpack.c.bf16 %v4227, %v4226
    %v4242 = vpack.c.bf16 %v4229, %v4228
    %v4243 = vpack.c.bf16 %v4231, %v4230
    %v4244 = vpack.c.bf16 %v4233, %v4232
    %v4245 = vpack.c.bf16 %v4235, %v4234
    %v4246 = vpack.c.bf16 %v4237, %v4236
    %v4247 = vpack.c.bf16 %v4239, %v4238
    %4248 = vrot.lane.b32.xlu0 %v3548, 64
    %v4249 = vpop.permute.xlu0 %4248
    %4250 = vrot.lane.b32.xlu0 %v3549, 64
    %v4251 = vpop.permute.xlu0 %4250
    %4252 = vrot.lane.b32.xlu0 %v3550, 64
    %v4253 = vpop.permute.xlu0 %4252
    %4254 = vrot.lane.b32.xlu0 %v3551, 64
    %v4255 = vpop.permute.xlu0 %4254
    %4256 = vrot.lane.b32.xlu0 %v3552, 64
    %v4257 = vpop.permute.xlu0 %4256
    %4258 = vrot.lane.b32.xlu0 %v3553, 64
    %v4259 = vpop.permute.xlu0 %4258
    %4260 = vrot.lane.b32.xlu0 %v3554, 64
    %v4261 = vpop.permute.xlu0 %4260
    %4262 = vrot.lane.b32.xlu0 %v3555, 64
    %v4263 = vpop.permute.xlu0 %4262
    %4272 = vmatpush.bf16.msra.mxu0 %v4263
    %4273 = vmatpush.bf16.msra.mxu0 %v4261
    %4274 = vmatpush.bf16.msra.mxu0 %v4259
    %4275 = vmatpush.bf16.msra.mxu0 %v4257
    %4276 = vmatpush.bf16.msra.mxu0 %v4255
    %4277 = vmatpush.bf16.msra.mxu0 %v4253
    %4278 = vmatpush.bf16.msra.mxu0 %v4251
    %4279 = vmatpush.bf16.msra.mxu0 %v4249
    %4280 = vmatmul.bf16.gmra.mxu0 %v4240
    %v4281 = vpop.f32.mrf.mxu0
    %v4282 = vadd.f32 0.0, %v4281
    %v4283 = vpop.f32.mrf.mxu0
    %v4284 = vadd.f32 0.0, %v4283
    %4285 = vmatmul.bf16.gmra.mxu0 %v4241
    %v4286 = vpop.f32.mrf.mxu0
    %v4287 = vadd.f32 0.0, %v4286
    %v4288 = vpop.f32.mrf.mxu0
    %v4289 = vadd.f32 0.0, %v4288
    %4290 = vmatmul.bf16.gmra.mxu0 %v4242
    %v4291 = vpop.f32.mrf.mxu0
    %v4292 = vadd.f32 0.0, %v4291
    %v4293 = vpop.f32.mrf.mxu0
    %v4294 = vadd.f32 0.0, %v4293
    %4295 = vmatmul.bf16.gmra.mxu0 %v4243
    %v4296 = vpop.f32.mrf.mxu0
    %v4297 = vadd.f32 0.0, %v4296
    %v4298 = vpop.f32.mrf.mxu0
    %v4299 = vadd.f32 0.0, %v4298
    %4300 = vmatmul.bf16.gmra.mxu0 %v4244
    %v4301 = vpop.f32.mrf.mxu0
    %v4302 = vadd.f32 0.0, %v4301
    %v4303 = vpop.f32.mrf.mxu0
    %v4304 = vadd.f32 0.0, %v4303
    %4305 = vmatmul.bf16.gmra.mxu0 %v4245
    %v4306 = vpop.f32.mrf.mxu0
    %v4307 = vadd.f32 0.0, %v4306
    %v4308 = vpop.f32.mrf.mxu0
    %v4309 = vadd.f32 0.0, %v4308
    %4310 = vmatmul.bf16.gmra.mxu0 %v4246
    %v4311 = vpop.f32.mrf.mxu0
    %v4312 = vadd.f32 0.0, %v4311
    %v4313 = vpop.f32.mrf.mxu0
    %v4314 = vadd.f32 0.0, %v4313
    %4315 = vmatmul.bf16.gmra.mxu0 %v4247
    %v4316 = vpop.f32.mrf.mxu0
    %v4317 = vadd.f32 0.0, %v4316
    %v4318 = vpop.f32.mrf.mxu0
    %v4319 = vadd.f32 0.0, %v4318
    %4320 = vdwg.mxu0
    %4321 = vrot.lane.b32.xlu0 %v3235, 32
    %v4322 = vpop.permute.xlu0 %4321
    %4323 = vrot.lane.b32.xlu0 %v3236, 32
    %v4324 = vpop.permute.xlu0 %4323
    %4325 = vrot.lane.b32.xlu0 %v3237, 32
    %v4326 = vpop.permute.xlu0 %4325
    %4327 = vrot.lane.b32.xlu0 %v3238, 32
    %v4328 = vpop.permute.xlu0 %4327
    %4329 = vrot.lane.b32.xlu0 %v3239, 32
    %v4330 = vpop.permute.xlu0 %4329
    %4331 = vrot.lane.b32.xlu0 %v3240, 32
    %v4332 = vpop.permute.xlu0 %4331
    %4333 = vrot.lane.b32.xlu0 %v3241, 32
    %v4334 = vpop.permute.xlu0 %4333
    %4335 = vrot.lane.b32.xlu0 %v3242, 32
    %v4336 = vpop.permute.xlu0 %4335
    %4337 = vrot.lane.b32.xlu0 %v3259, 32
    %v4338 = vpop.permute.xlu0 %4337
    %4339 = vrot.lane.b32.xlu0 %v3260, 32
    %v4340 = vpop.permute.xlu0 %4339
    %4341 = vrot.lane.b32.xlu0 %v3261, 32
    %v4342 = vpop.permute.xlu0 %4341
    %4343 = vrot.lane.b32.xlu0 %v3262, 32
    %v4344 = vpop.permute.xlu0 %4343
    %4345 = vrot.lane.b32.xlu0 %v3263, 32
    %v4346 = vpop.permute.xlu0 %4345
    %4347 = vrot.lane.b32.xlu0 %v3264, 32
    %v4348 = vpop.permute.xlu0 %4347
    %4349 = vrot.lane.b32.xlu0 %v3265, 32
    %v4350 = vpop.permute.xlu0 %4349
    %4351 = vrot.lane.b32.xlu0 %v3266, 32
    %v4352 = vpop.permute.xlu0 %4351
    %v4354 = vsel %vm1520, %v4322, 0
    %v4357 = vsel %vm1520, %v4324, 0
    %v4360 = vsel %vm1520, %v4326, 0
    %v4363 = vsel %vm1520, %v4328, 0
    %v4366 = vsel %vm1520, %v4330, 0
    %v4369 = vsel %vm1520, %v4332, 0
    %v4372 = vsel %vm1520, %v4334, 0
    %v4375 = vsel %vm1520, %v4336, 0
    %v4378 = vsel %vm1520, %v4338, 0
    %v4381 = vsel %vm1520, %v4340, 0
    %v4384 = vsel %vm1520, %v4342, 0
    %v4387 = vsel %vm1520, %v4344, 0
    %v4390 = vsel %vm1520, %v4346, 0
    %v4393 = vsel %vm1520, %v4348, 0
    %v4396 = vsel %vm1520, %v4350, 0
    %v4399 = vsel %vm1520, %v4352, 0
    %4401 = vmatpush.bf16.xpose.msra.mxu0 %v4399
    %4402 = vmatpush.bf16.xpose.msra.mxu0 %v4396
    %4403 = vmatpush.bf16.xpose.msra.mxu0 %v4393
    %4404 = vmatpush.bf16.xpose.msra.mxu0 %v4390
    %4405 = vmatpush.bf16.xpose.msra.mxu0 %v4387
    %4406 = vmatpush.bf16.xpose.msra.mxu0 %v4384
    %4407 = vmatpush.bf16.xpose.msra.mxu0 %v4381
    %4408 = vmatpush.bf16.xpose.msra.mxu0 %v4378
    %4409 = vmatmul.bf16.gmra.mxu0 %v4354
    %v4410 = vpop.f32.mrf.mxu0
    %v4411 = vadd.f32 %v1440, %v4410
    %v4412 = vpop.f32.mrf.mxu0
    %v4413 = vadd.f32 %v1441, %v4412
    %4414 = vmatmul.bf16.gmra.mxu0 %v4357
    %v4415 = vpop.f32.mrf.mxu0
    %v4416 = vadd.f32 %v1442, %v4415
    %v4417 = vpop.f32.mrf.mxu0
    %v4418 = vadd.f32 %v1443, %v4417
    %4419 = vmatmul.bf16.gmra.mxu0 %v4360
    %v4420 = vpop.f32.mrf.mxu0
    %v4421 = vadd.f32 %v1444, %v4420
    %v4422 = vpop.f32.mrf.mxu0
    %v4423 = vadd.f32 %v1445, %v4422
    %4424 = vmatmul.bf16.gmra.mxu0 %v4363
    %v4425 = vpop.f32.mrf.mxu0
    %v4426 = vadd.f32 %v1446, %v4425
    %v4427 = vpop.f32.mrf.mxu0
    %v4428 = vadd.f32 %v1447, %v4427
    %4429 = vmatmul.bf16.gmra.mxu0 %v4366
    %v4430 = vpop.f32.mrf.mxu0
    %v4431 = vadd.f32 %v1448, %v4430
    %v4432 = vpop.f32.mrf.mxu0
    %v4433 = vadd.f32 %v1449, %v4432
    %4434 = vmatmul.bf16.gmra.mxu0 %v4369
    %v4435 = vpop.f32.mrf.mxu0
    %v4436 = vadd.f32 %v1450, %v4435
    %v4437 = vpop.f32.mrf.mxu0
    %v4438 = vadd.f32 %v1451, %v4437
    %4439 = vmatmul.bf16.gmra.mxu0 %v4372
    %v4440 = vpop.f32.mrf.mxu0
    %v4441 = vadd.f32 %v1452, %v4440
    %v4442 = vpop.f32.mrf.mxu0
    %v4443 = vadd.f32 %v1453, %v4442
    %4444 = vmatmul.bf16.gmra.mxu0 %v4375
    %v4445 = vpop.f32.mrf.mxu0
    %v4446 = vadd.f32 %v1454, %v4445
    %v4447 = vpop.f32.mrf.mxu0
    %v4448 = vadd.f32 %v1455, %v4447
    %4449 = vdwg.mxu0
    %4450 = vmax.xlane.f32.xlu0 %v4411
    %v4451 = vpop.xlane.xlu0 %4450
    %4452 = vmax.xlane.f32.xlu0 %v4413
    %v4453 = vpop.xlane.xlu0 %4452
    %4454 = vmax.xlane.f32.xlu0 %v4416
    %v4455 = vpop.xlane.xlu0 %4454
    %4456 = vmax.xlane.f32.xlu0 %v4418
    %v4457 = vpop.xlane.xlu0 %4456
    %4458 = vmax.xlane.f32.xlu0 %v4421
    %v4459 = vpop.xlane.xlu0 %4458
    %4460 = vmax.xlane.f32.xlu0 %v4423
    %v4461 = vpop.xlane.xlu0 %4460
    %4462 = vmax.xlane.f32.xlu0 %v4426
    %v4463 = vpop.xlane.xlu0 %4462
    %4464 = vmax.xlane.f32.xlu0 %v4428
    %v4465 = vpop.xlane.xlu0 %4464
    %4466 = vmax.xlane.f32.xlu0 %v4431
    %v4467 = vpop.xlane.xlu0 %4466
    %4468 = vmax.xlane.f32.xlu0 %v4433
    %v4469 = vpop.xlane.xlu0 %4468
    %4470 = vmax.xlane.f32.xlu0 %v4436
    %v4471 = vpop.xlane.xlu0 %4470
    %4472 = vmax.xlane.f32.xlu0 %v4438
    %v4473 = vpop.xlane.xlu0 %4472
    %4474 = vmax.xlane.f32.xlu0 %v4441
    %v4475 = vpop.xlane.xlu0 %4474
    %4476 = vmax.xlane.f32.xlu0 %v4443
    %v4477 = vpop.xlane.xlu0 %4476
    %4478 = vmax.xlane.f32.xlu0 %v4446
    %v4479 = vpop.xlane.xlu0 %4478
    %4480 = vmax.xlane.f32.xlu0 %v4448
    %v4481 = vpop.xlane.xlu0 %4480
    %v4482 = vsub.f32 %v4411, %v4451
    %v4483 = vsub.f32 %v4413, %v4453
    %v4484 = vsub.f32 %v4416, %v4455
    %v4485 = vsub.f32 %v4418, %v4457
    %v4486 = vsub.f32 %v4421, %v4459
    %v4487 = vsub.f32 %v4423, %v4461
    %v4488 = vsub.f32 %v4426, %v4463
    %v4489 = vsub.f32 %v4428, %v4465
    %v4490 = vsub.f32 %v4431, %v4467
    %v4491 = vsub.f32 %v4433, %v4469
    %v4492 = vsub.f32 %v4436, %v4471
    %v4493 = vsub.f32 %v4438, %v4473
    %v4494 = vsub.f32 %v4441, %v4475
    %v4495 = vsub.f32 %v4443, %v4477
    %v4496 = vsub.f32 %v4446, %v4479
    %v4497 = vsub.f32 %v4448, %v4481
    %v4498 = vmul.f32 %v4482, 1.442695
    %v4499 = vpow.pop %v4498
    %v4500 = vmul.f32 %v4483, 1.442695
    %v4501 = vpow.pop %v4500
    %v4502 = vmul.f32 %v4484, 1.442695
    %v4503 = vpow.pop %v4502
    %v4504 = vmul.f32 %v4485, 1.442695
    %v4505 = vpow.pop %v4504
    %v4506 = vmul.f32 %v4486, 1.442695
    %v4507 = vpow.pop %v4506
    %v4508 = vmul.f32 %v4487, 1.442695
    %v4509 = vpow.pop %v4508
    %v4510 = vmul.f32 %v4488, 1.442695
    %v4511 = vpow.pop %v4510
    %v4512 = vmul.f32 %v4489, 1.442695
    %v4513 = vpow.pop %v4512
    %v4514 = vmul.f32 %v4490, 1.442695
    %v4515 = vpow.pop %v4514
    %v4516 = vmul.f32 %v4491, 1.442695
    %v4517 = vpow.pop %v4516
    %v4518 = vmul.f32 %v4492, 1.442695
    %v4519 = vpow.pop %v4518
    %v4520 = vmul.f32 %v4493, 1.442695
    %v4521 = vpow.pop %v4520
    %v4522 = vmul.f32 %v4494, 1.442695
    %v4523 = vpow.pop %v4522
    %v4524 = vmul.f32 %v4495, 1.442695
    %v4525 = vpow.pop %v4524
    %v4526 = vmul.f32 %v4496, 1.442695
    %v4527 = vpow.pop %v4526
    %v4528 = vmul.f32 %v4497, 1.442695
    %v4529 = vpow.pop %v4528
    %4530 = vadd.xlane.f32.xlu0 %v4499
    %v4531 = vpop.xlane.xlu0 %4530
    %4532 = vadd.xlane.f32.xlu0 %v4501
    %v4533 = vpop.xlane.xlu0 %4532
    %4534 = vadd.xlane.f32.xlu0 %v4503
    %v4535 = vpop.xlane.xlu0 %4534
    %4536 = vadd.xlane.f32.xlu0 %v4505
    %v4537 = vpop.xlane.xlu0 %4536
    %4538 = vadd.xlane.f32.xlu0 %v4507
    %v4539 = vpop.xlane.xlu0 %4538
    %4540 = vadd.xlane.f32.xlu0 %v4509
    %v4541 = vpop.xlane.xlu0 %4540
    %4542 = vadd.xlane.f32.xlu0 %v4511
    %v4543 = vpop.xlane.xlu0 %4542
    %4544 = vadd.xlane.f32.xlu0 %v4513
    %v4545 = vpop.xlane.xlu0 %4544
    %4546 = vadd.xlane.f32.xlu0 %v4515
    %v4547 = vpop.xlane.xlu0 %4546
    %4548 = vadd.xlane.f32.xlu0 %v4517
    %v4549 = vpop.xlane.xlu0 %4548
    %4550 = vadd.xlane.f32.xlu0 %v4519
    %v4551 = vpop.xlane.xlu0 %4550
    %4552 = vadd.xlane.f32.xlu0 %v4521
    %v4553 = vpop.xlane.xlu0 %4552
    %4554 = vadd.xlane.f32.xlu0 %v4523
    %v4555 = vpop.xlane.xlu0 %4554
    %4556 = vadd.xlane.f32.xlu0 %v4525
    %v4557 = vpop.xlane.xlu0 %4556
    %4558 = vadd.xlane.f32.xlu0 %v4527
    %v4559 = vpop.xlane.xlu0 %4558
    %4560 = vadd.xlane.f32.xlu0 %v4529
    %v4561 = vpop.xlane.xlu0 %4560
    %v4562 = vrcp.pop %v4531
    %v4563 = vrcp.pop %v4533
    %v4564 = vrcp.pop %v4535
    %v4565 = vrcp.pop %v4537
    %v4566 = vrcp.pop %v4539
    %v4567 = vrcp.pop %v4541
    %v4568 = vrcp.pop %v4543
    %v4569 = vrcp.pop %v4545
    %v4570 = vrcp.pop %v4547
    %v4571 = vrcp.pop %v4549
    %v4572 = vrcp.pop %v4551
    %v4573 = vrcp.pop %v4553
    %v4574 = vrcp.pop %v4555
    %v4575 = vrcp.pop %v4557
    %v4576 = vrcp.pop %v4559
    %v4577 = vrcp.pop %v4561
    %v4578 = vmul.f32 %v4499, %v4562
    %v4579 = vmul.f32 %v4501, %v4563
    %v4580 = vmul.f32 %v4503, %v4564
    %v4581 = vmul.f32 %v4505, %v4565
    %v4582 = vmul.f32 %v4507, %v4566
    %v4583 = vmul.f32 %v4509, %v4567
    %v4584 = vmul.f32 %v4511, %v4568
    %v4585 = vmul.f32 %v4513, %v4569
    %v4586 = vmul.f32 %v4515, %v4570
    %v4587 = vmul.f32 %v4517, %v4571
    %v4588 = vmul.f32 %v4519, %v4572
    %v4589 = vmul.f32 %v4521, %v4573
    %v4590 = vmul.f32 %v4523, %v4574
    %v4591 = vmul.f32 %v4525, %v4575
    %v4592 = vmul.f32 %v4527, %v4576
    %v4593 = vmul.f32 %v4529, %v4577
    %v4594 = vpack.c.bf16 %v4579, %v4578
    %v4595 = vpack.c.bf16 %v4581, %v4580
    %v4596 = vpack.c.bf16 %v4583, %v4582
    %v4597 = vpack.c.bf16 %v4585, %v4584
    %v4598 = vpack.c.bf16 %v4587, %v4586
    %v4599 = vpack.c.bf16 %v4589, %v4588
    %v4600 = vpack.c.bf16 %v4591, %v4590
    %v4601 = vpack.c.bf16 %v4593, %v4592
    %4602 = vrot.lane.b32.xlu0 %v3548, 32
    %v4603 = vpop.permute.xlu0 %4602
    %4604 = vrot.lane.b32.xlu0 %v3549, 32
    %v4605 = vpop.permute.xlu0 %4604
    %4606 = vrot.lane.b32.xlu0 %v3550, 32
    %v4607 = vpop.permute.xlu0 %4606
    %4608 = vrot.lane.b32.xlu0 %v3551, 32
    %v4609 = vpop.permute.xlu0 %4608
    %4610 = vrot.lane.b32.xlu0 %v3552, 32
    %v4611 = vpop.permute.xlu0 %4610
    %4612 = vrot.lane.b32.xlu0 %v3553, 32
    %v4613 = vpop.permute.xlu0 %4612
    %4614 = vrot.lane.b32.xlu0 %v3554, 32
    %v4615 = vpop.permute.xlu0 %4614
    %4616 = vrot.lane.b32.xlu0 %v3555, 32
    %v4617 = vpop.permute.xlu0 %4616
    %4626 = vmatpush.bf16.msra.mxu0 %v4617
    %4627 = vmatpush.bf16.msra.mxu0 %v4615
    %4628 = vmatpush.bf16.msra.mxu0 %v4613
    %4629 = vmatpush.bf16.msra.mxu0 %v4611
    %4630 = vmatpush.bf16.msra.mxu0 %v4609
    %4631 = vmatpush.bf16.msra.mxu0 %v4607
    %4632 = vmatpush.bf16.msra.mxu0 %v4605
    %4633 = vmatpush.bf16.msra.mxu0 %v4603
    %4634 = vmatmul.bf16.gmra.mxu0 %v4594
    %v4635 = vpop.f32.mrf.mxu0
    %v4636 = vadd.f32 0.0, %v4635
    %v4637 = vpop.f32.mrf.mxu0
    %v4638 = vadd.f32 0.0, %v4637
    %4639 = vmatmul.bf16.gmra.mxu0 %v4595
    %v4640 = vpop.f32.mrf.mxu0
    %v4641 = vadd.f32 0.0, %v4640
    %v4642 = vpop.f32.mrf.mxu0
    %v4643 = vadd.f32 0.0, %v4642
    %4644 = vmatmul.bf16.gmra.mxu0 %v4596
    %v4645 = vpop.f32.mrf.mxu0
    %v4646 = vadd.f32 0.0, %v4645
    %v4647 = vpop.f32.mrf.mxu0
    %v4648 = vadd.f32 0.0, %v4647
    %4649 = vmatmul.bf16.gmra.mxu0 %v4597
    %v4650 = vpop.f32.mrf.mxu0
    %v4651 = vadd.f32 0.0, %v4650
    %v4652 = vpop.f32.mrf.mxu0
    %v4653 = vadd.f32 0.0, %v4652
    %4654 = vmatmul.bf16.gmra.mxu0 %v4598
    %v4655 = vpop.f32.mrf.mxu0
    %v4656 = vadd.f32 0.0, %v4655
    %v4657 = vpop.f32.mrf.mxu0
    %v4658 = vadd.f32 0.0, %v4657
    %4659 = vmatmul.bf16.gmra.mxu0 %v4599
    %v4660 = vpop.f32.mrf.mxu0
    %v4661 = vadd.f32 0.0, %v4660
    %v4662 = vpop.f32.mrf.mxu0
    %v4663 = vadd.f32 0.0, %v4662
    %4664 = vmatmul.bf16.gmra.mxu0 %v4600
    %v4665 = vpop.f32.mrf.mxu0
    %v4666 = vadd.f32 0.0, %v4665
    %v4667 = vpop.f32.mrf.mxu0
    %v4668 = vadd.f32 0.0, %v4667
    %4669 = vmatmul.bf16.gmra.mxu0 %v4601
    %v4670 = vpop.f32.mrf.mxu0
    %v4671 = vadd.f32 0.0, %v4670
    %v4672 = vpop.f32.mrf.mxu0
    %v4673 = vadd.f32 0.0, %v4672
    %4674 = vdwg.mxu0
    %4691 = vrot.lane.b32.xlu0 %v3928, 32
    %v4692 = vpop.permute.xlu0 %4691
    %4693 = vrot.lane.b32.xlu0 %v3930, 32
    %v4694 = vpop.permute.xlu0 %4693
    %4695 = vrot.lane.b32.xlu0 %v3933, 32
    %v4696 = vpop.permute.xlu0 %4695
    %4697 = vrot.lane.b32.xlu0 %v3935, 32
    %v4698 = vpop.permute.xlu0 %4697
    %4699 = vrot.lane.b32.xlu0 %v3938, 32
    %v4700 = vpop.permute.xlu0 %4699
    %4701 = vrot.lane.b32.xlu0 %v3940, 32
    %v4702 = vpop.permute.xlu0 %4701
    %4703 = vrot.lane.b32.xlu0 %v3943, 32
    %v4704 = vpop.permute.xlu0 %4703
    %4705 = vrot.lane.b32.xlu0 %v3945, 32
    %v4706 = vpop.permute.xlu0 %4705
    %4707 = vrot.lane.b32.xlu0 %v3948, 32
    %v4708 = vpop.permute.xlu0 %4707
    %4709 = vrot.lane.b32.xlu0 %v3950, 32
    %v4710 = vpop.permute.xlu0 %4709
    %4711 = vrot.lane.b32.xlu0 %v3953, 32
    %v4712 = vpop.permute.xlu0 %4711
    %4713 = vrot.lane.b32.xlu0 %v3955, 32
    %v4714 = vpop.permute.xlu0 %4713
    %4715 = vrot.lane.b32.xlu0 %v3958, 32
    %v4716 = vpop.permute.xlu0 %4715
    %4717 = vrot.lane.b32.xlu0 %v3960, 32
    %v4718 = vpop.permute.xlu0 %4717
    %4719 = vrot.lane.b32.xlu0 %v3963, 32
    %v4720 = vpop.permute.xlu0 %4719
    %4721 = vrot.lane.b32.xlu0 %v3965, 32
    %v4722 = vpop.permute.xlu0 %4721
    %4755 = vrot.lane.b32.xlu0 %v4282, 64
    %v4756 = vpop.permute.xlu0 %4755
    %4757 = vrot.lane.b32.xlu0 %v4284, 64
    %v4758 = vpop.permute.xlu0 %4757
    %4759 = vrot.lane.b32.xlu0 %v4287, 64
    %v4760 = vpop.permute.xlu0 %4759
    %4761 = vrot.lane.b32.xlu0 %v4289, 64
    %v4762 = vpop.permute.xlu0 %4761
    %4763 = vrot.lane.b32.xlu0 %v4292, 64
    %v4764 = vpop.permute.xlu0 %4763
    %4765 = vrot.lane.b32.xlu0 %v4294, 64
    %v4766 = vpop.permute.xlu0 %4765
    %4767 = vrot.lane.b32.xlu0 %v4297, 64
    %v4768 = vpop.permute.xlu0 %4767
    %4769 = vrot.lane.b32.xlu0 %v4299, 64
    %v4770 = vpop.permute.xlu0 %4769
    %4771 = vrot.lane.b32.xlu0 %v4302, 64
    %v4772 = vpop.permute.xlu0 %4771
    %4773 = vrot.lane.b32.xlu0 %v4304, 64
    %v4774 = vpop.permute.xlu0 %4773
    %4775 = vrot.lane.b32.xlu0 %v4307, 64
    %v4776 = vpop.permute.xlu0 %4775
    %4777 = vrot.lane.b32.xlu0 %v4309, 64
    %v4778 = vpop.permute.xlu0 %4777
    %4779 = vrot.lane.b32.xlu0 %v4312, 64
    %v4780 = vpop.permute.xlu0 %4779
    %4781 = vrot.lane.b32.xlu0 %v4314, 64
    %v4782 = vpop.permute.xlu0 %4781
    %4783 = vrot.lane.b32.xlu0 %v4317, 64
    %v4784 = vpop.permute.xlu0 %4783
    %4785 = vrot.lane.b32.xlu0 %v4319, 64
    %v4786 = vpop.permute.xlu0 %4785
    %4819 = vrot.lane.b32.xlu0 %v4636, 96
    %v4820 = vpop.permute.xlu0 %4819
    %4821 = vrot.lane.b32.xlu0 %v4638, 96
    %v4822 = vpop.permute.xlu0 %4821
    %4823 = vrot.lane.b32.xlu0 %v4641, 96
    %v4824 = vpop.permute.xlu0 %4823
    %4825 = vrot.lane.b32.xlu0 %v4643, 96
    %v4826 = vpop.permute.xlu0 %4825
    %4827 = vrot.lane.b32.xlu0 %v4646, 96
    %v4828 = vpop.permute.xlu0 %4827
    %4829 = vrot.lane.b32.xlu0 %v4648, 96
    %v4830 = vpop.permute.xlu0 %4829
    %4831 = vrot.lane.b32.xlu0 %v4651, 96
    %v4832 = vpop.permute.xlu0 %4831
    %4833 = vrot.lane.b32.xlu0 %v4653, 96
    %v4834 = vpop.permute.xlu0 %4833
    %4835 = vrot.lane.b32.xlu0 %v4656, 96
    %v4836 = vpop.permute.xlu0 %4835
    %4837 = vrot.lane.b32.xlu0 %v4658, 96
    %v4838 = vpop.permute.xlu0 %4837
    %4839 = vrot.lane.b32.xlu0 %v4661, 96
    %v4840 = vpop.permute.xlu0 %4839
    %4841 = vrot.lane.b32.xlu0 %v4663, 96
    %v4842 = vpop.permute.xlu0 %4841
    %4843 = vrot.lane.b32.xlu0 %v4666, 96
    %v4844 = vpop.permute.xlu0 %4843
    %4845 = vrot.lane.b32.xlu0 %v4668, 96
    %v4846 = vpop.permute.xlu0 %4845
    %4847 = vrot.lane.b32.xlu0 %v4671, 96
    %v4848 = vpop.permute.xlu0 %4847
    %4849 = vrot.lane.b32.xlu0 %v4673, 96
    %v4850 = vpop.permute.xlu0 %4849
    %v4867 = vsel %vm1520, %v3574, %v4692
    %v4868 = vsel %vm1520, %v3576, %v4694
    %v4869 = vsel %vm1520, %v3579, %v4696
    %v4870 = vsel %vm1520, %v3581, %v4698
    %v4871 = vsel %vm1520, %v3584, %v4700
    %v4872 = vsel %vm1520, %v3586, %v4702
    %v4873 = vsel %vm1520, %v3589, %v4704
    %v4874 = vsel %vm1520, %v3591, %v4706
    %v4875 = vsel %vm1520, %v3594, %v4708
    %v4876 = vsel %vm1520, %v3596, %v4710
    %v4877 = vsel %vm1520, %v3599, %v4712
    %v4878 = vsel %vm1520, %v3601, %v4714
    %v4879 = vsel %vm1520, %v3604, %v4716
    %v4880 = vsel %vm1520, %v3606, %v4718
    %v4881 = vsel %vm1520, %v3609, %v4720
    %v4882 = vsel %vm1520, %v3611, %v4722
    %v4883 = vsel %vm3137, %v4867, %v4756
    %v4884 = vsel %vm3137, %v4868, %v4758
    %v4885 = vsel %vm3137, %v4869, %v4760
    %v4886 = vsel %vm3137, %v4870, %v4762
    %v4887 = vsel %vm3137, %v4871, %v4764
    %v4888 = vsel %vm3137, %v4872, %v4766
    %v4889 = vsel %vm3137, %v4873, %v4768
    %v4890 = vsel %vm3137, %v4874, %v4770
    %v4891 = vsel %vm3137, %v4875, %v4772
    %v4892 = vsel %vm3137, %v4876, %v4774
    %v4893 = vsel %vm3137, %v4877, %v4776
    %v4894 = vsel %vm3137, %v4878, %v4778
    %v4895 = vsel %vm3137, %v4879, %v4780
    %v4896 = vsel %vm3137, %v4880, %v4782
    %v4897 = vsel %vm3137, %v4881, %v4784
    %v4898 = vsel %vm3137, %v4882, %v4786
    %v4899 = vsel %vm3154, %v4883, %v4820
    %v4900 = vsel %vm3154, %v4884, %v4822
    %v4901 = vsel %vm3154, %v4885, %v4824
    %v4902 = vsel %vm3154, %v4886, %v4826
    %v4903 = vsel %vm3154, %v4887, %v4828
    %v4904 = vsel %vm3154, %v4888, %v4830
    %v4905 = vsel %vm3154, %v4889, %v4832
    %v4906 = vsel %vm3154, %v4890, %v4834
    %v4907 = vsel %vm3154, %v4891, %v4836
    %v4908 = vsel %vm3154, %v4892, %v4838
    %v4909 = vsel %vm3154, %v4893, %v4840
    %v4910 = vsel %vm3154, %v4894, %v4842
    %v4911 = vsel %vm3154, %v4895, %v4844
    %v4912 = vsel %vm3154, %v4896, %v4846
    %v4913 = vsel %vm3154, %v4897, %v4848
    %v4914 = vsel %vm3154, %v4898, %v4850
    %v4915 = vpack.c.bf16 %v4899, %v4899
    %v4916 = vpack.c.bf16 %v4900, %v4900
    %v4917 = vpack.c.bf16 %v4901, %v4901
    %v4918 = vpack.c.bf16 %v4902, %v4902
    %v4919 = vpack.c.bf16 %v4903, %v4903
    %v4920 = vpack.c.bf16 %v4904, %v4904
    %v4921 = vpack.c.bf16 %v4905, %v4905
    %v4922 = vpack.c.bf16 %v4906, %v4906
    %v4923 = vpack.c.bf16 %v4907, %v4907
    %v4924 = vpack.c.bf16 %v4908, %v4908
    %v4925 = vpack.c.bf16 %v4909, %v4909
    %v4926 = vpack.c.bf16 %v4910, %v4910
    %v4927 = vpack.c.bf16 %v4911, %v4911
    %v4928 = vpack.c.bf16 %v4912, %v4912
    %v4929 = vpack.c.bf16 %v4913, %v4913
    %v4930 = vpack.c.bf16 %v4914, %v4914
    %4931 = vst [vmem:[#allocation2 + $0x40] sm:$0xf] %v4915
    %4932 = vst [vmem:[#allocation2 + $0x44] sm:$0xf] %v4916
    %4933 = vst [vmem:[#allocation2 + $0x48] sm:$0xf] %v4917
    %4934 = vst [vmem:[#allocation2 + $0x4c] sm:$0xf] %v4918
    %4935 = vst [vmem:[#allocation2 + $0x50] sm:$0xf] %v4919
    %4936 = vst [vmem:[#allocation2 + $0x54] sm:$0xf] %v4920
    %4937 = vst [vmem:[#allocation2 + $0x58] sm:$0xf] %v4921
    %4938 = vst [vmem:[#allocation2 + $0x5c] sm:$0xf] %v4922
    %4939 = vst [vmem:[#allocation2 + $0x60] sm:$0xf] %v4923
    %4940 = vst [vmem:[#allocation2 + $0x64] sm:$0xf] %v4924
    %4941 = vst [vmem:[#allocation2 + $0x68] sm:$0xf] %v4925
    %4942 = vst [vmem:[#allocation2 + $0x6c] sm:$0xf] %v4926
    %4943 = vst [vmem:[#allocation2 + $0x70] sm:$0xf] %v4927
    %4944 = vst [vmem:[#allocation2 + $0x74] sm:$0xf] %v4928
    %4945 = vst [vmem:[#allocation2 + $0x78] sm:$0xf] %v4929
    %4946 = vst [vmem:[#allocation2 + $0x7c] sm:$0xf] %v4930
    %v4947 = vld [vmem:[#allocation2] sm:$0xf]
    %v4948 = vld [vmem:[#allocation2 + $0x4] sm:$0xf]
    %v4949 = vld [vmem:[#allocation2 + $0x8] sm:$0xf]
    %v4950 = vld [vmem:[#allocation2 + $0xc] sm:$0xf]
    %v4951 = vld [vmem:[#allocation2 + $0x10] sm:$0xf]
    %v4952 = vld [vmem:[#allocation2 + $0x14] sm:$0xf]
    %v4953 = vld [vmem:[#allocation2 + $0x18] sm:$0xf]
    %v4954 = vld [vmem:[#allocation2 + $0x1c] sm:$0xf]
    %v4955 = vld [vmem:[#allocation2 + $0x20] sm:$0xf]
    %v4956 = vld [vmem:[#allocation2 + $0x24] sm:$0xf]
    %v4957 = vld [vmem:[#allocation2 + $0x28] sm:$0xf]
    %v4958 = vld [vmem:[#allocation2 + $0x2c] sm:$0xf]
    %v4959 = vld [vmem:[#allocation2 + $0x30] sm:$0xf]
    %v4960 = vld [vmem:[#allocation2 + $0x34] sm:$0xf]
    %v4961 = vld [vmem:[#allocation2 + $0x38] sm:$0xf]
    %v4962 = vld [vmem:[#allocation2 + $0x3c] sm:$0xf]
    %v4963 = vld [vmem:[#allocation2 + $0x40] sm:$0xf]
    %v4964 = vld [vmem:[#allocation2 + $0x44] sm:$0xf]
    %v4965 = vld [vmem:[#allocation2 + $0x48] sm:$0xf]
    %v4966 = vld [vmem:[#allocation2 + $0x4c] sm:$0xf]
    %v4967 = vld [vmem:[#allocation2 + $0x50] sm:$0xf]
    %v4968 = vld [vmem:[#allocation2 + $0x54] sm:$0xf]
    %v4969 = vld [vmem:[#allocation2 + $0x58] sm:$0xf]
    %v4970 = vld [vmem:[#allocation2 + $0x5c] sm:$0xf]
    %v4971 = vld [vmem:[#allocation2 + $0x60] sm:$0xf]
    %v4972 = vld [vmem:[#allocation2 + $0x64] sm:$0xf]
    %v4973 = vld [vmem:[#allocation2 + $0x68] sm:$0xf]
    %v4974 = vld [vmem:[#allocation2 + $0x6c] sm:$0xf]
    %v4975 = vld [vmem:[#allocation2 + $0x70] sm:$0xf]
    %v4976 = vld [vmem:[#allocation2 + $0x74] sm:$0xf]
    %v4977 = vld [vmem:[#allocation2 + $0x78] sm:$0xf]
    %v4978 = vld [vmem:[#allocation2 + $0x7c] sm:$0xf]
    %v4979 = vld [vmem:[#allocation8] sm:$0xf]
    %v4980 = vld [vmem:[#allocation8 + $0x4] sm:$0xf]
    %v4981 = vld [vmem:[#allocation8 + $0x8] sm:$0xf]
    %v4982 = vld [vmem:[#allocation8 + $0xc] sm:$0xf]
    %v4983 = vld [vmem:[#allocation8 + $0x10] sm:$0xf]
    %v4984 = vld [vmem:[#allocation8 + $0x14] sm:$0xf]
    %v4985 = vld [vmem:[#allocation8 + $0x18] sm:$0xf]
    %v4986 = vld [vmem:[#allocation8 + $0x1c] sm:$0xf]
    %v4987 = vld [vmem:[#allocation8 + $0x20] sm:$0xf]
    %v4988 = vld [vmem:[#allocation8 + $0x24] sm:$0xf]
    %v4989 = vld [vmem:[#allocation8 + $0x28] sm:$0xf]
    %v4990 = vld [vmem:[#allocation8 + $0x2c] sm:$0xf]
    %v4991 = vld [vmem:[#allocation8 + $0x30] sm:$0xf]
    %v4992 = vld [vmem:[#allocation8 + $0x34] sm:$0xf]
    %v4993 = vld [vmem:[#allocation8 + $0x38] sm:$0xf]
    %v4994 = vld [vmem:[#allocation8 + $0x3c] sm:$0xf]
    %v5027 = vunpack.c.l.b16 %v4947
    %v5028 = vunpack.c.l.b16 %v4948
    %v5029 = vunpack.c.l.b16 %v4949
    %v5030 = vunpack.c.l.b16 %v4950
    %v5031 = vunpack.c.l.b16 %v4951
    %v5032 = vunpack.c.l.b16 %v4952
    %v5033 = vunpack.c.l.b16 %v4953
    %v5034 = vunpack.c.l.b16 %v4954
    %v5035 = vunpack.c.l.b16 %v4955
    %v5036 = vunpack.c.l.b16 %v4956
    %v5037 = vunpack.c.l.b16 %v4957
    %v5038 = vunpack.c.l.b16 %v4958
    %v5039 = vunpack.c.l.b16 %v4959
    %v5040 = vunpack.c.l.b16 %v4960
    %v5041 = vunpack.c.l.b16 %v4961
    %v5042 = vunpack.c.l.b16 %v4962
    %v5043 = vunpack.c.l.b16 %v4963
    %v5044 = vunpack.c.l.b16 %v4964
    %v5045 = vunpack.c.l.b16 %v4965
    %v5046 = vunpack.c.l.b16 %v4966
    %v5047 = vunpack.c.l.b16 %v4967
    %v5048 = vunpack.c.l.b16 %v4968
    %v5049 = vunpack.c.l.b16 %v4969
    %v5050 = vunpack.c.l.b16 %v4970
    %v5051 = vunpack.c.l.b16 %v4971
    %v5052 = vunpack.c.l.b16 %v4972
    %v5053 = vunpack.c.l.b16 %v4973
    %v5054 = vunpack.c.l.b16 %v4974
    %v5055 = vunpack.c.l.b16 %v4975
    %v5056 = vunpack.c.l.b16 %v4976
    %v5057 = vunpack.c.l.b16 %v4977
    %v5058 = vunpack.c.l.b16 %v4978
    %v5059 = vpack.c.b16 %v5028, %v5027
    %v5060 = vpack.c.b16 %v5030, %v5029
    %v5061 = vpack.c.b16 %v5032, %v5031
    %v5062 = vpack.c.b16 %v5034, %v5033
    %v5063 = vpack.c.b16 %v5036, %v5035
    %v5064 = vpack.c.b16 %v5038, %v5037
    %v5065 = vpack.c.b16 %v5040, %v5039
    %v5066 = vpack.c.b16 %v5042, %v5041
    %v5067 = vpack.c.b16 %v5044, %v5043
    %v5068 = vpack.c.b16 %v5046, %v5045
    %v5069 = vpack.c.b16 %v5048, %v5047
    %v5070 = vpack.c.b16 %v5050, %v5049
    %v5071 = vpack.c.b16 %v5052, %v5051
    %v5072 = vpack.c.b16 %v5054, %v5053
    %v5073 = vpack.c.b16 %v5056, %v5055
    %v5074 = vpack.c.b16 %v5058, %v5057
    %v5107 = vunpack.c.l.b16 %v4979
    %v5108 = vunpack.c.l.b16 %v4980
    %v5109 = vunpack.c.l.b16 %v4981
    %v5110 = vunpack.c.l.b16 %v4982
    %v5111 = vunpack.c.l.b16 %v4983
    %v5112 = vunpack.c.l.b16 %v4984
    %v5113 = vunpack.c.l.b16 %v4985
    %v5114 = vunpack.c.l.b16 %v4986
    %v5115 = vunpack.c.l.b16 %v4987
    %v5116 = vunpack.c.l.b16 %v4988
    %v5117 = vunpack.c.l.b16 %v4989
    %v5118 = vunpack.c.l.b16 %v4990
    %v5119 = vunpack.c.l.b16 %v4991
    %v5120 = vunpack.c.l.b16 %v4992
    %v5121 = vunpack.c.l.b16 %v4993
    %v5122 = vunpack.c.l.b16 %v4994
    %v5123 = vpack.c.b16 %v5108, %v5107
    %v5124 = vpack.c.b16 %v5110, %v5109
    %v5125 = vpack.c.b16 %v5112, %v5111
    %v5126 = vpack.c.b16 %v5114, %v5113
    %v5127 = vpack.c.b16 %v5116, %v5115
    %v5128 = vpack.c.b16 %v5118, %v5117
    %v5129 = vpack.c.b16 %v5120, %v5119
    %v5130 = vpack.c.b16 %v5122, %v5121
    %5139 = vmatpush.bf16.msra.mxu0 %v5130
    %5140 = vmatpush.bf16.msra.mxu0 %v5129
    %5141 = vmatpush.bf16.msra.mxu0 %v5128
    %5142 = vmatpush.bf16.msra.mxu0 %v5127
    %5143 = vmatpush.bf16.msra.mxu0 %v5126
    %5144 = vmatpush.bf16.msra.mxu0 %v5125
    %5145 = vmatpush.bf16.msra.mxu0 %v5124
    %5146 = vmatpush.bf16.msra.mxu0 %v5123
    %5147 = vmatmul.bf16.gmra.mxu0 %v5059
    %v5148 = vpop.f32.mrf.mxu0
    %v5149 = vadd.f32 0.0, %v5148
    %v5150 = vpop.f32.mrf.mxu0
    %v5151 = vadd.f32 0.0, %v5150
    %5152 = vmatmul.bf16.gmra.mxu0 %v5060
    %v5153 = vpop.f32.mrf.mxu0
    %v5154 = vadd.f32 0.0, %v5153
    %v5155 = vpop.f32.mrf.mxu0
    %v5156 = vadd.f32 0.0, %v5155
    %5157 = vmatmul.bf16.gmra.mxu0 %v5061
    %v5158 = vpop.f32.mrf.mxu0
    %v5159 = vadd.f32 0.0, %v5158
    %v5160 = vpop.f32.mrf.mxu0
    %v5161 = vadd.f32 0.0, %v5160
    %5162 = vmatmul.bf16.gmra.mxu0 %v5062
    %v5163 = vpop.f32.mrf.mxu0
    %v5164 = vadd.f32 0.0, %v5163
    %v5165 = vpop.f32.mrf.mxu0
    %v5166 = vadd.f32 0.0, %v5165
    %5167 = vmatmul.bf16.gmra.mxu0 %v5063
    %v5168 = vpop.f32.mrf.mxu0
    %v5169 = vadd.f32 0.0, %v5168
    %v5170 = vpop.f32.mrf.mxu0
    %v5171 = vadd.f32 0.0, %v5170
    %5172 = vmatmul.bf16.gmra.mxu0 %v5064
    %v5173 = vpop.f32.mrf.mxu0
    %v5174 = vadd.f32 0.0, %v5173
    %v5175 = vpop.f32.mrf.mxu0
    %v5176 = vadd.f32 0.0, %v5175
    %5177 = vmatmul.bf16.gmra.mxu0 %v5065
    %v5178 = vpop.f32.mrf.mxu0
    %v5179 = vadd.f32 0.0, %v5178
    %v5180 = vpop.f32.mrf.mxu0
    %v5181 = vadd.f32 0.0, %v5180
    %5182 = vmatmul.bf16.gmra.mxu0 %v5066
    %v5183 = vpop.f32.mrf.mxu0
    %v5184 = vadd.f32 0.0, %v5183
    %v5185 = vpop.f32.mrf.mxu0
    %v5186 = vadd.f32 0.0, %v5185
    %5187 = vmatmul.bf16.gmra.mxu0 %v5067
    %v5188 = vpop.f32.mrf.mxu0
    %v5189 = vadd.f32 0.0, %v5188
    %v5190 = vpop.f32.mrf.mxu0
    %v5191 = vadd.f32 0.0, %v5190
    %5192 = vmatmul.bf16.gmra.mxu0 %v5068
    %v5193 = vpop.f32.mrf.mxu0
    %v5194 = vadd.f32 0.0, %v5193
    %v5195 = vpop.f32.mrf.mxu0
    %v5196 = vadd.f32 0.0, %v5195
    %5197 = vmatmul.bf16.gmra.mxu0 %v5069
    %v5198 = vpop.f32.mrf.mxu0
    %v5199 = vadd.f32 0.0, %v5198
    %v5200 = vpop.f32.mrf.mxu0
    %v5201 = vadd.f32 0.0, %v5200
    %5202 = vmatmul.bf16.gmra.mxu0 %v5070
    %v5203 = vpop.f32.mrf.mxu0
    %v5204 = vadd.f32 0.0, %v5203
    %v5205 = vpop.f32.mrf.mxu0
    %v5206 = vadd.f32 0.0, %v5205
    %5207 = vmatmul.bf16.gmra.mxu0 %v5071
    %v5208 = vpop.f32.mrf.mxu0
    %v5209 = vadd.f32 0.0, %v5208
    %v5210 = vpop.f32.mrf.mxu0
    %v5211 = vadd.f32 0.0, %v5210
    %5212 = vmatmul.bf16.gmra.mxu0 %v5072
    %v5213 = vpop.f32.mrf.mxu0
    %v5214 = vadd.f32 0.0, %v5213
    %v5215 = vpop.f32.mrf.mxu0
    %v5216 = vadd.f32 0.0, %v5215
    %5217 = vmatmul.bf16.gmra.mxu0 %v5073
    %v5218 = vpop.f32.mrf.mxu0
    %v5219 = vadd.f32 0.0, %v5218
    %v5220 = vpop.f32.mrf.mxu0
    %v5221 = vadd.f32 0.0, %v5220
    %5222 = vmatmul.bf16.gmra.mxu0 %v5074
    %v5223 = vpop.f32.mrf.mxu0
    %v5224 = vadd.f32 0.0, %v5223
    %v5225 = vpop.f32.mrf.mxu0
    %v5226 = vadd.f32 0.0, %v5225
    %5227 = vdwg.mxu0
    %v5228 = vadd.f32 %v147, %v5149
    %v5229 = vadd.f32 %v148, %v5151
    %v5230 = vadd.f32 %v149, %v5154
    %v5231 = vadd.f32 %v150, %v5156
    %v5232 = vadd.f32 %v151, %v5159
    %v5233 = vadd.f32 %v152, %v5161
    %v5234 = vadd.f32 %v153, %v5164
    %v5235 = vadd.f32 %v154, %v5166
    %v5236 = vadd.f32 %v155, %v5169
    %v5237 = vadd.f32 %v156, %v5171
    %v5238 = vadd.f32 %v157, %v5174
    %v5239 = vadd.f32 %v158, %v5176
    %v5240 = vadd.f32 %v159, %v5179
    %v5241 = vadd.f32 %v160, %v5181
    %v5242 = vadd.f32 %v161, %v5184
    %v5243 = vadd.f32 %v162, %v5186
    %v5244 = vadd.f32 %v163, %v5189
    %v5245 = vadd.f32 %v164, %v5191
    %v5246 = vadd.f32 %v165, %v5194
    %v5247 = vadd.f32 %v166, %v5196
    %v5248 = vadd.f32 %v167, %v5199
    %v5249 = vadd.f32 %v168, %v5201
    %v5250 = vadd.f32 %v169, %v5204
    %v5251 = vadd.f32 %v170, %v5206
    %v5252 = vadd.f32 %v171, %v5209
    %v5253 = vadd.f32 %v172, %v5211
    %v5254 = vadd.f32 %v173, %v5214
    %v5255 = vadd.f32 %v174, %v5216
    %v5256 = vadd.f32 %v175, %v5219
    %v5257 = vadd.f32 %v176, %v5221
    %v5258 = vadd.f32 %v177, %v5224
    %v5259 = vadd.f32 %v178, %v5226
    %v5260 = vld [vmem:[%s5] sm:$0x1]
    %v5262 = vperm.slane %v5260, 0
    %v5264 = vadd.f32 %v5228, %v5262
    %v5265 = vadd.f32 %v5229, %v5262
    %v5266 = vadd.f32 %v5230, %v5262
    %v5267 = vadd.f32 %v5231, %v5262
    %v5268 = vadd.f32 %v5232, %v5262
    %v5269 = vadd.f32 %v5233, %v5262
    %v5270 = vadd.f32 %v5234, %v5262
    %v5271 = vadd.f32 %v5235, %v5262
    %v5272 = vadd.f32 %v5236, %v5262
    %v5273 = vadd.f32 %v5237, %v5262
    %v5274 = vadd.f32 %v5238, %v5262
    %v5275 = vadd.f32 %v5239, %v5262
    %v5276 = vadd.f32 %v5240, %v5262
    %v5277 = vadd.f32 %v5241, %v5262
    %v5278 = vadd.f32 %v5242, %v5262
    %v5279 = vadd.f32 %v5243, %v5262
    %v5280 = vadd.f32 %v5244, %v5262
    %v5281 = vadd.f32 %v5245, %v5262
    %v5282 = vadd.f32 %v5246, %v5262
    %v5283 = vadd.f32 %v5247, %v5262
    %v5284 = vadd.f32 %v5248, %v5262
    %v5285 = vadd.f32 %v5249, %v5262
    %v5286 = vadd.f32 %v5250, %v5262
    %v5287 = vadd.f32 %v5251, %v5262
    %v5288 = vadd.f32 %v5252, %v5262
    %v5289 = vadd.f32 %v5253, %v5262
    %v5290 = vadd.f32 %v5254, %v5262
    %v5291 = vadd.f32 %v5255, %v5262
    %v5292 = vadd.f32 %v5256, %v5262
    %v5293 = vadd.f32 %v5257, %v5262
    %v5294 = vadd.f32 %v5258, %v5262
    %v5295 = vadd.f32 %v5259, %v5262
    %v5296 = vld [vmem:[%s6] sm:$0x1]
    %v5297 = vld [vmem:[%s7] sm:$0x1]
    %5298 = vadd.xlane.f32.xlu0 %v5264
    %v5299 = vpop.xlane.xlu0 %5298
    %5300 = vadd.xlane.f32.xlu0 %v5265
    %v5301 = vpop.xlane.xlu0 %5300
    %5302 = vadd.xlane.f32.xlu0 %v5266
    %v5303 = vpop.xlane.xlu0 %5302
    %5304 = vadd.xlane.f32.xlu0 %v5267
    %v5305 = vpop.xlane.xlu0 %5304
    %5306 = vadd.xlane.f32.xlu0 %v5268
    %v5307 = vpop.xlane.xlu0 %5306
    %5308 = vadd.xlane.f32.xlu0 %v5269
    %v5309 = vpop.xlane.xlu0 %5308
    %5310 = vadd.xlane.f32.xlu0 %v5270
    %v5311 = vpop.xlane.xlu0 %5310
    %5312 = vadd.xlane.f32.xlu0 %v5271
    %v5313 = vpop.xlane.xlu0 %5312
    %5314 = vadd.xlane.f32.xlu0 %v5272
    %v5315 = vpop.xlane.xlu0 %5314
    %5316 = vadd.xlane.f32.xlu0 %v5273
    %v5317 = vpop.xlane.xlu0 %5316
    %5318 = vadd.xlane.f32.xlu0 %v5274
    %v5319 = vpop.xlane.xlu0 %5318
    %5320 = vadd.xlane.f32.xlu0 %v5275
    %v5321 = vpop.xlane.xlu0 %5320
    %5322 = vadd.xlane.f32.xlu0 %v5276
    %v5323 = vpop.xlane.xlu0 %5322
    %5324 = vadd.xlane.f32.xlu0 %v5277
    %v5325 = vpop.xlane.xlu0 %5324
    %5326 = vadd.xlane.f32.xlu0 %v5278
    %v5327 = vpop.xlane.xlu0 %5326
    %5328 = vadd.xlane.f32.xlu0 %v5279
    %v5329 = vpop.xlane.xlu0 %5328
    %5330 = vadd.xlane.f32.xlu0 %v5280
    %v5331 = vpop.xlane.xlu0 %5330
    %5332 = vadd.xlane.f32.xlu0 %v5281
    %v5333 = vpop.xlane.xlu0 %5332
    %5334 = vadd.xlane.f32.xlu0 %v5282
    %v5335 = vpop.xlane.xlu0 %5334
    %5336 = vadd.xlane.f32.xlu0 %v5283
    %v5337 = vpop.xlane.xlu0 %5336
    %5338 = vadd.xlane.f32.xlu0 %v5284
    %v5339 = vpop.xlane.xlu0 %5338
    %5340 = vadd.xlane.f32.xlu0 %v5285
    %v5341 = vpop.xlane.xlu0 %5340
    %5342 = vadd.xlane.f32.xlu0 %v5286
    %v5343 = vpop.xlane.xlu0 %5342
    %5344 = vadd.xlane.f32.xlu0 %v5287
    %v5345 = vpop.xlane.xlu0 %5344
    %5346 = vadd.xlane.f32.xlu0 %v5288
    %v5347 = vpop.xlane.xlu0 %5346
    %5348 = vadd.xlane.f32.xlu0 %v5289
    %v5349 = vpop.xlane.xlu0 %5348
    %5350 = vadd.xlane.f32.xlu0 %v5290
    %v5351 = vpop.xlane.xlu0 %5350
    %5352 = vadd.xlane.f32.xlu0 %v5291
    %v5353 = vpop.xlane.xlu0 %5352
    %5354 = vadd.xlane.f32.xlu0 %v5292
    %v5355 = vpop.xlane.xlu0 %5354
    %5356 = vadd.xlane.f32.xlu0 %v5293
    %v5357 = vpop.xlane.xlu0 %5356
    %5358 = vadd.xlane.f32.xlu0 %v5294
    %v5359 = vpop.xlane.xlu0 %5358
    %5360 = vadd.xlane.f32.xlu0 %v5295
    %v5361 = vpop.xlane.xlu0 %5360
    %v5362 = vmul.f32 %v5299, %v251
    %v5363 = vmul.f32 %v5301, %v251
    %v5364 = vmul.f32 %v5303, %v251
    %v5365 = vmul.f32 %v5305, %v251
    %v5366 = vmul.f32 %v5307, %v251
    %v5367 = vmul.f32 %v5309, %v251
    %v5368 = vmul.f32 %v5311, %v251
    %v5369 = vmul.f32 %v5313, %v251
    %v5370 = vmul.f32 %v5315, %v251
    %v5371 = vmul.f32 %v5317, %v251
    %v5372 = vmul.f32 %v5319, %v251
    %v5373 = vmul.f32 %v5321, %v251
    %v5374 = vmul.f32 %v5323, %v251
    %v5375 = vmul.f32 %v5325, %v251
    %v5376 = vmul.f32 %v5327, %v251
    %v5377 = vmul.f32 %v5329, %v251
    %v5378 = vmul.f32 %v5331, %v251
    %v5379 = vmul.f32 %v5333, %v251
    %v5380 = vmul.f32 %v5335, %v251
    %v5381 = vmul.f32 %v5337, %v251
    %v5382 = vmul.f32 %v5339, %v251
    %v5383 = vmul.f32 %v5341, %v251
    %v5384 = vmul.f32 %v5343, %v251
    %v5385 = vmul.f32 %v5345, %v251
    %v5386 = vmul.f32 %v5347, %v251
    %v5387 = vmul.f32 %v5349, %v251
    %v5388 = vmul.f32 %v5351, %v251
    %v5389 = vmul.f32 %v5353, %v251
    %v5390 = vmul.f32 %v5355, %v251
    %v5391 = vmul.f32 %v5357, %v251
    %v5392 = vmul.f32 %v5359, %v251
    %v5393 = vmul.f32 %v5361, %v251
    %v5394 = vsub.f32 %v5264, %v5362
    %v5395 = vsub.f32 %v5265, %v5363
    %v5396 = vsub.f32 %v5266, %v5364
    %v5397 = vsub.f32 %v5267, %v5365
    %v5398 = vsub.f32 %v5268, %v5366
    %v5399 = vsub.f32 %v5269, %v5367
    %v5400 = vsub.f32 %v5270, %v5368
    %v5401 = vsub.f32 %v5271, %v5369
    %v5402 = vsub.f32 %v5272, %v5370
    %v5403 = vsub.f32 %v5273, %v5371
    %v5404 = vsub.f32 %v5274, %v5372
    %v5405 = vsub.f32 %v5275, %v5373
    %v5406 = vsub.f32 %v5276, %v5374
    %v5407 = vsub.f32 %v5277, %v5375
    %v5408 = vsub.f32 %v5278, %v5376
    %v5409 = vsub.f32 %v5279, %v5377
    %v5410 = vsub.f32 %v5280, %v5378
    %v5411 = vsub.f32 %v5281, %v5379
    %v5412 = vsub.f32 %v5282, %v5380
    %v5413 = vsub.f32 %v5283, %v5381
    %v5414 = vsub.f32 %v5284, %v5382
    %v5415 = vsub.f32 %v5285, %v5383
    %v5416 = vsub.f32 %v5286, %v5384
    %v5417 = vsub.f32 %v5287, %v5385
    %v5418 = vsub.f32 %v5288, %v5386
    %v5419 = vsub.f32 %v5289, %v5387
    %v5420 = vsub.f32 %v5290, %v5388
    %v5421 = vsub.f32 %v5291, %v5389
    %v5422 = vsub.f32 %v5292, %v5390
    %v5423 = vsub.f32 %v5293, %v5391
    %v5424 = vsub.f32 %v5294, %v5392
    %v5425 = vsub.f32 %v5295, %v5393
    %v5426 = vmul.f32 %v5394, %v5394
    %v5427 = vmul.f32 %v5395, %v5395
    %v5428 = vmul.f32 %v5396, %v5396
    %v5429 = vmul.f32 %v5397, %v5397
    %v5430 = vmul.f32 %v5398, %v5398
    %v5431 = vmul.f32 %v5399, %v5399
    %v5432 = vmul.f32 %v5400, %v5400
    %v5433 = vmul.f32 %v5401, %v5401
    %v5434 = vmul.f32 %v5402, %v5402
    %v5435 = vmul.f32 %v5403, %v5403
    %v5436 = vmul.f32 %v5404, %v5404
    %v5437 = vmul.f32 %v5405, %v5405
    %v5438 = vmul.f32 %v5406, %v5406
    %v5439 = vmul.f32 %v5407, %v5407
    %v5440 = vmul.f32 %v5408, %v5408
    %v5441 = vmul.f32 %v5409, %v5409
    %v5442 = vmul.f32 %v5410, %v5410
    %v5443 = vmul.f32 %v5411, %v5411
    %v5444 = vmul.f32 %v5412, %v5412
    %v5445 = vmul.f32 %v5413, %v5413
    %v5446 = vmul.f32 %v5414, %v5414
    %v5447 = vmul.f32 %v5415, %v5415
    %v5448 = vmul.f32 %v5416, %v5416
    %v5449 = vmul.f32 %v5417, %v5417
    %v5450 = vmul.f32 %v5418, %v5418
    %v5451 = vmul.f32 %v5419, %v5419
    %v5452 = vmul.f32 %v5420, %v5420
    %v5453 = vmul.f32 %v5421, %v5421
    %v5454 = vmul.f32 %v5422, %v5422
    %v5455 = vmul.f32 %v5423, %v5423
    %v5456 = vmul.f32 %v5424, %v5424
    %v5457 = vmul.f32 %v5425, %v5425
    %5458 = vadd.xlane.f32.xlu0 %v5426
    %v5459 = vpop.xlane.xlu0 %5458
    %5460 = vadd.xlane.f32.xlu0 %v5427
    %v5461 = vpop.xlane.xlu0 %5460
    %5462 = vadd.xlane.f32.xlu0 %v5428
    %v5463 = vpop.xlane.xlu0 %5462
    %5464 = vadd.xlane.f32.xlu0 %v5429
    %v5465 = vpop.xlane.xlu0 %5464
    %5466 = vadd.xlane.f32.xlu0 %v5430
    %v5467 = vpop.xlane.xlu0 %5466
    %5468 = vadd.xlane.f32.xlu0 %v5431
    %v5469 = vpop.xlane.xlu0 %5468
    %5470 = vadd.xlane.f32.xlu0 %v5432
    %v5471 = vpop.xlane.xlu0 %5470
    %5472 = vadd.xlane.f32.xlu0 %v5433
    %v5473 = vpop.xlane.xlu0 %5472
    %5474 = vadd.xlane.f32.xlu0 %v5434
    %v5475 = vpop.xlane.xlu0 %5474
    %5476 = vadd.xlane.f32.xlu0 %v5435
    %v5477 = vpop.xlane.xlu0 %5476
    %5478 = vadd.xlane.f32.xlu0 %v5436
    %v5479 = vpop.xlane.xlu0 %5478
    %5480 = vadd.xlane.f32.xlu0 %v5437
    %v5481 = vpop.xlane.xlu0 %5480
    %5482 = vadd.xlane.f32.xlu0 %v5438
    %v5483 = vpop.xlane.xlu0 %5482
    %5484 = vadd.xlane.f32.xlu0 %v5439
    %v5485 = vpop.xlane.xlu0 %5484
    %5486 = vadd.xlane.f32.xlu0 %v5440
    %v5487 = vpop.xlane.xlu0 %5486
    %5488 = vadd.xlane.f32.xlu0 %v5441
    %v5489 = vpop.xlane.xlu0 %5488
    %5490 = vadd.xlane.f32.xlu0 %v5442
    %v5491 = vpop.xlane.xlu0 %5490
    %5492 = vadd.xlane.f32.xlu0 %v5443
    %v5493 = vpop.xlane.xlu0 %5492
    %5494 = vadd.xlane.f32.xlu0 %v5444
    %v5495 = vpop.xlane.xlu0 %5494
    %5496 = vadd.xlane.f32.xlu0 %v5445
    %v5497 = vpop.xlane.xlu0 %5496
    %5498 = vadd.xlane.f32.xlu0 %v5446
    %v5499 = vpop.xlane.xlu0 %5498
    %5500 = vadd.xlane.f32.xlu0 %v5447
    %v5501 = vpop.xlane.xlu0 %5500
    %5502 = vadd.xlane.f32.xlu0 %v5448
    %v5503 = vpop.xlane.xlu0 %5502
    %5504 = vadd.xlane.f32.xlu0 %v5449
    %v5505 = vpop.xlane.xlu0 %5504
    %5506 = vadd.xlane.f32.xlu0 %v5450
    %v5507 = vpop.xlane.xlu0 %5506
    %5508 = vadd.xlane.f32.xlu0 %v5451
    %v5509 = vpop.xlane.xlu0 %5508
    %5510 = vadd.xlane.f32.xlu0 %v5452
    %v5511 = vpop.xlane.xlu0 %5510
    %5512 = vadd.xlane.f32.xlu0 %v5453
    %v5513 = vpop.xlane.xlu0 %5512
    %5514 = vadd.xlane.f32.xlu0 %v5454
    %v5515 = vpop.xlane.xlu0 %5514
    %5516 = vadd.xlane.f32.xlu0 %v5455
    %v5517 = vpop.xlane.xlu0 %5516
    %5518 = vadd.xlane.f32.xlu0 %v5456
    %v5519 = vpop.xlane.xlu0 %5518
    %5520 = vadd.xlane.f32.xlu0 %v5457
    %v5521 = vpop.xlane.xlu0 %5520
    %v5522 = vmul.f32 %v5459, %v251
    %v5523 = vmul.f32 %v5461, %v251
    %v5524 = vmul.f32 %v5463, %v251
    %v5525 = vmul.f32 %v5465, %v251
    %v5526 = vmul.f32 %v5467, %v251
    %v5527 = vmul.f32 %v5469, %v251
    %v5528 = vmul.f32 %v5471, %v251
    %v5529 = vmul.f32 %v5473, %v251
    %v5530 = vmul.f32 %v5475, %v251
    %v5531 = vmul.f32 %v5477, %v251
    %v5532 = vmul.f32 %v5479, %v251
    %v5533 = vmul.f32 %v5481, %v251
    %v5534 = vmul.f32 %v5483, %v251
    %v5535 = vmul.f32 %v5485, %v251
    %v5536 = vmul.f32 %v5487, %v251
    %v5537 = vmul.f32 %v5489, %v251
    %v5538 = vmul.f32 %v5491, %v251
    %v5539 = vmul.f32 %v5493, %v251
    %v5540 = vmul.f32 %v5495, %v251
    %v5541 = vmul.f32 %v5497, %v251
    %v5542 = vmul.f32 %v5499, %v251
    %v5543 = vmul.f32 %v5501, %v251
    %v5544 = vmul.f32 %v5503, %v251
    %v5545 = vmul.f32 %v5505, %v251
    %v5546 = vmul.f32 %v5507, %v251
    %v5547 = vmul.f32 %v5509, %v251
    %v5548 = vmul.f32 %v5511, %v251
    %v5549 = vmul.f32 %v5513, %v251
    %v5550 = vmul.f32 %v5515, %v251
    %v5551 = vmul.f32 %v5517, %v251
    %v5552 = vmul.f32 %v5519, %v251
    %v5553 = vmul.f32 %v5521, %v251
    %v5554 = vadd.f32 %v5522, 1e-05
    %v5555 = vadd.f32 %v5523, 1e-05
    %v5556 = vadd.f32 %v5524, 1e-05
    %v5557 = vadd.f32 %v5525, 1e-05
    %v5558 = vadd.f32 %v5526, 1e-05
    %v5559 = vadd.f32 %v5527, 1e-05
    %v5560 = vadd.f32 %v5528, 1e-05
    %v5561 = vadd.f32 %v5529, 1e-05
    %v5562 = vadd.f32 %v5530, 1e-05
    %v5563 = vadd.f32 %v5531, 1e-05
    %v5564 = vadd.f32 %v5532, 1e-05
    %v5565 = vadd.f32 %v5533, 1e-05
    %v5566 = vadd.f32 %v5534, 1e-05
    %v5567 = vadd.f32 %v5535, 1e-05
    %v5568 = vadd.f32 %v5536, 1e-05
    %v5569 = vadd.f32 %v5537, 1e-05
    %v5570 = vadd.f32 %v5538, 1e-05
    %v5571 = vadd.f32 %v5539, 1e-05
    %v5572 = vadd.f32 %v5540, 1e-05
    %v5573 = vadd.f32 %v5541, 1e-05
    %v5574 = vadd.f32 %v5542, 1e-05
    %v5575 = vadd.f32 %v5543, 1e-05
    %v5576 = vadd.f32 %v5544, 1e-05
    %v5577 = vadd.f32 %v5545, 1e-05
    %v5578 = vadd.f32 %v5546, 1e-05
    %v5579 = vadd.f32 %v5547, 1e-05
    %v5580 = vadd.f32 %v5548, 1e-05
    %v5581 = vadd.f32 %v5549, 1e-05
    %v5582 = vadd.f32 %v5550, 1e-05
    %v5583 = vadd.f32 %v5551, 1e-05
    %v5584 = vadd.f32 %v5552, 1e-05
    %v5585 = vadd.f32 %v5553, 1e-05
    %v5586 = vrsqrt.pop %v5554
    %v5587 = vmul.f32 %v5586, %v5554
    %v5588 = vmul.f32 %v5587, %v5586
    %v5589 = vmul.f32 0.5, %v5588
    %v5590 = vsub.f32 1.5, %v5589
    %v5591 = vmul.f32 %v5586, %v5590
    %vm5592 = vweird.f32 %v5554
    %vm5593 = vweird.f32 %v5586
    %vm5594 = vmor %vm5592, %vm5593
    %v5595 = vsel %vm5594, %v5586, %v5591
    %v5596 = vrsqrt.pop %v5555
    %v5597 = vmul.f32 %v5596, %v5555
    %v5598 = vmul.f32 %v5597, %v5596
    %v5599 = vmul.f32 0.5, %v5598
    %v5600 = vsub.f32 1.5, %v5599
    %v5601 = vmul.f32 %v5596, %v5600
    %vm5602 = vweird.f32 %v5555
    %vm5603 = vweird.f32 %v5596
    %vm5604 = vmor %vm5602, %vm5603
    %v5605 = vsel %vm5604, %v5596, %v5601
    %v5606 = vrsqrt.pop %v5556
    %v5607 = vmul.f32 %v5606, %v5556
    %v5608 = vmul.f32 %v5607, %v5606
    %v5609 = vmul.f32 0.5, %v5608
    %v5610 = vsub.f32 1.5, %v5609
    %v5611 = vmul.f32 %v5606, %v5610
    %vm5612 = vweird.f32 %v5556
    %vm5613 = vweird.f32 %v5606
    %vm5614 = vmor %vm5612, %vm5613
    %v5615 = vsel %vm5614, %v5606, %v5611
    %v5616 = vrsqrt.pop %v5557
    %v5617 = vmul.f32 %v5616, %v5557
    %v5618 = vmul.f32 %v5617, %v5616
    %v5619 = vmul.f32 0.5, %v5618
    %v5620 = vsub.f32 1.5, %v5619
    %v5621 = vmul.f32 %v5616, %v5620
    %vm5622 = vweird.f32 %v5557
    %vm5623 = vweird.f32 %v5616
    %vm5624 = vmor %vm5622, %vm5623
    %v5625 = vsel %vm5624, %v5616, %v5621
    %v5626 = vrsqrt.pop %v5558
    %v5627 = vmul.f32 %v5626, %v5558
    %v5628 = vmul.f32 %v5627, %v5626
    %v5629 = vmul.f32 0.5, %v5628
    %v5630 = vsub.f32 1.5, %v5629
    %v5631 = vmul.f32 %v5626, %v5630
    %vm5632 = vweird.f32 %v5558
    %vm5633 = vweird.f32 %v5626
    %vm5634 = vmor %vm5632, %vm5633
    %v5635 = vsel %vm5634, %v5626, %v5631
    %v5636 = vrsqrt.pop %v5559
    %v5637 = vmul.f32 %v5636, %v5559
    %v5638 = vmul.f32 %v5637, %v5636
    %v5639 = vmul.f32 0.5, %v5638
    %v5640 = vsub.f32 1.5, %v5639
    %v5641 = vmul.f32 %v5636, %v5640
    %vm5642 = vweird.f32 %v5559
    %vm5643 = vweird.f32 %v5636
    %vm5644 = vmor %vm5642, %vm5643
    %v5645 = vsel %vm5644, %v5636, %v5641
    %v5646 = vrsqrt.pop %v5560
    %v5647 = vmul.f32 %v5646, %v5560
    %v5648 = vmul.f32 %v5647, %v5646
    %v5649 = vmul.f32 0.5, %v5648
    %v5650 = vsub.f32 1.5, %v5649
    %v5651 = vmul.f32 %v5646, %v5650
    %vm5652 = vweird.f32 %v5560
    %vm5653 = vweird.f32 %v5646
    %vm5654 = vmor %vm5652, %vm5653
    %v5655 = vsel %vm5654, %v5646, %v5651
    %v5656 = vrsqrt.pop %v5561
    %v5657 = vmul.f32 %v5656, %v5561
    %v5658 = vmul.f32 %v5657, %v5656
    %v5659 = vmul.f32 0.5, %v5658
    %v5660 = vsub.f32 1.5, %v5659
    %v5661 = vmul.f32 %v5656, %v5660
    %vm5662 = vweird.f32 %v5561
    %vm5663 = vweird.f32 %v5656
    %vm5664 = vmor %vm5662, %vm5663
    %v5665 = vsel %vm5664, %v5656, %v5661
    %v5666 = vrsqrt.pop %v5562
    %v5667 = vmul.f32 %v5666, %v5562
    %v5668 = vmul.f32 %v5667, %v5666
    %v5669 = vmul.f32 0.5, %v5668
    %v5670 = vsub.f32 1.5, %v5669
    %v5671 = vmul.f32 %v5666, %v5670
    %vm5672 = vweird.f32 %v5562
    %vm5673 = vweird.f32 %v5666
    %vm5674 = vmor %vm5672, %vm5673
    %v5675 = vsel %vm5674, %v5666, %v5671
    %v5676 = vrsqrt.pop %v5563
    %v5677 = vmul.f32 %v5676, %v5563
    %v5678 = vmul.f32 %v5677, %v5676
    %v5679 = vmul.f32 0.5, %v5678
    %v5680 = vsub.f32 1.5, %v5679
    %v5681 = vmul.f32 %v5676, %v5680
    %vm5682 = vweird.f32 %v5563
    %vm5683 = vweird.f32 %v5676
    %vm5684 = vmor %vm5682, %vm5683
    %v5685 = vsel %vm5684, %v5676, %v5681
    %v5686 = vrsqrt.pop %v5564
    %v5687 = vmul.f32 %v5686, %v5564
    %v5688 = vmul.f32 %v5687, %v5686
    %v5689 = vmul.f32 0.5, %v5688
    %v5690 = vsub.f32 1.5, %v5689
    %v5691 = vmul.f32 %v5686, %v5690
    %vm5692 = vweird.f32 %v5564
    %vm5693 = vweird.f32 %v5686
    %vm5694 = vmor %vm5692, %vm5693
    %v5695 = vsel %vm5694, %v5686, %v5691
    %v5696 = vrsqrt.pop %v5565
    %v5697 = vmul.f32 %v5696, %v5565
    %v5698 = vmul.f32 %v5697, %v5696
    %v5699 = vmul.f32 0.5, %v5698
    %v5700 = vsub.f32 1.5, %v5699
    %v5701 = vmul.f32 %v5696, %v5700
    %vm5702 = vweird.f32 %v5565
    %vm5703 = vweird.f32 %v5696
    %vm5704 = vmor %vm5702, %vm5703
    %v5705 = vsel %vm5704, %v5696, %v5701
    %v5706 = vrsqrt.pop %v5566
    %v5707 = vmul.f32 %v5706, %v5566
    %v5708 = vmul.f32 %v5707, %v5706
    %v5709 = vmul.f32 0.5, %v5708
    %v5710 = vsub.f32 1.5, %v5709
    %v5711 = vmul.f32 %v5706, %v5710
    %vm5712 = vweird.f32 %v5566
    %vm5713 = vweird.f32 %v5706
    %vm5714 = vmor %vm5712, %vm5713
    %v5715 = vsel %vm5714, %v5706, %v5711
    %v5716 = vrsqrt.pop %v5567
    %v5717 = vmul.f32 %v5716, %v5567
    %v5718 = vmul.f32 %v5717, %v5716
    %v5719 = vmul.f32 0.5, %v5718
    %v5720 = vsub.f32 1.5, %v5719
    %v5721 = vmul.f32 %v5716, %v5720
    %vm5722 = vweird.f32 %v5567
    %vm5723 = vweird.f32 %v5716
    %vm5724 = vmor %vm5722, %vm5723
    %v5725 = vsel %vm5724, %v5716, %v5721
    %v5726 = vrsqrt.pop %v5568
    %v5727 = vmul.f32 %v5726, %v5568
    %v5728 = vmul.f32 %v5727, %v5726
    %v5729 = vmul.f32 0.5, %v5728
    %v5730 = vsub.f32 1.5, %v5729
    %v5731 = vmul.f32 %v5726, %v5730
    %vm5732 = vweird.f32 %v5568
    %vm5733 = vweird.f32 %v5726
    %vm5734 = vmor %vm5732, %vm5733
    %v5735 = vsel %vm5734, %v5726, %v5731
    %v5736 = vrsqrt.pop %v5569
    %v5737 = vmul.f32 %v5736, %v5569
    %v5738 = vmul.f32 %v5737, %v5736
    %v5739 = vmul.f32 0.5, %v5738
    %v5740 = vsub.f32 1.5, %v5739
    %v5741 = vmul.f32 %v5736, %v5740
    %vm5742 = vweird.f32 %v5569
    %vm5743 = vweird.f32 %v5736
    %vm5744 = vmor %vm5742, %vm5743
    %v5745 = vsel %vm5744, %v5736, %v5741
    %v5746 = vrsqrt.pop %v5570
    %v5747 = vmul.f32 %v5746, %v5570
    %v5748 = vmul.f32 %v5747, %v5746
    %v5749 = vmul.f32 0.5, %v5748
    %v5750 = vsub.f32 1.5, %v5749
    %v5751 = vmul.f32 %v5746, %v5750
    %vm5752 = vweird.f32 %v5570
    %vm5753 = vweird.f32 %v5746
    %vm5754 = vmor %vm5752, %vm5753
    %v5755 = vsel %vm5754, %v5746, %v5751
    %v5756 = vrsqrt.pop %v5571
    %v5757 = vmul.f32 %v5756, %v5571
    %v5758 = vmul.f32 %v5757, %v5756
    %v5759 = vmul.f32 0.5, %v5758
    %v5760 = vsub.f32 1.5, %v5759
    %v5761 = vmul.f32 %v5756, %v5760
    %vm5762 = vweird.f32 %v5571
    %vm5763 = vweird.f32 %v5756
    %vm5764 = vmor %vm5762, %vm5763
    %v5765 = vsel %vm5764, %v5756, %v5761
    %v5766 = vrsqrt.pop %v5572
    %v5767 = vmul.f32 %v5766, %v5572
    %v5768 = vmul.f32 %v5767, %v5766
    %v5769 = vmul.f32 0.5, %v5768
    %v5770 = vsub.f32 1.5, %v5769
    %v5771 = vmul.f32 %v5766, %v5770
    %vm5772 = vweird.f32 %v5572
    %vm5773 = vweird.f32 %v5766
    %vm5774 = vmor %vm5772, %vm5773
    %v5775 = vsel %vm5774, %v5766, %v5771
    %v5776 = vrsqrt.pop %v5573
    %v5777 = vmul.f32 %v5776, %v5573
    %v5778 = vmul.f32 %v5777, %v5776
    %v5779 = vmul.f32 0.5, %v5778
    %v5780 = vsub.f32 1.5, %v5779
    %v5781 = vmul.f32 %v5776, %v5780
    %vm5782 = vweird.f32 %v5573
    %vm5783 = vweird.f32 %v5776
    %vm5784 = vmor %vm5782, %vm5783
    %v5785 = vsel %vm5784, %v5776, %v5781
    %v5786 = vrsqrt.pop %v5574
    %v5787 = vmul.f32 %v5786, %v5574
    %v5788 = vmul.f32 %v5787, %v5786
    %v5789 = vmul.f32 0.5, %v5788
    %v5790 = vsub.f32 1.5, %v5789
    %v5791 = vmul.f32 %v5786, %v5790
    %vm5792 = vweird.f32 %v5574
    %vm5793 = vweird.f32 %v5786
    %vm5794 = vmor %vm5792, %vm5793
    %v5795 = vsel %vm5794, %v5786, %v5791
    %v5796 = vrsqrt.pop %v5575
    %v5797 = vmul.f32 %v5796, %v5575
    %v5798 = vmul.f32 %v5797, %v5796
    %v5799 = vmul.f32 0.5, %v5798
    %v5800 = vsub.f32 1.5, %v5799
    %v5801 = vmul.f32 %v5796, %v5800
    %vm5802 = vweird.f32 %v5575
    %vm5803 = vweird.f32 %v5796
    %vm5804 = vmor %vm5802, %vm5803
    %v5805 = vsel %vm5804, %v5796, %v5801
    %v5806 = vrsqrt.pop %v5576
    %v5807 = vmul.f32 %v5806, %v5576
    %v5808 = vmul.f32 %v5807, %v5806
    %v5809 = vmul.f32 0.5, %v5808
    %v5810 = vsub.f32 1.5, %v5809
    %v5811 = vmul.f32 %v5806, %v5810
    %vm5812 = vweird.f32 %v5576
    %vm5813 = vweird.f32 %v5806
    %vm5814 = vmor %vm5812, %vm5813
    %v5815 = vsel %vm5814, %v5806, %v5811
    %v5816 = vrsqrt.pop %v5577
    %v5817 = vmul.f32 %v5816, %v5577
    %v5818 = vmul.f32 %v5817, %v5816
    %v5819 = vmul.f32 0.5, %v5818
    %v5820 = vsub.f32 1.5, %v5819
    %v5821 = vmul.f32 %v5816, %v5820
    %vm5822 = vweird.f32 %v5577
    %vm5823 = vweird.f32 %v5816
    %vm5824 = vmor %vm5822, %vm5823
    %v5825 = vsel %vm5824, %v5816, %v5821
    %v5826 = vrsqrt.pop %v5578
    %v5827 = vmul.f32 %v5826, %v5578
    %v5828 = vmul.f32 %v5827, %v5826
    %v5829 = vmul.f32 0.5, %v5828
    %v5830 = vsub.f32 1.5, %v5829
    %v5831 = vmul.f32 %v5826, %v5830
    %vm5832 = vweird.f32 %v5578
    %vm5833 = vweird.f32 %v5826
    %vm5834 = vmor %vm5832, %vm5833
    %v5835 = vsel %vm5834, %v5826, %v5831
    %v5836 = vrsqrt.pop %v5579
    %v5837 = vmul.f32 %v5836, %v5579
    %v5838 = vmul.f32 %v5837, %v5836
    %v5839 = vmul.f32 0.5, %v5838
    %v5840 = vsub.f32 1.5, %v5839
    %v5841 = vmul.f32 %v5836, %v5840
    %vm5842 = vweird.f32 %v5579
    %vm5843 = vweird.f32 %v5836
    %vm5844 = vmor %vm5842, %vm5843
    %v5845 = vsel %vm5844, %v5836, %v5841
    %v5846 = vrsqrt.pop %v5580
    %v5847 = vmul.f32 %v5846, %v5580
    %v5848 = vmul.f32 %v5847, %v5846
    %v5849 = vmul.f32 0.5, %v5848
    %v5850 = vsub.f32 1.5, %v5849
    %v5851 = vmul.f32 %v5846, %v5850
    %vm5852 = vweird.f32 %v5580
    %vm5853 = vweird.f32 %v5846
    %vm5854 = vmor %vm5852, %vm5853
    %v5855 = vsel %vm5854, %v5846, %v5851
    %v5856 = vrsqrt.pop %v5581
    %v5857 = vmul.f32 %v5856, %v5581
    %v5858 = vmul.f32 %v5857, %v5856
    %v5859 = vmul.f32 0.5, %v5858
    %v5860 = vsub.f32 1.5, %v5859
    %v5861 = vmul.f32 %v5856, %v5860
    %vm5862 = vweird.f32 %v5581
    %vm5863 = vweird.f32 %v5856
    %vm5864 = vmor %vm5862, %vm5863
    %v5865 = vsel %vm5864, %v5856, %v5861
    %v5866 = vrsqrt.pop %v5582
    %v5867 = vmul.f32 %v5866, %v5582
    %v5868 = vmul.f32 %v5867, %v5866
    %v5869 = vmul.f32 0.5, %v5868
    %v5870 = vsub.f32 1.5, %v5869
    %v5871 = vmul.f32 %v5866, %v5870
    %vm5872 = vweird.f32 %v5582
    %vm5873 = vweird.f32 %v5866
    %vm5874 = vmor %vm5872, %vm5873
    %v5875 = vsel %vm5874, %v5866, %v5871
    %v5876 = vrsqrt.pop %v5583
    %v5877 = vmul.f32 %v5876, %v5583
    %v5878 = vmul.f32 %v5877, %v5876
    %v5879 = vmul.f32 0.5, %v5878
    %v5880 = vsub.f32 1.5, %v5879
    %v5881 = vmul.f32 %v5876, %v5880
    %vm5882 = vweird.f32 %v5583
    %vm5883 = vweird.f32 %v5876
    %vm5884 = vmor %vm5882, %vm5883
    %v5885 = vsel %vm5884, %v5876, %v5881
    %v5886 = vrsqrt.pop %v5584
    %v5887 = vmul.f32 %v5886, %v5584
    %v5888 = vmul.f32 %v5887, %v5886
    %v5889 = vmul.f32 0.5, %v5888
    %v5890 = vsub.f32 1.5, %v5889
    %v5891 = vmul.f32 %v5886, %v5890
    %vm5892 = vweird.f32 %v5584
    %vm5893 = vweird.f32 %v5886
    %vm5894 = vmor %vm5892, %vm5893
    %v5895 = vsel %vm5894, %v5886, %v5891
    %v5896 = vrsqrt.pop %v5585
    %v5897 = vmul.f32 %v5896, %v5585
    %v5898 = vmul.f32 %v5897, %v5896
    %v5899 = vmul.f32 0.5, %v5898
    %v5900 = vsub.f32 1.5, %v5899
    %v5901 = vmul.f32 %v5896, %v5900
    %vm5902 = vweird.f32 %v5585
    %vm5903 = vweird.f32 %v5896
    %vm5904 = vmor %vm5902, %vm5903
    %v5905 = vsel %vm5904, %v5896, %v5901
    %v5906 = vmul.f32 %v5394, %v5595
    %v5907 = vmul.f32 %v5395, %v5605
    %v5908 = vmul.f32 %v5396, %v5615
    %v5909 = vmul.f32 %v5397, %v5625
    %v5910 = vmul.f32 %v5398, %v5635
    %v5911 = vmul.f32 %v5399, %v5645
    %v5912 = vmul.f32 %v5400, %v5655
    %v5913 = vmul.f32 %v5401, %v5665
    %v5914 = vmul.f32 %v5402, %v5675
    %v5915 = vmul.f32 %v5403, %v5685
    %v5916 = vmul.f32 %v5404, %v5695
    %v5917 = vmul.f32 %v5405, %v5705
    %v5918 = vmul.f32 %v5406, %v5715
    %v5919 = vmul.f32 %v5407, %v5725
    %v5920 = vmul.f32 %v5408, %v5735
    %v5921 = vmul.f32 %v5409, %v5745
    %v5922 = vmul.f32 %v5410, %v5755
    %v5923 = vmul.f32 %v5411, %v5765
    %v5924 = vmul.f32 %v5412, %v5775
    %v5925 = vmul.f32 %v5413, %v5785
    %v5926 = vmul.f32 %v5414, %v5795
    %v5927 = vmul.f32 %v5415, %v5805
    %v5928 = vmul.f32 %v5416, %v5815
    %v5929 = vmul.f32 %v5417, %v5825
    %v5930 = vmul.f32 %v5418, %v5835
    %v5931 = vmul.f32 %v5419, %v5845
    %v5932 = vmul.f32 %v5420, %v5855
    %v5933 = vmul.f32 %v5421, %v5865
    %v5934 = vmul.f32 %v5422, %v5875
    %v5935 = vmul.f32 %v5423, %v5885
    %v5936 = vmul.f32 %v5424, %v5895
    %v5937 = vmul.f32 %v5425, %v5905
    %v5939 = vperm.slane %v5296, 0
    %v5941 = vmul.f32 %v5906, %v5939
    %v5942 = vmul.f32 %v5907, %v5939
    %v5943 = vmul.f32 %v5908, %v5939
    %v5944 = vmul.f32 %v5909, %v5939
    %v5945 = vmul.f32 %v5910, %v5939
    %v5946 = vmul.f32 %v5911, %v5939
    %v5947 = vmul.f32 %v5912, %v5939
    %v5948 = vmul.f32 %v5913, %v5939
    %v5949 = vmul.f32 %v5914, %v5939
    %v5950 = vmul.f32 %v5915, %v5939
    %v5951 = vmul.f32 %v5916, %v5939
    %v5952 = vmul.f32 %v5917, %v5939
    %v5953 = vmul.f32 %v5918, %v5939
    %v5954 = vmul.f32 %v5919, %v5939
    %v5955 = vmul.f32 %v5920, %v5939
    %v5956 = vmul.f32 %v5921, %v5939
    %v5957 = vmul.f32 %v5922, %v5939
    %v5958 = vmul.f32 %v5923, %v5939
    %v5959 = vmul.f32 %v5924, %v5939
    %v5960 = vmul.f32 %v5925, %v5939
    %v5961 = vmul.f32 %v5926, %v5939
    %v5962 = vmul.f32 %v5927, %v5939
    %v5963 = vmul.f32 %v5928, %v5939
    %v5964 = vmul.f32 %v5929, %v5939
    %v5965 = vmul.f32 %v5930, %v5939
    %v5966 = vmul.f32 %v5931, %v5939
    %v5967 = vmul.f32 %v5932, %v5939
    %v5968 = vmul.f32 %v5933, %v5939
    %v5969 = vmul.f32 %v5934, %v5939
    %v5970 = vmul.f32 %v5935, %v5939
    %v5971 = vmul.f32 %v5936, %v5939
    %v5972 = vmul.f32 %v5937, %v5939
    %v5974 = vperm.slane %v5297, 0
    %v5976 = vadd.f32 %v5941, %v5974
    %v5977 = vadd.f32 %v5942, %v5974
    %v5978 = vadd.f32 %v5943, %v5974
    %v5979 = vadd.f32 %v5944, %v5974
    %v5980 = vadd.f32 %v5945, %v5974
    %v5981 = vadd.f32 %v5946, %v5974
    %v5982 = vadd.f32 %v5947, %v5974
    %v5983 = vadd.f32 %v5948, %v5974
    %v5984 = vadd.f32 %v5949, %v5974
    %v5985 = vadd.f32 %v5950, %v5974
    %v5986 = vadd.f32 %v5951, %v5974
    %v5987 = vadd.f32 %v5952, %v5974
    %v5988 = vadd.f32 %v5953, %v5974
    %v5989 = vadd.f32 %v5954, %v5974
    %v5990 = vadd.f32 %v5955, %v5974
    %v5991 = vadd.f32 %v5956, %v5974
    %v5992 = vadd.f32 %v5957, %v5974
    %v5993 = vadd.f32 %v5958, %v5974
    %v5994 = vadd.f32 %v5959, %v5974
    %v5995 = vadd.f32 %v5960, %v5974
    %v5996 = vadd.f32 %v5961, %v5974
    %v5997 = vadd.f32 %v5962, %v5974
    %v5998 = vadd.f32 %v5963, %v5974
    %v5999 = vadd.f32 %v5964, %v5974
    %v6000 = vadd.f32 %v5965, %v5974
    %v6001 = vadd.f32 %v5966, %v5974
    %v6002 = vadd.f32 %v5967, %v5974
    %v6003 = vadd.f32 %v5968, %v5974
    %v6004 = vadd.f32 %v5969, %v5974
    %v6005 = vadd.f32 %v5970, %v5974
    %v6006 = vadd.f32 %v5971, %v5974
    %v6007 = vadd.f32 %v5972, %v5974
    %v6008 = vpack.c.bf16 %v5977, %v5976
    %v6009 = vpack.c.bf16 %v5979, %v5978
    %v6010 = vpack.c.bf16 %v5981, %v5980
    %v6011 = vpack.c.bf16 %v5983, %v5982
    %v6012 = vpack.c.bf16 %v5985, %v5984
    %v6013 = vpack.c.bf16 %v5987, %v5986
    %v6014 = vpack.c.bf16 %v5989, %v5988
    %v6015 = vpack.c.bf16 %v5991, %v5990
    %v6016 = vpack.c.bf16 %v5993, %v5992
    %v6017 = vpack.c.bf16 %v5995, %v5994
    %v6018 = vpack.c.bf16 %v5997, %v5996
    %v6019 = vpack.c.bf16 %v5999, %v5998
    %v6020 = vpack.c.bf16 %v6001, %v6000
    %v6021 = vpack.c.bf16 %v6003, %v6002
    %v6022 = vpack.c.bf16 %v6005, %v6004
    %v6023 = vpack.c.bf16 %v6007, %v6006
    %v6024 = vld [vmem:[#allocation9] sm:$0xf]
    %v6025 = vld [vmem:[#allocation9 + $0x10] sm:$0xf]
    %v6026 = vld [vmem:[#allocation9 + $0x20] sm:$0xf]
    %v6027 = vld [vmem:[#allocation9 + $0x30] sm:$0xf]
    %v6028 = vld [vmem:[#allocation9 + $0x40] sm:$0xf]
    %v6029 = vld [vmem:[#allocation9 + $0x50] sm:$0xf]
    %v6030 = vld [vmem:[#allocation9 + $0x60] sm:$0xf]
    %v6031 = vld [vmem:[#allocation9 + $0x70] sm:$0xf]
    %v6032 = vld [vmem:[#allocation9 + $0x80] sm:$0xf]
    %v6033 = vld [vmem:[#allocation9 + $0x90] sm:$0xf]
    %v6034 = vld [vmem:[#allocation9 + $0xa0] sm:$0xf]
    %v6035 = vld [vmem:[#allocation9 + $0xb0] sm:$0xf]
    %v6036 = vld [vmem:[#allocation9 + $0xc0] sm:$0xf]
    %v6037 = vld [vmem:[#allocation9 + $0xd0] sm:$0xf]
    %v6038 = vld [vmem:[#allocation9 + $0xe0] sm:$0xf]
    %v6039 = vld [vmem:[#allocation9 + $0xf0] sm:$0xf]
    %v6040 = vld [vmem:[#allocation11] sm:$0x1]
    %v6042 = vperm.slane %v6040, 0
    %v6060 = vunpack.c.l.b16 %v6024
    %v6061 = vunpack.c.l.b16 %v6025
    %v6062 = vunpack.c.l.b16 %v6026
    %v6063 = vunpack.c.l.b16 %v6027
    %v6064 = vunpack.c.l.b16 %v6028
    %v6065 = vunpack.c.l.b16 %v6029
    %v6066 = vunpack.c.l.b16 %v6030
    %v6067 = vunpack.c.l.b16 %v6031
    %v6068 = vunpack.c.l.b16 %v6032
    %v6069 = vunpack.c.l.b16 %v6033
    %v6070 = vunpack.c.l.b16 %v6034
    %v6071 = vunpack.c.l.b16 %v6035
    %v6072 = vunpack.c.l.b16 %v6036
    %v6073 = vunpack.c.l.b16 %v6037
    %v6074 = vunpack.c.l.b16 %v6038
    %v6075 = vunpack.c.l.b16 %v6039
    %v6076 = vpack.c.b16 %v6061, %v6060
    %v6077 = vpack.c.b16 %v6063, %v6062
    %v6078 = vpack.c.b16 %v6065, %v6064
    %v6079 = vpack.c.b16 %v6067, %v6066
    %v6080 = vpack.c.b16 %v6069, %v6068
    %v6081 = vpack.c.b16 %v6071, %v6070
    %v6082 = vpack.c.b16 %v6073, %v6072
    %v6083 = vpack.c.b16 %v6075, %v6074
    %6092 = vmatpush.bf16.msra.mxu0 %v6083
    %6093 = vmatpush.bf16.msra.mxu0 %v6082
    %6094 = vmatpush.bf16.msra.mxu0 %v6081
    %6095 = vmatpush.bf16.msra.mxu0 %v6080
    %6096 = vmatpush.bf16.msra.mxu0 %v6079
    %6097 = vmatpush.bf16.msra.mxu0 %v6078
    %6098 = vmatpush.bf16.msra.mxu0 %v6077
    %6099 = vmatpush.bf16.msra.mxu0 %v6076
    %6100 = vmatmul.bf16.gmra.mxu0 %v6008
    %v6101 = vpop.f32.mrf.mxu0
    %v6102 = vadd.f32 %v6042, %v6101
    %v6103 = vpop.f32.mrf.mxu0
    %v6104 = vadd.f32 %v6042, %v6103
    %6105 = vmatmul.bf16.gmra.mxu0 %v6009
    %v6106 = vpop.f32.mrf.mxu0
    %v6107 = vadd.f32 %v6042, %v6106
    %v6108 = vpop.f32.mrf.mxu0
    %v6109 = vadd.f32 %v6042, %v6108
    %6110 = vmatmul.bf16.gmra.mxu0 %v6010
    %v6111 = vpop.f32.mrf.mxu0
    %v6112 = vadd.f32 %v6042, %v6111
    %v6113 = vpop.f32.mrf.mxu0
    %v6114 = vadd.f32 %v6042, %v6113
    %6115 = vmatmul.bf16.gmra.mxu0 %v6011
    %v6116 = vpop.f32.mrf.mxu0
    %v6117 = vadd.f32 %v6042, %v6116
    %v6118 = vpop.f32.mrf.mxu0
    %v6119 = vadd.f32 %v6042, %v6118
    %6120 = vmatmul.bf16.gmra.mxu0 %v6012
    %v6121 = vpop.f32.mrf.mxu0
    %v6122 = vadd.f32 %v6042, %v6121
    %v6123 = vpop.f32.mrf.mxu0
    %v6124 = vadd.f32 %v6042, %v6123
    %6125 = vmatmul.bf16.gmra.mxu0 %v6013
    %v6126 = vpop.f32.mrf.mxu0
    %v6127 = vadd.f32 %v6042, %v6126
    %v6128 = vpop.f32.mrf.mxu0
    %v6129 = vadd.f32 %v6042, %v6128
    %6130 = vmatmul.bf16.gmra.mxu0 %v6014
    %v6131 = vpop.f32.mrf.mxu0
    %v6132 = vadd.f32 %v6042, %v6131
    %v6133 = vpop.f32.mrf.mxu0
    %v6134 = vadd.f32 %v6042, %v6133
    %6135 = vmatmul.bf16.gmra.mxu0 %v6015
    %v6136 = vpop.f32.mrf.mxu0
    %v6137 = vadd.f32 %v6042, %v6136
    %v6138 = vpop.f32.mrf.mxu0
    %v6139 = vadd.f32 %v6042, %v6138
    %6140 = vmatmul.bf16.gmra.mxu0 %v6016
    %v6141 = vpop.f32.mrf.mxu0
    %v6142 = vadd.f32 %v6042, %v6141
    %v6143 = vpop.f32.mrf.mxu0
    %v6144 = vadd.f32 %v6042, %v6143
    %6145 = vmatmul.bf16.gmra.mxu0 %v6017
    %v6146 = vpop.f32.mrf.mxu0
    %v6147 = vadd.f32 %v6042, %v6146
    %v6148 = vpop.f32.mrf.mxu0
    %v6149 = vadd.f32 %v6042, %v6148
    %6150 = vmatmul.bf16.gmra.mxu0 %v6018
    %v6151 = vpop.f32.mrf.mxu0
    %v6152 = vadd.f32 %v6042, %v6151
    %v6153 = vpop.f32.mrf.mxu0
    %v6154 = vadd.f32 %v6042, %v6153
    %6155 = vmatmul.bf16.gmra.mxu0 %v6019
    %v6156 = vpop.f32.mrf.mxu0
    %v6157 = vadd.f32 %v6042, %v6156
    %v6158 = vpop.f32.mrf.mxu0
    %v6159 = vadd.f32 %v6042, %v6158
    %6160 = vmatmul.bf16.gmra.mxu0 %v6020
    %v6161 = vpop.f32.mrf.mxu0
    %v6162 = vadd.f32 %v6042, %v6161
    %v6163 = vpop.f32.mrf.mxu0
    %v6164 = vadd.f32 %v6042, %v6163
    %6165 = vmatmul.bf16.gmra.mxu0 %v6021
    %v6166 = vpop.f32.mrf.mxu0
    %v6167 = vadd.f32 %v6042, %v6166
    %v6168 = vpop.f32.mrf.mxu0
    %v6169 = vadd.f32 %v6042, %v6168
    %6170 = vmatmul.bf16.gmra.mxu0 %v6022
    %v6171 = vpop.f32.mrf.mxu0
    %v6172 = vadd.f32 %v6042, %v6171
    %v6173 = vpop.f32.mrf.mxu0
    %v6174 = vadd.f32 %v6042, %v6173
    %6175 = vmatmul.bf16.gmra.mxu0 %v6023
    %v6176 = vpop.f32.mrf.mxu0
    %v6177 = vadd.f32 %v6042, %v6176
    %v6178 = vpop.f32.mrf.mxu0
    %v6179 = vadd.f32 %v6042, %v6178
    %6180 = vdwg.mxu0
    %v6181 = vmax.f32 %v6102, 0.0
    %v6182 = vmax.f32 %v6104, 0.0
    %v6183 = vmax.f32 %v6107, 0.0
    %v6184 = vmax.f32 %v6109, 0.0
    %v6185 = vmax.f32 %v6112, 0.0
    %v6186 = vmax.f32 %v6114, 0.0
    %v6187 = vmax.f32 %v6117, 0.0
    %v6188 = vmax.f32 %v6119, 0.0
    %v6189 = vmax.f32 %v6122, 0.0
    %v6190 = vmax.f32 %v6124, 0.0
    %v6191 = vmax.f32 %v6127, 0.0
    %v6192 = vmax.f32 %v6129, 0.0
    %v6193 = vmax.f32 %v6132, 0.0
    %v6194 = vmax.f32 %v6134, 0.0
    %v6195 = vmax.f32 %v6137, 0.0
    %v6196 = vmax.f32 %v6139, 0.0
    %v6197 = vmax.f32 %v6142, 0.0
    %v6198 = vmax.f32 %v6144, 0.0
    %v6199 = vmax.f32 %v6147, 0.0
    %v6200 = vmax.f32 %v6149, 0.0
    %v6201 = vmax.f32 %v6152, 0.0
    %v6202 = vmax.f32 %v6154, 0.0
    %v6203 = vmax.f32 %v6157, 0.0
    %v6204 = vmax.f32 %v6159, 0.0
    %v6205 = vmax.f32 %v6162, 0.0
    %v6206 = vmax.f32 %v6164, 0.0
    %v6207 = vmax.f32 %v6167, 0.0
    %v6208 = vmax.f32 %v6169, 0.0
    %v6209 = vmax.f32 %v6172, 0.0
    %v6210 = vmax.f32 %v6174, 0.0
    %v6211 = vmax.f32 %v6177, 0.0
    %v6212 = vmax.f32 %v6179, 0.0
    %v6213 = vpack.c.bf16 %v6182, %v6181
    %v6214 = vpack.c.bf16 %v6184, %v6183
    %v6215 = vpack.c.bf16 %v6186, %v6185
    %v6216 = vpack.c.bf16 %v6188, %v6187
    %v6217 = vpack.c.bf16 %v6190, %v6189
    %v6218 = vpack.c.bf16 %v6192, %v6191
    %v6219 = vpack.c.bf16 %v6194, %v6193
    %v6220 = vpack.c.bf16 %v6196, %v6195
    %v6221 = vpack.c.bf16 %v6198, %v6197
    %v6222 = vpack.c.bf16 %v6200, %v6199
    %v6223 = vpack.c.bf16 %v6202, %v6201
    %v6224 = vpack.c.bf16 %v6204, %v6203
    %v6225 = vpack.c.bf16 %v6206, %v6205
    %v6226 = vpack.c.bf16 %v6208, %v6207
    %v6227 = vpack.c.bf16 %v6210, %v6209
    %v6228 = vpack.c.bf16 %v6212, %v6211
    %v6229 = vld [vmem:[#allocation12] sm:$0xf]
    %v6230 = vld [vmem:[#allocation12 + $0x4] sm:$0xf]
    %v6231 = vld [vmem:[#allocation12 + $0x8] sm:$0xf]
    %v6232 = vld [vmem:[#allocation12 + $0xc] sm:$0xf]
    %v6233 = vld [vmem:[#allocation12 + $0x10] sm:$0xf]
    %v6234 = vld [vmem:[#allocation12 + $0x14] sm:$0xf]
    %v6235 = vld [vmem:[#allocation12 + $0x18] sm:$0xf]
    %v6236 = vld [vmem:[#allocation12 + $0x1c] sm:$0xf]
    %v6237 = vld [vmem:[#allocation12 + $0x20] sm:$0xf]
    %v6238 = vld [vmem:[#allocation12 + $0x24] sm:$0xf]
    %v6239 = vld [vmem:[#allocation12 + $0x28] sm:$0xf]
    %v6240 = vld [vmem:[#allocation12 + $0x2c] sm:$0xf]
    %v6241 = vld [vmem:[#allocation12 + $0x30] sm:$0xf]
    %v6242 = vld [vmem:[#allocation12 + $0x34] sm:$0xf]
    %v6243 = vld [vmem:[#allocation12 + $0x38] sm:$0xf]
    %v6244 = vld [vmem:[#allocation12 + $0x3c] sm:$0xf]
    %v6245 = vld [vmem:[#allocation9 + $0x4] sm:$0xf]
    %v6246 = vld [vmem:[#allocation9 + $0x14] sm:$0xf]
    %v6247 = vld [vmem:[#allocation9 + $0x24] sm:$0xf]
    %v6248 = vld [vmem:[#allocation9 + $0x34] sm:$0xf]
    %v6249 = vld [vmem:[#allocation9 + $0x44] sm:$0xf]
    %v6250 = vld [vmem:[#allocation9 + $0x54] sm:$0xf]
    %v6251 = vld [vmem:[#allocation9 + $0x64] sm:$0xf]
    %v6252 = vld [vmem:[#allocation9 + $0x74] sm:$0xf]
    %v6253 = vld [vmem:[#allocation9 + $0x84] sm:$0xf]
    %v6254 = vld [vmem:[#allocation9 + $0x94] sm:$0xf]
    %v6255 = vld [vmem:[#allocation9 + $0xa4] sm:$0xf]
    %v6256 = vld [vmem:[#allocation9 + $0xb4] sm:$0xf]
    %v6257 = vld [vmem:[#allocation9 + $0xc4] sm:$0xf]
    %v6258 = vld [vmem:[#allocation9 + $0xd4] sm:$0xf]
    %v6259 = vld [vmem:[#allocation9 + $0xe4] sm:$0xf]
    %v6260 = vld [vmem:[#allocation9 + $0xf4] sm:$0xf]
    %v6261 = vld [vmem:[#allocation11 + $0x1] sm:$0x1]
    %v6263 = vperm.slane %v6261, 0
    %v6281 = vunpack.c.l.b16 %v6245
    %v6282 = vunpack.c.l.b16 %v6246
    %v6283 = vunpack.c.l.b16 %v6247
    %v6284 = vunpack.c.l.b16 %v6248
    %v6285 = vunpack.c.l.b16 %v6249
    %v6286 = vunpack.c.l.b16 %v6250
    %v6287 = vunpack.c.l.b16 %v6251
    %v6288 = vunpack.c.l.b16 %v6252
    %v6289 = vunpack.c.l.b16 %v6253
    %v6290 = vunpack.c.l.b16 %v6254
    %v6291 = vunpack.c.l.b16 %v6255
    %v6292 = vunpack.c.l.b16 %v6256
    %v6293 = vunpack.c.l.b16 %v6257
    %v6294 = vunpack.c.l.b16 %v6258
    %v6295 = vunpack.c.l.b16 %v6259
    %v6296 = vunpack.c.l.b16 %v6260
    %v6297 = vpack.c.b16 %v6282, %v6281
    %v6298 = vpack.c.b16 %v6284, %v6283
    %v6299 = vpack.c.b16 %v6286, %v6285
    %v6300 = vpack.c.b16 %v6288, %v6287
    %v6301 = vpack.c.b16 %v6290, %v6289
    %v6302 = vpack.c.b16 %v6292, %v6291
    %v6303 = vpack.c.b16 %v6294, %v6293
    %v6304 = vpack.c.b16 %v6296, %v6295
    %6313 = vmatpush.bf16.msra.mxu0 %v6304
    %6314 = vmatpush.bf16.msra.mxu0 %v6303
    %6315 = vmatpush.bf16.msra.mxu0 %v6302
    %6316 = vmatpush.bf16.msra.mxu0 %v6301
    %6317 = vmatpush.bf16.msra.mxu0 %v6300
    %6318 = vmatpush.bf16.msra.mxu0 %v6299
    %6319 = vmatpush.bf16.msra.mxu0 %v6298
    %6320 = vmatpush.bf16.msra.mxu0 %v6297
    %6321 = vmatmul.bf16.gmra.mxu0 %v6008
    %v6322 = vpop.f32.mrf.mxu0
    %v6323 = vadd.f32 %v6263, %v6322
    %v6324 = vpop.f32.mrf.mxu0
    %v6325 = vadd.f32 %v6263, %v6324
    %6326 = vmatmul.bf16.gmra.mxu0 %v6009
    %v6327 = vpop.f32.mrf.mxu0
    %v6328 = vadd.f32 %v6263, %v6327
    %v6329 = vpop.f32.mrf.mxu0
    %v6330 = vadd.f32 %v6263, %v6329
    %6331 = vmatmul.bf16.gmra.mxu0 %v6010
    %v6332 = vpop.f32.mrf.mxu0
    %v6333 = vadd.f32 %v6263, %v6332
    %v6334 = vpop.f32.mrf.mxu0
    %v6335 = vadd.f32 %v6263, %v6334
    %6336 = vmatmul.bf16.gmra.mxu0 %v6011
    %v6337 = vpop.f32.mrf.mxu0
    %v6338 = vadd.f32 %v6263, %v6337
    %v6339 = vpop.f32.mrf.mxu0
    %v6340 = vadd.f32 %v6263, %v6339
    %6341 = vmatmul.bf16.gmra.mxu0 %v6012
    %v6342 = vpop.f32.mrf.mxu0
    %v6343 = vadd.f32 %v6263, %v6342
    %v6344 = vpop.f32.mrf.mxu0
    %v6345 = vadd.f32 %v6263, %v6344
    %6346 = vmatmul.bf16.gmra.mxu0 %v6013
    %v6347 = vpop.f32.mrf.mxu0
    %v6348 = vadd.f32 %v6263, %v6347
    %v6349 = vpop.f32.mrf.mxu0
    %v6350 = vadd.f32 %v6263, %v6349
    %6351 = vmatmul.bf16.gmra.mxu0 %v6014
    %v6352 = vpop.f32.mrf.mxu0
    %v6353 = vadd.f32 %v6263, %v6352
    %v6354 = vpop.f32.mrf.mxu0
    %v6355 = vadd.f32 %v6263, %v6354
    %6356 = vmatmul.bf16.gmra.mxu0 %v6015
    %v6357 = vpop.f32.mrf.mxu0
    %v6358 = vadd.f32 %v6263, %v6357
    %v6359 = vpop.f32.mrf.mxu0
    %v6360 = vadd.f32 %v6263, %v6359
    %6361 = vmatmul.bf16.gmra.mxu0 %v6016
    %v6362 = vpop.f32.mrf.mxu0
    %v6363 = vadd.f32 %v6263, %v6362
    %v6364 = vpop.f32.mrf.mxu0
    %v6365 = vadd.f32 %v6263, %v6364
    %6366 = vmatmul.bf16.gmra.mxu0 %v6017
    %v6367 = vpop.f32.mrf.mxu0
    %v6368 = vadd.f32 %v6263, %v6367
    %v6369 = vpop.f32.mrf.mxu0
    %v6370 = vadd.f32 %v6263, %v6369
    %6371 = vmatmul.bf16.gmra.mxu0 %v6018
    %v6372 = vpop.f32.mrf.mxu0
    %v6373 = vadd.f32 %v6263, %v6372
    %v6374 = vpop.f32.mrf.mxu0
    %v6375 = vadd.f32 %v6263, %v6374
    %6376 = vmatmul.bf16.gmra.mxu0 %v6019
    %v6377 = vpop.f32.mrf.mxu0
    %v6378 = vadd.f32 %v6263, %v6377
    %v6379 = vpop.f32.mrf.mxu0
    %v6380 = vadd.f32 %v6263, %v6379
    %6381 = vmatmul.bf16.gmra.mxu0 %v6020
    %v6382 = vpop.f32.mrf.mxu0
    %v6383 = vadd.f32 %v6263, %v6382
    %v6384 = vpop.f32.mrf.mxu0
    %v6385 = vadd.f32 %v6263, %v6384
    %6386 = vmatmul.bf16.gmra.mxu0 %v6021
    %v6387 = vpop.f32.mrf.mxu0
    %v6388 = vadd.f32 %v6263, %v6387
    %v6389 = vpop.f32.mrf.mxu0
    %v6390 = vadd.f32 %v6263, %v6389
    %6391 = vmatmul.bf16.gmra.mxu0 %v6022
    %v6392 = vpop.f32.mrf.mxu0
    %v6393 = vadd.f32 %v6263, %v6392
    %v6394 = vpop.f32.mrf.mxu0
    %v6395 = vadd.f32 %v6263, %v6394
    %6396 = vmatmul.bf16.gmra.mxu0 %v6023
    %v6397 = vpop.f32.mrf.mxu0
    %v6398 = vadd.f32 %v6263, %v6397
    %v6399 = vpop.f32.mrf.mxu0
    %v6400 = vadd.f32 %v6263, %v6399
    %6401 = vdwg.mxu0
    %v6402 = vmax.f32 %v6323, 0.0
    %v6403 = vmax.f32 %v6325, 0.0
    %v6404 = vmax.f32 %v6328, 0.0
    %v6405 = vmax.f32 %v6330, 0.0
    %v6406 = vmax.f32 %v6333, 0.0
    %v6407 = vmax.f32 %v6335, 0.0
    %v6408 = vmax.f32 %v6338, 0.0
    %v6409 = vmax.f32 %v6340, 0.0
    %v6410 = vmax.f32 %v6343, 0.0
    %v6411 = vmax.f32 %v6345, 0.0
    %v6412 = vmax.f32 %v6348, 0.0
    %v6413 = vmax.f32 %v6350, 0.0
    %v6414 = vmax.f32 %v6353, 0.0
    %v6415 = vmax.f32 %v6355, 0.0
    %v6416 = vmax.f32 %v6358, 0.0
    %v6417 = vmax.f32 %v6360, 0.0
    %v6418 = vmax.f32 %v6363, 0.0
    %v6419 = vmax.f32 %v6365, 0.0
    %v6420 = vmax.f32 %v6368, 0.0
    %v6421 = vmax.f32 %v6370, 0.0
    %v6422 = vmax.f32 %v6373, 0.0
    %v6423 = vmax.f32 %v6375, 0.0
    %v6424 = vmax.f32 %v6378, 0.0
    %v6425 = vmax.f32 %v6380, 0.0
    %v6426 = vmax.f32 %v6383, 0.0
    %v6427 = vmax.f32 %v6385, 0.0
    %v6428 = vmax.f32 %v6388, 0.0
    %v6429 = vmax.f32 %v6390, 0.0
    %v6430 = vmax.f32 %v6393, 0.0
    %v6431 = vmax.f32 %v6395, 0.0
    %v6432 = vmax.f32 %v6398, 0.0
    %v6433 = vmax.f32 %v6400, 0.0
    %v6434 = vpack.c.bf16 %v6403, %v6402
    %v6435 = vpack.c.bf16 %v6405, %v6404
    %v6436 = vpack.c.bf16 %v6407, %v6406
    %v6437 = vpack.c.bf16 %v6409, %v6408
    %v6438 = vpack.c.bf16 %v6411, %v6410
    %v6439 = vpack.c.bf16 %v6413, %v6412
    %v6440 = vpack.c.bf16 %v6415, %v6414
    %v6441 = vpack.c.bf16 %v6417, %v6416
    %v6442 = vpack.c.bf16 %v6419, %v6418
    %v6443 = vpack.c.bf16 %v6421, %v6420
    %v6444 = vpack.c.bf16 %v6423, %v6422
    %v6445 = vpack.c.bf16 %v6425, %v6424
    %v6446 = vpack.c.bf16 %v6427, %v6426
    %v6447 = vpack.c.bf16 %v6429, %v6428
    %v6448 = vpack.c.bf16 %v6431, %v6430
    %v6449 = vpack.c.bf16 %v6433, %v6432
    %v6450 = vld [vmem:[#allocation12 + $0x40] sm:$0xf]
    %v6451 = vld [vmem:[#allocation12 + $0x44] sm:$0xf]
    %v6452 = vld [vmem:[#allocation12 + $0x48] sm:$0xf]
    %v6453 = vld [vmem:[#allocation12 + $0x4c] sm:$0xf]
    %v6454 = vld [vmem:[#allocation12 + $0x50] sm:$0xf]
    %v6455 = vld [vmem:[#allocation12 + $0x54] sm:$0xf]
    %v6456 = vld [vmem:[#allocation12 + $0x58] sm:$0xf]
    %v6457 = vld [vmem:[#allocation12 + $0x5c] sm:$0xf]
    %v6458 = vld [vmem:[#allocation12 + $0x60] sm:$0xf]
    %v6459 = vld [vmem:[#allocation12 + $0x64] sm:$0xf]
    %v6460 = vld [vmem:[#allocation12 + $0x68] sm:$0xf]
    %v6461 = vld [vmem:[#allocation12 + $0x6c] sm:$0xf]
    %v6462 = vld [vmem:[#allocation12 + $0x70] sm:$0xf]
    %v6463 = vld [vmem:[#allocation12 + $0x74] sm:$0xf]
    %v6464 = vld [vmem:[#allocation12 + $0x78] sm:$0xf]
    %v6465 = vld [vmem:[#allocation12 + $0x7c] sm:$0xf]
    %v6482 = vunpack.c.l.b16 %v6450
    %v6483 = vunpack.c.l.b16 %v6451
    %v6484 = vunpack.c.l.b16 %v6452
    %v6485 = vunpack.c.l.b16 %v6453
    %v6486 = vunpack.c.l.b16 %v6454
    %v6487 = vunpack.c.l.b16 %v6455
    %v6488 = vunpack.c.l.b16 %v6456
    %v6489 = vunpack.c.l.b16 %v6457
    %v6490 = vunpack.c.l.b16 %v6458
    %v6491 = vunpack.c.l.b16 %v6459
    %v6492 = vunpack.c.l.b16 %v6460
    %v6493 = vunpack.c.l.b16 %v6461
    %v6494 = vunpack.c.l.b16 %v6462
    %v6495 = vunpack.c.l.b16 %v6463
    %v6496 = vunpack.c.l.b16 %v6464
    %v6497 = vunpack.c.l.b16 %v6465
    %v6498 = vpack.c.b16 %v6483, %v6482
    %v6499 = vpack.c.b16 %v6485, %v6484
    %v6500 = vpack.c.b16 %v6487, %v6486
    %v6501 = vpack.c.b16 %v6489, %v6488
    %v6502 = vpack.c.b16 %v6491, %v6490
    %v6503 = vpack.c.b16 %v6493, %v6492
    %v6504 = vpack.c.b16 %v6495, %v6494
    %v6505 = vpack.c.b16 %v6497, %v6496
    %6514 = vmatpush.bf16.msra.mxu0 %v6505
    %6515 = vmatpush.bf16.msra.mxu0 %v6504
    %6516 = vmatpush.bf16.msra.mxu0 %v6503
    %6517 = vmatpush.bf16.msra.mxu0 %v6502
    %6518 = vmatpush.bf16.msra.mxu0 %v6501
    %6519 = vmatpush.bf16.msra.mxu0 %v6500
    %6520 = vmatpush.bf16.msra.mxu0 %v6499
    %6521 = vmatpush.bf16.msra.mxu0 %v6498
    %6522 = vmatmul.bf16.gmra.mxu0 %v6434
    %v6523 = vpop.f32.mrf.mxu0
    %v6524 = vadd.f32 0.0, %v6523
    %v6525 = vpop.f32.mrf.mxu0
    %v6526 = vadd.f32 0.0, %v6525
    %6527 = vmatmul.bf16.gmra.mxu0 %v6435
    %v6528 = vpop.f32.mrf.mxu0
    %v6529 = vadd.f32 0.0, %v6528
    %v6530 = vpop.f32.mrf.mxu0
    %v6531 = vadd.f32 0.0, %v6530
    %6532 = vmatmul.bf16.gmra.mxu0 %v6436
    %v6533 = vpop.f32.mrf.mxu0
    %v6534 = vadd.f32 0.0, %v6533
    %v6535 = vpop.f32.mrf.mxu0
    %v6536 = vadd.f32 0.0, %v6535
    %6537 = vmatmul.bf16.gmra.mxu0 %v6437
    %v6538 = vpop.f32.mrf.mxu0
    %v6539 = vadd.f32 0.0, %v6538
    %v6540 = vpop.f32.mrf.mxu0
    %v6541 = vadd.f32 0.0, %v6540
    %6542 = vmatmul.bf16.gmra.mxu0 %v6438
    %v6543 = vpop.f32.mrf.mxu0
    %v6544 = vadd.f32 0.0, %v6543
    %v6545 = vpop.f32.mrf.mxu0
    %v6546 = vadd.f32 0.0, %v6545
    %6547 = vmatmul.bf16.gmra.mxu0 %v6439
    %v6548 = vpop.f32.mrf.mxu0
    %v6549 = vadd.f32 0.0, %v6548
    %v6550 = vpop.f32.mrf.mxu0
    %v6551 = vadd.f32 0.0, %v6550
    %6552 = vmatmul.bf16.gmra.mxu0 %v6440
    %v6553 = vpop.f32.mrf.mxu0
    %v6554 = vadd.f32 0.0, %v6553
    %v6555 = vpop.f32.mrf.mxu0
    %v6556 = vadd.f32 0.0, %v6555
    %6557 = vmatmul.bf16.gmra.mxu0 %v6441
    %v6558 = vpop.f32.mrf.mxu0
    %v6559 = vadd.f32 0.0, %v6558
    %v6560 = vpop.f32.mrf.mxu0
    %v6561 = vadd.f32 0.0, %v6560
    %6562 = vmatmul.bf16.gmra.mxu0 %v6442
    %v6563 = vpop.f32.mrf.mxu0
    %v6564 = vadd.f32 0.0, %v6563
    %v6565 = vpop.f32.mrf.mxu0
    %v6566 = vadd.f32 0.0, %v6565
    %6567 = vmatmul.bf16.gmra.mxu0 %v6443
    %v6568 = vpop.f32.mrf.mxu0
    %v6569 = vadd.f32 0.0, %v6568
    %v6570 = vpop.f32.mrf.mxu0
    %v6571 = vadd.f32 0.0, %v6570
    %6572 = vmatmul.bf16.gmra.mxu0 %v6444
    %v6573 = vpop.f32.mrf.mxu0
    %v6574 = vadd.f32 0.0, %v6573
    %v6575 = vpop.f32.mrf.mxu0
    %v6576 = vadd.f32 0.0, %v6575
    %6577 = vmatmul.bf16.gmra.mxu0 %v6445
    %v6578 = vpop.f32.mrf.mxu0
    %v6579 = vadd.f32 0.0, %v6578
    %v6580 = vpop.f32.mrf.mxu0
    %v6581 = vadd.f32 0.0, %v6580
    %6582 = vmatmul.bf16.gmra.mxu0 %v6446
    %v6583 = vpop.f32.mrf.mxu0
    %v6584 = vadd.f32 0.0, %v6583
    %v6585 = vpop.f32.mrf.mxu0
    %v6586 = vadd.f32 0.0, %v6585
    %6587 = vmatmul.bf16.gmra.mxu0 %v6447
    %v6588 = vpop.f32.mrf.mxu0
    %v6589 = vadd.f32 0.0, %v6588
    %v6590 = vpop.f32.mrf.mxu0
    %v6591 = vadd.f32 0.0, %v6590
    %6592 = vmatmul.bf16.gmra.mxu0 %v6448
    %v6593 = vpop.f32.mrf.mxu0
    %v6594 = vadd.f32 0.0, %v6593
    %v6595 = vpop.f32.mrf.mxu0
    %v6596 = vadd.f32 0.0, %v6595
    %6597 = vmatmul.bf16.gmra.mxu0 %v6449
    %v6598 = vpop.f32.mrf.mxu0
    %v6599 = vadd.f32 0.0, %v6598
    %v6600 = vpop.f32.mrf.mxu0
    %v6601 = vadd.f32 0.0, %v6600
    %6602 = vdwg.mxu0
    %v6619 = vunpack.c.l.b16 %v6229
    %v6620 = vunpack.c.l.b16 %v6230
    %v6621 = vunpack.c.l.b16 %v6231
    %v6622 = vunpack.c.l.b16 %v6232
    %v6623 = vunpack.c.l.b16 %v6233
    %v6624 = vunpack.c.l.b16 %v6234
    %v6625 = vunpack.c.l.b16 %v6235
    %v6626 = vunpack.c.l.b16 %v6236
    %v6627 = vunpack.c.l.b16 %v6237
    %v6628 = vunpack.c.l.b16 %v6238
    %v6629 = vunpack.c.l.b16 %v6239
    %v6630 = vunpack.c.l.b16 %v6240
    %v6631 = vunpack.c.l.b16 %v6241
    %v6632 = vunpack.c.l.b16 %v6242
    %v6633 = vunpack.c.l.b16 %v6243
    %v6634 = vunpack.c.l.b16 %v6244
    %v6635 = vpack.c.b16 %v6620, %v6619
    %v6636 = vpack.c.b16 %v6622, %v6621
    %v6637 = vpack.c.b16 %v6624, %v6623
    %v6638 = vpack.c.b16 %v6626, %v6625
    %v6639 = vpack.c.b16 %v6628, %v6627
    %v6640 = vpack.c.b16 %v6630, %v6629
    %v6641 = vpack.c.b16 %v6632, %v6631
    %v6642 = vpack.c.b16 %v6634, %v6633
    %6651 = vmatpush.bf16.msra.mxu0 %v6642
    %6652 = vmatpush.bf16.msra.mxu0 %v6641
    %6653 = vmatpush.bf16.msra.mxu0 %v6640
    %6654 = vmatpush.bf16.msra.mxu0 %v6639
    %6655 = vmatpush.bf16.msra.mxu0 %v6638
    %6656 = vmatpush.bf16.msra.mxu0 %v6637
    %6657 = vmatpush.bf16.msra.mxu0 %v6636
    %6658 = vmatpush.bf16.msra.mxu0 %v6635
    %6659 = vmatmul.bf16.gmra.mxu0 %v6213
    %v6660 = vpop.f32.mrf.mxu0
    %v6661 = vadd.f32 %v6524, %v6660
    %v6662 = vpop.f32.mrf.mxu0
    %v6663 = vadd.f32 %v6526, %v6662
    %6664 = vmatmul.bf16.gmra.mxu0 %v6214
    %v6665 = vpop.f32.mrf.mxu0
    %v6666 = vadd.f32 %v6529, %v6665
    %v6667 = vpop.f32.mrf.mxu0
    %v6668 = vadd.f32 %v6531, %v6667
    %6669 = vmatmul.bf16.gmra.mxu0 %v6215
    %v6670 = vpop.f32.mrf.mxu0
    %v6671 = vadd.f32 %v6534, %v6670
    %v6672 = vpop.f32.mrf.mxu0
    %v6673 = vadd.f32 %v6536, %v6672
    %6674 = vmatmul.bf16.gmra.mxu0 %v6216
    %v6675 = vpop.f32.mrf.mxu0
    %v6676 = vadd.f32 %v6539, %v6675
    %v6677 = vpop.f32.mrf.mxu0
    %v6678 = vadd.f32 %v6541, %v6677
    %6679 = vmatmul.bf16.gmra.mxu0 %v6217
    %v6680 = vpop.f32.mrf.mxu0
    %v6681 = vadd.f32 %v6544, %v6680
    %v6682 = vpop.f32.mrf.mxu0
    %v6683 = vadd.f32 %v6546, %v6682
    %6684 = vmatmul.bf16.gmra.mxu0 %v6218
    %v6685 = vpop.f32.mrf.mxu0
    %v6686 = vadd.f32 %v6549, %v6685
    %v6687 = vpop.f32.mrf.mxu0
    %v6688 = vadd.f32 %v6551, %v6687
    %6689 = vmatmul.bf16.gmra.mxu0 %v6219
    %v6690 = vpop.f32.mrf.mxu0
    %v6691 = vadd.f32 %v6554, %v6690
    %v6692 = vpop.f32.mrf.mxu0
    %v6693 = vadd.f32 %v6556, %v6692
    %6694 = vmatmul.bf16.gmra.mxu0 %v6220
    %v6695 = vpop.f32.mrf.mxu0
    %v6696 = vadd.f32 %v6559, %v6695
    %v6697 = vpop.f32.mrf.mxu0
    %v6698 = vadd.f32 %v6561, %v6697
    %6699 = vmatmul.bf16.gmra.mxu0 %v6221
    %v6700 = vpop.f32.mrf.mxu0
    %v6701 = vadd.f32 %v6564, %v6700
    %v6702 = vpop.f32.mrf.mxu0
    %v6703 = vadd.f32 %v6566, %v6702
    %6704 = vmatmul.bf16.gmra.mxu0 %v6222
    %v6705 = vpop.f32.mrf.mxu0
    %v6706 = vadd.f32 %v6569, %v6705
    %v6707 = vpop.f32.mrf.mxu0
    %v6708 = vadd.f32 %v6571, %v6707
    %6709 = vmatmul.bf16.gmra.mxu0 %v6223
    %v6710 = vpop.f32.mrf.mxu0
    %v6711 = vadd.f32 %v6574, %v6710
    %v6712 = vpop.f32.mrf.mxu0
    %v6713 = vadd.f32 %v6576, %v6712
    %6714 = vmatmul.bf16.gmra.mxu0 %v6224
    %v6715 = vpop.f32.mrf.mxu0
    %v6716 = vadd.f32 %v6579, %v6715
    %v6717 = vpop.f32.mrf.mxu0
    %v6718 = vadd.f32 %v6581, %v6717
    %6719 = vmatmul.bf16.gmra.mxu0 %v6225
    %v6720 = vpop.f32.mrf.mxu0
    %v6721 = vadd.f32 %v6584, %v6720
    %v6722 = vpop.f32.mrf.mxu0
    %v6723 = vadd.f32 %v6586, %v6722
    %6724 = vmatmul.bf16.gmra.mxu0 %v6226
    %v6725 = vpop.f32.mrf.mxu0
    %v6726 = vadd.f32 %v6589, %v6725
    %v6727 = vpop.f32.mrf.mxu0
    %v6728 = vadd.f32 %v6591, %v6727
    %6729 = vmatmul.bf16.gmra.mxu0 %v6227
    %v6730 = vpop.f32.mrf.mxu0
    %v6731 = vadd.f32 %v6594, %v6730
    %v6732 = vpop.f32.mrf.mxu0
    %v6733 = vadd.f32 %v6596, %v6732
    %6734 = vmatmul.bf16.gmra.mxu0 %v6228
    %v6735 = vpop.f32.mrf.mxu0
    %v6736 = vadd.f32 %v6599, %v6735
    %v6737 = vpop.f32.mrf.mxu0
    %v6738 = vadd.f32 %v6601, %v6737
    %6739 = vdwg.mxu0
    %v6740 = vld [vmem:[#allocation9 + $0x8] sm:$0xf]
    %v6741 = vld [vmem:[#allocation9 + $0x18] sm:$0xf]
    %v6742 = vld [vmem:[#allocation9 + $0x28] sm:$0xf]
    %v6743 = vld [vmem:[#allocation9 + $0x38] sm:$0xf]
    %v6744 = vld [vmem:[#allocation9 + $0x48] sm:$0xf]
    %v6745 = vld [vmem:[#allocation9 + $0x58] sm:$0xf]
    %v6746 = vld [vmem:[#allocation9 + $0x68] sm:$0xf]
    %v6747 = vld [vmem:[#allocation9 + $0x78] sm:$0xf]
    %v6748 = vld [vmem:[#allocation9 + $0x88] sm:$0xf]
    %v6749 = vld [vmem:[#allocation9 + $0x98] sm:$0xf]
    %v6750 = vld [vmem:[#allocation9 + $0xa8] sm:$0xf]
    %v6751 = vld [vmem:[#allocation9 + $0xb8] sm:$0xf]
    %v6752 = vld [vmem:[#allocation9 + $0xc8] sm:$0xf]
    %v6753 = vld [vmem:[#allocation9 + $0xd8] sm:$0xf]
    %v6754 = vld [vmem:[#allocation9 + $0xe8] sm:$0xf]
    %v6755 = vld [vmem:[#allocation9 + $0xf8] sm:$0xf]
    %v6756 = vld [vmem:[#allocation11 + $0x2] sm:$0x1]
    %v6758 = vperm.slane %v6756, 0
    %v6776 = vunpack.c.l.b16 %v6740
    %v6777 = vunpack.c.l.b16 %v6741
    %v6778 = vunpack.c.l.b16 %v6742
    %v6779 = vunpack.c.l.b16 %v6743
    %v6780 = vunpack.c.l.b16 %v6744
    %v6781 = vunpack.c.l.b16 %v6745
    %v6782 = vunpack.c.l.b16 %v6746
    %v6783 = vunpack.c.l.b16 %v6747
    %v6784 = vunpack.c.l.b16 %v6748
    %v6785 = vunpack.c.l.b16 %v6749
    %v6786 = vunpack.c.l.b16 %v6750
    %v6787 = vunpack.c.l.b16 %v6751
    %v6788 = vunpack.c.l.b16 %v6752
    %v6789 = vunpack.c.l.b16 %v6753
    %v6790 = vunpack.c.l.b16 %v6754
    %v6791 = vunpack.c.l.b16 %v6755
    %v6792 = vpack.c.b16 %v6777, %v6776
    %v6793 = vpack.c.b16 %v6779, %v6778
    %v6794 = vpack.c.b16 %v6781, %v6780
    %v6795 = vpack.c.b16 %v6783, %v6782
    %v6796 = vpack.c.b16 %v6785, %v6784
    %v6797 = vpack.c.b16 %v6787, %v6786
    %v6798 = vpack.c.b16 %v6789, %v6788
    %v6799 = vpack.c.b16 %v6791, %v6790
    %6808 = vmatpush.bf16.msra.mxu0 %v6799
    %6809 = vmatpush.bf16.msra.mxu0 %v6798
    %6810 = vmatpush.bf16.msra.mxu0 %v6797
    %6811 = vmatpush.bf16.msra.mxu0 %v6796
    %6812 = vmatpush.bf16.msra.mxu0 %v6795
    %6813 = vmatpush.bf16.msra.mxu0 %v6794
    %6814 = vmatpush.bf16.msra.mxu0 %v6793
    %6815 = vmatpush.bf16.msra.mxu0 %v6792
    %6816 = vmatmul.bf16.gmra.mxu0 %v6008
    %v6817 = vpop.f32.mrf.mxu0
    %v6818 = vadd.f32 %v6758, %v6817
    %v6819 = vpop.f32.mrf.mxu0
    %v6820 = vadd.f32 %v6758, %v6819
    %6821 = vmatmul.bf16.gmra.mxu0 %v6009
    %v6822 = vpop.f32.mrf.mxu0
    %v6823 = vadd.f32 %v6758, %v6822
    %v6824 = vpop.f32.mrf.mxu0
    %v6825 = vadd.f32 %v6758, %v6824
    %6826 = vmatmul.bf16.gmra.mxu0 %v6010
    %v6827 = vpop.f32.mrf.mxu0
    %v6828 = vadd.f32 %v6758, %v6827
    %v6829 = vpop.f32.mrf.mxu0
    %v6830 = vadd.f32 %v6758, %v6829
    %6831 = vmatmul.bf16.gmra.mxu0 %v6011
    %v6832 = vpop.f32.mrf.mxu0
    %v6833 = vadd.f32 %v6758, %v6832
    %v6834 = vpop.f32.mrf.mxu0
    %v6835 = vadd.f32 %v6758, %v6834
    %6836 = vmatmul.bf16.gmra.mxu0 %v6012
    %v6837 = vpop.f32.mrf.mxu0
    %v6838 = vadd.f32 %v6758, %v6837
    %v6839 = vpop.f32.mrf.mxu0
    %v6840 = vadd.f32 %v6758, %v6839
    %6841 = vmatmul.bf16.gmra.mxu0 %v6013
    %v6842 = vpop.f32.mrf.mxu0
    %v6843 = vadd.f32 %v6758, %v6842
    %v6844 = vpop.f32.mrf.mxu0
    %v6845 = vadd.f32 %v6758, %v6844
    %6846 = vmatmul.bf16.gmra.mxu0 %v6014
    %v6847 = vpop.f32.mrf.mxu0
    %v6848 = vadd.f32 %v6758, %v6847
    %v6849 = vpop.f32.mrf.mxu0
    %v6850 = vadd.f32 %v6758, %v6849
    %6851 = vmatmul.bf16.gmra.mxu0 %v6015
    %v6852 = vpop.f32.mrf.mxu0
    %v6853 = vadd.f32 %v6758, %v6852
    %v6854 = vpop.f32.mrf.mxu0
    %v6855 = vadd.f32 %v6758, %v6854
    %6856 = vmatmul.bf16.gmra.mxu0 %v6016
    %v6857 = vpop.f32.mrf.mxu0
    %v6858 = vadd.f32 %v6758, %v6857
    %v6859 = vpop.f32.mrf.mxu0
    %v6860 = vadd.f32 %v6758, %v6859
    %6861 = vmatmul.bf16.gmra.mxu0 %v6017
    %v6862 = vpop.f32.mrf.mxu0
    %v6863 = vadd.f32 %v6758, %v6862
    %v6864 = vpop.f32.mrf.mxu0
    %v6865 = vadd.f32 %v6758, %v6864
    %6866 = vmatmul.bf16.gmra.mxu0 %v6018
    %v6867 = vpop.f32.mrf.mxu0
    %v6868 = vadd.f32 %v6758, %v6867
    %v6869 = vpop.f32.mrf.mxu0
    %v6870 = vadd.f32 %v6758, %v6869
    %6871 = vmatmul.bf16.gmra.mxu0 %v6019
    %v6872 = vpop.f32.mrf.mxu0
    %v6873 = vadd.f32 %v6758, %v6872
    %v6874 = vpop.f32.mrf.mxu0
    %v6875 = vadd.f32 %v6758, %v6874
    %6876 = vmatmul.bf16.gmra.mxu0 %v6020
    %v6877 = vpop.f32.mrf.mxu0
    %v6878 = vadd.f32 %v6758, %v6877
    %v6879 = vpop.f32.mrf.mxu0
    %v6880 = vadd.f32 %v6758, %v6879
    %6881 = vmatmul.bf16.gmra.mxu0 %v6021
    %v6882 = vpop.f32.mrf.mxu0
    %v6883 = vadd.f32 %v6758, %v6882
    %v6884 = vpop.f32.mrf.mxu0
    %v6885 = vadd.f32 %v6758, %v6884
    %6886 = vmatmul.bf16.gmra.mxu0 %v6022
    %v6887 = vpop.f32.mrf.mxu0
    %v6888 = vadd.f32 %v6758, %v6887
    %v6889 = vpop.f32.mrf.mxu0
    %v6890 = vadd.f32 %v6758, %v6889
    %6891 = vmatmul.bf16.gmra.mxu0 %v6023
    %v6892 = vpop.f32.mrf.mxu0
    %v6893 = vadd.f32 %v6758, %v6892
    %v6894 = vpop.f32.mrf.mxu0
    %v6895 = vadd.f32 %v6758, %v6894
    %6896 = vdwg.mxu0
    %v6897 = vmax.f32 %v6818, 0.0
    %v6898 = vmax.f32 %v6820, 0.0
    %v6899 = vmax.f32 %v6823, 0.0
    %v6900 = vmax.f32 %v6825, 0.0
    %v6901 = vmax.f32 %v6828, 0.0
    %v6902 = vmax.f32 %v6830, 0.0
    %v6903 = vmax.f32 %v6833, 0.0
    %v6904 = vmax.f32 %v6835, 0.0
    %v6905 = vmax.f32 %v6838, 0.0
    %v6906 = vmax.f32 %v6840, 0.0
    %v6907 = vmax.f32 %v6843, 0.0
    %v6908 = vmax.f32 %v6845, 0.0
    %v6909 = vmax.f32 %v6848, 0.0
    %v6910 = vmax.f32 %v6850, 0.0
    %v6911 = vmax.f32 %v6853, 0.0
    %v6912 = vmax.f32 %v6855, 0.0
    %v6913 = vmax.f32 %v6858, 0.0
    %v6914 = vmax.f32 %v6860, 0.0
    %v6915 = vmax.f32 %v6863, 0.0
    %v6916 = vmax.f32 %v6865, 0.0
    %v6917 = vmax.f32 %v6868, 0.0
    %v6918 = vmax.f32 %v6870, 0.0
    %v6919 = vmax.f32 %v6873, 0.0
    %v6920 = vmax.f32 %v6875, 0.0
    %v6921 = vmax.f32 %v6878, 0.0
    %v6922 = vmax.f32 %v6880, 0.0
    %v6923 = vmax.f32 %v6883, 0.0
    %v6924 = vmax.f32 %v6885, 0.0
    %v6925 = vmax.f32 %v6888, 0.0
    %v6926 = vmax.f32 %v6890, 0.0
    %v6927 = vmax.f32 %v6893, 0.0
    %v6928 = vmax.f32 %v6895, 0.0
    %v6929 = vpack.c.bf16 %v6898, %v6897
    %v6930 = vpack.c.bf16 %v6900, %v6899
    %v6931 = vpack.c.bf16 %v6902, %v6901
    %v6932 = vpack.c.bf16 %v6904, %v6903
    %v6933 = vpack.c.bf16 %v6906, %v6905
    %v6934 = vpack.c.bf16 %v6908, %v6907
    %v6935 = vpack.c.bf16 %v6910, %v6909
    %v6936 = vpack.c.bf16 %v6912, %v6911
    %v6937 = vpack.c.bf16 %v6914, %v6913
    %v6938 = vpack.c.bf16 %v6916, %v6915
    %v6939 = vpack.c.bf16 %v6918, %v6917
    %v6940 = vpack.c.bf16 %v6920, %v6919
    %v6941 = vpack.c.bf16 %v6922, %v6921
    %v6942 = vpack.c.bf16 %v6924, %v6923
    %v6943 = vpack.c.bf16 %v6926, %v6925
    %v6944 = vpack.c.bf16 %v6928, %v6927
    %v6945 = vld [vmem:[#allocation12 + $0x80] sm:$0xf]
    %v6946 = vld [vmem:[#allocation12 + $0x84] sm:$0xf]
    %v6947 = vld [vmem:[#allocation12 + $0x88] sm:$0xf]
    %v6948 = vld [vmem:[#allocation12 + $0x8c] sm:$0xf]
    %v6949 = vld [vmem:[#allocation12 + $0x90] sm:$0xf]
    %v6950 = vld [vmem:[#allocation12 + $0x94] sm:$0xf]
    %v6951 = vld [vmem:[#allocation12 + $0x98] sm:$0xf]
    %v6952 = vld [vmem:[#allocation12 + $0x9c] sm:$0xf]
    %v6953 = vld [vmem:[#allocation12 + $0xa0] sm:$0xf]
    %v6954 = vld [vmem:[#allocation12 + $0xa4] sm:$0xf]
    %v6955 = vld [vmem:[#allocation12 + $0xa8] sm:$0xf]
    %v6956 = vld [vmem:[#allocation12 + $0xac] sm:$0xf]
    %v6957 = vld [vmem:[#allocation12 + $0xb0] sm:$0xf]
    %v6958 = vld [vmem:[#allocation12 + $0xb4] sm:$0xf]
    %v6959 = vld [vmem:[#allocation12 + $0xb8] sm:$0xf]
    %v6960 = vld [vmem:[#allocation12 + $0xbc] sm:$0xf]
    %v6977 = vunpack.c.l.b16 %v6945
    %v6978 = vunpack.c.l.b16 %v6946
    %v6979 = vunpack.c.l.b16 %v6947
    %v6980 = vunpack.c.l.b16 %v6948
    %v6981 = vunpack.c.l.b16 %v6949
    %v6982 = vunpack.c.l.b16 %v6950
    %v6983 = vunpack.c.l.b16 %v6951
    %v6984 = vunpack.c.l.b16 %v6952
    %v6985 = vunpack.c.l.b16 %v6953
    %v6986 = vunpack.c.l.b16 %v6954
    %v6987 = vunpack.c.l.b16 %v6955
    %v6988 = vunpack.c.l.b16 %v6956
    %v6989 = vunpack.c.l.b16 %v6957
    %v6990 = vunpack.c.l.b16 %v6958
    %v6991 = vunpack.c.l.b16 %v6959
    %v6992 = vunpack.c.l.b16 %v6960
    %v6993 = vpack.c.b16 %v6978, %v6977
    %v6994 = vpack.c.b16 %v6980, %v6979
    %v6995 = vpack.c.b16 %v6982, %v6981
    %v6996 = vpack.c.b16 %v6984, %v6983
    %v6997 = vpack.c.b16 %v6986, %v6985
    %v6998 = vpack.c.b16 %v6988, %v6987
    %v6999 = vpack.c.b16 %v6990, %v6989
    %v7000 = vpack.c.b16 %v6992, %v6991
    %7009 = vmatpush.bf16.msra.mxu0 %v7000
    %7010 = vmatpush.bf16.msra.mxu0 %v6999
    %7011 = vmatpush.bf16.msra.mxu0 %v6998
    %7012 = vmatpush.bf16.msra.mxu0 %v6997
    %7013 = vmatpush.bf16.msra.mxu0 %v6996
    %7014 = vmatpush.bf16.msra.mxu0 %v6995
    %7015 = vmatpush.bf16.msra.mxu0 %v6994
    %7016 = vmatpush.bf16.msra.mxu0 %v6993
    %7017 = vmatmul.bf16.gmra.mxu0 %v6929
    %v7018 = vpop.f32.mrf.mxu0
    %v7019 = vadd.f32 0.0, %v7018
    %v7020 = vpop.f32.mrf.mxu0
    %v7021 = vadd.f32 0.0, %v7020
    %7022 = vmatmul.bf16.gmra.mxu0 %v6930
    %v7023 = vpop.f32.mrf.mxu0
    %v7024 = vadd.f32 0.0, %v7023
    %v7025 = vpop.f32.mrf.mxu0
    %v7026 = vadd.f32 0.0, %v7025
    %7027 = vmatmul.bf16.gmra.mxu0 %v6931
    %v7028 = vpop.f32.mrf.mxu0
    %v7029 = vadd.f32 0.0, %v7028
    %v7030 = vpop.f32.mrf.mxu0
    %v7031 = vadd.f32 0.0, %v7030
    %7032 = vmatmul.bf16.gmra.mxu0 %v6932
    %v7033 = vpop.f32.mrf.mxu0
    %v7034 = vadd.f32 0.0, %v7033
    %v7035 = vpop.f32.mrf.mxu0
    %v7036 = vadd.f32 0.0, %v7035
    %7037 = vmatmul.bf16.gmra.mxu0 %v6933
    %v7038 = vpop.f32.mrf.mxu0
    %v7039 = vadd.f32 0.0, %v7038
    %v7040 = vpop.f32.mrf.mxu0
    %v7041 = vadd.f32 0.0, %v7040
    %7042 = vmatmul.bf16.gmra.mxu0 %v6934
    %v7043 = vpop.f32.mrf.mxu0
    %v7044 = vadd.f32 0.0, %v7043
    %v7045 = vpop.f32.mrf.mxu0
    %v7046 = vadd.f32 0.0, %v7045
    %7047 = vmatmul.bf16.gmra.mxu0 %v6935
    %v7048 = vpop.f32.mrf.mxu0
    %v7049 = vadd.f32 0.0, %v7048
    %v7050 = vpop.f32.mrf.mxu0
    %v7051 = vadd.f32 0.0, %v7050
    %7052 = vmatmul.bf16.gmra.mxu0 %v6936
    %v7053 = vpop.f32.mrf.mxu0
    %v7054 = vadd.f32 0.0, %v7053
    %v7055 = vpop.f32.mrf.mxu0
    %v7056 = vadd.f32 0.0, %v7055
    %7057 = vmatmul.bf16.gmra.mxu0 %v6937
    %v7058 = vpop.f32.mrf.mxu0
    %v7059 = vadd.f32 0.0, %v7058
    %v7060 = vpop.f32.mrf.mxu0
    %v7061 = vadd.f32 0.0, %v7060
    %7062 = vmatmul.bf16.gmra.mxu0 %v6938
    %v7063 = vpop.f32.mrf.mxu0
    %v7064 = vadd.f32 0.0, %v7063
    %v7065 = vpop.f32.mrf.mxu0
    %v7066 = vadd.f32 0.0, %v7065
    %7067 = vmatmul.bf16.gmra.mxu0 %v6939
    %v7068 = vpop.f32.mrf.mxu0
    %v7069 = vadd.f32 0.0, %v7068
    %v7070 = vpop.f32.mrf.mxu0
    %v7071 = vadd.f32 0.0, %v7070
    %7072 = vmatmul.bf16.gmra.mxu0 %v6940
    %v7073 = vpop.f32.mrf.mxu0
    %v7074 = vadd.f32 0.0, %v7073
    %v7075 = vpop.f32.mrf.mxu0
    %v7076 = vadd.f32 0.0, %v7075
    %7077 = vmatmul.bf16.gmra.mxu0 %v6941
    %v7078 = vpop.f32.mrf.mxu0
    %v7079 = vadd.f32 0.0, %v7078
    %v7080 = vpop.f32.mrf.mxu0
    %v7081 = vadd.f32 0.0, %v7080
    %7082 = vmatmul.bf16.gmra.mxu0 %v6942
    %v7083 = vpop.f32.mrf.mxu0
    %v7084 = vadd.f32 0.0, %v7083
    %v7085 = vpop.f32.mrf.mxu0
    %v7086 = vadd.f32 0.0, %v7085
    %7087 = vmatmul.bf16.gmra.mxu0 %v6943
    %v7088 = vpop.f32.mrf.mxu0
    %v7089 = vadd.f32 0.0, %v7088
    %v7090 = vpop.f32.mrf.mxu0
    %v7091 = vadd.f32 0.0, %v7090
    %7092 = vmatmul.bf16.gmra.mxu0 %v6944
    %v7093 = vpop.f32.mrf.mxu0
    %v7094 = vadd.f32 0.0, %v7093
    %v7095 = vpop.f32.mrf.mxu0
    %v7096 = vadd.f32 0.0, %v7095
    %7097 = vdwg.mxu0
    %v7098 = vadd.f32 %v6661, %v7019
    %v7099 = vadd.f32 %v6663, %v7021
    %v7100 = vadd.f32 %v6666, %v7024
    %v7101 = vadd.f32 %v6668, %v7026
    %v7102 = vadd.f32 %v6671, %v7029
    %v7103 = vadd.f32 %v6673, %v7031
    %v7104 = vadd.f32 %v6676, %v7034
    %v7105 = vadd.f32 %v6678, %v7036
    %v7106 = vadd.f32 %v6681, %v7039
    %v7107 = vadd.f32 %v6683, %v7041
    %v7108 = vadd.f32 %v6686, %v7044
    %v7109 = vadd.f32 %v6688, %v7046
    %v7110 = vadd.f32 %v6691, %v7049
    %v7111 = vadd.f32 %v6693, %v7051
    %v7112 = vadd.f32 %v6696, %v7054
    %v7113 = vadd.f32 %v6698, %v7056
    %v7114 = vadd.f32 %v6701, %v7059
    %v7115 = vadd.f32 %v6703, %v7061
    %v7116 = vadd.f32 %v6706, %v7064
    %v7117 = vadd.f32 %v6708, %v7066
    %v7118 = vadd.f32 %v6711, %v7069
    %v7119 = vadd.f32 %v6713, %v7071
    %v7120 = vadd.f32 %v6716, %v7074
    %v7121 = vadd.f32 %v6718, %v7076
    %v7122 = vadd.f32 %v6721, %v7079
    %v7123 = vadd.f32 %v6723, %v7081
    %v7124 = vadd.f32 %v6726, %v7084
    %v7125 = vadd.f32 %v6728, %v7086
    %v7126 = vadd.f32 %v6731, %v7089
    %v7127 = vadd.f32 %v6733, %v7091
    %v7128 = vadd.f32 %v6736, %v7094
    %v7129 = vadd.f32 %v6738, %v7096
    %v7130 = vld [vmem:[#allocation9 + $0xc] sm:$0xf]
    %v7131 = vld [vmem:[#allocation9 + $0x1c] sm:$0xf]
    %v7132 = vld [vmem:[#allocation9 + $0x2c] sm:$0xf]
    %v7133 = vld [vmem:[#allocation9 + $0x3c] sm:$0xf]
    %v7134 = vld [vmem:[#allocation9 + $0x4c] sm:$0xf]
    %v7135 = vld [vmem:[#allocation9 + $0x5c] sm:$0xf]
    %v7136 = vld [vmem:[#allocation9 + $0x6c] sm:$0xf]
    %v7137 = vld [vmem:[#allocation9 + $0x7c] sm:$0xf]
    %v7138 = vld [vmem:[#allocation9 + $0x8c] sm:$0xf]
    %v7139 = vld [vmem:[#allocation9 + $0x9c] sm:$0xf]
    %v7140 = vld [vmem:[#allocation9 + $0xac] sm:$0xf]
    %v7141 = vld [vmem:[#allocation9 + $0xbc] sm:$0xf]
    %v7142 = vld [vmem:[#allocation9 + $0xcc] sm:$0xf]
    %v7143 = vld [vmem:[#allocation9 + $0xdc] sm:$0xf]
    %v7144 = vld [vmem:[#allocation9 + $0xec] sm:$0xf]
    %v7145 = vld [vmem:[#allocation9 + $0xfc] sm:$0xf]
    %v7146 = vld [vmem:[#allocation11 + $0x3] sm:$0x1]
    %v7148 = vperm.slane %v7146, 0
    %v7166 = vunpack.c.l.b16 %v7130
    %v7167 = vunpack.c.l.b16 %v7131
    %v7168 = vunpack.c.l.b16 %v7132
    %v7169 = vunpack.c.l.b16 %v7133
    %v7170 = vunpack.c.l.b16 %v7134
    %v7171 = vunpack.c.l.b16 %v7135
    %v7172 = vunpack.c.l.b16 %v7136
    %v7173 = vunpack.c.l.b16 %v7137
    %v7174 = vunpack.c.l.b16 %v7138
    %v7175 = vunpack.c.l.b16 %v7139
    %v7176 = vunpack.c.l.b16 %v7140
    %v7177 = vunpack.c.l.b16 %v7141
    %v7178 = vunpack.c.l.b16 %v7142
    %v7179 = vunpack.c.l.b16 %v7143
    %v7180 = vunpack.c.l.b16 %v7144
    %v7181 = vunpack.c.l.b16 %v7145
    %v7182 = vpack.c.b16 %v7167, %v7166
    %v7183 = vpack.c.b16 %v7169, %v7168
    %v7184 = vpack.c.b16 %v7171, %v7170
    %v7185 = vpack.c.b16 %v7173, %v7172
    %v7186 = vpack.c.b16 %v7175, %v7174
    %v7187 = vpack.c.b16 %v7177, %v7176
    %v7188 = vpack.c.b16 %v7179, %v7178
    %v7189 = vpack.c.b16 %v7181, %v7180
    %7198 = vmatpush.bf16.msra.mxu0 %v7189
    %7199 = vmatpush.bf16.msra.mxu0 %v7188
    %7200 = vmatpush.bf16.msra.mxu0 %v7187
    %7201 = vmatpush.bf16.msra.mxu0 %v7186
    %7202 = vmatpush.bf16.msra.mxu0 %v7185
    %7203 = vmatpush.bf16.msra.mxu0 %v7184
    %7204 = vmatpush.bf16.msra.mxu0 %v7183
    %7205 = vmatpush.bf16.msra.mxu0 %v7182
    %7206 = vmatmul.bf16.gmra.mxu0 %v6008
    %v7207 = vpop.f32.mrf.mxu0
    %v7208 = vadd.f32 %v7148, %v7207
    %v7209 = vpop.f32.mrf.mxu0
    %v7210 = vadd.f32 %v7148, %v7209
    %7211 = vmatmul.bf16.gmra.mxu0 %v6009
    %v7212 = vpop.f32.mrf.mxu0
    %v7213 = vadd.f32 %v7148, %v7212
    %v7214 = vpop.f32.mrf.mxu0
    %v7215 = vadd.f32 %v7148, %v7214
    %7216 = vmatmul.bf16.gmra.mxu0 %v6010
    %v7217 = vpop.f32.mrf.mxu0
    %v7218 = vadd.f32 %v7148, %v7217
    %v7219 = vpop.f32.mrf.mxu0
    %v7220 = vadd.f32 %v7148, %v7219
    %7221 = vmatmul.bf16.gmra.mxu0 %v6011
    %v7222 = vpop.f32.mrf.mxu0
    %v7223 = vadd.f32 %v7148, %v7222
    %v7224 = vpop.f32.mrf.mxu0
    %v7225 = vadd.f32 %v7148, %v7224
    %7226 = vmatmul.bf16.gmra.mxu0 %v6012
    %v7227 = vpop.f32.mrf.mxu0
    %v7228 = vadd.f32 %v7148, %v7227
    %v7229 = vpop.f32.mrf.mxu0
    %v7230 = vadd.f32 %v7148, %v7229
    %7231 = vmatmul.bf16.gmra.mxu0 %v6013
    %v7232 = vpop.f32.mrf.mxu0
    %v7233 = vadd.f32 %v7148, %v7232
    %v7234 = vpop.f32.mrf.mxu0
    %v7235 = vadd.f32 %v7148, %v7234
    %7236 = vmatmul.bf16.gmra.mxu0 %v6014
    %v7237 = vpop.f32.mrf.mxu0
    %v7238 = vadd.f32 %v7148, %v7237
    %v7239 = vpop.f32.mrf.mxu0
    %v7240 = vadd.f32 %v7148, %v7239
    %7241 = vmatmul.bf16.gmra.mxu0 %v6015
    %v7242 = vpop.f32.mrf.mxu0
    %v7243 = vadd.f32 %v7148, %v7242
    %v7244 = vpop.f32.mrf.mxu0
    %v7245 = vadd.f32 %v7148, %v7244
    %7246 = vmatmul.bf16.gmra.mxu0 %v6016
    %v7247 = vpop.f32.mrf.mxu0
    %v7248 = vadd.f32 %v7148, %v7247
    %v7249 = vpop.f32.mrf.mxu0
    %v7250 = vadd.f32 %v7148, %v7249
    %7251 = vmatmul.bf16.gmra.mxu0 %v6017
    %v7252 = vpop.f32.mrf.mxu0
    %v7253 = vadd.f32 %v7148, %v7252
    %v7254 = vpop.f32.mrf.mxu0
    %v7255 = vadd.f32 %v7148, %v7254
    %7256 = vmatmul.bf16.gmra.mxu0 %v6018
    %v7257 = vpop.f32.mrf.mxu0
    %v7258 = vadd.f32 %v7148, %v7257
    %v7259 = vpop.f32.mrf.mxu0
    %v7260 = vadd.f32 %v7148, %v7259
    %7261 = vmatmul.bf16.gmra.mxu0 %v6019
    %v7262 = vpop.f32.mrf.mxu0
    %v7263 = vadd.f32 %v7148, %v7262
    %v7264 = vpop.f32.mrf.mxu0
    %v7265 = vadd.f32 %v7148, %v7264
    %7266 = vmatmul.bf16.gmra.mxu0 %v6020
    %v7267 = vpop.f32.mrf.mxu0
    %v7268 = vadd.f32 %v7148, %v7267
    %v7269 = vpop.f32.mrf.mxu0
    %v7270 = vadd.f32 %v7148, %v7269
    %7271 = vmatmul.bf16.gmra.mxu0 %v6021
    %v7272 = vpop.f32.mrf.mxu0
    %v7273 = vadd.f32 %v7148, %v7272
    %v7274 = vpop.f32.mrf.mxu0
    %v7275 = vadd.f32 %v7148, %v7274
    %7276 = vmatmul.bf16.gmra.mxu0 %v6022
    %v7277 = vpop.f32.mrf.mxu0
    %v7278 = vadd.f32 %v7148, %v7277
    %v7279 = vpop.f32.mrf.mxu0
    %v7280 = vadd.f32 %v7148, %v7279
    %7281 = vmatmul.bf16.gmra.mxu0 %v6023
    %v7282 = vpop.f32.mrf.mxu0
    %v7283 = vadd.f32 %v7148, %v7282
    %v7284 = vpop.f32.mrf.mxu0
    %v7285 = vadd.f32 %v7148, %v7284
    %7286 = vdwg.mxu0
    %v7287 = vmax.f32 %v7208, 0.0
    %v7288 = vmax.f32 %v7210, 0.0
    %v7289 = vmax.f32 %v7213, 0.0
    %v7290 = vmax.f32 %v7215, 0.0
    %v7291 = vmax.f32 %v7218, 0.0
    %v7292 = vmax.f32 %v7220, 0.0
    %v7293 = vmax.f32 %v7223, 0.0
    %v7294 = vmax.f32 %v7225, 0.0
    %v7295 = vmax.f32 %v7228, 0.0
    %v7296 = vmax.f32 %v7230, 0.0
    %v7297 = vmax.f32 %v7233, 0.0
    %v7298 = vmax.f32 %v7235, 0.0
    %v7299 = vmax.f32 %v7238, 0.0
    %v7300 = vmax.f32 %v7240, 0.0
    %v7301 = vmax.f32 %v7243, 0.0
    %v7302 = vmax.f32 %v7245, 0.0
    %v7303 = vmax.f32 %v7248, 0.0
    %v7304 = vmax.f32 %v7250, 0.0
    %v7305 = vmax.f32 %v7253, 0.0
    %v7306 = vmax.f32 %v7255, 0.0
    %v7307 = vmax.f32 %v7258, 0.0
    %v7308 = vmax.f32 %v7260, 0.0
    %v7309 = vmax.f32 %v7263, 0.0
    %v7310 = vmax.f32 %v7265, 0.0
    %v7311 = vmax.f32 %v7268, 0.0
    %v7312 = vmax.f32 %v7270, 0.0
    %v7313 = vmax.f32 %v7273, 0.0
    %v7314 = vmax.f32 %v7275, 0.0
    %v7315 = vmax.f32 %v7278, 0.0
    %v7316 = vmax.f32 %v7280, 0.0
    %v7317 = vmax.f32 %v7283, 0.0
    %v7318 = vmax.f32 %v7285, 0.0
    %v7319 = vpack.c.bf16 %v7288, %v7287
    %v7320 = vpack.c.bf16 %v7290, %v7289
    %v7321 = vpack.c.bf16 %v7292, %v7291
    %v7322 = vpack.c.bf16 %v7294, %v7293
    %v7323 = vpack.c.bf16 %v7296, %v7295
    %v7324 = vpack.c.bf16 %v7298, %v7297
    %v7325 = vpack.c.bf16 %v7300, %v7299
    %v7326 = vpack.c.bf16 %v7302, %v7301
    %v7327 = vpack.c.bf16 %v7304, %v7303
    %v7328 = vpack.c.bf16 %v7306, %v7305
    %v7329 = vpack.c.bf16 %v7308, %v7307
    %v7330 = vpack.c.bf16 %v7310, %v7309
    %v7331 = vpack.c.bf16 %v7312, %v7311
    %v7332 = vpack.c.bf16 %v7314, %v7313
    %v7333 = vpack.c.bf16 %v7316, %v7315
    %v7334 = vpack.c.bf16 %v7318, %v7317
    %v7335 = vld [vmem:[#allocation12 + $0xc0] sm:$0xf]
    %v7336 = vld [vmem:[#allocation12 + $0xc4] sm:$0xf]
    %v7337 = vld [vmem:[#allocation12 + $0xc8] sm:$0xf]
    %v7338 = vld [vmem:[#allocation12 + $0xcc] sm:$0xf]
    %v7339 = vld [vmem:[#allocation12 + $0xd0] sm:$0xf]
    %v7340 = vld [vmem:[#allocation12 + $0xd4] sm:$0xf]
    %v7341 = vld [vmem:[#allocation12 + $0xd8] sm:$0xf]
    %v7342 = vld [vmem:[#allocation12 + $0xdc] sm:$0xf]
    %v7343 = vld [vmem:[#allocation12 + $0xe0] sm:$0xf]
    %v7344 = vld [vmem:[#allocation12 + $0xe4] sm:$0xf]
    %v7345 = vld [vmem:[#allocation12 + $0xe8] sm:$0xf]
    %v7346 = vld [vmem:[#allocation12 + $0xec] sm:$0xf]
    %v7347 = vld [vmem:[#allocation12 + $0xf0] sm:$0xf]
    %v7348 = vld [vmem:[#allocation12 + $0xf4] sm:$0xf]
    %v7349 = vld [vmem:[#allocation12 + $0xf8] sm:$0xf]
    %v7350 = vld [vmem:[#allocation12 + $0xfc] sm:$0xf]
    %v7367 = vunpack.c.l.b16 %v7335
    %v7368 = vunpack.c.l.b16 %v7336
    %v7369 = vunpack.c.l.b16 %v7337
    %v7370 = vunpack.c.l.b16 %v7338
    %v7371 = vunpack.c.l.b16 %v7339
    %v7372 = vunpack.c.l.b16 %v7340
    %v7373 = vunpack.c.l.b16 %v7341
    %v7374 = vunpack.c.l.b16 %v7342
    %v7375 = vunpack.c.l.b16 %v7343
    %v7376 = vunpack.c.l.b16 %v7344
    %v7377 = vunpack.c.l.b16 %v7345
    %v7378 = vunpack.c.l.b16 %v7346
    %v7379 = vunpack.c.l.b16 %v7347
    %v7380 = vunpack.c.l.b16 %v7348
    %v7381 = vunpack.c.l.b16 %v7349
    %v7382 = vunpack.c.l.b16 %v7350
    %v7383 = vpack.c.b16 %v7368, %v7367
    %v7384 = vpack.c.b16 %v7370, %v7369
    %v7385 = vpack.c.b16 %v7372, %v7371
    %v7386 = vpack.c.b16 %v7374, %v7373
    %v7387 = vpack.c.b16 %v7376, %v7375
    %v7388 = vpack.c.b16 %v7378, %v7377
    %v7389 = vpack.c.b16 %v7380, %v7379
    %v7390 = vpack.c.b16 %v7382, %v7381
    %7399 = vmatpush.bf16.msra.mxu0 %v7390
    %7400 = vmatpush.bf16.msra.mxu0 %v7389
    %7401 = vmatpush.bf16.msra.mxu0 %v7388
    %7402 = vmatpush.bf16.msra.mxu0 %v7387
    %7403 = vmatpush.bf16.msra.mxu0 %v7386
    %7404 = vmatpush.bf16.msra.mxu0 %v7385
    %7405 = vmatpush.bf16.msra.mxu0 %v7384
    %7406 = vmatpush.bf16.msra.mxu0 %v7383
    %7407 = vmatmul.bf16.gmra.mxu0 %v7319
    %v7408 = vpop.f32.mrf.mxu0
    %v7409 = vadd.f32 0.0, %v7408
    %v7410 = vpop.f32.mrf.mxu0
    %v7411 = vadd.f32 0.0, %v7410
    %7412 = vmatmul.bf16.gmra.mxu0 %v7320
    %v7413 = vpop.f32.mrf.mxu0
    %v7414 = vadd.f32 0.0, %v7413
    %v7415 = vpop.f32.mrf.mxu0
    %v7416 = vadd.f32 0.0, %v7415
    %7417 = vmatmul.bf16.gmra.mxu0 %v7321
    %v7418 = vpop.f32.mrf.mxu0
    %v7419 = vadd.f32 0.0, %v7418
    %v7420 = vpop.f32.mrf.mxu0
    %v7421 = vadd.f32 0.0, %v7420
    %7422 = vmatmul.bf16.gmra.mxu0 %v7322
    %v7423 = vpop.f32.mrf.mxu0
    %v7424 = vadd.f32 0.0, %v7423
    %v7425 = vpop.f32.mrf.mxu0
    %v7426 = vadd.f32 0.0, %v7425
    %7427 = vmatmul.bf16.gmra.mxu0 %v7323
    %v7428 = vpop.f32.mrf.mxu0
    %v7429 = vadd.f32 0.0, %v7428
    %v7430 = vpop.f32.mrf.mxu0
    %v7431 = vadd.f32 0.0, %v7430
    %7432 = vmatmul.bf16.gmra.mxu0 %v7324
    %v7433 = vpop.f32.mrf.mxu0
    %v7434 = vadd.f32 0.0, %v7433
    %v7435 = vpop.f32.mrf.mxu0
    %v7436 = vadd.f32 0.0, %v7435
    %7437 = vmatmul.bf16.gmra.mxu0 %v7325
    %v7438 = vpop.f32.mrf.mxu0
    %v7439 = vadd.f32 0.0, %v7438
    %v7440 = vpop.f32.mrf.mxu0
    %v7441 = vadd.f32 0.0, %v7440
    %7442 = vmatmul.bf16.gmra.mxu0 %v7326
    %v7443 = vpop.f32.mrf.mxu0
    %v7444 = vadd.f32 0.0, %v7443
    %v7445 = vpop.f32.mrf.mxu0
    %v7446 = vadd.f32 0.0, %v7445
    %7447 = vmatmul.bf16.gmra.mxu0 %v7327
    %v7448 = vpop.f32.mrf.mxu0
    %v7449 = vadd.f32 0.0, %v7448
    %v7450 = vpop.f32.mrf.mxu0
    %v7451 = vadd.f32 0.0, %v7450
    %7452 = vmatmul.bf16.gmra.mxu0 %v7328
    %v7453 = vpop.f32.mrf.mxu0
    %v7454 = vadd.f32 0.0, %v7453
    %v7455 = vpop.f32.mrf.mxu0
    %v7456 = vadd.f32 0.0, %v7455
    %7457 = vmatmul.bf16.gmra.mxu0 %v7329
    %v7458 = vpop.f32.mrf.mxu0
    %v7459 = vadd.f32 0.0, %v7458
    %v7460 = vpop.f32.mrf.mxu0
    %v7461 = vadd.f32 0.0, %v7460
    %7462 = vmatmul.bf16.gmra.mxu0 %v7330
    %v7463 = vpop.f32.mrf.mxu0
    %v7464 = vadd.f32 0.0, %v7463
    %v7465 = vpop.f32.mrf.mxu0
    %v7466 = vadd.f32 0.0, %v7465
    %7467 = vmatmul.bf16.gmra.mxu0 %v7331
    %v7468 = vpop.f32.mrf.mxu0
    %v7469 = vadd.f32 0.0, %v7468
    %v7470 = vpop.f32.mrf.mxu0
    %v7471 = vadd.f32 0.0, %v7470
    %7472 = vmatmul.bf16.gmra.mxu0 %v7332
    %v7473 = vpop.f32.mrf.mxu0
    %v7474 = vadd.f32 0.0, %v7473
    %v7475 = vpop.f32.mrf.mxu0
    %v7476 = vadd.f32 0.0, %v7475
    %7477 = vmatmul.bf16.gmra.mxu0 %v7333
    %v7478 = vpop.f32.mrf.mxu0
    %v7479 = vadd.f32 0.0, %v7478
    %v7480 = vpop.f32.mrf.mxu0
    %v7481 = vadd.f32 0.0, %v7480
    %7482 = vmatmul.bf16.gmra.mxu0 %v7334
    %v7483 = vpop.f32.mrf.mxu0
    %v7484 = vadd.f32 0.0, %v7483
    %v7485 = vpop.f32.mrf.mxu0
    %v7486 = vadd.f32 0.0, %v7485
    %7487 = vdwg.mxu0
    %v7488 = vadd.f32 %v7098, %v7409
    %v7489 = vadd.f32 %v7099, %v7411
    %v7490 = vadd.f32 %v7100, %v7414
    %v7491 = vadd.f32 %v7101, %v7416
    %v7492 = vadd.f32 %v7102, %v7419
    %v7493 = vadd.f32 %v7103, %v7421
    %v7494 = vadd.f32 %v7104, %v7424
    %v7495 = vadd.f32 %v7105, %v7426
    %v7496 = vadd.f32 %v7106, %v7429
    %v7497 = vadd.f32 %v7107, %v7431
    %v7498 = vadd.f32 %v7108, %v7434
    %v7499 = vadd.f32 %v7109, %v7436
    %v7500 = vadd.f32 %v7110, %v7439
    %v7501 = vadd.f32 %v7111, %v7441
    %v7502 = vadd.f32 %v7112, %v7444
    %v7503 = vadd.f32 %v7113, %v7446
    %v7504 = vadd.f32 %v7114, %v7449
    %v7505 = vadd.f32 %v7115, %v7451
    %v7506 = vadd.f32 %v7116, %v7454
    %v7507 = vadd.f32 %v7117, %v7456
    %v7508 = vadd.f32 %v7118, %v7459
    %v7509 = vadd.f32 %v7119, %v7461
    %v7510 = vadd.f32 %v7120, %v7464
    %v7511 = vadd.f32 %v7121, %v7466
    %v7512 = vadd.f32 %v7122, %v7469
    %v7513 = vadd.f32 %v7123, %v7471
    %v7514 = vadd.f32 %v7124, %v7474
    %v7515 = vadd.f32 %v7125, %v7476
    %v7516 = vadd.f32 %v7126, %v7479
    %v7517 = vadd.f32 %v7127, %v7481
    %v7518 = vadd.f32 %v7128, %v7484
    %v7519 = vadd.f32 %v7129, %v7486
    %v7520 = vadd.f32 %v5264, %v7488
    %v7521 = vadd.f32 %v5265, %v7489
    %v7522 = vadd.f32 %v5266, %v7490
    %v7523 = vadd.f32 %v5267, %v7491
    %v7524 = vadd.f32 %v5268, %v7492
    %v7525 = vadd.f32 %v5269, %v7493
    %v7526 = vadd.f32 %v5270, %v7494
    %v7527 = vadd.f32 %v5271, %v7495
    %v7528 = vadd.f32 %v5272, %v7496
    %v7529 = vadd.f32 %v5273, %v7497
    %v7530 = vadd.f32 %v5274, %v7498
    %v7531 = vadd.f32 %v5275, %v7499
    %v7532 = vadd.f32 %v5276, %v7500
    %v7533 = vadd.f32 %v5277, %v7501
    %v7534 = vadd.f32 %v5278, %v7502
    %v7535 = vadd.f32 %v5279, %v7503
    %v7536 = vadd.f32 %v5280, %v7504
    %v7537 = vadd.f32 %v5281, %v7505
    %v7538 = vadd.f32 %v5282, %v7506
    %v7539 = vadd.f32 %v5283, %v7507
    %v7540 = vadd.f32 %v5284, %v7508
    %v7541 = vadd.f32 %v5285, %v7509
    %v7542 = vadd.f32 %v5286, %v7510
    %v7543 = vadd.f32 %v5287, %v7511
    %v7544 = vadd.f32 %v5288, %v7512
    %v7545 = vadd.f32 %v5289, %v7513
    %v7546 = vadd.f32 %v5290, %v7514
    %v7547 = vadd.f32 %v5291, %v7515
    %v7548 = vadd.f32 %v5292, %v7516
    %v7549 = vadd.f32 %v5293, %v7517
    %v7550 = vadd.f32 %v5294, %v7518
    %v7551 = vadd.f32 %v5295, %v7519
    %v7552 = vld [vmem:[#allocation14] sm:$0x1]
    %v7554 = vperm.slane %v7552, 0
    %v7556 = vadd.f32 %v7520, %v7554
    %v7557 = vadd.f32 %v7521, %v7554
    %v7558 = vadd.f32 %v7522, %v7554
    %v7559 = vadd.f32 %v7523, %v7554
    %v7560 = vadd.f32 %v7524, %v7554
    %v7561 = vadd.f32 %v7525, %v7554
    %v7562 = vadd.f32 %v7526, %v7554
    %v7563 = vadd.f32 %v7527, %v7554
    %v7564 = vadd.f32 %v7528, %v7554
    %v7565 = vadd.f32 %v7529, %v7554
    %v7566 = vadd.f32 %v7530, %v7554
    %v7567 = vadd.f32 %v7531, %v7554
    %v7568 = vadd.f32 %v7532, %v7554
    %v7569 = vadd.f32 %v7533, %v7554
    %v7570 = vadd.f32 %v7534, %v7554
    %v7571 = vadd.f32 %v7535, %v7554
    %v7572 = vadd.f32 %v7536, %v7554
    %v7573 = vadd.f32 %v7537, %v7554
    %v7574 = vadd.f32 %v7538, %v7554
    %v7575 = vadd.f32 %v7539, %v7554
    %v7576 = vadd.f32 %v7540, %v7554
    %v7577 = vadd.f32 %v7541, %v7554
    %v7578 = vadd.f32 %v7542, %v7554
    %v7579 = vadd.f32 %v7543, %v7554
    %v7580 = vadd.f32 %v7544, %v7554
    %v7581 = vadd.f32 %v7545, %v7554
    %v7582 = vadd.f32 %v7546, %v7554
    %v7583 = vadd.f32 %v7547, %v7554
    %v7584 = vadd.f32 %v7548, %v7554
    %v7585 = vadd.f32 %v7549, %v7554
    %v7586 = vadd.f32 %v7550, %v7554
    %v7587 = vadd.f32 %v7551, %v7554
    %7588 = vst [vmem:[#allocation15] sm:$0xff] %v7556
    %7589 = vst [vmem:[#allocation15 + $0x8] sm:$0xff] %v7557
    %7590 = vst [vmem:[#allocation15 + $0x10] sm:$0xff] %v7558
    %7591 = vst [vmem:[#allocation15 + $0x18] sm:$0xff] %v7559
    %7592 = vst [vmem:[#allocation15 + $0x20] sm:$0xff] %v7560
    %7593 = vst [vmem:[#allocation15 + $0x28] sm:$0xff] %v7561
    %7594 = vst [vmem:[#allocation15 + $0x30] sm:$0xff] %v7562
    %7595 = vst [vmem:[#allocation15 + $0x38] sm:$0xff] %v7563
    %7596 = vst [vmem:[#allocation15 + $0x40] sm:$0xff] %v7564
    %7597 = vst [vmem:[#allocation15 + $0x48] sm:$0xff] %v7565
    %7598 = vst [vmem:[#allocation15 + $0x50] sm:$0xff] %v7566
    %7599 = vst [vmem:[#allocation15 + $0x58] sm:$0xff] %v7567
    %7600 = vst [vmem:[#allocation15 + $0x60] sm:$0xff] %v7568
    %7601 = vst [vmem:[#allocation15 + $0x68] sm:$0xff] %v7569
    %7602 = vst [vmem:[#allocation15 + $0x70] sm:$0xff] %v7570
    %7603 = vst [vmem:[#allocation15 + $0x78] sm:$0xff] %v7571
    %7604 = vst [vmem:[#allocation15 + $0x80] sm:$0xff] %v7572
    %7605 = vst [vmem:[#allocation15 + $0x88] sm:$0xff] %v7573
    %7606 = vst [vmem:[#allocation15 + $0x90] sm:$0xff] %v7574
    %7607 = vst [vmem:[#allocation15 + $0x98] sm:$0xff] %v7575
    %7608 = vst [vmem:[#allocation15 + $0xa0] sm:$0xff] %v7576
    %7609 = vst [vmem:[#allocation15 + $0xa8] sm:$0xff] %v7577
    %7610 = vst [vmem:[#allocation15 + $0xb0] sm:$0xff] %v7578
    %7611 = vst [vmem:[#allocation15 + $0xb8] sm:$0xff] %v7579
    %7612 = vst [vmem:[#allocation15 + $0xc0] sm:$0xff] %v7580
    %7613 = vst [vmem:[#allocation15 + $0xc8] sm:$0xff] %v7581
    %7614 = vst [vmem:[#allocation15 + $0xd0] sm:$0xff] %v7582
    %7615 = vst [vmem:[#allocation15 + $0xd8] sm:$0xff] %v7583
    %7616 = vst [vmem:[#allocation15 + $0xe0] sm:$0xff] %v7584
    %7617 = vst [vmem:[#allocation15 + $0xe8] sm:$0xff] %v7585
    %7618 = vst [vmem:[#allocation15 + $0xf0] sm:$0xff] %v7586
    %7619 = vst [vmem:[#allocation15 + $0xf8] sm:$0xff] %v7587
    // Predicated region
    $region78: #{block_forward.1} parent=1 // pred_check
      _
    $region79: #{block_forward.1} parent=1 // pred_check_branch
      %7621 = sbr.rel (0) target = $region81
    $region80: #{block_forward.1} parent=1 // pred_region
      %7623 = vsyncadd [#allocation5], 0
      %s7624 = sshll.u32 [#allocation15], 4
      %s7625 = int_to_ptr.vmem [resolvable:$true] %s7624
      %s7626 = sshll.u32 %s12, 4
      %s7627 = int_to_ptr.hbm [resolvable:$true] %s7626
      %7632 = dma.vmem_to_hbm [thread:$0]  %s7625, 4096, %s7627, [#allocation5], 128, 128, 8
    $region81: #{block_forward.1} parent=1 // pred_fallthru
      _
    // Predicated region
    $region82: #{block_forward.1} parent=1 // pred_check
      _
    $region83: #{block_forward.1} parent=1 // pred_check_branch
      %7634 = sbr.rel (0) target = $region85
    $region84: #{block_forward.1} parent=1 // pred_region
      %7636 = dma.done [#allocation5], 4096
    $region85: #{block_forward.1} parent=1 // pred_fallthru
      _
    %7637 = vsyncpa [#allocation4], 1
    %7638 = vsyncpa [#allocation7], 1
    %7639 = vsyncpa [#allocation10], 1
    %7640 = vsyncpa [#allocation13], 1
    %7641 = vsyncpa [#allocation5], 1

</llo_original>
